<compile_context>
chip_gen: v6e
topology: v6e:2x2x1
jax: 0.10.0
libtpu: 0.0.40
codegen_flags: <defaults>
</compile_context>

<pallas_src>
import functools

import jax
import jax.numpy as jnp
from jax import lax
from jax.experimental import pallas as pl
from jax.experimental.pallas import tpu as pltpu


def _dsblock_kernel(x_ref, w_ref, gamma_ref, beta_ref, cg_ref, gc_ref,
                    o1_ref, o2_ref, slab_ref, acc_ref, *, inv_cnt, eps):
    """One batch element: fused dual Conv3x3 -> dual GroupNorm -> ReLU."""
    H, W, C = x_ref.shape
    C3 = 3 * C

    # ---- build the bf16 im2col slab: (H+2, W, 3C); channel blocks = kx shifts -------
    xf = x_ref[...]                                             # (H, W, C) native dtype
    col = lax.broadcasted_iota(jnp.int32, (H, W, C), 1)
    # left[h, w]  = x[h, w-1] (0 at w==0)      -> tap kx = 0
    # mid [h, w]  = x[h, w  ]                  -> tap kx = 1
    # right[h, w] = x[h, w+1] (0 at w==W-1)    -> tap kx = 2
    left = jnp.where(col >= 1, pltpu.roll(xf, 1, 1), 0).astype(slab_ref.dtype)
    right = jnp.where(col <= W - 2, pltpu.roll(xf, W - 1, 1), 0).astype(slab_ref.dtype)
    mid = xf.astype(slab_ref.dtype)

    # Zero only the two H-halo border planes; interior planes are fully overwritten.
    zplane = jnp.zeros((1, W, C3), dtype=slab_ref.dtype)
    slab_ref[pl.ds(0, 1), :, :] = zplane
    slab_ref[pl.ds(H + 1, 1), :, :] = zplane
    # Lane offsets 0 / C / 2C are 128-aligned; sublane extent is full W.
    slab_ref[pl.ds(1, H), :, pl.ds(0, C)] = left
    slab_ref[pl.ds(1, H), :, pl.ds(C, C)] = mid
    slab_ref[pl.ds(1, H), :, pl.ds(2 * C, C)] = right

    # ---- conv: 3 fused MXU matmuls (H*W, 3C) x (3C, 2C), f32 accumulation ------------
    for ky in range(3):
        xs = slab_ref[pl.ds(ky, H), :, :].reshape(H * W, C3)     # aligned plane slice
        p = jnp.dot(xs, w_ref[ky], preferred_element_type=jnp.float32)
        if ky == 0:
            acc_ref[...] = p                                     # no zero-init pass
        else:
            acc_ref[...] += p

    # ---- fused GroupNorm (2*G groups over 2C channels) + ReLU, two-pass variance -----
    acc = acc_ref[...]                                           # (H*W, 2C) f32
    ch_sum = jnp.sum(acc, axis=0, keepdims=True)                 # (1, 2C)
    mean_g = jnp.dot(ch_sum, cg_ref[...], preferred_element_type=jnp.float32) * inv_cnt
    mean_c = jnp.dot(mean_g, gc_ref[...], preferred_element_type=jnp.float32)   # (1, 2C)
    d = acc - mean_c
    ch_ss = jnp.sum(d * d, axis=0, keepdims=True)                # (1, 2C)
    var_g = jnp.dot(ch_ss, cg_ref[...], preferred_element_type=jnp.float32) * inv_cnt
    inv_std_c = jnp.dot(lax.rsqrt(var_g + eps), gc_ref[...],
                        preferred_element_type=jnp.float32)      # (1, 2C)
    scale = gamma_ref[...] * inv_std_c
    y = jnp.maximum(d * scale + beta_ref[...], 0.0)              # (H*W, 2C)

    # Lane-aligned channel split (branch 1 = [0,C), branch 2 = [C,2C)).
    o1_ref[...] = y[:, :C].reshape(o1_ref.shape).astype(o1_ref.dtype)
    o2_ref[...] = y[:, C:].reshape(o2_ref.shape).astype(o2_ref.dtype)


def dsblock_forward(x_nhwc, w1_oihw, w2_oihw, gamma1, beta1, gamma2, beta2,
                    *, num_groups=32, eps=1e-5):
    """DSBlock forward: two parallel Conv3x3(pad=1, no bias) -> GroupNorm(32) -> ReLU.

    x_nhwc:   (N, H, W, C) activations (channels-last).
    w*_oihw:  (C, C, 3, 3) conv weights in torch OIHW layout.
    gamma*/beta*: (C,) GroupNorm affine parameters.
    Returns (fnd, fpd), each (N, H, W, C).
    """
    N, H, W, C = x_nhwc.shape
    assert C % num_groups == 0, "GroupNorm requires C % num_groups == 0"
    cpg = C // num_groups
    C2, C3, G2 = 2 * C, 3 * C, 2 * num_groups

    # Fused weight: (ky, kx*C + cin, branch*C + cout) -> (3, 3C, 2C), bf16 for the MXU.
    t1 = jnp.transpose(w1_oihw, (2, 3, 1, 0))                    # (3, 3, Cin, Cout)
    t2 = jnp.transpose(w2_oihw, (2, 3, 1, 0))
    w_fused = jnp.concatenate([t1, t2], axis=-1).reshape(3, C3, C2).astype(jnp.bfloat16)

    gamma = jnp.concatenate([gamma1, gamma2]).reshape(1, C2).astype(jnp.float32)
    beta = jnp.concatenate([beta1, beta2]).reshape(1, C2).astype(jnp.float32)

    # Constant 0/1 channel<->group membership matrices over the fused 2C channels.
    ch = jnp.arange(C2)
    gr = jnp.arange(G2)
    cg_map = (ch[:, None] // cpg == gr[None, :]).astype(jnp.float32)   # (2C, 2G)
    gc_map = jnp.transpose(cg_map)                                     # (2G, 2C)

    kernel = functools.partial(
        _dsblock_kernel,
        inv_cnt=1.0 / float(H * W * cpg),
        eps=float(eps),
    )

    out_shape = (
        jax.ShapeDtypeStruct((N, H, W, C), x_nhwc.dtype),
        jax.ShapeDtypeStruct((N, H, W, C), x_nhwc.dtype),
    )

    # Per-step VMEM estimate -> explicit scoped limit (capped at v7x's 64 MiB physical).
    act = H * W * C * x_nhwc.dtype.itemsize
    vmem_est = (
        2 * act                              # input x, double-buffered
        + 2 * 2 * act                        # two outputs, double-buffered
        + 3 * C3 * C2 * 2                    # fused bf16 weights
        + (H + 2) * W * C3 * 2               # bf16 im2col slab scratch
        + H * W * C2 * 4                     # f32 accumulator scratch
        + 4 * C2 * max(G2, 8) * 4            # gamma/beta + group maps (generous)
    )
    vmem_limit = int(min(64 * 1024 * 1024,
                         max(int(1.5 * vmem_est) + (2 << 20), 24 << 20)))

    def build(single_buffer_consts):
        def const_spec(shape):
            idx = lambda b: (0,) * len(shape)
            if single_buffer_consts:
                # Grid-invariant blocks: single-buffer them to halve their VMEM cost.
                return pl.BlockSpec(shape, idx, pipeline_mode=pl.Buffered(1))
            return pl.BlockSpec(shape, idx)

        grid_spec = pltpu.PrefetchScalarGridSpec(
            num_scalar_prefetch=0,
            grid=(N,),
            in_specs=[
                pl.BlockSpec((None, H, W, C), lambda b: (b, 0, 0, 0)),   # x (one DMA)
                const_spec((3, C3, C2)),                                 # fused weights
                const_spec((1, C2)),                                     # gamma (fused)
                const_spec((1, C2)),                                     # beta  (fused)
                const_spec((C2, G2)),                                    # ch->group map
                const_spec((G2, C2)),                                    # group->ch map
            ],
            out_specs=[
                pl.BlockSpec((None, H, W, C), lambda b: (b, 0, 0, 0)),   # fnd
                pl.BlockSpec((None, H, W, C), lambda b: (b, 0, 0, 0)),   # fpd
            ],
            scratch_shapes=[
                pltpu.VMEM((H + 2, W, C3), jnp.bfloat16),   # im2col slab (H-halo only)
                pltpu.VMEM((H * W, C2), jnp.float32),       # fused f32 accumulator
            ],
        )
        return pl.pallas_call(
            kernel,
            out_shape=out_shape,
            grid_spec=grid_spec,
            compiler_params=pltpu.CompilerParams(
                dimension_semantics=("parallel",),   # batch axis -> both TCs on v7x
                vmem_limit_bytes=vmem_limit,
            ),
        )

    args = (x_nhwc, w_fused, gamma, beta, cg_map, gc_map)
    try:
        return build(True)(*args)
    except Exception:
        # pipeline_mode=pl.Buffered(1) unsupported on this jax/libtpu combination:
        # fall back to default double-buffering of the grid-invariant blocks.
        return build(False)(*args)


def dsblock_forward_nchw(x_nchw, w1, w2, gamma1, beta1, gamma2, beta2, **kw):
    """Torch-layout convenience wrapper (pays for its own activation transposes)."""
    x = jnp.transpose(x_nchw, (0, 2, 3, 1))
    fnd, fpd = dsblock_forward(x, w1, w2, gamma1, beta1, gamma2, beta2, **kw)
    return jnp.transpose(fnd, (0, 3, 1, 2)), jnp.transpose(fpd, (0, 3, 1, 2))


# ----------------------------- reference (pure JAX) -----------------------------
def _reference_branch(x_nhwc, w_oihw, gamma, beta, num_groups, eps):
    w_hwio = jnp.transpose(w_oihw, (2, 3, 1, 0))
    y = lax.conv_general_dilated(
        x_nhwc, w_hwio, window_strides=(1, 1), padding=((1, 1), (1, 1)),
        dimension_numbers=("NHWC", "HWIO", "NHWC"))
    N, H, W, C = y.shape
    cpg = C // num_groups
    yg = y.reshape(N, H, W, num_groups, cpg)
    mean = jnp.mean(yg, axis=(1, 2, 4), keepdims=True)
    var = jnp.mean((yg - mean) ** 2, axis=(1, 2, 4), keepdims=True)   # biased, like torch
    yn = ((yg - mean) / jnp.sqrt(var + eps)).reshape(N, H, W, C)
    return jnp.maximum(yn * gamma.reshape(1, 1, 1, C) + beta.reshape(1, 1, 1, C), 0.0)


def _rel_err(a, b):
    return float(jnp.linalg.norm((a - b).ravel()) / (jnp.linalg.norm(b.ravel()) + 1e-12))


if __name__ == "__main__":
    key = jax.random.PRNGKey(0)
    kx, kw1, kw2, kg1, kb1, kg2, kb2 = jax.random.split(key, 7)

    # GroupNorm(32, C) requires C % 32 == 0; C=128 keeps lanes dense / MXU-shaped.
    N, H, W, C = 2, 16, 16, 128
    x = jax.random.normal(kx, (N, H, W, C), jnp.float32)
    w1 = jax.random.normal(kw1, (C, C, 3, 3), jnp.float32) * 0.05   # torch OIHW layout
    w2 = jax.random.normal(kw2, (C, C, 3, 3), jnp.float32) * 0.05
    gamma1 = 1.0 + 0.1 * jax.random.normal(kg1, (C,), jnp.float32)
    beta1 = 0.1 * jax.random.normal(kb1, (C,), jnp.float32)
    gamma2 = 1.0 + 0.1 * jax.random.normal(kg2, (C,), jnp.float32)
    beta2 = 0.1 * jax.random.normal(kb2, (C,), jnp.float32)

    fnd, fpd = dsblock_forward(x, w1, w2, gamma1, beta1, gamma2, beta2)
    jax.block_until_ready((fnd, fpd))

    ref_fnd = _reference_branch(x, w1, gamma1, beta1, 32, 1e-5)
    ref_fpd = _reference_branch(x, w2, gamma2, beta2, 32, 1e-5)
    max1 = float(jnp.max(jnp.abs(fnd - ref_fnd)))
    max2 = float(jnp.max(jnp.abs(fpd - ref_fpd)))
    rel1 = _rel_err(fnd, ref_fnd)
    rel2 = _rel_err(fpd, ref_fpd)
    if not (max1 < 1e-1 and max2 < 1e-1 and rel1 < 3e-2 and rel2 < 3e-2):
        raise AssertionError(
            f"mismatch vs reference: max=({max1:.3e},{max2:.3e}) rel=({rel1:.3e},{rel2:.3e})")

    print("KERNEL_OK")
</pallas_src>

<mosaic_0001>
module attributes {stable_mosaic.version = 11 : i64} {
  func.func @_dsblock_kernel(%arg0: i32, %arg1: memref<1x16x16x128xf32, #tpu.memory_space<vmem>>, %arg2: memref<3x384x256xbf16, #tpu.memory_space<vmem>>, %arg3: memref<1x256xf32, #tpu.memory_space<vmem>>, %arg4: memref<1x256xf32, #tpu.memory_space<vmem>>, %arg5: memref<256x64xf32, #tpu.memory_space<vmem>>, %arg6: memref<64x256xf32, #tpu.memory_space<vmem>>, %arg7: memref<1x16x16x128xf32, #tpu.memory_space<vmem>>, %arg8: memref<1x16x16x128xf32, #tpu.memory_space<vmem>>, %arg9: memref<18x16x384xbf16, #tpu.memory_space<vmem>>, %arg10: memref<256x256xf32, #tpu.memory_space<vmem>>) attributes {dimension_semantics = [#tpu.dimension_semantics<parallel>], iteration_bounds = array<i64: 2>, scalar_prefetch = 0 : i64, scratch_operands = 2 : i64, tpu.core_type = #tpu.core_type<tc>, window_params = [{transform_indices = @transform_0, window_bounds = array<i64: 1, 16, 16, 128>}, {pipeline_mode = #tpu.pipeline_mode<synchronous>, transform_indices = @transform_1, window_bounds = array<i64: 3, 384, 256>}, {pipeline_mode = #tpu.pipeline_mode<synchronous>, transform_indices = @transform_2, window_bounds = array<i64: 1, 256>}, {pipeline_mode = #tpu.pipeline_mode<synchronous>, transform_indices = @transform_3, window_bounds = array<i64: 1, 256>}, {pipeline_mode = #tpu.pipeline_mode<synchronous>, transform_indices = @transform_4, window_bounds = array<i64: 256, 64>}, {pipeline_mode = #tpu.pipeline_mode<synchronous>, transform_indices = @transform_5, window_bounds = array<i64: 64, 256>}, {transform_indices = @transform_6, window_bounds = array<i64: 1, 16, 16, 128>}, {transform_indices = @transform_7, window_bounds = array<i64: 1, 16, 16, 128>}]} {
    %c0 = arith.constant 0 : index
    %c0_0 = arith.constant 0 : index
    %c0_1 = arith.constant 0 : index
    %c0_2 = arith.constant 0 : index
    %0 = vector.load %arg1[%c0, %c0_0, %c0_1, %c0_2] : memref<1x16x16x128xf32, #tpu.memory_space<vmem>>, vector<1x16x16x128xf32>
    %1 = vector.shape_cast %0 : vector<1x16x16x128xf32> to vector<16x16x128xf32>
    %2 = tpu.iota {dimensions = array<i32: 1>} : vector<16x16x128xi32>
    %c1_i32 = arith.constant 1 : i32
    %3 = vector.broadcast %c1_i32 : i32 to vector<16x16x128xi32>
    %4 = arith.cmpi sge, %2, %3 : vector<16x16x128xi32>
    %c1_i32_3 = arith.constant 1 : i32
    %5 = tpu.dynamic_rotate %1 by %c1_i32_3 dim 1 : vector<16x16x128xf32>, i32 -> vector<16x16x128xf32>
    %c0_i32 = arith.constant 0 : i32
    %6 = arith.sitofp %c0_i32 : i32 to f32
    %7 = vector.broadcast %6 : f32 to vector<16x16x128xf32>
    %8 = arith.select %4, %5, %7 : vector<16x16x128xi1>, vector<16x16x128xf32>
    %9 = arith.truncf %8 : vector<16x16x128xf32> to vector<16x16x128xbf16>
    %c14_i32 = arith.constant 14 : i32
    %10 = vector.broadcast %c14_i32 : i32 to vector<16x16x128xi32>
    %11 = arith.cmpi sle, %2, %10 : vector<16x16x128xi32>
    %c15_i32 = arith.constant 15 : i32
    %12 = tpu.dynamic_rotate %1 by %c15_i32 dim 1 : vector<16x16x128xf32>, i32 -> vector<16x16x128xf32>
    %c0_i32_4 = arith.constant 0 : i32
    %13 = arith.sitofp %c0_i32_4 : i32 to f32
    %14 = vector.broadcast %13 : f32 to vector<16x16x128xf32>
    %15 = arith.select %11, %12, %14 : vector<16x16x128xi1>, vector<16x16x128xf32>
    %16 = arith.truncf %15 : vector<16x16x128xf32> to vector<16x16x128xbf16>
    %17 = arith.truncf %1 : vector<16x16x128xf32> to vector<16x16x128xbf16>
    %cst = arith.constant 0.000000e+00 : bf16
    %18 = vector.broadcast %cst : bf16 to vector<1x16x384xbf16>
    %c0_5 = arith.constant 0 : index
    %c0_6 = arith.constant 0 : index
    %c0_7 = arith.constant 0 : index
    %19 = vector.load %arg9[%c0_5, %c0_6, %c0_7] : memref<18x16x384xbf16, #tpu.memory_space<vmem>>, vector<1x16x384xbf16>
    tpu.vector_store %arg9[%c0_5, %c0_6, %c0_7], %18 {strides = array<i32>} : memref<18x16x384xbf16, #tpu.memory_space<vmem>>, vector<1x16x384xbf16>,
    %c17 = arith.constant 17 : index
    %c0_8 = arith.constant 0 : index
    %c0_9 = arith.constant 0 : index
    %20 = vector.load %arg9[%c17, %c0_8, %c0_9] : memref<18x16x384xbf16, #tpu.memory_space<vmem>>, vector<1x16x384xbf16>
    tpu.vector_store %arg9[%c17, %c0_8, %c0_9], %18 {strides = array<i32>} : memref<18x16x384xbf16, #tpu.memory_space<vmem>>, vector<1x16x384xbf16>,
    %c1 = arith.constant 1 : index
    %c0_10 = arith.constant 0 : index
    %c0_11 = arith.constant 0 : index
    %21 = vector.load %arg9[%c1, %c0_10, %c0_11] : memref<18x16x384xbf16, #tpu.memory_space<vmem>>, vector<16x16x128xbf16>
    tpu.vector_store %arg9[%c1, %c0_10, %c0_11], %9 {strides = array<i32>} : memref<18x16x384xbf16, #tpu.memory_space<vmem>>, vector<16x16x128xbf16>,
    %c1_12 = arith.constant 1 : index
    %c0_13 = arith.constant 0 : index
    %c128 = arith.constant 128 : index
    %22 = vector.load %arg9[%c1_12, %c0_13, %c128] : memref<18x16x384xbf16, #tpu.memory_space<vmem>>, vector<16x16x128xbf16>
    tpu.vector_store %arg9[%c1_12, %c0_13, %c128], %17 {strides = array<i32>} : memref<18x16x384xbf16, #tpu.memory_space<vmem>>, vector<16x16x128xbf16>,
    %c1_14 = arith.constant 1 : index
    %c0_15 = arith.constant 0 : index
    %c256 = arith.constant 256 : index
    %23 = vector.load %arg9[%c1_14, %c0_15, %c256] : memref<18x16x384xbf16, #tpu.memory_space<vmem>>, vector<16x16x128xbf16>
    tpu.vector_store %arg9[%c1_14, %c0_15, %c256], %16 {strides = array<i32>} : memref<18x16x384xbf16, #tpu.memory_space<vmem>>, vector<16x16x128xbf16>,
    %c0_16 = arith.constant 0 : index
    %c0_17 = arith.constant 0 : index
    %c0_18 = arith.constant 0 : index
    %24 = vector.load %arg9[%c0_16, %c0_17, %c0_18] : memref<18x16x384xbf16, #tpu.memory_space<vmem>>, vector<16x16x384xbf16>
    %25 = vector.shape_cast %24 : vector<16x16x384xbf16> to vector<256x384xbf16>
    %c0_19 = arith.constant 0 : index
    %c0_20 = arith.constant 0 : index
    %c0_21 = arith.constant 0 : index
    %26 = vector.load %arg2[%c0_19, %c0_20, %c0_21] : memref<3x384x256xbf16, #tpu.memory_space<vmem>>, vector<1x384x256xbf16>
    %27 = vector.shape_cast %26 : vector<1x384x256xbf16> to vector<384x256xbf16>
    %cst_22 = arith.constant dense<0.000000e+00> : vector<256x256xf32>
    %28 = tpu.matmul %25, %27, %cst_22 {dimension_numbers = #tpu.dot_dimension_numbers<[1], [0], [0], [1], [0, 0, 1, 1], [], []>} : vector<256x384xbf16>, vector<384x256xbf16>, vector<256x256xf32> -> vector<256x256xf32>
    %c0_23 = arith.constant 0 : index
    %c0_24 = arith.constant 0 : index
    %29 = vector.load %arg10[%c0_23, %c0_24] : memref<256x256xf32, #tpu.memory_space<vmem>>, vector<256x256xf32>
    tpu.vector_store %arg10[%c0_23, %c0_24], %28 {strides = array<i32>} : memref<256x256xf32, #tpu.memory_space<vmem>>, vector<256x256xf32>,
    %c1_25 = arith.constant 1 : index
    %c0_26 = arith.constant 0 : index
    %c0_27 = arith.constant 0 : index
    %30 = vector.load %arg9[%c1_25, %c0_26, %c0_27] : memref<18x16x384xbf16, #tpu.memory_space<vmem>>, vector<16x16x384xbf16>
    %31 = vector.shape_cast %30 : vector<16x16x384xbf16> to vector<256x384xbf16>
    %c1_28 = arith.constant 1 : index
    %c0_29 = arith.constant 0 : index
    %c0_30 = arith.constant 0 : index
    %32 = vector.load %arg2[%c1_28, %c0_29, %c0_30] : memref<3x384x256xbf16, #tpu.memory_space<vmem>>, vector<1x384x256xbf16>
    %33 = vector.shape_cast %32 : vector<1x384x256xbf16> to vector<384x256xbf16>
    %cst_31 = arith.constant dense<0.000000e+00> : vector<256x256xf32>
    %34 = tpu.matmul %31, %33, %cst_31 {dimension_numbers = #tpu.dot_dimension_numbers<[1], [0], [0], [1], [0, 0, 1, 1], [], []>} : vector<256x384xbf16>, vector<384x256xbf16>, vector<256x256xf32> -> vector<256x256xf32>
    %c0_32 = arith.constant 0 : index
    %c0_33 = arith.constant 0 : index
    %35 = vector.load %arg10[%c0_32, %c0_33] : memref<256x256xf32, #tpu.memory_space<vmem>>, vector<256x256xf32>
    %36 = arith.addf %35, %34 : vector<256x256xf32>
    %c0_34 = arith.constant 0 : index
    %c0_35 = arith.constant 0 : index
    %37 = vector.load %arg10[%c0_34, %c0_35] : memref<256x256xf32, #tpu.memory_space<vmem>>, vector<256x256xf32>
    tpu.vector_store %arg10[%c0_34, %c0_35], %36 {strides = array<i32>} : memref<256x256xf32, #tpu.memory_space<vmem>>, vector<256x256xf32>,
    %c2 = arith.constant 2 : index
    %c0_36 = arith.constant 0 : index
    %c0_37 = arith.constant 0 : index
    %38 = vector.load %arg9[%c2, %c0_36, %c0_37] : memref<18x16x384xbf16, #tpu.memory_space<vmem>>, vector<16x16x384xbf16>
    %39 = vector.shape_cast %38 : vector<16x16x384xbf16> to vector<256x384xbf16>
    %c2_38 = arith.constant 2 : index
    %c0_39 = arith.constant 0 : index
    %c0_40 = arith.constant 0 : index
    %40 = vector.load %arg2[%c2_38, %c0_39, %c0_40] : memref<3x384x256xbf16, #tpu.memory_space<vmem>>, vector<1x384x256xbf16>
    %41 = vector.shape_cast %40 : vector<1x384x256xbf16> to vector<384x256xbf16>
    %cst_41 = arith.constant dense<0.000000e+00> : vector<256x256xf32>
    %42 = tpu.matmul %39, %41, %cst_41 {dimension_numbers = #tpu.dot_dimension_numbers<[1], [0], [0], [1], [0, 0, 1, 1], [], []>} : vector<256x384xbf16>, vector<384x256xbf16>, vector<256x256xf32> -> vector<256x256xf32>
    %c0_42 = arith.constant 0 : index
    %c0_43 = arith.constant 0 : index
    %43 = vector.load %arg10[%c0_42, %c0_43] : memref<256x256xf32, #tpu.memory_space<vmem>>, vector<256x256xf32>
    %44 = arith.addf %43, %42 : vector<256x256xf32>
    %c0_44 = arith.constant 0 : index
    %c0_45 = arith.constant 0 : index
    %45 = vector.load %arg10[%c0_44, %c0_45] : memref<256x256xf32, #tpu.memory_space<vmem>>, vector<256x256xf32>
    tpu.vector_store %arg10[%c0_44, %c0_45], %44 {strides = array<i32>} : memref<256x256xf32, #tpu.memory_space<vmem>>, vector<256x256xf32>,
    %c0_46 = arith.constant 0 : index
    %c0_47 = arith.constant 0 : index
    %46 = vector.load %arg10[%c0_46, %c0_47] : memref<256x256xf32, #tpu.memory_space<vmem>>, vector<256x256xf32>
    %cst_48 = arith.constant dense<0.000000e+00> : vector<256xf32>
    %47 = vector.multi_reduction <add>, %46, %cst_48 [0] : vector<256x256xf32> to vector<256xf32>
    %48 = vector.shape_cast %47 : vector<256xf32> to vector<1x256xf32>
    %c0_49 = arith.constant 0 : index
    %c0_50 = arith.constant 0 : index
    %49 = vector.load %arg5[%c0_49, %c0_50] : memref<256x64xf32, #tpu.memory_space<vmem>>, vector<256x64xf32>
    %cst_51 = arith.constant dense<0.000000e+00> : vector<1x64xf32>
    %50 = tpu.matmul %48, %49, %cst_51 {dimension_numbers = #tpu.dot_dimension_numbers<[1], [0], [0], [1], [0, 0, 1, 1], [], []>} : vector<1x256xf32>, vector<256x64xf32>, vector<1x64xf32> -> vector<1x64xf32>
    %cst_52 = arith.constant 9.765625E-4 : f32
    %51 = vector.broadcast %cst_52 : f32 to vector<1x64xf32>
    %52 = arith.mulf %50, %51 : vector<1x64xf32>
    %c0_53 = arith.constant 0 : index
    %c0_54 = arith.constant 0 : index
    %53 = vector.load %arg6[%c0_53, %c0_54] : memref<64x256xf32, #tpu.memory_space<vmem>>, vector<64x256xf32>
    %cst_55 = arith.constant dense<0.000000e+00> : vector<1x256xf32>
    %54 = tpu.matmul %52, %53, %cst_55 {dimension_numbers = #tpu.dot_dimension_numbers<[1], [0], [0], [1], [0, 0, 1, 1], [], []>} : vector<1x64xf32>, vector<64x256xf32>, vector<1x256xf32> -> vector<1x256xf32>
    %55 = vector.broadcast %54 : vector<1x256xf32> to vector<256x256xf32>
    %56 = arith.subf %46, %55 : vector<256x256xf32>
    %57 = arith.mulf %56, %56 : vector<256x256xf32>
    %cst_56 = arith.constant dense<0.000000e+00> : vector<256xf32>
    %58 = vector.multi_reduction <add>, %57, %cst_56 [0] : vector<256x256xf32> to vector<256xf32>
    %59 = vector.shape_cast %58 : vector<256xf32> to vector<1x256xf32>
    %c0_57 = arith.constant 0 : index
    %c0_58 = arith.constant 0 : index
    %60 = vector.load %arg5[%c0_57, %c0_58] : memref<256x64xf32, #tpu.memory_space<vmem>>, vector<256x64xf32>
    %cst_59 = arith.constant dense<0.000000e+00> : vector<1x64xf32>
    %61 = tpu.matmul %59, %60, %cst_59 {dimension_numbers = #tpu.dot_dimension_numbers<[1], [0], [0], [1], [0, 0, 1, 1], [], []>} : vector<1x256xf32>, vector<256x64xf32>, vector<1x64xf32> -> vector<1x64xf32>
    %cst_60 = arith.constant 9.765625E-4 : f32
    %62 = vector.broadcast %cst_60 : f32 to vector<1x64xf32>
    %63 = arith.mulf %61, %62 : vector<1x64xf32>
    %cst_61 = arith.constant 9.99999974E-6 : f32
    %64 = vector.broadcast %cst_61 : f32 to vector<1x64xf32>
    %65 = arith.addf %63, %64 : vector<1x64xf32>
    %66 = math.rsqrt %65 : vector<1x64xf32>
    %c0_62 = arith.constant 0 : index
    %c0_63 = arith.constant 0 : index
    %67 = vector.load %arg6[%c0_62, %c0_63] : memref<64x256xf32, #tpu.memory_space<vmem>>, vector<64x256xf32>
    %cst_64 = arith.constant dense<0.000000e+00> : vector<1x256xf32>
    %68 = tpu.matmul %66, %67, %cst_64 {dimension_numbers = #tpu.dot_dimension_numbers<[1], [0], [0], [1], [0, 0, 1, 1], [], []>} : vector<1x64xf32>, vector<64x256xf32>, vector<1x256xf32> -> vector<1x256xf32>
    %c0_65 = arith.constant 0 : index
    %c0_66 = arith.constant 0 : index
    %69 = vector.load %arg3[%c0_65, %c0_66] : memref<1x256xf32, #tpu.memory_space<vmem>>, vector<1x256xf32>
    %70 = arith.mulf %69, %68 : vector<1x256xf32>
    %71 = vector.broadcast %70 : vector<1x256xf32> to vector<256x256xf32>
    %72 = arith.mulf %56, %71 : vector<256x256xf32>
    %c0_67 = arith.constant 0 : index
    %c0_68 = arith.constant 0 : index
    %73 = vector.load %arg4[%c0_67, %c0_68] : memref<1x256xf32, #tpu.memory_space<vmem>>, vector<1x256xf32>
    %74 = vector.broadcast %73 : vector<1x256xf32> to vector<256x256xf32>
    %75 = arith.addf %72, %74 : vector<256x256xf32>
    %cst_69 = arith.constant 0.000000e+00 : f32
    %76 = vector.broadcast %cst_69 : f32 to vector<256x256xf32>
    %77 = arith.maximumf %75, %76 : vector<256x256xf32>
    %78 = vector.extract_strided_slice %77 {offsets = [0, 0], sizes = [256, 128], strides = [1, 1]} : vector<256x256xf32> to vector<256x128xf32>
    %79 = vector.shape_cast %78 : vector<256x128xf32> to vector<16x16x128xf32>
    %c0_70 = arith.constant 0 : index
    %c0_71 = arith.constant 0 : index
    %c0_72 = arith.constant 0 : index
    %c0_73 = arith.constant 0 : index
    %80 = vector.load %arg7[%c0_70, %c0_71, %c0_72, %c0_73] : memref<1x16x16x128xf32, #tpu.memory_space<vmem>>, vector<1x16x16x128xf32>
    %81 = vector.shape_cast %80 : vector<1x16x16x128xf32> to vector<16x16x128xf32>
    %82 = vector.shape_cast %79 : vector<16x16x128xf32> to vector<1x16x16x128xf32>
    tpu.vector_store %arg7[%c0_70, %c0_71, %c0_72, %c0_73], %82 {strides = array<i32>} : memref<1x16x16x128xf32, #tpu.memory_space<vmem>>, vector<1x16x16x128xf32>,
    %83 = vector.extract_strided_slice %77 {offsets = [0, 128], sizes = [256, 128], strides = [1, 1]} : vector<256x256xf32> to vector<256x128xf32>
    %84 = vector.shape_cast %83 : vector<256x128xf32> to vector<16x16x128xf32>
    %c0_74 = arith.constant 0 : index
    %c0_75 = arith.constant 0 : index
    %c0_76 = arith.constant 0 : index
    %c0_77 = arith.constant 0 : index
    %85 = vector.load %arg8[%c0_74, %c0_75, %c0_76, %c0_77] : memref<1x16x16x128xf32, #tpu.memory_space<vmem>>, vector<1x16x16x128xf32>
    %86 = vector.shape_cast %85 : vector<1x16x16x128xf32> to vector<16x16x128xf32>
    %87 = vector.shape_cast %84 : vector<16x16x128xf32> to vector<1x16x16x128xf32>
    tpu.vector_store %arg8[%c0_74, %c0_75, %c0_76, %c0_77], %87 {strides = array<i32>} : memref<1x16x16x128xf32, #tpu.memory_space<vmem>>, vector<1x16x16x128xf32>,
    return
  }
  func.func @transform_0(%arg0: i32) -> (i32, i32, i32, i32) {
    %c0_i32 = arith.constant 0 : i32
    %c0_i32_0 = arith.constant 0 : i32
    %c0_i32_1 = arith.constant 0 : i32
    %c0_i32_2 = arith.constant 0 : i32
    return %arg0, %c0_i32, %c0_i32_0, %c0_i32_1 : i32, i32, i32, i32
  }
  func.func @transform_1(%arg0: i32) -> (i32, i32, i32) {
    %c0_i32 = arith.constant 0 : i32
    %c0_i32_0 = arith.constant 0 : i32
    %c0_i32_1 = arith.constant 0 : i32
    %c0_i32_2 = arith.constant 0 : i32
    return %c0_i32, %c0_i32_0, %c0_i32_1 : i32, i32, i32
  }
  func.func @transform_2(%arg0: i32) -> (i32, i32) {
    %c0_i32 = arith.constant 0 : i32
    %c0_i32_0 = arith.constant 0 : i32
    %c0_i32_1 = arith.constant 0 : i32
    return %c0_i32, %c0_i32_0 : i32, i32
  }
  func.func @transform_3(%arg0: i32) -> (i32, i32) {
    %c0_i32 = arith.constant 0 : i32
    %c0_i32_0 = arith.constant 0 : i32
    %c0_i32_1 = arith.constant 0 : i32
    return %c0_i32, %c0_i32_0 : i32, i32
  }
  func.func @transform_4(%arg0: i32) -> (i32, i32) {
    %c0_i32 = arith.constant 0 : i32
    %c0_i32_0 = arith.constant 0 : i32
    %c0_i32_1 = arith.constant 0 : i32
    return %c0_i32, %c0_i32_0 : i32, i32
  }
  func.func @transform_5(%arg0: i32) -> (i32, i32) {
    %c0_i32 = arith.constant 0 : i32
    %c0_i32_0 = arith.constant 0 : i32
    %c0_i32_1 = arith.constant 0 : i32
    return %c0_i32, %c0_i32_0 : i32, i32
  }
  func.func @transform_6(%arg0: i32) -> (i32, i32, i32, i32) {
    %c0_i32 = arith.constant 0 : i32
    %c0_i32_0 = arith.constant 0 : i32
    %c0_i32_1 = arith.constant 0 : i32
    %c0_i32_2 = arith.constant 0 : i32
    return %arg0, %c0_i32, %c0_i32_0, %c0_i32_1 : i32, i32, i32, i32
  }
  func.func @transform_7(%arg0: i32) -> (i32, i32, i32, i32) {
    %c0_i32 = arith.constant 0 : i32
    %c0_i32_0 = arith.constant 0 : i32
    %c0_i32_1 = arith.constant 0 : i32
    %c0_i32_2 = arith.constant 0 : i32
    return %arg0, %c0_i32, %c0_i32_0, %c0_i32_1 : i32, i32, i32, i32
  }
}

module attributes {stable_mosaic.version = 11 : i64} {
  func.func @_dsblock_kernel(%arg0: i32, %arg1: memref<1x16x16x128xf32, #tpu.memory_space<vmem>>, %arg2: memref<3x384x256xbf16, #tpu.memory_space<vmem>>, %arg3: memref<1x256xf32, #tpu.memory_space<vmem>>, %arg4: memref<1x256xf32, #tpu.memory_space<vmem>>, %arg5: memref<256x64xf32, #tpu.memory_space<vmem>>, %arg6: memref<64x256xf32, #tpu.memory_space<vmem>>, %arg7: memref<1x16x16x128xf32, #tpu.memory_space<vmem>>, %arg8: memref<1x16x16x128xf32, #tpu.memory_space<vmem>>, %arg9: memref<18x16x384xbf16, #tpu.memory_space<vmem>>, %arg10: memref<256x256xf32, #tpu.memory_space<vmem>>) attributes {dimension_semantics = [#tpu.dimension_semantics<parallel>], iteration_bounds = array<i64: 2>, scalar_prefetch = 0 : i64, scratch_operands = 2 : i64, tpu.core_type = #tpu.core_type<tc>, window_params = [{transform_indices = @transform_0, window_bounds = array<i64: 1, 16, 16, 128>}, {pipeline_mode = #tpu.pipeline_mode<synchronous>, transform_indices = @transform_1, window_bounds = array<i64: 3, 384, 256>}, {pipeline_mode = #tpu.pipeline_mode<synchronous>, transform_indices = @transform_2, window_bounds = array<i64: 1, 256>}, {pipeline_mode = #tpu.pipeline_mode<synchronous>, transform_indices = @transform_3, window_bounds = array<i64: 1, 256>}, {pipeline_mode = #tpu.pipeline_mode<synchronous>, transform_indices = @transform_4, window_bounds = array<i64: 256, 64>}, {pipeline_mode = #tpu.pipeline_mode<synchronous>, transform_indices = @transform_5, window_bounds = array<i64: 64, 256>}, {transform_indices = @transform_6, window_bounds = array<i64: 1, 16, 16, 128>}, {transform_indices = @transform_7, window_bounds = array<i64: 1, 16, 16, 128>}]} {
    %c0 = arith.constant 0 : index
    %c0_0 = arith.constant 0 : index
    %c0_1 = arith.constant 0 : index
    %c0_2 = arith.constant 0 : index
    %0 = vector.load %arg1[%c0, %c0_0, %c0_1, %c0_2] : memref<1x16x16x128xf32, #tpu.memory_space<vmem>>, vector<1x16x16x128xf32>
    %1 = vector.shape_cast %0 : vector<1x16x16x128xf32> to vector<16x16x128xf32>
    %2 = tpu.iota {dimensions = array<i32: 1>} : vector<16x16x128xi32>
    %c1_i32 = arith.constant 1 : i32
    %3 = vector.broadcast %c1_i32 : i32 to vector<16x16x128xi32>
    %4 = arith.cmpi sge, %2, %3 : vector<16x16x128xi32>
    %c1_i32_3 = arith.constant 1 : i32
    %5 = tpu.dynamic_rotate %1 by %c1_i32_3 dim 1 : vector<16x16x128xf32>, i32 -> vector<16x16x128xf32>
    %c0_i32 = arith.constant 0 : i32
    %6 = arith.sitofp %c0_i32 : i32 to f32
    %7 = vector.broadcast %6 : f32 to vector<16x16x128xf32>
    %8 = arith.select %4, %5, %7 : vector<16x16x128xi1>, vector<16x16x128xf32>
    %9 = arith.truncf %8 : vector<16x16x128xf32> to vector<16x16x128xbf16>
    %c14_i32 = arith.constant 14 : i32
    %10 = vector.broadcast %c14_i32 : i32 to vector<16x16x128xi32>
    %11 = arith.cmpi sle, %2, %10 : vector<16x16x128xi32>
    %c15_i32 = arith.constant 15 : i32
    %12 = tpu.dynamic_rotate %1 by %c15_i32 dim 1 : vector<16x16x128xf32>, i32 -> vector<16x16x128xf32>
    %c0_i32_4 = arith.constant 0 : i32
    %13 = arith.sitofp %c0_i32_4 : i32 to f32
    %14 = vector.broadcast %13 : f32 to vector<16x16x128xf32>
    %15 = arith.select %11, %12, %14 : vector<16x16x128xi1>, vector<16x16x128xf32>
    %16 = arith.truncf %15 : vector<16x16x128xf32> to vector<16x16x128xbf16>
    %17 = arith.truncf %1 : vector<16x16x128xf32> to vector<16x16x128xbf16>
    %cst = arith.constant 0.000000e+00 : bf16
    %18 = vector.broadcast %cst : bf16 to vector<1x16x384xbf16>
    %c0_5 = arith.constant 0 : index
    %c0_6 = arith.constant 0 : index
    %c0_7 = arith.constant 0 : index
    %19 = vector.load %arg9[%c0_5, %c0_6, %c0_7] : memref<18x16x384xbf16, #tpu.memory_space<vmem>>, vector<1x16x384xbf16>
    tpu.vector_store %arg9[%c0_5, %c0_6, %c0_7], %18 {strides = array<i32>} : memref<18x16x384xbf16, #tpu.memory_space<vmem>>, vector<1x16x384xbf16>,
    %c17 = arith.constant 17 : index
    %c0_8 = arith.constant 0 : index
    %c0_9 = arith.constant 0 : index
    %20 = vector.load %arg9[%c17, %c0_8, %c0_9] : memref<18x16x384xbf16, #tpu.memory_space<vmem>>, vector<1x16x384xbf16>
    tpu.vector_store %arg9[%c17, %c0_8, %c0_9], %18 {strides = array<i32>} : memref<18x16x384xbf16, #tpu.memory_space<vmem>>, vector<1x16x384xbf16>,
    %c1 = arith.constant 1 : index
    %c0_10 = arith.constant 0 : index
    %c0_11 = arith.constant 0 : index
    %21 = vector.load %arg9[%c1, %c0_10, %c0_11] : memref<18x16x384xbf16, #tpu.memory_space<vmem>>, vector<16x16x128xbf16>
    tpu.vector_store %arg9[%c1, %c0_10, %c0_11], %9 {strides = array<i32>} : memref<18x16x384xbf16, #tpu.memory_space<vmem>>, vector<16x16x128xbf16>,
    %c1_12 = arith.constant 1 : index
    %c0_13 = arith.constant 0 : index
    %c128 = arith.constant 128 : index
    %22 = vector.load %arg9[%c1_12, %c0_13, %c128] : memref<18x16x384xbf16, #tpu.memory_space<vmem>>, vector<16x16x128xbf16>
    tpu.vector_store %arg9[%c1_12, %c0_13, %c128], %17 {strides = array<i32>} : memref<18x16x384xbf16, #tpu.memory_space<vmem>>, vector<16x16x128xbf16>,
    %c1_14 = arith.constant 1 : index
    %c0_15 = arith.constant 0 : index
    %c256 = arith.constant 256 : index
    %23 = vector.load %arg9[%c1_14, %c0_15, %c256] : memref<18x16x384xbf16, #tpu.memory_space<vmem>>, vector<16x16x128xbf16>
    tpu.vector_store %arg9[%c1_14, %c0_15, %c256], %16 {strides = array<i32>} : memref<18x16x384xbf16, #tpu.memory_space<vmem>>, vector<16x16x128xbf16>,
    %c0_16 = arith.constant 0 : index
    %c0_17 = arith.constant 0 : index
    %c0_18 = arith.constant 0 : index
    %24 = vector.load %arg9[%c0_16, %c0_17, %c0_18] : memref<18x16x384xbf16, #tpu.memory_space<vmem>>, vector<16x16x384xbf16>
    %25 = vector.shape_cast %24 : vector<16x16x384xbf16> to vector<256x384xbf16>
    %c0_19 = arith.constant 0 : index
    %c0_20 = arith.constant 0 : index
    %c0_21 = arith.constant 0 : index
    %26 = vector.load %arg2[%c0_19, %c0_20, %c0_21] : memref<3x384x256xbf16, #tpu.memory_space<vmem>>, vector<1x384x256xbf16>
    %27 = vector.shape_cast %26 : vector<1x384x256xbf16> to vector<384x256xbf16>
    %cst_22 = arith.constant dense<0.000000e+00> : vector<256x256xf32>
    %28 = tpu.matmul %25, %27, %cst_22 {dimension_numbers = #tpu.dot_dimension_numbers<[1], [0], [0], [1], [0, 0, 1, 1], [], []>} : vector<256x384xbf16>, vector<384x256xbf16>, vector<256x256xf32> -> vector<256x256xf32>
    %c0_23 = arith.constant 0 : index
    %c0_24 = arith.constant 0 : index
    %29 = vector.load %arg10[%c0_23, %c0_24] : memref<256x256xf32, #tpu.memory_space<vmem>>, vector<256x256xf32>
    tpu.vector_store %arg10[%c0_23, %c0_24], %28 {strides = array<i32>} : memref<256x256xf32, #tpu.memory_space<vmem>>, vector<256x256xf32>,
    %c1_25 = arith.constant 1 : index
    %c0_26 = arith.constant 0 : index
    %c0_27 = arith.constant 0 : index
    %30 = vector.load %arg9[%c1_25, %c0_26, %c0_27] : memref<18x16x384xbf16, #tpu.memory_space<vmem>>, vector<16x16x384xbf16>
    %31 = vector.shape_cast %30 : vector<16x16x384xbf16> to vector<256x384xbf16>
    %c1_28 = arith.constant 1 : index
    %c0_29 = arith.constant 0 : index
    %c0_30 = arith.constant 0 : index
    %32 = vector.load %arg2[%c1_28, %c0_29, %c0_30] : memref<3x384x256xbf16, #tpu.memory_space<vmem>>, vector<1x384x256xbf16>
    %33 = vector.shape_cast %32 : vector<1x384x256xbf16> to vector<384x256xbf16>
    %cst_31 = arith.constant dense<0.000000e+00> : vector<256x256xf32>
    %34 = tpu.matmul %31, %33, %cst_31 {dimension_numbers = #tpu.dot_dimension_numbers<[1], [0], [0], [1], [0, 0, 1, 1], [], []>} : vector<256x384xbf16>, vector<384x256xbf16>, vector<256x256xf32> -> vector<256x256xf32>
    %c0_32 = arith.constant 0 : index
    %c0_33 = arith.constant 0 : index
    %35 = vector.load %arg10[%c0_32, %c0_33] : memref<256x256xf32, #tpu.memory_space<vmem>>, vector<256x256xf32>
    %36 = arith.addf %35, %34 : vector<256x256xf32>
    %c0_34 = arith.constant 0 : index
    %c0_35 = arith.constant 0 : index
    %37 = vector.load %arg10[%c0_34, %c0_35] : memref<256x256xf32, #tpu.memory_space<vmem>>, vector<256x256xf32>
    tpu.vector_store %arg10[%c0_34, %c0_35], %36 {strides = array<i32>} : memref<256x256xf32, #tpu.memory_space<vmem>>, vector<256x256xf32>,
    %c2 = arith.constant 2 : index
    %c0_36 = arith.constant 0 : index
    %c0_37 = arith.constant 0 : index
    %38 = vector.load %arg9[%c2, %c0_36, %c0_37] : memref<18x16x384xbf16, #tpu.memory_space<vmem>>, vector<16x16x384xbf16>
    %39 = vector.shape_cast %38 : vector<16x16x384xbf16> to vector<256x384xbf16>
    %c2_38 = arith.constant 2 : index
    %c0_39 = arith.constant 0 : index
    %c0_40 = arith.constant 0 : index
    %40 = vector.load %arg2[%c2_38, %c0_39, %c0_40] : memref<3x384x256xbf16, #tpu.memory_space<vmem>>, vector<1x384x256xbf16>
    %41 = vector.shape_cast %40 : vector<1x384x256xbf16> to vector<384x256xbf16>
    %cst_41 = arith.constant dense<0.000000e+00> : vector<256x256xf32>
    %42 = tpu.matmul %39, %41, %cst_41 {dimension_numbers = #tpu.dot_dimension_numbers<[1], [0], [0], [1], [0, 0, 1, 1], [], []>} : vector<256x384xbf16>, vector<384x256xbf16>, vector<256x256xf32> -> vector<256x256xf32>
    %c0_42 = arith.constant 0 : index
    %c0_43 = arith.constant 0 : index
    %43 = vector.load %arg10[%c0_42, %c0_43] : memref<256x256xf32, #tpu.memory_space<vmem>>, vector<256x256xf32>
    %44 = arith.addf %43, %42 : vector<256x256xf32>
    %c0_44 = arith.constant 0 : index
    %c0_45 = arith.constant 0 : index
    %45 = vector.load %arg10[%c0_44, %c0_45] : memref<256x256xf32, #tpu.memory_space<vmem>>, vector<256x256xf32>
    tpu.vector_store %arg10[%c0_44, %c0_45], %44 {strides = array<i32>} : memref<256x256xf32, #tpu.memory_space<vmem>>, vector<256x256xf32>,
    %c0_46 = arith.constant 0 : index
    %c0_47 = arith.constant 0 : index
    %46 = vector.load %arg10[%c0_46, %c0_47] : memref<256x256xf32, #tpu.memory_space<vmem>>, vector<256x256xf32>
    %cst_48 = arith.constant dense<0.000000e+00> : vector<256xf32>
    %47 = vector.multi_reduction <add>, %46, %cst_48 [0] : vector<256x256xf32> to vector<256xf32>
    %48 = vector.shape_cast %47 : vector<256xf32> to vector<1x256xf32>
    %c0_49 = arith.constant 0 : index
    %c0_50 = arith.constant 0 : index
    %49 = vector.load %arg5[%c0_49, %c0_50] : memref<256x64xf32, #tpu.memory_space<vmem>>, vector<256x64xf32>
    %cst_51 = arith.constant dense<0.000000e+00> : vector<1x64xf32>
    %50 = tpu.matmul %48, %49, %cst_51 {dimension_numbers = #tpu.dot_dimension_numbers<[1], [0], [0], [1], [0, 0, 1, 1], [], []>} : vector<1x256xf32>, vector<256x64xf32>, vector<1x64xf32> -> vector<1x64xf32>
    %cst_52 = arith.constant 9.765625E-4 : f32
    %51 = vector.broadcast %cst_52 : f32 to vector<1x64xf32>
    %52 = arith.mulf %50, %51 : vector<1x64xf32>
    %c0_53 = arith.constant 0 : index
    %c0_54 = arith.constant 0 : index
    %53 = vector.load %arg6[%c0_53, %c0_54] : memref<64x256xf32, #tpu.memory_space<vmem>>, vector<64x256xf32>
    %cst_55 = arith.constant dense<0.000000e+00> : vector<1x256xf32>
    %54 = tpu.matmul %52, %53, %cst_55 {dimension_numbers = #tpu.dot_dimension_numbers<[1], [0], [0], [1], [0, 0, 1, 1], [], []>} : vector<1x64xf32>, vector<64x256xf32>, vector<1x256xf32> -> vector<1x256xf32>
    %55 = vector.broadcast %54 : vector<1x256xf32> to vector<256x256xf32>
    %56 = arith.subf %46, %55 : vector<256x256xf32>
    %57 = arith.mulf %56, %56 : vector<256x256xf32>
    %cst_56 = arith.constant dense<0.000000e+00> : vector<256xf32>
    %58 = vector.multi_reduction <add>, %57, %cst_56 [0] : vector<256x256xf32> to vector<256xf32>
    %59 = vector.shape_cast %58 : vector<256xf32> to vector<1x256xf32>
    %c0_57 = arith.constant 0 : index
    %c0_58 = arith.constant 0 : index
    %60 = vector.load %arg5[%c0_57, %c0_58] : memref<256x64xf32, #tpu.memory_space<vmem>>, vector<256x64xf32>
    %cst_59 = arith.constant dense<0.000000e+00> : vector<1x64xf32>
    %61 = tpu.matmul %59, %60, %cst_59 {dimension_numbers = #tpu.dot_dimension_numbers<[1], [0], [0], [1], [0, 0, 1, 1], [], []>} : vector<1x256xf32>, vector<256x64xf32>, vector<1x64xf32> -> vector<1x64xf32>
    %cst_60 = arith.constant 9.765625E-4 : f32
    %62 = vector.broadcast %cst_60 : f32 to vector<1x64xf32>
    %63 = arith.mulf %61, %62 : vector<1x64xf32>
    %cst_61 = arith.constant 9.99999974E-6 : f32
    %64 = vector.broadcast %cst_61 : f32 to vector<1x64xf32>
    %65 = arith.addf %63, %64 : vector<1x64xf32>
    %66 = math.rsqrt %65 : vector<1x64xf32>
    %c0_62 = arith.constant 0 : index
    %c0_63 = arith.constant 0 : index
    %67 = vector.load %arg6[%c0_62, %c0_63] : memref<64x256xf32, #tpu.memory_space<vmem>>, vector<64x256xf32>
    %cst_64 = arith.constant dense<0.000000e+00> : vector<1x256xf32>
    %68 = tpu.matmul %66, %67, %cst_64 {dimension_numbers = #tpu.dot_dimension_numbers<[1], [0], [0], [1], [0, 0, 1, 1], [], []>} : vector<1x64xf32>, vector<64x256xf32>, vector<1x256xf32> -> vector<1x256xf32>
    %c0_65 = arith.constant 0 : index
    %c0_66 = arith.constant 0 : index
    %69 = vector.load %arg3[%c0_65, %c0_66] : memref<1x256xf32, #tpu.memory_space<vmem>>, vector<1x256xf32>
    %70 = arith.mulf %69, %68 : vector<1x256xf32>
    %71 = vector.broadcast %70 : vector<1x256xf32> to vector<256x256xf32>
    %72 = arith.mulf %56, %71 : vector<256x256xf32>
    %c0_67 = arith.constant 0 : index
    %c0_68 = arith.constant 0 : index
    %73 = vector.load %arg4[%c0_67, %c0_68] : memref<1x256xf32, #tpu.memory_space<vmem>>, vector<1x256xf32>
    %74 = vector.broadcast %73 : vector<1x256xf32> to vector<256x256xf32>
    %75 = arith.addf %72, %74 : vector<256x256xf32>
    %cst_69 = arith.constant 0.000000e+00 : f32
    %76 = vector.broadcast %cst_69 : f32 to vector<256x256xf32>
    %77 = arith.maximumf %75, %76 : vector<256x256xf32>
    %78 = vector.extract_strided_slice %77 {offsets = [0, 0], sizes = [256, 128], strides = [1, 1]} : vector<256x256xf32> to vector<256x128xf32>
    %79 = vector.shape_cast %78 : vector<256x128xf32> to vector<16x16x128xf32>
    %c0_70 = arith.constant 0 : index
    %c0_71 = arith.constant 0 : index
    %c0_72 = arith.constant 0 : index
    %c0_73 = arith.constant 0 : index
    %80 = vector.load %arg7[%c0_70, %c0_71, %c0_72, %c0_73] : memref<1x16x16x128xf32, #tpu.memory_space<vmem>>, vector<1x16x16x128xf32>
    %81 = vector.shape_cast %80 : vector<1x16x16x128xf32> to vector<16x16x128xf32>
    %82 = vector.shape_cast %79 : vector<16x16x128xf32> to vector<1x16x16x128xf32>
    tpu.vector_store %arg7[%c0_70, %c0_71, %c0_72, %c0_73], %82 {strides = array<i32>} : memref<1x16x16x128xf32, #tpu.memory_space<vmem>>, vector<1x16x16x128xf32>,
    %83 = vector.extract_strided_slice %77 {offsets = [0, 128], sizes = [256, 128], strides = [1, 1]} : vector<256x256xf32> to vector<256x128xf32>
    %84 = vector.shape_cast %83 : vector<256x128xf32> to vector<16x16x128xf32>
    %c0_74 = arith.constant 0 : index
    %c0_75 = arith.constant 0 : index
    %c0_76 = arith.constant 0 : index
    %c0_77 = arith.constant 0 : index
    %85 = vector.load %arg8[%c0_74, %c0_75, %c0_76, %c0_77] : memref<1x16x16x128xf32, #tpu.memory_space<vmem>>, vector<1x16x16x128xf32>
    %86 = vector.shape_cast %85 : vector<1x16x16x128xf32> to vector<16x16x128xf32>
    %87 = vector.shape_cast %84 : vector<16x16x128xf32> to vector<1x16x16x128xf32>
    tpu.vector_store %arg8[%c0_74, %c0_75, %c0_76, %c0_77], %87 {strides = array<i32>} : memref<1x16x16x128xf32, #tpu.memory_space<vmem>>, vector<1x16x16x128xf32>,
    return
  }
  func.func @transform_0(%arg0: i32) -> (i32, i32, i32, i32) {
    %c0_i32 = arith.constant 0 : i32
    %c0_i32_0 = arith.constant 0 : i32
    %c0_i32_1 = arith.constant 0 : i32
    %c0_i32_2 = arith.constant 0 : i32
    return %arg0, %c0_i32, %c0_i32_0, %c0_i32_1 : i32, i32, i32, i32
  }
  func.func @transform_1(%arg0: i32) -> (i32, i32, i32) {
    %c0_i32 = arith.constant 0 : i32
    %c0_i32_0 = arith.constant 0 : i32
    %c0_i32_1 = arith.constant 0 : i32
    %c0_i32_2 = arith.constant 0 : i32
    return %c0_i32, %c0_i32_0, %c0_i32_1 : i32, i32, i32
  }
  func.func @transform_2(%arg0: i32) -> (i32, i32) {
    %c0_i32 = arith.constant 0 : i32
    %c0_i32_0 = arith.constant 0 : i32
    %c0_i32_1 = arith.constant 0 : i32
    return %c0_i32, %c0_i32_0 : i32, i32
  }
  func.func @transform_3(%arg0: i32) -> (i32, i32) {
    %c0_i32 = arith.constant 0 : i32
    %c0_i32_0 = arith.constant 0 : i32
    %c0_i32_1 = arith.constant 0 : i32
    return %c0_i32, %c0_i32_0 : i32, i32
  }
  func.func @transform_4(%arg0: i32) -> (i32, i32) {
    %c0_i32 = arith.constant 0 : i32
    %c0_i32_0 = arith.constant 0 : i32
    %c0_i32_1 = arith.constant 0 : i32
    return %c0_i32, %c0_i32_0 : i32, i32
  }
  func.func @transform_5(%arg0: i32) -> (i32, i32) {
    %c0_i32 = arith.constant 0 : i32
    %c0_i32_0 = arith.constant 0 : i32
    %c0_i32_1 = arith.constant 0 : i32
    return %c0_i32, %c0_i32_0 : i32, i32
  }
  func.func @transform_6(%arg0: i32) -> (i32, i32, i32, i32) {
    %c0_i32 = arith.constant 0 : i32
    %c0_i32_0 = arith.constant 0 : i32
    %c0_i32_1 = arith.constant 0 : i32
    %c0_i32_2 = arith.constant 0 : i32
    return %arg0, %c0_i32, %c0_i32_0, %c0_i32_1 : i32, i32, i32, i32
  }
  func.func @transform_7(%arg0: i32) -> (i32, i32, i32, i32) {
    %c0_i32 = arith.constant 0 : i32
    %c0_i32_0 = arith.constant 0 : i32
    %c0_i32_1 = arith.constant 0 : i32
    %c0_i32_2 = arith.constant 0 : i32
    return %arg0, %c0_i32, %c0_i32_0, %c0_i32_1 : i32, i32, i32, i32
  }
}

</mosaic_0001>

<llo_original>
// kernel: tpu_custom_call.1
$region0: #{tpu_custom_call.1}
  #allocation0 [shape = 'u32[]', space=smem, size = 0x4, offset = 0x4, fixed_abs, tag = 'smem constant byte address 0x4 - core index']
  #allocation1 [shape = 'u32[144,128]{1,0:T(1,128)}', space=vmem, size = 0x12000, scoped, tag = 'internal scratch']
  #allocation2 [shape = 'bf16[18,16,384]{2,1,0:T(8,128)(2,1)}', space=vmem, size = 0x36000, scoped, tag = 'scratch operand']
  #allocation3 [shape = 'f32[256,256]{1,0:T(8,128)}', space=vmem, size = 0x40000, scoped, tag = 'scratch operand']
  %s0 = inlined_call_operand.hbm [shape: f32[2,16,16,128], index: 0, kind: input, shape index: {}]
  %s1 = inlined_call_operand.hbm [shape: bf16[3,384,256], index: 1, kind: input, shape index: {}]
  %s2 = inlined_call_operand.vmem [shape: f32[1,256], index: 2, kind: input, shape index: {}]
  %s3 = inlined_call_operand.vmem [shape: f32[1,256], index: 3, kind: input, shape index: {}]
  %s4 = inlined_call_operand.vmem [shape: f32[256,64], index: 4, kind: input, shape index: {}]
  %s5 = inlined_call_operand.vmem [shape: f32[64,256], index: 5, kind: input, shape index: {}]
  %s6 = inlined_call_operand.hbm [shape: f32[2,16,16,128], index: 6, kind: output, shape index: {0}]
  %s7 = inlined_call_operand.hbm [shape: f32[2,16,16,128], index: 7, kind: output, shape index: {1}]
  %8 = xla_tuple %s6, %s7
  %s9 = sld [smem:[#allocation0]]
  $region73: #{tpu_custom_call.1} parent=0
    _
  %s11 = ssub.s32 1, %s9
  %s12 = scalar_select 0, %s11, %s9
  $region1: #{tpu_custom_call.1} parent=0
    #allocation4 [shape = 'u8[262144]{0}', space=vmem, size = 0x40000, scoped, tag = 'input window, operand 0']
    #allocation5 [shape = 's32[2]{0}', space=sflag, size = 0x8, scoped, tag = 'scoped memory for tpu_custom_call.1']
    #allocation6 [shape = 's32[2]{0}', space=sflag, size = 0x8, scoped, tag = 'scoped memory for tpu_custom_call.1']
    #allocation7 [shape = 'u8[589824]{0}', space=vmem, size = 0x90000, scoped, tag = 'input window, operand 1, single buffered']
    #allocation8 [shape = 's32[1]{0}', space=sflag, size = 0x4, scoped, tag = 'scoped memory for tpu_custom_call.1']
    #allocation9 [shape = 'u8[262144]{0}', space=vmem, size = 0x40000, scoped, tag = 'output window, operand 0']
    #allocation10 [shape = 'u8[262144]{0}', space=vmem, size = 0x40000, scoped, tag = 'output window, operand 1']
    #allocation11 [shape = 's32[2]{0}', space=sflag, size = 0x8, scoped, tag = 'scoped memory for tpu_custom_call.1']
    %13 = vsyncpa [#allocation5], 0
    %s14 = scalar_lea.sflag [#allocation5], 1
    %15 = vsyncpa %s14, 0
    %16 = vsyncpa [#allocation8], 0
    %17 = vsyncpa [#allocation6], 0
    %s18 = scalar_lea.sflag [#allocation6], 1
    %19 = vsyncpa %s18, 0
    %20 = vsyncpa [#allocation11], 0
    %s21 = scalar_lea.sflag [#allocation11], 1
    %22 = vsyncpa %s21, 0
    loop: start=0, step=1, limit=4
    $region2: #{tpu_custom_call.1} parent=1 // loop_pre_header
      _
    $region3: #{tpu_custom_call.1} parent=1 // loop_header
      %s24 = sphi 0, %s28
      %p25 = scmp.ge.s32.totalorder %s24, 4
      %s34 = sphi 0, %s36
      %s37 = sphi 0, %s34
      %s38 = sphi 0, %s37
      %s54 = sphi 0, %s38
      %s58 = sphi 0, %s58
      %s60 = sphi 0, %s58
      %s61 = sphi 0, %s60
      %s75 = sphi 0, %s61
      %s79 = sphi 0, %s79
      %s81 = sphi 0, %s79
      %s82 = sphi 0, %s81
      %s96 = sphi 0, %s82
      %s100 = sphi 0, %s100
      %s102 = sphi 0, %s100
      %s103 = sphi 0, %s102
      %s117 = sphi 0, %s103
      %s121 = sphi 0, %s121
      %s123 = sphi 0, %s121
      %s124 = sphi 0, %s123
      %s138 = sphi 0, %s124
      %s142 = sphi 0, %s142
      %s144 = sphi 0, %s142
      %s145 = sphi 0, %s144
      %s159 = sphi 0, %s145
      %s165 = sphi 0, %s167
      %s168 = sphi 0, %s165
      %s169 = sphi 0, %s168
      %s185 = sphi 0, %s169
      %s191 = sphi 0, %s193
      %s194 = sphi 0, %s191
      %s195 = sphi 0, %s194
      %s211 = sphi 0, %s195
    $region4: #{tpu_custom_call.1} parent=1 // loop_header_branch
      %27 = sbr.rel (%p25) target = $region8
    $region5: #{tpu_custom_call.1} parent=1 // loop_body
      %s29 = ssub.s32 %s24, 1
      %s30 = ssub.s32 %s24, 2
      %s31 = sadd.s32 %s24, 1
      %s32 = ssub.s32 %s24, %s31
      %p33 = scmp.eq.s32.totalorder %s32, 0
      %s35 = sadd.s32 %s34, 1
      %s36 = scalar_select %p33, %s34, %s35
      %p39 = pneg %p33
      %p40 = scmp.eq.s32.totalorder %s24, 1
      %p41 = por %p39, %p40
      %p42 = scmp.ne.s32.totalorder %s34, %s37
      %p43 = scmp.eq.s32.totalorder %s24, 0
      %p44 = por %p42, %p43
      %p45 = scmp.ne.s32.totalorder %s34, %s37
      %p46 = scmp.eq.s32.totalorder %s29, 1
      %p47 = por %p45, %p46
      %p48 = scmp.ne.s32.totalorder %s37, %s38
      %p49 = scmp.eq.s32.totalorder %s29, 0
      %p50 = por %p48, %p49
      %p51 = scmp.ne.s32.totalorder %s37, %s38
      %p52 = scmp.eq.s32.totalorder %s30, 1
      %p53 = por %p51, %p52
      %p55 = scmp.ne.s32.totalorder %s38, %s54
      %p56 = scmp.eq.s32.totalorder %s30, 0
      %p57 = por %p55, %p56
      %s59 = sadd.s32 %s58, 1
      %p62 = scmp.eq.s32.totalorder %s24, 1
      %p63 = scmp.ne.s32.totalorder %s58, %s60
      %p64 = scmp.eq.s32.totalorder %s24, 0
      %p65 = por %p63, %p64
      %p66 = scmp.ne.s32.totalorder %s58, %s60
      %p67 = scmp.eq.s32.totalorder %s29, 1
      %p68 = por %p66, %p67
      %p69 = scmp.ne.s32.totalorder %s60, %s61
      %p70 = scmp.eq.s32.totalorder %s29, 0
      %p71 = por %p69, %p70
      %p72 = scmp.ne.s32.totalorder %s60, %s61
      %p73 = scmp.eq.s32.totalorder %s30, 1
      %p74 = por %p72, %p73
      %p76 = scmp.ne.s32.totalorder %s61, %s75
      %p77 = scmp.eq.s32.totalorder %s30, 0
      %p78 = por %p76, %p77
      %s80 = sadd.s32 %s79, 1
      %p83 = scmp.eq.s32.totalorder %s24, 1
      %p84 = scmp.ne.s32.totalorder %s79, %s81
      %p85 = scmp.eq.s32.totalorder %s24, 0
      %p86 = por %p84, %p85
      %p87 = scmp.ne.s32.totalorder %s79, %s81
      %p88 = scmp.eq.s32.totalorder %s29, 1
      %p89 = por %p87, %p88
      %p90 = scmp.ne.s32.totalorder %s81, %s82
      %p91 = scmp.eq.s32.totalorder %s29, 0
      %p92 = por %p90, %p91
      %p93 = scmp.ne.s32.totalorder %s81, %s82
      %p94 = scmp.eq.s32.totalorder %s30, 1
      %p95 = por %p93, %p94
      %p97 = scmp.ne.s32.totalorder %s82, %s96
      %p98 = scmp.eq.s32.totalorder %s30, 0
      %p99 = por %p97, %p98
      %s101 = sadd.s32 %s100, 1
      %p104 = scmp.eq.s32.totalorder %s24, 1
      %p105 = scmp.ne.s32.totalorder %s100, %s102
      %p106 = scmp.eq.s32.totalorder %s24, 0
      %p107 = por %p105, %p106
      %p108 = scmp.ne.s32.totalorder %s100, %s102
      %p109 = scmp.eq.s32.totalorder %s29, 1
      %p110 = por %p108, %p109
      %p111 = scmp.ne.s32.totalorder %s102, %s103
      %p112 = scmp.eq.s32.totalorder %s29, 0
      %p113 = por %p111, %p112
      %p114 = scmp.ne.s32.totalorder %s102, %s103
      %p115 = scmp.eq.s32.totalorder %s30, 1
      %p116 = por %p114, %p115
      %p118 = scmp.ne.s32.totalorder %s103, %s117
      %p119 = scmp.eq.s32.totalorder %s30, 0
      %p120 = por %p118, %p119
      %s122 = sadd.s32 %s121, 1
      %p125 = scmp.eq.s32.totalorder %s24, 1
      %p126 = scmp.ne.s32.totalorder %s121, %s123
      %p127 = scmp.eq.s32.totalorder %s24, 0
      %p128 = por %p126, %p127
      %p129 = scmp.ne.s32.totalorder %s121, %s123
      %p130 = scmp.eq.s32.totalorder %s29, 1
      %p131 = por %p129, %p130
      %p132 = scmp.ne.s32.totalorder %s123, %s124
      %p133 = scmp.eq.s32.totalorder %s29, 0
      %p134 = por %p132, %p133
      %p135 = scmp.ne.s32.totalorder %s123, %s124
      %p136 = scmp.eq.s32.totalorder %s30, 1
      %p137 = por %p135, %p136
      %p139 = scmp.ne.s32.totalorder %s124, %s138
      %p140 = scmp.eq.s32.totalorder %s30, 0
      %p141 = por %p139, %p140
      %s143 = sadd.s32 %s142, 1
      %p146 = scmp.eq.s32.totalorder %s24, 1
      %p147 = scmp.ne.s32.totalorder %s142, %s144
      %p148 = scmp.eq.s32.totalorder %s24, 0
      %p149 = por %p147, %p148
      %p150 = scmp.ne.s32.totalorder %s142, %s144
      %p151 = scmp.eq.s32.totalorder %s29, 1
      %p152 = por %p150, %p151
      %p153 = scmp.ne.s32.totalorder %s144, %s145
      %p154 = scmp.eq.s32.totalorder %s29, 0
      %p155 = por %p153, %p154
      %p156 = scmp.ne.s32.totalorder %s144, %s145
      %p157 = scmp.eq.s32.totalorder %s30, 1
      %p158 = por %p156, %p157
      %p160 = scmp.ne.s32.totalorder %s145, %s159
      %p161 = scmp.eq.s32.totalorder %s30, 0
      %p162 = por %p160, %p161
      %s163 = ssub.s32 %s24, %s31
      %p164 = scmp.eq.s32.totalorder %s163, 0
      %s166 = sadd.s32 %s165, 1
      %s167 = scalar_select %p164, %s165, %s166
      %p170 = pneg %p164
      %p171 = scmp.eq.s32.totalorder %s24, 1
      %p172 = por %p170, %p171
      %p173 = scmp.ne.s32.totalorder %s165, %s168
      %p174 = scmp.eq.s32.totalorder %s24, 0
      %p175 = por %p173, %p174
      %p176 = scmp.ne.s32.totalorder %s165, %s168
      %p177 = scmp.eq.s32.totalorder %s29, 1
      %p178 = por %p176, %p177
      %p179 = scmp.ne.s32.totalorder %s168, %s169
      %p180 = scmp.eq.s32.totalorder %s29, 0
      %p181 = por %p179, %p180
      %p182 = scmp.ne.s32.totalorder %s168, %s169
      %p183 = scmp.eq.s32.totalorder %s30, 1
      %p184 = por %p182, %p183
      %p186 = scmp.ne.s32.totalorder %s169, %s185
      %p187 = scmp.eq.s32.totalorder %s30, 0
      %p188 = por %p186, %p187
      %s189 = ssub.s32 %s24, %s31
      %p190 = scmp.eq.s32.totalorder %s189, 0
      %s192 = sadd.s32 %s191, 1
      %s193 = scalar_select %p190, %s191, %s192
      %p196 = pneg %p190
      %p197 = scmp.eq.s32.totalorder %s24, 1
      %p198 = por %p196, %p197
      %p199 = scmp.ne.s32.totalorder %s191, %s194
      %p200 = scmp.eq.s32.totalorder %s24, 0
      %p201 = por %p199, %p200
      %p202 = scmp.ne.s32.totalorder %s191, %s194
      %p203 = scmp.eq.s32.totalorder %s29, 1
      %p204 = por %p202, %p203
      %p205 = scmp.ne.s32.totalorder %s194, %s195
      %p206 = scmp.eq.s32.totalorder %s29, 0
      %p207 = por %p205, %p206
      %p208 = scmp.ne.s32.totalorder %s194, %s195
      %p209 = scmp.eq.s32.totalorder %s30, 1
      %p210 = por %p208, %p209
      %p212 = scmp.ne.s32.totalorder %s195, %s211
      %p213 = scmp.eq.s32.totalorder %s30, 0
      %p214 = por %p212, %p213
      %p215 = scmp.le.s32.totalorder 1, %s24
      %p216 = scmp.lt.s32.totalorder %s24, 3
      %p217 = pnand %p215, %p216
      %p218 = pneg %p217
      // Predicated region
      $region9: #{tpu_custom_call.1} parent=5 // pred_check
        _
      $region10: #{tpu_custom_call.1} parent=5 // pred_check_branch
        %220 = sbr.rel (%p217) target = $region12
      $region11: #{tpu_custom_call.1} parent=5 // pred_region
        %s221 = ssub.s32 %s24, 1
        // Predicated region
        $region13: #{tpu_custom_call.1} parent=11 // pred_check
          %p222 = pneg %p71
        $region14: #{tpu_custom_call.1} parent=11 // pred_check_branch
          %224 = sbr.rel (%p222) target = $region16
        $region15: #{tpu_custom_call.1} parent=11 // pred_region
          %s226 = ssub.s32 18432, 18432
          %227 = vsyncadd [#allocation8], %s226
          %s228 = sshll.u32 [#allocation7], 4
          %s229 = int_to_ptr.vmem [resolvable:$true] %s228
          %234 = dma.hbm_to_vmem [thread:$0]  %s1, 18432, %s229, [#allocation8], 128, 128, 8
        $region16: #{tpu_custom_call.1} parent=11 // pred_fallthru
          _
        // Predicated region
        $region17: #{tpu_custom_call.1} parent=11 // pred_check
          %p235 = pneg %p92
        $region18: #{tpu_custom_call.1} parent=11 // pred_check_branch
          %237 = sbr.rel (%p235) target = $region20
        $region19: #{tpu_custom_call.1} parent=11 // pred_region
          _
        $region20: #{tpu_custom_call.1} parent=11 // pred_fallthru
          _
        // Predicated region
        $region21: #{tpu_custom_call.1} parent=11 // pred_check
          %p238 = pneg %p113
        $region22: #{tpu_custom_call.1} parent=11 // pred_check_branch
          %240 = sbr.rel (%p238) target = $region24
        $region23: #{tpu_custom_call.1} parent=11 // pred_region
          _
        $region24: #{tpu_custom_call.1} parent=11 // pred_fallthru
          _
        // Predicated region
        $region25: #{tpu_custom_call.1} parent=11 // pred_check
          %p241 = pneg %p134
        $region26: #{tpu_custom_call.1} parent=11 // pred_check_branch
          %243 = sbr.rel (%p241) target = $region28
        $region27: #{tpu_custom_call.1} parent=11 // pred_region
          _
        $region28: #{tpu_custom_call.1} parent=11 // pred_fallthru
          _
        // Predicated region
        $region29: #{tpu_custom_call.1} parent=11 // pred_check
          %p244 = pneg %p155
        $region30: #{tpu_custom_call.1} parent=11 // pred_check_branch
          %246 = sbr.rel (%p244) target = $region32
        $region31: #{tpu_custom_call.1} parent=11 // pred_region
          _
        $region32: #{tpu_custom_call.1} parent=11 // pred_fallthru
          _
      $region12: #{tpu_custom_call.1} parent=5 // pred_fallthru
        _
      %p247 = scmp.lt.s32.totalorder %s24, 2
      // Predicated region
      $region33: #{tpu_custom_call.1} parent=5 // pred_check
        %p248 = pneg %p247
      $region34: #{tpu_custom_call.1} parent=5 // pred_check_branch
        %250 = sbr.rel (%p248) target = $region36
      $region35: #{tpu_custom_call.1} parent=5 // pred_region
        // Predicated region
        $region37: #{tpu_custom_call.1} parent=35 // pred_check
          %p251 = pneg %p44
        $region38: #{tpu_custom_call.1} parent=35 // pred_check_branch
          %253 = sbr.rel (%p251) target = $region40
        $region39: #{tpu_custom_call.1} parent=35 // pred_region
          %s254 = sand.u32 %s34, 1
          %s255 = scalar_lea.sflag [#allocation5], %s254
          %s256 = sand.u32 %s34, 1
          %s257 = smul.addr %s256, 256
          %s258 = scalar_lea.vmem [#allocation4], %s257
          %s260 = ssub.s32 4096, 4096
          %261 = vsyncadd %s255, %s260
          %s262 = smul.addr %s24, 32
          %s263 = smul.addr %s262, 128
          %s264 = scalar_lea.hbm %s0, %s263
          %s265 = sshll.u32 %s258, 4
          %s266 = int_to_ptr.vmem [resolvable:$true] %s265
          %271 = dma.hbm_to_vmem [thread:$0]  %s264, 4096, %s266, %s255, 128, 128, 8
        $region40: #{tpu_custom_call.1} parent=35 // pred_fallthru
          _
      $region36: #{tpu_custom_call.1} parent=5 // pred_fallthru
        _
      %p272 = scmp.le.s32.totalorder 1, %s24
      %p273 = scmp.lt.s32.totalorder %s24, 3
      %p274 = pnand %p272, %p273
      %p275 = pneg %p274
      // Predicated region
      $region41: #{tpu_custom_call.1} parent=5 // pred_check
        _
      $region42: #{tpu_custom_call.1} parent=5 // pred_check_branch
        %277 = sbr.rel (%p274) target = $region44
      $region43: #{tpu_custom_call.1} parent=5 // pred_region
        %s278 = ssub.s32 %s24, 1
        %s279 = sand.u32 %s37, 1
        %s280 = scalar_lea.sflag [#allocation5], %s279
        %s281 = sand.u32 %s37, 1
        %s282 = smul.addr %s281, 256
        %s283 = scalar_lea.vmem [#allocation4], %s282
        // Predicated region
        $region45: #{tpu_custom_call.1} parent=43 // pred_check
          %p284 = pneg %p50
        $region46: #{tpu_custom_call.1} parent=43 // pred_check_branch
          %286 = sbr.rel (%p284) target = $region48
        $region47: #{tpu_custom_call.1} parent=43 // pred_region
          %287 = dma.done %s280, 4096
        $region48: #{tpu_custom_call.1} parent=43 // pred_fallthru
          _
        // Predicated region
        $region49: #{tpu_custom_call.1} parent=43 // pred_check
          %p288 = pneg %p71
        $region50: #{tpu_custom_call.1} parent=43 // pred_check_branch
          %290 = sbr.rel (%p288) target = $region52
        $region51: #{tpu_custom_call.1} parent=43 // pred_region
          %291 = dma.done [#allocation8], 18432
        $region52: #{tpu_custom_call.1} parent=43 // pred_fallthru
          _
        %s292 = sand.u32 %s37, 1
        %s293 = scalar_lea.sflag [#allocation5], %s292
        %s294 = sand.u32 %s37, 1
        %s295 = smul.addr %s294, 256
        %s296 = scalar_lea.vmem [#allocation4], %s295
        %p297 = pneg %p50
        %p298 = pneg %p47
        %p299 = pneg %p71
        %p300 = pneg %p68
        %p301 = pneg %p92
        %p302 = pneg %p89
        %p303 = pneg %p113
        %p304 = pneg %p110
        %p305 = pneg %p134
        %p306 = pneg %p131
        %p307 = pneg %p155
        %p308 = pneg %p152
        %p309 = pneg %p181
        %p310 = pneg %p178
        %s311 = sand.u32 %s168, 1
        %s312 = scalar_lea.sflag [#allocation6], %s311
        %s313 = sand.u32 %s168, 1
        %s314 = smul.addr %s313, 256
        %s315 = scalar_lea.vmem [#allocation9], %s314
        %p316 = pneg %p207
        %p317 = pneg %p204
        %s318 = sand.u32 %s194, 1
        %s319 = scalar_lea.sflag [#allocation11], %s318
        %s320 = sand.u32 %s194, 1
        %s321 = smul.addr %s320, 256
        %s322 = scalar_lea.vmem [#allocation10], %s321
        %v324 = vld [vmem:[%s283] sm:$0xff]
        %v325 = vld [vmem:[%s283 + $0x8] sm:$0xff]
        %v326 = vld [vmem:[%s283 + $0x10] sm:$0xff]
        %v327 = vld [vmem:[%s283 + $0x18] sm:$0xff]
        %v328 = vld [vmem:[%s283 + $0x20] sm:$0xff]
        %v329 = vld [vmem:[%s283 + $0x28] sm:$0xff]
        %v330 = vld [vmem:[%s283 + $0x30] sm:$0xff]
        %v331 = vld [vmem:[%s283 + $0x38] sm:$0xff]
        %v332 = vld [vmem:[%s283 + $0x40] sm:$0xff]
        %v333 = vld [vmem:[%s283 + $0x48] sm:$0xff]
        %v334 = vld [vmem:[%s283 + $0x50] sm:$0xff]
        %v335 = vld [vmem:[%s283 + $0x58] sm:$0xff]
        %v336 = vld [vmem:[%s283 + $0x60] sm:$0xff]
        %v337 = vld [vmem:[%s283 + $0x68] sm:$0xff]
        %v338 = vld [vmem:[%s283 + $0x70] sm:$0xff]
        %v339 = vld [vmem:[%s283 + $0x78] sm:$0xff]
        %v340 = vld [vmem:[%s283 + $0x80] sm:$0xff]
        %v341 = vld [vmem:[%s283 + $0x88] sm:$0xff]
        %v342 = vld [vmem:[%s283 + $0x90] sm:$0xff]
        %v343 = vld [vmem:[%s283 + $0x98] sm:$0xff]
        %v344 = vld [vmem:[%s283 + $0xa0] sm:$0xff]
        %v345 = vld [vmem:[%s283 + $0xa8] sm:$0xff]
        %v346 = vld [vmem:[%s283 + $0xb0] sm:$0xff]
        %v347 = vld [vmem:[%s283 + $0xb8] sm:$0xff]
        %v348 = vld [vmem:[%s283 + $0xc0] sm:$0xff]
        %v349 = vld [vmem:[%s283 + $0xc8] sm:$0xff]
        %v350 = vld [vmem:[%s283 + $0xd0] sm:$0xff]
        %v351 = vld [vmem:[%s283 + $0xd8] sm:$0xff]
        %v352 = vld [vmem:[%s283 + $0xe0] sm:$0xff]
        %v353 = vld [vmem:[%s283 + $0xe8] sm:$0xff]
        %v354 = vld [vmem:[%s283 + $0xf0] sm:$0xff]
        %v355 = vld [vmem:[%s283 + $0xf8] sm:$0xff]
        %v356 = vlaneseq
        %v357 = vshrl.u32 %v356, 7
        %v358 = vadd.s32 %v357, 8
        %vm359 = vcmp.ge.s32.totalorder %v357, 1
        %vm360 = vcmp.ge.s32.totalorder %v358, 1
        %v361 = vrot.slane %v324, 7
        %v362 = vrot.slane %v326, 7
        %v363 = vrot.slane %v328, 7
        %v364 = vrot.slane %v330, 7
        %v365 = vrot.slane %v332, 7
        %v366 = vrot.slane %v334, 7
        %v367 = vrot.slane %v336, 7
        %v368 = vrot.slane %v338, 7
        %v369 = vrot.slane %v340, 7
        %v370 = vrot.slane %v342, 7
        %v371 = vrot.slane %v344, 7
        %v372 = vrot.slane %v346, 7
        %v373 = vrot.slane %v348, 7
        %v374 = vrot.slane %v350, 7
        %v375 = vrot.slane %v352, 7
        %v376 = vrot.slane %v354, 7
        %v377 = vrot.slane %v325, 7
        %v378 = vrot.slane %v327, 7
        %v379 = vrot.slane %v329, 7
        %v380 = vrot.slane %v331, 7
        %v381 = vrot.slane %v333, 7
        %v382 = vrot.slane %v335, 7
        %v383 = vrot.slane %v337, 7
        %v384 = vrot.slane %v339, 7
        %v385 = vrot.slane %v341, 7
        %v386 = vrot.slane %v343, 7
        %v387 = vrot.slane %v345, 7
        %v388 = vrot.slane %v347, 7
        %v389 = vrot.slane %v349, 7
        %v390 = vrot.slane %v351, 7
        %v391 = vrot.slane %v353, 7
        %v392 = vrot.slane %v355, 7
        %vm393 = vcmp.lt.s32.totalorder %v357, 1
        %v394 = vsel %vm393, %v361, %v377
        %v395 = vsel %vm393, %v362, %v378
        %v396 = vsel %vm393, %v363, %v379
        %v397 = vsel %vm393, %v364, %v380
        %v398 = vsel %vm393, %v365, %v381
        %v399 = vsel %vm393, %v366, %v382
        %v400 = vsel %vm393, %v367, %v383
        %v401 = vsel %vm393, %v368, %v384
        %v402 = vsel %vm393, %v369, %v385
        %v403 = vsel %vm393, %v370, %v386
        %v404 = vsel %vm393, %v371, %v387
        %v405 = vsel %vm393, %v372, %v388
        %v406 = vsel %vm393, %v373, %v389
        %v407 = vsel %vm393, %v374, %v390
        %v408 = vsel %vm393, %v375, %v391
        %v409 = vsel %vm393, %v376, %v392
        %v410 = vsel %vm393, %v377, %v361
        %v411 = vsel %vm393, %v378, %v362
        %v412 = vsel %vm393, %v379, %v363
        %v413 = vsel %vm393, %v380, %v364
        %v414 = vsel %vm393, %v381, %v365
        %v415 = vsel %vm393, %v382, %v366
        %v416 = vsel %vm393, %v383, %v367
        %v417 = vsel %vm393, %v384, %v368
        %v418 = vsel %vm393, %v385, %v369
        %v419 = vsel %vm393, %v386, %v370
        %v420 = vsel %vm393, %v387, %v371
        %v421 = vsel %vm393, %v388, %v372
        %v422 = vsel %vm393, %v389, %v373
        %v423 = vsel %vm393, %v390, %v374
        %v424 = vsel %vm393, %v391, %v375
        %v425 = vsel %vm393, %v392, %v376
        %v426 = vsel %vm359, %v410, 0.0
        %v427 = vsel %vm360, %v394, 0.0
        %v428 = vsel %vm359, %v411, 0.0
        %v429 = vsel %vm360, %v395, 0.0
        %v430 = vsel %vm359, %v412, 0.0
        %v431 = vsel %vm360, %v396, 0.0
        %v432 = vsel %vm359, %v413, 0.0
        %v433 = vsel %vm360, %v397, 0.0
        %v434 = vsel %vm359, %v414, 0.0
        %v435 = vsel %vm360, %v398, 0.0
        %v436 = vsel %vm359, %v415, 0.0
        %v437 = vsel %vm360, %v399, 0.0
        %v438 = vsel %vm359, %v416, 0.0
        %v439 = vsel %vm360, %v400, 0.0
        %v440 = vsel %vm359, %v417, 0.0
        %v441 = vsel %vm360, %v401, 0.0
        %v442 = vsel %vm359, %v418, 0.0
        %v443 = vsel %vm360, %v402, 0.0
        %v444 = vsel %vm359, %v419, 0.0
        %v445 = vsel %vm360, %v403, 0.0
        %v446 = vsel %vm359, %v420, 0.0
        %v447 = vsel %vm360, %v404, 0.0
        %v448 = vsel %vm359, %v421, 0.0
        %v449 = vsel %vm360, %v405, 0.0
        %v450 = vsel %vm359, %v422, 0.0
        %v451 = vsel %vm360, %v406, 0.0
        %v452 = vsel %vm359, %v423, 0.0
        %v453 = vsel %vm360, %v407, 0.0
        %v454 = vsel %vm359, %v424, 0.0
        %v455 = vsel %vm360, %v408, 0.0
        %v456 = vsel %vm359, %v425, 0.0
        %v457 = vsel %vm360, %v409, 0.0
        %v458 = vpack.c.bf16 %v427, %v426
        %v459 = vpack.c.bf16 %v429, %v428
        %v460 = vpack.c.bf16 %v431, %v430
        %v461 = vpack.c.bf16 %v433, %v432
        %v462 = vpack.c.bf16 %v435, %v434
        %v463 = vpack.c.bf16 %v437, %v436
        %v464 = vpack.c.bf16 %v439, %v438
        %v465 = vpack.c.bf16 %v441, %v440
        %v466 = vpack.c.bf16 %v443, %v442
        %v467 = vpack.c.bf16 %v445, %v444
        %v468 = vpack.c.bf16 %v447, %v446
        %v469 = vpack.c.bf16 %v449, %v448
        %v470 = vpack.c.bf16 %v451, %v450
        %v471 = vpack.c.bf16 %v453, %v452
        %v472 = vpack.c.bf16 %v455, %v454
        %v473 = vpack.c.bf16 %v457, %v456
        %vm474 = vcmp.le.s32.totalorder %v357, 14
        %vm475 = vcmp.le.s32.totalorder %v358, 14
        %v476 = vrot.slane %v324, 1
        %v477 = vrot.slane %v326, 1
        %v478 = vrot.slane %v328, 1
        %v479 = vrot.slane %v330, 1
        %v480 = vrot.slane %v332, 1
        %v481 = vrot.slane %v334, 1
        %v482 = vrot.slane %v336, 1
        %v483 = vrot.slane %v338, 1
        %v484 = vrot.slane %v340, 1
        %v485 = vrot.slane %v342, 1
        %v486 = vrot.slane %v344, 1
        %v487 = vrot.slane %v346, 1
        %v488 = vrot.slane %v348, 1
        %v489 = vrot.slane %v350, 1
        %v490 = vrot.slane %v352, 1
        %v491 = vrot.slane %v354, 1
        %v492 = vrot.slane %v325, 1
        %v493 = vrot.slane %v327, 1
        %v494 = vrot.slane %v329, 1
        %v495 = vrot.slane %v331, 1
        %v496 = vrot.slane %v333, 1
        %v497 = vrot.slane %v335, 1
        %v498 = vrot.slane %v337, 1
        %v499 = vrot.slane %v339, 1
        %v500 = vrot.slane %v341, 1
        %v501 = vrot.slane %v343, 1
        %v502 = vrot.slane %v345, 1
        %v503 = vrot.slane %v347, 1
        %v504 = vrot.slane %v349, 1
        %v505 = vrot.slane %v351, 1
        %v506 = vrot.slane %v353, 1
        %v507 = vrot.slane %v355, 1
        %vm508 = vcmp.lt.s32.totalorder %v357, 7
        %v509 = vsel %vm508, %v476, %v492
        %v510 = vsel %vm508, %v477, %v493
        %v511 = vsel %vm508, %v478, %v494
        %v512 = vsel %vm508, %v479, %v495
        %v513 = vsel %vm508, %v480, %v496
        %v514 = vsel %vm508, %v481, %v497
        %v515 = vsel %vm508, %v482, %v498
        %v516 = vsel %vm508, %v483, %v499
        %v517 = vsel %vm508, %v484, %v500
        %v518 = vsel %vm508, %v485, %v501
        %v519 = vsel %vm508, %v486, %v502
        %v520 = vsel %vm508, %v487, %v503
        %v521 = vsel %vm508, %v488, %v504
        %v522 = vsel %vm508, %v489, %v505
        %v523 = vsel %vm508, %v490, %v506
        %v524 = vsel %vm508, %v491, %v507
        %v525 = vsel %vm508, %v492, %v476
        %v526 = vsel %vm508, %v493, %v477
        %v527 = vsel %vm508, %v494, %v478
        %v528 = vsel %vm508, %v495, %v479
        %v529 = vsel %vm508, %v496, %v480
        %v530 = vsel %vm508, %v497, %v481
        %v531 = vsel %vm508, %v498, %v482
        %v532 = vsel %vm508, %v499, %v483
        %v533 = vsel %vm508, %v500, %v484
        %v534 = vsel %vm508, %v501, %v485
        %v535 = vsel %vm508, %v502, %v486
        %v536 = vsel %vm508, %v503, %v487
        %v537 = vsel %vm508, %v504, %v488
        %v538 = vsel %vm508, %v505, %v489
        %v539 = vsel %vm508, %v506, %v490
        %v540 = vsel %vm508, %v507, %v491
        %v541 = vsel %vm474, %v509, 0.0
        %v542 = vsel %vm475, %v525, 0.0
        %v543 = vsel %vm474, %v510, 0.0
        %v544 = vsel %vm475, %v526, 0.0
        %v545 = vsel %vm474, %v511, 0.0
        %v546 = vsel %vm475, %v527, 0.0
        %v547 = vsel %vm474, %v512, 0.0
        %v548 = vsel %vm475, %v528, 0.0
        %v549 = vsel %vm474, %v513, 0.0
        %v550 = vsel %vm475, %v529, 0.0
        %v551 = vsel %vm474, %v514, 0.0
        %v552 = vsel %vm475, %v530, 0.0
        %v553 = vsel %vm474, %v515, 0.0
        %v554 = vsel %vm475, %v531, 0.0
        %v555 = vsel %vm474, %v516, 0.0
        %v556 = vsel %vm475, %v532, 0.0
        %v557 = vsel %vm474, %v517, 0.0
        %v558 = vsel %vm475, %v533, 0.0
        %v559 = vsel %vm474, %v518, 0.0
        %v560 = vsel %vm475, %v534, 0.0
        %v561 = vsel %vm474, %v519, 0.0
        %v562 = vsel %vm475, %v535, 0.0
        %v563 = vsel %vm474, %v520, 0.0
        %v564 = vsel %vm475, %v536, 0.0
        %v565 = vsel %vm474, %v521, 0.0
        %v566 = vsel %vm475, %v537, 0.0
        %v567 = vsel %vm474, %v522, 0.0
        %v568 = vsel %vm475, %v538, 0.0
        %v569 = vsel %vm474, %v523, 0.0
        %v570 = vsel %vm475, %v539, 0.0
        %v571 = vsel %vm474, %v524, 0.0
        %v572 = vsel %vm475, %v540, 0.0
        %v573 = vpack.c.bf16 %v542, %v541
        %v574 = vpack.c.bf16 %v544, %v543
        %v575 = vpack.c.bf16 %v546, %v545
        %v576 = vpack.c.bf16 %v548, %v547
        %v577 = vpack.c.bf16 %v550, %v549
        %v578 = vpack.c.bf16 %v552, %v551
        %v579 = vpack.c.bf16 %v554, %v553
        %v580 = vpack.c.bf16 %v556, %v555
        %v581 = vpack.c.bf16 %v558, %v557
        %v582 = vpack.c.bf16 %v560, %v559
        %v583 = vpack.c.bf16 %v562, %v561
        %v584 = vpack.c.bf16 %v564, %v563
        %v585 = vpack.c.bf16 %v566, %v565
        %v586 = vpack.c.bf16 %v568, %v567
        %v587 = vpack.c.bf16 %v570, %v569
        %v588 = vpack.c.bf16 %v572, %v571
        %v589 = vpack.c.bf16 %v325, %v324
        %v590 = vpack.c.bf16 %v327, %v326
        %v591 = vpack.c.bf16 %v329, %v328
        %v592 = vpack.c.bf16 %v331, %v330
        %v593 = vpack.c.bf16 %v333, %v332
        %v594 = vpack.c.bf16 %v335, %v334
        %v595 = vpack.c.bf16 %v337, %v336
        %v596 = vpack.c.bf16 %v339, %v338
        %v597 = vpack.c.bf16 %v341, %v340
        %v598 = vpack.c.bf16 %v343, %v342
        %v599 = vpack.c.bf16 %v345, %v344
        %v600 = vpack.c.bf16 %v347, %v346
        %v601 = vpack.c.bf16 %v349, %v348
        %v602 = vpack.c.bf16 %v351, %v350
        %v603 = vpack.c.bf16 %v353, %v352
        %v604 = vpack.c.bf16 %v355, %v354
        %605 = vst [vmem:[#allocation2] sm:$0xff] 0
        %606 = vst [vmem:[#allocation2 + $0x8] sm:$0xf] 0
        %607 = vst [vmem:[#allocation2 + $0xc] sm:$0xff] 0
        %608 = vst [vmem:[#allocation2 + $0x14] sm:$0xf] 0
        %s609 = scalar_lea.vmem [#allocation2], 408
        %610 = vst [vmem:[%s609] sm:$0xff] 0
        %611 = vst [vmem:[%s609 + $0x8] sm:$0xf] 0
        %612 = vst [vmem:[%s609 + $0xc] sm:$0xff] 0
        %613 = vst [vmem:[%s609 + $0x14] sm:$0xf] 0
        %v630 = vunpack.c.l.b16 %v458
        %v631 = vunpack.c.h.b16 %v458
        %v632 = vunpack.c.l.b16 %v459
        %v633 = vunpack.c.h.b16 %v459
        %v634 = vunpack.c.l.b16 %v460
        %v635 = vunpack.c.h.b16 %v460
        %v636 = vunpack.c.l.b16 %v461
        %v637 = vunpack.c.h.b16 %v461
        %v638 = vunpack.c.l.b16 %v462
        %v639 = vunpack.c.h.b16 %v462
        %v640 = vunpack.c.l.b16 %v463
        %v641 = vunpack.c.h.b16 %v463
        %v642 = vunpack.c.l.b16 %v464
        %v643 = vunpack.c.h.b16 %v464
        %v644 = vunpack.c.l.b16 %v465
        %v645 = vunpack.c.h.b16 %v465
        %v646 = vunpack.c.l.b16 %v466
        %v647 = vunpack.c.h.b16 %v466
        %v648 = vunpack.c.l.b16 %v467
        %v649 = vunpack.c.h.b16 %v467
        %v650 = vunpack.c.l.b16 %v468
        %v651 = vunpack.c.h.b16 %v468
        %v652 = vunpack.c.l.b16 %v469
        %v653 = vunpack.c.h.b16 %v469
        %v654 = vunpack.c.l.b16 %v470
        %v655 = vunpack.c.h.b16 %v470
        %v656 = vunpack.c.l.b16 %v471
        %v657 = vunpack.c.h.b16 %v471
        %v658 = vunpack.c.l.b16 %v472
        %v659 = vunpack.c.h.b16 %v472
        %v660 = vunpack.c.l.b16 %v473
        %v661 = vunpack.c.h.b16 %v473
        %v662 = vpack.c.b16 %v630, %v630
        %v663 = vpack.c.b16 %v631, %v631
        %v664 = vpack.c.b16 %v632, %v632
        %v665 = vpack.c.b16 %v633, %v633
        %v666 = vpack.c.b16 %v634, %v634
        %v667 = vpack.c.b16 %v635, %v635
        %v668 = vpack.c.b16 %v636, %v636
        %v669 = vpack.c.b16 %v637, %v637
        %v670 = vpack.c.b16 %v638, %v638
        %v671 = vpack.c.b16 %v639, %v639
        %v672 = vpack.c.b16 %v640, %v640
        %v673 = vpack.c.b16 %v641, %v641
        %v674 = vpack.c.b16 %v642, %v642
        %v675 = vpack.c.b16 %v643, %v643
        %v676 = vpack.c.b16 %v644, %v644
        %v677 = vpack.c.b16 %v645, %v645
        %v678 = vpack.c.b16 %v646, %v646
        %v679 = vpack.c.b16 %v647, %v647
        %v680 = vpack.c.b16 %v648, %v648
        %v681 = vpack.c.b16 %v649, %v649
        %v682 = vpack.c.b16 %v650, %v650
        %v683 = vpack.c.b16 %v651, %v651
        %v684 = vpack.c.b16 %v652, %v652
        %v685 = vpack.c.b16 %v653, %v653
        %v686 = vpack.c.b16 %v654, %v654
        %v687 = vpack.c.b16 %v655, %v655
        %v688 = vpack.c.b16 %v656, %v656
        %v689 = vpack.c.b16 %v657, %v657
        %v690 = vpack.c.b16 %v658, %v658
        %v691 = vpack.c.b16 %v659, %v659
        %v692 = vpack.c.b16 %v660, %v660
        %v693 = vpack.c.b16 %v661, %v661
        %s726 = scalar_lea.vmem [#allocation2], 24
        %727 = vst [vmem:[%s726] sm:$0xf] %v662
        %728 = vst [vmem:[%s726 + $0xc] sm:$0xf] %v663
        %729 = vst [vmem:[%s726 + $0x18] sm:$0xf] %v664
        %730 = vst [vmem:[%s726 + $0x24] sm:$0xf] %v665
        %731 = vst [vmem:[%s726 + $0x30] sm:$0xf] %v666
        %732 = vst [vmem:[%s726 + $0x3c] sm:$0xf] %v667
        %733 = vst [vmem:[%s726 + $0x48] sm:$0xf] %v668
        %734 = vst [vmem:[%s726 + $0x54] sm:$0xf] %v669
        %735 = vst [vmem:[%s726 + $0x60] sm:$0xf] %v670
        %736 = vst [vmem:[%s726 + $0x6c] sm:$0xf] %v671
        %737 = vst [vmem:[%s726 + $0x78] sm:$0xf] %v672
        %738 = vst [vmem:[%s726 + $0x84] sm:$0xf] %v673
        %739 = vst [vmem:[%s726 + $0x90] sm:$0xf] %v674
        %740 = vst [vmem:[%s726 + $0x9c] sm:$0xf] %v675
        %741 = vst [vmem:[%s726 + $0xa8] sm:$0xf] %v676
        %742 = vst [vmem:[%s726 + $0xb4] sm:$0xf] %v677
        %743 = vst [vmem:[%s726 + $0xc0] sm:$0xf] %v678
        %744 = vst [vmem:[%s726 + $0xcc] sm:$0xf] %v679
        %745 = vst [vmem:[%s726 + $0xd8] sm:$0xf] %v680
        %746 = vst [vmem:[%s726 + $0xe4] sm:$0xf] %v681
        %747 = vst [vmem:[%s726 + $0xf0] sm:$0xf] %v682
        %748 = vst [vmem:[%s726 + $0xfc] sm:$0xf] %v683
        %749 = vst [vmem:[%s726 + $0x108] sm:$0xf] %v684
        %750 = vst [vmem:[%s726 + $0x114] sm:$0xf] %v685
        %751 = vst [vmem:[%s726 + $0x120] sm:$0xf] %v686
        %752 = vst [vmem:[%s726 + $0x12c] sm:$0xf] %v687
        %753 = vst [vmem:[%s726 + $0x138] sm:$0xf] %v688
        %754 = vst [vmem:[%s726 + $0x144] sm:$0xf] %v689
        %755 = vst [vmem:[%s726 + $0x150] sm:$0xf] %v690
        %756 = vst [vmem:[%s726 + $0x15c] sm:$0xf] %v691
        %757 = vst [vmem:[%s726 + $0x168] sm:$0xf] %v692
        %758 = vst [vmem:[%s726 + $0x174] sm:$0xf] %v693
        %v775 = vunpack.c.l.b16 %v589
        %v776 = vunpack.c.h.b16 %v589
        %v777 = vunpack.c.l.b16 %v590
        %v778 = vunpack.c.h.b16 %v590
        %v779 = vunpack.c.l.b16 %v591
        %v780 = vunpack.c.h.b16 %v591
        %v781 = vunpack.c.l.b16 %v592
        %v782 = vunpack.c.h.b16 %v592
        %v783 = vunpack.c.l.b16 %v593
        %v784 = vunpack.c.h.b16 %v593
        %v785 = vunpack.c.l.b16 %v594
        %v786 = vunpack.c.h.b16 %v594
        %v787 = vunpack.c.l.b16 %v595
        %v788 = vunpack.c.h.b16 %v595
        %v789 = vunpack.c.l.b16 %v596
        %v790 = vunpack.c.h.b16 %v596
        %v791 = vunpack.c.l.b16 %v597
        %v792 = vunpack.c.h.b16 %v597
        %v793 = vunpack.c.l.b16 %v598
        %v794 = vunpack.c.h.b16 %v598
        %v795 = vunpack.c.l.b16 %v599
        %v796 = vunpack.c.h.b16 %v599
        %v797 = vunpack.c.l.b16 %v600
        %v798 = vunpack.c.h.b16 %v600
        %v799 = vunpack.c.l.b16 %v601
        %v800 = vunpack.c.h.b16 %v601
        %v801 = vunpack.c.l.b16 %v602
        %v802 = vunpack.c.h.b16 %v602
        %v803 = vunpack.c.l.b16 %v603
        %v804 = vunpack.c.h.b16 %v603
        %v805 = vunpack.c.l.b16 %v604
        %v806 = vunpack.c.h.b16 %v604
        %v807 = vpack.c.b16 %v775, %v775
        %v808 = vpack.c.b16 %v776, %v776
        %v809 = vpack.c.b16 %v777, %v777
        %v810 = vpack.c.b16 %v778, %v778
        %v811 = vpack.c.b16 %v779, %v779
        %v812 = vpack.c.b16 %v780, %v780
        %v813 = vpack.c.b16 %v781, %v781
        %v814 = vpack.c.b16 %v782, %v782
        %v815 = vpack.c.b16 %v783, %v783
        %v816 = vpack.c.b16 %v784, %v784
        %v817 = vpack.c.b16 %v785, %v785
        %v818 = vpack.c.b16 %v786, %v786
        %v819 = vpack.c.b16 %v787, %v787
        %v820 = vpack.c.b16 %v788, %v788
        %v821 = vpack.c.b16 %v789, %v789
        %v822 = vpack.c.b16 %v790, %v790
        %v823 = vpack.c.b16 %v791, %v791
        %v824 = vpack.c.b16 %v792, %v792
        %v825 = vpack.c.b16 %v793, %v793
        %v826 = vpack.c.b16 %v794, %v794
        %v827 = vpack.c.b16 %v795, %v795
        %v828 = vpack.c.b16 %v796, %v796
        %v829 = vpack.c.b16 %v797, %v797
        %v830 = vpack.c.b16 %v798, %v798
        %v831 = vpack.c.b16 %v799, %v799
        %v832 = vpack.c.b16 %v800, %v800
        %v833 = vpack.c.b16 %v801, %v801
        %v834 = vpack.c.b16 %v802, %v802
        %v835 = vpack.c.b16 %v803, %v803
        %v836 = vpack.c.b16 %v804, %v804
        %v837 = vpack.c.b16 %v805, %v805
        %v838 = vpack.c.b16 %v806, %v806
        %871 = vst [vmem:[%s726 + $0x4] sm:$0xf] %v807
        %872 = vst [vmem:[%s726 + $0x10] sm:$0xf] %v808
        %873 = vst [vmem:[%s726 + $0x1c] sm:$0xf] %v809
        %874 = vst [vmem:[%s726 + $0x28] sm:$0xf] %v810
        %875 = vst [vmem:[%s726 + $0x34] sm:$0xf] %v811
        %876 = vst [vmem:[%s726 + $0x40] sm:$0xf] %v812
        %877 = vst [vmem:[%s726 + $0x4c] sm:$0xf] %v813
        %878 = vst [vmem:[%s726 + $0x58] sm:$0xf] %v814
        %879 = vst [vmem:[%s726 + $0x64] sm:$0xf] %v815
        %880 = vst [vmem:[%s726 + $0x70] sm:$0xf] %v816
        %881 = vst [vmem:[%s726 + $0x7c] sm:$0xf] %v817
        %882 = vst [vmem:[%s726 + $0x88] sm:$0xf] %v818
        %883 = vst [vmem:[%s726 + $0x94] sm:$0xf] %v819
        %884 = vst [vmem:[%s726 + $0xa0] sm:$0xf] %v820
        %885 = vst [vmem:[%s726 + $0xac] sm:$0xf] %v821
        %886 = vst [vmem:[%s726 + $0xb8] sm:$0xf] %v822
        %887 = vst [vmem:[%s726 + $0xc4] sm:$0xf] %v823
        %888 = vst [vmem:[%s726 + $0xd0] sm:$0xf] %v824
        %889 = vst [vmem:[%s726 + $0xdc] sm:$0xf] %v825
        %890 = vst [vmem:[%s726 + $0xe8] sm:$0xf] %v826
        %891 = vst [vmem:[%s726 + $0xf4] sm:$0xf] %v827
        %892 = vst [vmem:[%s726 + $0x100] sm:$0xf] %v828
        %893 = vst [vmem:[%s726 + $0x10c] sm:$0xf] %v829
        %894 = vst [vmem:[%s726 + $0x118] sm:$0xf] %v830
        %895 = vst [vmem:[%s726 + $0x124] sm:$0xf] %v831
        %896 = vst [vmem:[%s726 + $0x130] sm:$0xf] %v832
        %897 = vst [vmem:[%s726 + $0x13c] sm:$0xf] %v833
        %898 = vst [vmem:[%s726 + $0x148] sm:$0xf] %v834
        %899 = vst [vmem:[%s726 + $0x154] sm:$0xf] %v835
        %900 = vst [vmem:[%s726 + $0x160] sm:$0xf] %v836
        %901 = vst [vmem:[%s726 + $0x16c] sm:$0xf] %v837
        %902 = vst [vmem:[%s726 + $0x178] sm:$0xf] %v838
        %v919 = vunpack.c.l.b16 %v573
        %v920 = vunpack.c.h.b16 %v573
        %v921 = vunpack.c.l.b16 %v574
        %v922 = vunpack.c.h.b16 %v574
        %v923 = vunpack.c.l.b16 %v575
        %v924 = vunpack.c.h.b16 %v575
        %v925 = vunpack.c.l.b16 %v576
        %v926 = vunpack.c.h.b16 %v576
        %v927 = vunpack.c.l.b16 %v577
        %v928 = vunpack.c.h.b16 %v577
        %v929 = vunpack.c.l.b16 %v578
        %v930 = vunpack.c.h.b16 %v578
        %v931 = vunpack.c.l.b16 %v579
        %v932 = vunpack.c.h.b16 %v579
        %v933 = vunpack.c.l.b16 %v580
        %v934 = vunpack.c.h.b16 %v580
        %v935 = vunpack.c.l.b16 %v581
        %v936 = vunpack.c.h.b16 %v581
        %v937 = vunpack.c.l.b16 %v582
        %v938 = vunpack.c.h.b16 %v582
        %v939 = vunpack.c.l.b16 %v583
        %v940 = vunpack.c.h.b16 %v583
        %v941 = vunpack.c.l.b16 %v584
        %v942 = vunpack.c.h.b16 %v584
        %v943 = vunpack.c.l.b16 %v585
        %v944 = vunpack.c.h.b16 %v585
        %v945 = vunpack.c.l.b16 %v586
        %v946 = vunpack.c.h.b16 %v586
        %v947 = vunpack.c.l.b16 %v587
        %v948 = vunpack.c.h.b16 %v587
        %v949 = vunpack.c.l.b16 %v588
        %v950 = vunpack.c.h.b16 %v588
        %v951 = vpack.c.b16 %v919, %v919
        %v952 = vpack.c.b16 %v920, %v920
        %v953 = vpack.c.b16 %v921, %v921
        %v954 = vpack.c.b16 %v922, %v922
        %v955 = vpack.c.b16 %v923, %v923
        %v956 = vpack.c.b16 %v924, %v924
        %v957 = vpack.c.b16 %v925, %v925
        %v958 = vpack.c.b16 %v926, %v926
        %v959 = vpack.c.b16 %v927, %v927
        %v960 = vpack.c.b16 %v928, %v928
        %v961 = vpack.c.b16 %v929, %v929
        %v962 = vpack.c.b16 %v930, %v930
        %v963 = vpack.c.b16 %v931, %v931
        %v964 = vpack.c.b16 %v932, %v932
        %v965 = vpack.c.b16 %v933, %v933
        %v966 = vpack.c.b16 %v934, %v934
        %v967 = vpack.c.b16 %v935, %v935
        %v968 = vpack.c.b16 %v936, %v936
        %v969 = vpack.c.b16 %v937, %v937
        %v970 = vpack.c.b16 %v938, %v938
        %v971 = vpack.c.b16 %v939, %v939
        %v972 = vpack.c.b16 %v940, %v940
        %v973 = vpack.c.b16 %v941, %v941
        %v974 = vpack.c.b16 %v942, %v942
        %v975 = vpack.c.b16 %v943, %v943
        %v976 = vpack.c.b16 %v944, %v944
        %v977 = vpack.c.b16 %v945, %v945
        %v978 = vpack.c.b16 %v946, %v946
        %v979 = vpack.c.b16 %v947, %v947
        %v980 = vpack.c.b16 %v948, %v948
        %v981 = vpack.c.b16 %v949, %v949
        %v982 = vpack.c.b16 %v950, %v950
        %1015 = vst [vmem:[%s726 + $0x8] sm:$0xf] %v951
        %1016 = vst [vmem:[%s726 + $0x14] sm:$0xf] %v952
        %1017 = vst [vmem:[%s726 + $0x20] sm:$0xf] %v953
        %1018 = vst [vmem:[%s726 + $0x2c] sm:$0xf] %v954
        %1019 = vst [vmem:[%s726 + $0x38] sm:$0xf] %v955
        %1020 = vst [vmem:[%s726 + $0x44] sm:$0xf] %v956
        %1021 = vst [vmem:[%s726 + $0x50] sm:$0xf] %v957
        %1022 = vst [vmem:[%s726 + $0x5c] sm:$0xf] %v958
        %1023 = vst [vmem:[%s726 + $0x68] sm:$0xf] %v959
        %1024 = vst [vmem:[%s726 + $0x74] sm:$0xf] %v960
        %1025 = vst [vmem:[%s726 + $0x80] sm:$0xf] %v961
        %1026 = vst [vmem:[%s726 + $0x8c] sm:$0xf] %v962
        %1027 = vst [vmem:[%s726 + $0x98] sm:$0xf] %v963
        %1028 = vst [vmem:[%s726 + $0xa4] sm:$0xf] %v964
        %1029 = vst [vmem:[%s726 + $0xb0] sm:$0xf] %v965
        %1030 = vst [vmem:[%s726 + $0xbc] sm:$0xf] %v966
        %1031 = vst [vmem:[%s726 + $0xc8] sm:$0xf] %v967
        %1032 = vst [vmem:[%s726 + $0xd4] sm:$0xf] %v968
        %1033 = vst [vmem:[%s726 + $0xe0] sm:$0xf] %v969
        %1034 = vst [vmem:[%s726 + $0xec] sm:$0xf] %v970
        %1035 = vst [vmem:[%s726 + $0xf8] sm:$0xf] %v971
        %1036 = vst [vmem:[%s726 + $0x104] sm:$0xf] %v972
        %1037 = vst [vmem:[%s726 + $0x110] sm:$0xf] %v973
        %1038 = vst [vmem:[%s726 + $0x11c] sm:$0xf] %v974
        %1039 = vst [vmem:[%s726 + $0x128] sm:$0xf] %v975
        %1040 = vst [vmem:[%s726 + $0x134] sm:$0xf] %v976
        %1041 = vst [vmem:[%s726 + $0x140] sm:$0xf] %v977
        %1042 = vst [vmem:[%s726 + $0x14c] sm:$0xf] %v978
        %1043 = vst [vmem:[%s726 + $0x158] sm:$0xf] %v979
        %1044 = vst [vmem:[%s726 + $0x164] sm:$0xf] %v980
        %1045 = vst [vmem:[%s726 + $0x170] sm:$0xf] %v981
        %1046 = vst [vmem:[%s726 + $0x17c] sm:$0xf] %v982
        %v1047 = vld [vmem:[#allocation2] sm:$0xff]
        %v1048 = vld [vmem:[#allocation2 + $0x8] sm:$0xf]
        %v1049 = vld [vmem:[#allocation2 + $0xc] sm:$0xff]
        %v1050 = vld [vmem:[#allocation2 + $0x14] sm:$0xf]
        %v1051 = vld [vmem:[#allocation2 + $0x18] sm:$0xff]
        %v1052 = vld [vmem:[#allocation2 + $0x20] sm:$0xf]
        %v1053 = vld [vmem:[#allocation2 + $0x24] sm:$0xff]
        %v1054 = vld [vmem:[#allocation2 + $0x2c] sm:$0xf]
        %v1055 = vld [vmem:[#allocation2 + $0x30] sm:$0xff]
        %v1056 = vld [vmem:[#allocation2 + $0x38] sm:$0xf]
        %v1057 = vld [vmem:[#allocation2 + $0x3c] sm:$0xff]
        %v1058 = vld [vmem:[#allocation2 + $0x44] sm:$0xf]
        %v1059 = vld [vmem:[#allocation2 + $0x48] sm:$0xff]
        %v1060 = vld [vmem:[#allocation2 + $0x50] sm:$0xf]
        %v1061 = vld [vmem:[#allocation2 + $0x54] sm:$0xff]
        %v1062 = vld [vmem:[#allocation2 + $0x5c] sm:$0xf]
        %v1063 = vld [vmem:[#allocation2 + $0x60] sm:$0xff]
        %v1064 = vld [vmem:[#allocation2 + $0x68] sm:$0xf]
        %v1065 = vld [vmem:[#allocation2 + $0x6c] sm:$0xff]
        %v1066 = vld [vmem:[#allocation2 + $0x74] sm:$0xf]
        %v1067 = vld [vmem:[#allocation2 + $0x78] sm:$0xff]
        %v1068 = vld [vmem:[#allocation2 + $0x80] sm:$0xf]
        %v1069 = vld [vmem:[#allocation2 + $0x84] sm:$0xff]
        %v1070 = vld [vmem:[#allocation2 + $0x8c] sm:$0xf]
        %v1071 = vld [vmem:[#allocation2 + $0x90] sm:$0xff]
        %v1072 = vld [vmem:[#allocation2 + $0x98] sm:$0xf]
        %v1073 = vld [vmem:[#allocation2 + $0x9c] sm:$0xff]
        %v1074 = vld [vmem:[#allocation2 + $0xa4] sm:$0xf]
        %v1075 = vld [vmem:[#allocation2 + $0xa8] sm:$0xff]
        %v1076 = vld [vmem:[#allocation2 + $0xb0] sm:$0xf]
        %v1077 = vld [vmem:[#allocation2 + $0xb4] sm:$0xff]
        %v1078 = vld [vmem:[#allocation2 + $0xbc] sm:$0xf]
        %v1079 = vld [vmem:[#allocation2 + $0xc0] sm:$0xff]
        %v1080 = vld [vmem:[#allocation2 + $0xc8] sm:$0xf]
        %v1081 = vld [vmem:[#allocation2 + $0xcc] sm:$0xff]
        %v1082 = vld [vmem:[#allocation2 + $0xd4] sm:$0xf]
        %v1083 = vld [vmem:[#allocation2 + $0xd8] sm:$0xff]
        %v1084 = vld [vmem:[#allocation2 + $0xe0] sm:$0xf]
        %v1085 = vld [vmem:[#allocation2 + $0xe4] sm:$0xff]
        %v1086 = vld [vmem:[#allocation2 + $0xec] sm:$0xf]
        %v1087 = vld [vmem:[#allocation2 + $0xf0] sm:$0xff]
        %v1088 = vld [vmem:[#allocation2 + $0xf8] sm:$0xf]
        %v1089 = vld [vmem:[#allocation2 + $0xfc] sm:$0xff]
        %v1090 = vld [vmem:[#allocation2 + $0x104] sm:$0xf]
        %v1091 = vld [vmem:[#allocation2 + $0x108] sm:$0xff]
        %v1092 = vld [vmem:[#allocation2 + $0x110] sm:$0xf]
        %v1093 = vld [vmem:[#allocation2 + $0x114] sm:$0xff]
        %v1094 = vld [vmem:[#allocation2 + $0x11c] sm:$0xf]
        %v1095 = vld [vmem:[#allocation2 + $0x120] sm:$0xff]
        %v1096 = vld [vmem:[#allocation2 + $0x128] sm:$0xf]
        %v1097 = vld [vmem:[#allocation2 + $0x12c] sm:$0xff]
        %v1098 = vld [vmem:[#allocation2 + $0x134] sm:$0xf]
        %v1099 = vld [vmem:[#allocation2 + $0x138] sm:$0xff]
        %v1100 = vld [vmem:[#allocation2 + $0x140] sm:$0xf]
        %v1101 = vld [vmem:[#allocation2 + $0x144] sm:$0xff]
        %v1102 = vld [vmem:[#allocation2 + $0x14c] sm:$0xf]
        %v1103 = vld [vmem:[#allocation2 + $0x150] sm:$0xff]
        %v1104 = vld [vmem:[#allocation2 + $0x158] sm:$0xf]
        %v1105 = vld [vmem:[#allocation2 + $0x15c] sm:$0xff]
        %v1106 = vld [vmem:[#allocation2 + $0x164] sm:$0xf]
        %v1107 = vld [vmem:[#allocation2 + $0x168] sm:$0xff]
        %v1108 = vld [vmem:[#allocation2 + $0x170] sm:$0xf]
        %v1109 = vld [vmem:[#allocation2 + $0x174] sm:$0xff]
        %v1110 = vld [vmem:[#allocation2 + $0x17c] sm:$0xf]
        %v1111 = vld [vmem:[#allocation7] sm:$0xff]
        %v1112 = vld [vmem:[#allocation7 + $0x8] sm:$0xff]
        %v1113 = vld [vmem:[#allocation7 + $0x10] sm:$0xff]
        %v1114 = vld [vmem:[#allocation7 + $0x18] sm:$0xff]
        %v1115 = vld [vmem:[#allocation7 + $0x20] sm:$0xff]
        %v1116 = vld [vmem:[#allocation7 + $0x28] sm:$0xff]
        %v1117 = vld [vmem:[#allocation7 + $0x30] sm:$0xff]
        %v1118 = vld [vmem:[#allocation7 + $0x38] sm:$0xff]
        %v1119 = vld [vmem:[#allocation7 + $0x40] sm:$0xff]
        %v1120 = vld [vmem:[#allocation7 + $0x48] sm:$0xff]
        %v1121 = vld [vmem:[#allocation7 + $0x50] sm:$0xff]
        %v1122 = vld [vmem:[#allocation7 + $0x58] sm:$0xff]
        %v1123 = vld [vmem:[#allocation7 + $0x60] sm:$0xff]
        %v1124 = vld [vmem:[#allocation7 + $0x68] sm:$0xff]
        %v1125 = vld [vmem:[#allocation7 + $0x70] sm:$0xff]
        %v1126 = vld [vmem:[#allocation7 + $0x78] sm:$0xff]
        %v1127 = vld [vmem:[#allocation7 + $0x80] sm:$0xff]
        %v1128 = vld [vmem:[#allocation7 + $0x88] sm:$0xff]
        %v1129 = vld [vmem:[#allocation7 + $0x90] sm:$0xff]
        %v1130 = vld [vmem:[#allocation7 + $0x98] sm:$0xff]
        %v1131 = vld [vmem:[#allocation7 + $0xa0] sm:$0xff]
        %v1132 = vld [vmem:[#allocation7 + $0xa8] sm:$0xff]
        %v1133 = vld [vmem:[#allocation7 + $0xb0] sm:$0xff]
        %v1134 = vld [vmem:[#allocation7 + $0xb8] sm:$0xff]
        %v1135 = vld [vmem:[#allocation7 + $0xc0] sm:$0xff]
        %v1136 = vld [vmem:[#allocation7 + $0xc8] sm:$0xff]
        %v1137 = vld [vmem:[#allocation7 + $0xd0] sm:$0xff]
        %v1138 = vld [vmem:[#allocation7 + $0xd8] sm:$0xff]
        %v1139 = vld [vmem:[#allocation7 + $0xe0] sm:$0xff]
        %v1140 = vld [vmem:[#allocation7 + $0xe8] sm:$0xff]
        %v1141 = vld [vmem:[#allocation7 + $0xf0] sm:$0xff]
        %v1142 = vld [vmem:[#allocation7 + $0xf8] sm:$0xff]
        %v1143 = vld [vmem:[#allocation7 + $0x100] sm:$0xff]
        %v1144 = vld [vmem:[#allocation7 + $0x108] sm:$0xff]
        %v1145 = vld [vmem:[#allocation7 + $0x110] sm:$0xff]
        %v1146 = vld [vmem:[#allocation7 + $0x118] sm:$0xff]
        %v1147 = vld [vmem:[#allocation7 + $0x120] sm:$0xff]
        %v1148 = vld [vmem:[#allocation7 + $0x128] sm:$0xff]
        %v1149 = vld [vmem:[#allocation7 + $0x130] sm:$0xff]
        %v1150 = vld [vmem:[#allocation7 + $0x138] sm:$0xff]
        %v1151 = vld [vmem:[#allocation7 + $0x140] sm:$0xff]
        %v1152 = vld [vmem:[#allocation7 + $0x148] sm:$0xff]
        %v1153 = vld [vmem:[#allocation7 + $0x150] sm:$0xff]
        %v1154 = vld [vmem:[#allocation7 + $0x158] sm:$0xff]
        %v1155 = vld [vmem:[#allocation7 + $0x160] sm:$0xff]
        %v1156 = vld [vmem:[#allocation7 + $0x168] sm:$0xff]
        %v1157 = vld [vmem:[#allocation7 + $0x170] sm:$0xff]
        %v1158 = vld [vmem:[#allocation7 + $0x178] sm:$0xff]
        %v1223 = vunpack.c.l.b16 %v1047
        %v1224 = vunpack.c.h.b16 %v1047
        %v1225 = vunpack.c.l.b16 %v1048
        %v1226 = vunpack.c.l.b16 %v1049
        %v1227 = vunpack.c.h.b16 %v1049
        %v1228 = vunpack.c.l.b16 %v1050
        %v1229 = vunpack.c.l.b16 %v1051
        %v1230 = vunpack.c.h.b16 %v1051
        %v1231 = vunpack.c.l.b16 %v1052
        %v1232 = vunpack.c.l.b16 %v1053
        %v1233 = vunpack.c.h.b16 %v1053
        %v1234 = vunpack.c.l.b16 %v1054
        %v1235 = vunpack.c.l.b16 %v1055
        %v1236 = vunpack.c.h.b16 %v1055
        %v1237 = vunpack.c.l.b16 %v1056
        %v1238 = vunpack.c.l.b16 %v1057
        %v1239 = vunpack.c.h.b16 %v1057
        %v1240 = vunpack.c.l.b16 %v1058
        %v1241 = vunpack.c.l.b16 %v1059
        %v1242 = vunpack.c.h.b16 %v1059
        %v1243 = vunpack.c.l.b16 %v1060
        %v1244 = vunpack.c.l.b16 %v1061
        %v1245 = vunpack.c.h.b16 %v1061
        %v1246 = vunpack.c.l.b16 %v1062
        %v1247 = vunpack.c.l.b16 %v1063
        %v1248 = vunpack.c.h.b16 %v1063
        %v1249 = vunpack.c.l.b16 %v1064
        %v1250 = vunpack.c.l.b16 %v1065
        %v1251 = vunpack.c.h.b16 %v1065
        %v1252 = vunpack.c.l.b16 %v1066
        %v1253 = vunpack.c.l.b16 %v1067
        %v1254 = vunpack.c.h.b16 %v1067
        %v1255 = vunpack.c.l.b16 %v1068
        %v1256 = vunpack.c.l.b16 %v1069
        %v1257 = vunpack.c.h.b16 %v1069
        %v1258 = vunpack.c.l.b16 %v1070
        %v1259 = vunpack.c.l.b16 %v1071
        %v1260 = vunpack.c.h.b16 %v1071
        %v1261 = vunpack.c.l.b16 %v1072
        %v1262 = vunpack.c.l.b16 %v1073
        %v1263 = vunpack.c.h.b16 %v1073
        %v1264 = vunpack.c.l.b16 %v1074
        %v1265 = vunpack.c.l.b16 %v1075
        %v1266 = vunpack.c.h.b16 %v1075
        %v1267 = vunpack.c.l.b16 %v1076
        %v1268 = vunpack.c.l.b16 %v1077
        %v1269 = vunpack.c.h.b16 %v1077
        %v1270 = vunpack.c.l.b16 %v1078
        %v1271 = vunpack.c.l.b16 %v1079
        %v1272 = vunpack.c.h.b16 %v1079
        %v1273 = vunpack.c.l.b16 %v1080
        %v1274 = vunpack.c.l.b16 %v1081
        %v1275 = vunpack.c.h.b16 %v1081
        %v1276 = vunpack.c.l.b16 %v1082
        %v1277 = vunpack.c.l.b16 %v1083
        %v1278 = vunpack.c.h.b16 %v1083
        %v1279 = vunpack.c.l.b16 %v1084
        %v1280 = vunpack.c.l.b16 %v1085
        %v1281 = vunpack.c.h.b16 %v1085
        %v1282 = vunpack.c.l.b16 %v1086
        %v1283 = vunpack.c.l.b16 %v1087
        %v1284 = vunpack.c.h.b16 %v1087
        %v1285 = vunpack.c.l.b16 %v1088
        %v1286 = vunpack.c.l.b16 %v1089
        %v1287 = vunpack.c.h.b16 %v1089
        %v1288 = vunpack.c.l.b16 %v1090
        %v1289 = vunpack.c.l.b16 %v1091
        %v1290 = vunpack.c.h.b16 %v1091
        %v1291 = vunpack.c.l.b16 %v1092
        %v1292 = vunpack.c.l.b16 %v1093
        %v1293 = vunpack.c.h.b16 %v1093
        %v1294 = vunpack.c.l.b16 %v1094
        %v1295 = vunpack.c.l.b16 %v1095
        %v1296 = vunpack.c.h.b16 %v1095
        %v1297 = vunpack.c.l.b16 %v1096
        %v1298 = vunpack.c.l.b16 %v1097
        %v1299 = vunpack.c.h.b16 %v1097
        %v1300 = vunpack.c.l.b16 %v1098
        %v1301 = vunpack.c.l.b16 %v1099
        %v1302 = vunpack.c.h.b16 %v1099
        %v1303 = vunpack.c.l.b16 %v1100
        %v1304 = vunpack.c.l.b16 %v1101
        %v1305 = vunpack.c.h.b16 %v1101
        %v1306 = vunpack.c.l.b16 %v1102
        %v1307 = vunpack.c.l.b16 %v1103
        %v1308 = vunpack.c.h.b16 %v1103
        %v1309 = vunpack.c.l.b16 %v1104
        %v1310 = vunpack.c.l.b16 %v1105
        %v1311 = vunpack.c.h.b16 %v1105
        %v1312 = vunpack.c.l.b16 %v1106
        %v1313 = vunpack.c.l.b16 %v1107
        %v1314 = vunpack.c.h.b16 %v1107
        %v1315 = vunpack.c.l.b16 %v1108
        %v1316 = vunpack.c.l.b16 %v1109
        %v1317 = vunpack.c.h.b16 %v1109
        %v1318 = vunpack.c.l.b16 %v1110
        %v1319 = vpack.c.b16 %v1226, %v1223
        %v1320 = vpack.c.b16 %v1227, %v1224
        %v1321 = vpack.c.b16 %v1228, %v1225
        %v1322 = vpack.c.b16 %v1232, %v1229
        %v1323 = vpack.c.b16 %v1233, %v1230
        %v1324 = vpack.c.b16 %v1234, %v1231
        %v1325 = vpack.c.b16 %v1238, %v1235
        %v1326 = vpack.c.b16 %v1239, %v1236
        %v1327 = vpack.c.b16 %v1240, %v1237
        %v1328 = vpack.c.b16 %v1244, %v1241
        %v1329 = vpack.c.b16 %v1245, %v1242
        %v1330 = vpack.c.b16 %v1246, %v1243
        %v1331 = vpack.c.b16 %v1250, %v1247
        %v1332 = vpack.c.b16 %v1251, %v1248
        %v1333 = vpack.c.b16 %v1252, %v1249
        %v1334 = vpack.c.b16 %v1256, %v1253
        %v1335 = vpack.c.b16 %v1257, %v1254
        %v1336 = vpack.c.b16 %v1258, %v1255
        %v1337 = vpack.c.b16 %v1262, %v1259
        %v1338 = vpack.c.b16 %v1263, %v1260
        %v1339 = vpack.c.b16 %v1264, %v1261
        %v1340 = vpack.c.b16 %v1268, %v1265
        %v1341 = vpack.c.b16 %v1269, %v1266
        %v1342 = vpack.c.b16 %v1270, %v1267
        %v1343 = vpack.c.b16 %v1274, %v1271
        %v1344 = vpack.c.b16 %v1275, %v1272
        %v1345 = vpack.c.b16 %v1276, %v1273
        %v1346 = vpack.c.b16 %v1280, %v1277
        %v1347 = vpack.c.b16 %v1281, %v1278
        %v1348 = vpack.c.b16 %v1282, %v1279
        %v1349 = vpack.c.b16 %v1286, %v1283
        %v1350 = vpack.c.b16 %v1287, %v1284
        %v1351 = vpack.c.b16 %v1288, %v1285
        %v1352 = vpack.c.b16 %v1292, %v1289
        %v1353 = vpack.c.b16 %v1293, %v1290
        %v1354 = vpack.c.b16 %v1294, %v1291
        %v1355 = vpack.c.b16 %v1298, %v1295
        %v1356 = vpack.c.b16 %v1299, %v1296
        %v1357 = vpack.c.b16 %v1300, %v1297
        %v1358 = vpack.c.b16 %v1304, %v1301
        %v1359 = vpack.c.b16 %v1305, %v1302
        %v1360 = vpack.c.b16 %v1306, %v1303
        %v1361 = vpack.c.b16 %v1310, %v1307
        %v1362 = vpack.c.b16 %v1311, %v1308
        %v1363 = vpack.c.b16 %v1312, %v1309
        %v1364 = vpack.c.b16 %v1316, %v1313
        %v1365 = vpack.c.b16 %v1317, %v1314
        %v1366 = vpack.c.b16 %v1318, %v1315
        %v1463 = vunpack.c.l.b16 %v1111
        %v1464 = vunpack.c.h.b16 %v1111
        %v1465 = vunpack.c.l.b16 %v1112
        %v1466 = vunpack.c.h.b16 %v1112
        %v1467 = vunpack.c.l.b16 %v1113
        %v1468 = vunpack.c.h.b16 %v1113
        %v1469 = vunpack.c.l.b16 %v1114
        %v1470 = vunpack.c.h.b16 %v1114
        %v1471 = vunpack.c.l.b16 %v1115
        %v1472 = vunpack.c.h.b16 %v1115
        %v1473 = vunpack.c.l.b16 %v1116
        %v1474 = vunpack.c.h.b16 %v1116
        %v1475 = vunpack.c.l.b16 %v1117
        %v1476 = vunpack.c.h.b16 %v1117
        %v1477 = vunpack.c.l.b16 %v1118
        %v1478 = vunpack.c.h.b16 %v1118
        %v1479 = vunpack.c.l.b16 %v1119
        %v1480 = vunpack.c.h.b16 %v1119
        %v1481 = vunpack.c.l.b16 %v1120
        %v1482 = vunpack.c.h.b16 %v1120
        %v1483 = vunpack.c.l.b16 %v1121
        %v1484 = vunpack.c.h.b16 %v1121
        %v1485 = vunpack.c.l.b16 %v1122
        %v1486 = vunpack.c.h.b16 %v1122
        %v1487 = vunpack.c.l.b16 %v1123
        %v1488 = vunpack.c.h.b16 %v1123
        %v1489 = vunpack.c.l.b16 %v1124
        %v1490 = vunpack.c.h.b16 %v1124
        %v1491 = vunpack.c.l.b16 %v1125
        %v1492 = vunpack.c.h.b16 %v1125
        %v1493 = vunpack.c.l.b16 %v1126
        %v1494 = vunpack.c.h.b16 %v1126
        %v1495 = vunpack.c.l.b16 %v1127
        %v1496 = vunpack.c.h.b16 %v1127
        %v1497 = vunpack.c.l.b16 %v1128
        %v1498 = vunpack.c.h.b16 %v1128
        %v1499 = vunpack.c.l.b16 %v1129
        %v1500 = vunpack.c.h.b16 %v1129
        %v1501 = vunpack.c.l.b16 %v1130
        %v1502 = vunpack.c.h.b16 %v1130
        %v1503 = vunpack.c.l.b16 %v1131
        %v1504 = vunpack.c.h.b16 %v1131
        %v1505 = vunpack.c.l.b16 %v1132
        %v1506 = vunpack.c.h.b16 %v1132
        %v1507 = vunpack.c.l.b16 %v1133
        %v1508 = vunpack.c.h.b16 %v1133
        %v1509 = vunpack.c.l.b16 %v1134
        %v1510 = vunpack.c.h.b16 %v1134
        %v1511 = vunpack.c.l.b16 %v1135
        %v1512 = vunpack.c.h.b16 %v1135
        %v1513 = vunpack.c.l.b16 %v1136
        %v1514 = vunpack.c.h.b16 %v1136
        %v1515 = vunpack.c.l.b16 %v1137
        %v1516 = vunpack.c.h.b16 %v1137
        %v1517 = vunpack.c.l.b16 %v1138
        %v1518 = vunpack.c.h.b16 %v1138
        %v1519 = vunpack.c.l.b16 %v1139
        %v1520 = vunpack.c.h.b16 %v1139
        %v1521 = vunpack.c.l.b16 %v1140
        %v1522 = vunpack.c.h.b16 %v1140
        %v1523 = vunpack.c.l.b16 %v1141
        %v1524 = vunpack.c.h.b16 %v1141
        %v1525 = vunpack.c.l.b16 %v1142
        %v1526 = vunpack.c.h.b16 %v1142
        %v1527 = vunpack.c.l.b16 %v1143
        %v1528 = vunpack.c.h.b16 %v1143
        %v1529 = vunpack.c.l.b16 %v1144
        %v1530 = vunpack.c.h.b16 %v1144
        %v1531 = vunpack.c.l.b16 %v1145
        %v1532 = vunpack.c.h.b16 %v1145
        %v1533 = vunpack.c.l.b16 %v1146
        %v1534 = vunpack.c.h.b16 %v1146
        %v1535 = vunpack.c.l.b16 %v1147
        %v1536 = vunpack.c.h.b16 %v1147
        %v1537 = vunpack.c.l.b16 %v1148
        %v1538 = vunpack.c.h.b16 %v1148
        %v1539 = vunpack.c.l.b16 %v1149
        %v1540 = vunpack.c.h.b16 %v1149
        %v1541 = vunpack.c.l.b16 %v1150
        %v1542 = vunpack.c.h.b16 %v1150
        %v1543 = vunpack.c.l.b16 %v1151
        %v1544 = vunpack.c.h.b16 %v1151
        %v1545 = vunpack.c.l.b16 %v1152
        %v1546 = vunpack.c.h.b16 %v1152
        %v1547 = vunpack.c.l.b16 %v1153
        %v1548 = vunpack.c.h.b16 %v1153
        %v1549 = vunpack.c.l.b16 %v1154
        %v1550 = vunpack.c.h.b16 %v1154
        %v1551 = vunpack.c.l.b16 %v1155
        %v1552 = vunpack.c.h.b16 %v1155
        %v1553 = vunpack.c.l.b16 %v1156
        %v1554 = vunpack.c.h.b16 %v1156
        %v1555 = vunpack.c.l.b16 %v1157
        %v1556 = vunpack.c.h.b16 %v1157
        %v1557 = vunpack.c.l.b16 %v1158
        %v1558 = vunpack.c.h.b16 %v1158
        %v1559 = vpack.c.b16 %v1465, %v1463
        %v1560 = vpack.c.b16 %v1466, %v1464
        %v1561 = vpack.c.b16 %v1469, %v1467
        %v1562 = vpack.c.b16 %v1470, %v1468
        %v1563 = vpack.c.b16 %v1473, %v1471
        %v1564 = vpack.c.b16 %v1474, %v1472
        %v1565 = vpack.c.b16 %v1477, %v1475
        %v1566 = vpack.c.b16 %v1478, %v1476
        %v1567 = vpack.c.b16 %v1481, %v1479
        %v1568 = vpack.c.b16 %v1482, %v1480
        %v1569 = vpack.c.b16 %v1485, %v1483
        %v1570 = vpack.c.b16 %v1486, %v1484
        %v1571 = vpack.c.b16 %v1489, %v1487
        %v1572 = vpack.c.b16 %v1490, %v1488
        %v1573 = vpack.c.b16 %v1493, %v1491
        %v1574 = vpack.c.b16 %v1494, %v1492
        %v1575 = vpack.c.b16 %v1497, %v1495
        %v1576 = vpack.c.b16 %v1498, %v1496
        %v1577 = vpack.c.b16 %v1501, %v1499
        %v1578 = vpack.c.b16 %v1502, %v1500
        %v1579 = vpack.c.b16 %v1505, %v1503
        %v1580 = vpack.c.b16 %v1506, %v1504
        %v1581 = vpack.c.b16 %v1509, %v1507
        %v1582 = vpack.c.b16 %v1510, %v1508
        %v1583 = vpack.c.b16 %v1513, %v1511
        %v1584 = vpack.c.b16 %v1514, %v1512
        %v1585 = vpack.c.b16 %v1517, %v1515
        %v1586 = vpack.c.b16 %v1518, %v1516
        %v1587 = vpack.c.b16 %v1521, %v1519
        %v1588 = vpack.c.b16 %v1522, %v1520
        %v1589 = vpack.c.b16 %v1525, %v1523
        %v1590 = vpack.c.b16 %v1526, %v1524
        %v1591 = vpack.c.b16 %v1529, %v1527
        %v1592 = vpack.c.b16 %v1530, %v1528
        %v1593 = vpack.c.b16 %v1533, %v1531
        %v1594 = vpack.c.b16 %v1534, %v1532
        %v1595 = vpack.c.b16 %v1537, %v1535
        %v1596 = vpack.c.b16 %v1538, %v1536
        %v1597 = vpack.c.b16 %v1541, %v1539
        %v1598 = vpack.c.b16 %v1542, %v1540
        %v1599 = vpack.c.b16 %v1545, %v1543
        %v1600 = vpack.c.b16 %v1546, %v1544
        %v1601 = vpack.c.b16 %v1549, %v1547
        %v1602 = vpack.c.b16 %v1550, %v1548
        %v1603 = vpack.c.b16 %v1553, %v1551
        %v1604 = vpack.c.b16 %v1554, %v1552
        %v1605 = vpack.c.b16 %v1557, %v1555
        %v1606 = vpack.c.b16 %v1558, %v1556
        %1655 = vmatprep.subr.bf16.mxu0 %v1574
        %1656 = vmatpush1.bf16.msra.mxu0 %v1573
        %1657 = vmatprep.subr.bf16.mxu0 %v1572
        %1658 = vmatpush1.bf16.msra.mxu0 %v1571
        %1659 = vmatprep.subr.bf16.mxu0 %v1570
        %1660 = vmatpush1.bf16.msra.mxu0 %v1569
        %1661 = vmatprep.subr.bf16.mxu0 %v1568
        %1662 = vmatpush1.bf16.msra.mxu0 %v1567
        %1663 = vmatprep.subr.bf16.mxu0 %v1566
        %1664 = vmatpush1.bf16.msra.mxu0 %v1565
        %1665 = vmatprep.subr.bf16.mxu0 %v1564
        %1666 = vmatpush1.bf16.msra.mxu0 %v1563
        %1667 = vmatprep.subr.bf16.mxu0 %v1562
        %1668 = vmatpush1.bf16.msra.mxu0 %v1561
        %1669 = vmatprep.subr.bf16.mxu0 %v1560
        %1670 = vmatpush1.bf16.msra.mxu0 %v1559
        %1671 = vmatprep.subr.bf16.mxu0 %v1590
        %1672 = vmatpush2.bf16.msra.mxu0 %v1589
        %1673 = vmatprep.subr.bf16.mxu0 %v1588
        %1674 = vmatpush2.bf16.msra.mxu0 %v1587
        %1675 = vmatprep.subr.bf16.mxu0 %v1586
        %1676 = vmatpush2.bf16.msra.mxu0 %v1585
        %1677 = vmatprep.subr.bf16.mxu0 %v1584
        %1678 = vmatpush2.bf16.msra.mxu0 %v1583
        %1679 = vmatprep.subr.bf16.mxu0 %v1582
        %1680 = vmatpush2.bf16.msra.mxu0 %v1581
        %1681 = vmatprep.subr.bf16.mxu0 %v1580
        %1682 = vmatpush2.bf16.msra.mxu0 %v1579
        %1683 = vmatprep.subr.bf16.mxu0 %v1578
        %1684 = vmatpush2.bf16.msra.mxu0 %v1577
        %1685 = vmatprep.subr.bf16.mxu0 %v1576
        %1686 = vmatpush2.bf16.msra.mxu0 %v1575
        %1687 = vmatprep.mubr.bf16.mxu0 %v1320
        %1688 = vmatmul.mubr.bf16.gmra.mxu0 %v1319
        %v1689 = vpop.f32.mrf.mxu0
        %v1690 = vadd.f32 0.0, %v1689
        %v1691 = vpop.f32.mrf.mxu0
        %v1692 = vadd.f32 0.0, %v1691
        %v1693 = vpop.f32.mrf.mxu0
        %v1694 = vadd.f32 0.0, %v1693
        %v1695 = vpop.f32.mrf.mxu0
        %v1696 = vadd.f32 0.0, %v1695
        %1697 = vmatprep.mubr.bf16.mxu0 %v1323
        %1698 = vmatmul.mubr.bf16.gmra.mxu0 %v1322
        %v1699 = vpop.f32.mrf.mxu0
        %v1700 = vadd.f32 0.0, %v1699
        %v1701 = vpop.f32.mrf.mxu0
        %v1702 = vadd.f32 0.0, %v1701
        %v1703 = vpop.f32.mrf.mxu0
        %v1704 = vadd.f32 0.0, %v1703
        %v1705 = vpop.f32.mrf.mxu0
        %v1706 = vadd.f32 0.0, %v1705
        %1707 = vmatprep.mubr.bf16.mxu0 %v1326
        %1708 = vmatmul.mubr.bf16.gmra.mxu0 %v1325
        %v1709 = vpop.f32.mrf.mxu0
        %v1710 = vadd.f32 0.0, %v1709
        %v1711 = vpop.f32.mrf.mxu0
        %v1712 = vadd.f32 0.0, %v1711
        %v1713 = vpop.f32.mrf.mxu0
        %v1714 = vadd.f32 0.0, %v1713
        %v1715 = vpop.f32.mrf.mxu0
        %v1716 = vadd.f32 0.0, %v1715
        %1717 = vmatprep.mubr.bf16.mxu0 %v1329
        %1718 = vmatmul.mubr.bf16.gmra.mxu0 %v1328
        %v1719 = vpop.f32.mrf.mxu0
        %v1720 = vadd.f32 0.0, %v1719
        %v1721 = vpop.f32.mrf.mxu0
        %v1722 = vadd.f32 0.0, %v1721
        %v1723 = vpop.f32.mrf.mxu0
        %v1724 = vadd.f32 0.0, %v1723
        %v1725 = vpop.f32.mrf.mxu0
        %v1726 = vadd.f32 0.0, %v1725
        %1727 = vmatprep.mubr.bf16.mxu0 %v1332
        %1728 = vmatmul.mubr.bf16.gmra.mxu0 %v1331
        %v1729 = vpop.f32.mrf.mxu0
        %v1730 = vadd.f32 0.0, %v1729
        %v1731 = vpop.f32.mrf.mxu0
        %v1732 = vadd.f32 0.0, %v1731
        %v1733 = vpop.f32.mrf.mxu0
        %v1734 = vadd.f32 0.0, %v1733
        %v1735 = vpop.f32.mrf.mxu0
        %v1736 = vadd.f32 0.0, %v1735
        %1737 = vmatprep.mubr.bf16.mxu0 %v1335
        %1738 = vmatmul.mubr.bf16.gmra.mxu0 %v1334
        %v1739 = vpop.f32.mrf.mxu0
        %v1740 = vadd.f32 0.0, %v1739
        %v1741 = vpop.f32.mrf.mxu0
        %v1742 = vadd.f32 0.0, %v1741
        %v1743 = vpop.f32.mrf.mxu0
        %v1744 = vadd.f32 0.0, %v1743
        %v1745 = vpop.f32.mrf.mxu0
        %v1746 = vadd.f32 0.0, %v1745
        %1747 = vmatprep.mubr.bf16.mxu0 %v1338
        %1748 = vmatmul.mubr.bf16.gmra.mxu0 %v1337
        %v1749 = vpop.f32.mrf.mxu0
        %v1750 = vadd.f32 0.0, %v1749
        %v1751 = vpop.f32.mrf.mxu0
        %v1752 = vadd.f32 0.0, %v1751
        %v1753 = vpop.f32.mrf.mxu0
        %v1754 = vadd.f32 0.0, %v1753
        %v1755 = vpop.f32.mrf.mxu0
        %v1756 = vadd.f32 0.0, %v1755
        %1757 = vmatprep.mubr.bf16.mxu0 %v1341
        %1758 = vmatmul.mubr.bf16.gmra.mxu0 %v1340
        %v1759 = vpop.f32.mrf.mxu0
        %v1760 = vadd.f32 0.0, %v1759
        %v1761 = vpop.f32.mrf.mxu0
        %v1762 = vadd.f32 0.0, %v1761
        %v1763 = vpop.f32.mrf.mxu0
        %v1764 = vadd.f32 0.0, %v1763
        %v1765 = vpop.f32.mrf.mxu0
        %v1766 = vadd.f32 0.0, %v1765
        %1767 = vmatprep.mubr.bf16.mxu0 %v1344
        %1768 = vmatmul.mubr.bf16.gmra.mxu0 %v1343
        %v1769 = vpop.f32.mrf.mxu0
        %v1770 = vadd.f32 0.0, %v1769
        %v1771 = vpop.f32.mrf.mxu0
        %v1772 = vadd.f32 0.0, %v1771
        %v1773 = vpop.f32.mrf.mxu0
        %v1774 = vadd.f32 0.0, %v1773
        %v1775 = vpop.f32.mrf.mxu0
        %v1776 = vadd.f32 0.0, %v1775
        %1777 = vmatprep.mubr.bf16.mxu0 %v1347
        %1778 = vmatmul.mubr.bf16.gmra.mxu0 %v1346
        %v1779 = vpop.f32.mrf.mxu0
        %v1780 = vadd.f32 0.0, %v1779
        %v1781 = vpop.f32.mrf.mxu0
        %v1782 = vadd.f32 0.0, %v1781
        %v1783 = vpop.f32.mrf.mxu0
        %v1784 = vadd.f32 0.0, %v1783
        %v1785 = vpop.f32.mrf.mxu0
        %v1786 = vadd.f32 0.0, %v1785
        %1787 = vmatprep.mubr.bf16.mxu0 %v1350
        %1788 = vmatmul.mubr.bf16.gmra.mxu0 %v1349
        %v1789 = vpop.f32.mrf.mxu0
        %v1790 = vadd.f32 0.0, %v1789
        %v1791 = vpop.f32.mrf.mxu0
        %v1792 = vadd.f32 0.0, %v1791
        %v1793 = vpop.f32.mrf.mxu0
        %v1794 = vadd.f32 0.0, %v1793
        %v1795 = vpop.f32.mrf.mxu0
        %v1796 = vadd.f32 0.0, %v1795
        %1797 = vmatprep.mubr.bf16.mxu0 %v1353
        %1798 = vmatmul.mubr.bf16.gmra.mxu0 %v1352
        %v1799 = vpop.f32.mrf.mxu0
        %v1800 = vadd.f32 0.0, %v1799
        %v1801 = vpop.f32.mrf.mxu0
        %v1802 = vadd.f32 0.0, %v1801
        %v1803 = vpop.f32.mrf.mxu0
        %v1804 = vadd.f32 0.0, %v1803
        %v1805 = vpop.f32.mrf.mxu0
        %v1806 = vadd.f32 0.0, %v1805
        %1807 = vmatprep.mubr.bf16.mxu0 %v1356
        %1808 = vmatmul.mubr.bf16.gmra.mxu0 %v1355
        %v1809 = vpop.f32.mrf.mxu0
        %v1810 = vadd.f32 0.0, %v1809
        %v1811 = vpop.f32.mrf.mxu0
        %v1812 = vadd.f32 0.0, %v1811
        %v1813 = vpop.f32.mrf.mxu0
        %v1814 = vadd.f32 0.0, %v1813
        %v1815 = vpop.f32.mrf.mxu0
        %v1816 = vadd.f32 0.0, %v1815
        %1817 = vmatprep.mubr.bf16.mxu0 %v1359
        %1818 = vmatmul.mubr.bf16.gmra.mxu0 %v1358
        %v1819 = vpop.f32.mrf.mxu0
        %v1820 = vadd.f32 0.0, %v1819
        %v1821 = vpop.f32.mrf.mxu0
        %v1822 = vadd.f32 0.0, %v1821
        %v1823 = vpop.f32.mrf.mxu0
        %v1824 = vadd.f32 0.0, %v1823
        %v1825 = vpop.f32.mrf.mxu0
        %v1826 = vadd.f32 0.0, %v1825
        %1827 = vmatprep.mubr.bf16.mxu0 %v1362
        %1828 = vmatmul.mubr.bf16.gmra.mxu0 %v1361
        %v1829 = vpop.f32.mrf.mxu0
        %v1830 = vadd.f32 0.0, %v1829
        %v1831 = vpop.f32.mrf.mxu0
        %v1832 = vadd.f32 0.0, %v1831
        %v1833 = vpop.f32.mrf.mxu0
        %v1834 = vadd.f32 0.0, %v1833
        %v1835 = vpop.f32.mrf.mxu0
        %v1836 = vadd.f32 0.0, %v1835
        %1837 = vmatprep.mubr.bf16.mxu0 %v1365
        %1838 = vmatmul.mubr.bf16.gmra.mxu0 %v1364
        %v1839 = vpop.f32.mrf.mxu0
        %v1840 = vadd.f32 0.0, %v1839
        %v1841 = vpop.f32.mrf.mxu0
        %v1842 = vadd.f32 0.0, %v1841
        %v1843 = vpop.f32.mrf.mxu0
        %v1844 = vadd.f32 0.0, %v1843
        %v1845 = vpop.f32.mrf.mxu0
        %v1846 = vadd.f32 0.0, %v1845
        %1847 = vdwg.mxu0
        %1848 = vmatprep.subr.bf16.mxu0 %v1606
        %1849 = vmatpush1.bf16.msra.mxu0 %v1605
        %1850 = vmatprep.subr.bf16.mxu0 %v1604
        %1851 = vmatpush1.bf16.msra.mxu0 %v1603
        %1852 = vmatprep.subr.bf16.mxu0 %v1602
        %1853 = vmatpush1.bf16.msra.mxu0 %v1601
        %1854 = vmatprep.subr.bf16.mxu0 %v1600
        %1855 = vmatpush1.bf16.msra.mxu0 %v1599
        %1856 = vmatprep.subr.bf16.mxu0 %v1598
        %1857 = vmatpush1.bf16.msra.mxu0 %v1597
        %1858 = vmatprep.subr.bf16.mxu0 %v1596
        %1859 = vmatpush1.bf16.msra.mxu0 %v1595
        %1860 = vmatprep.subr.bf16.mxu0 %v1594
        %1861 = vmatpush1.bf16.msra.mxu0 %v1593
        %1862 = vmatprep.subr.bf16.mxu0 %v1592
        %1863 = vmatpush1.bf16.msra.mxu0 %v1591
        %1864 = vmatprep.subr.bf16.mxu0 0
        %1865 = vmatpush2.bf16.msra.mxu0 0
        %1866 = vmatprep.subr.bf16.mxu0 0
        %1867 = vmatpush2.bf16.msra.mxu0 0
        %1868 = vmatprep.subr.bf16.mxu0 0
        %1869 = vmatpush2.bf16.msra.mxu0 0
        %1870 = vmatprep.subr.bf16.mxu0 0
        %1871 = vmatpush2.bf16.msra.mxu0 0
        %1872 = vmatprep.subr.bf16.mxu0 0
        %1873 = vmatpush2.bf16.msra.mxu0 0
        %1874 = vmatprep.subr.bf16.mxu0 0
        %1875 = vmatpush2.bf16.msra.mxu0 0
        %1876 = vmatprep.subr.bf16.mxu0 0
        %1877 = vmatpush2.bf16.msra.mxu0 0
        %1878 = vmatprep.subr.bf16.mxu0 0
        %1879 = vmatpush2.bf16.msra.mxu0 0
        %1880 = vmatprep.mubr.bf16.mxu0 0
        %1881 = vmatmul.mubr.bf16.gmra.mxu0 %v1321
        %v1882 = vpop.f32.mrf.mxu0
        %v1883 = vadd.f32 %v1690, %v1882
        %v1884 = vpop.f32.mrf.mxu0
        %v1885 = vadd.f32 %v1692, %v1884
        %v1886 = vpop.f32.mrf.mxu0
        %v1887 = vadd.f32 %v1694, %v1886
        %v1888 = vpop.f32.mrf.mxu0
        %v1889 = vadd.f32 %v1696, %v1888
        %1890 = vmatprep.mubr.bf16.mxu0 0
        %1891 = vmatmul.mubr.bf16.gmra.mxu0 %v1324
        %v1892 = vpop.f32.mrf.mxu0
        %v1893 = vadd.f32 %v1700, %v1892
        %v1894 = vpop.f32.mrf.mxu0
        %v1895 = vadd.f32 %v1702, %v1894
        %v1896 = vpop.f32.mrf.mxu0
        %v1897 = vadd.f32 %v1704, %v1896
        %v1898 = vpop.f32.mrf.mxu0
        %v1899 = vadd.f32 %v1706, %v1898
        %1900 = vmatprep.mubr.bf16.mxu0 0
        %1901 = vmatmul.mubr.bf16.gmra.mxu0 %v1327
        %v1902 = vpop.f32.mrf.mxu0
        %v1903 = vadd.f32 %v1710, %v1902
        %v1904 = vpop.f32.mrf.mxu0
        %v1905 = vadd.f32 %v1712, %v1904
        %v1906 = vpop.f32.mrf.mxu0
        %v1907 = vadd.f32 %v1714, %v1906
        %v1908 = vpop.f32.mrf.mxu0
        %v1909 = vadd.f32 %v1716, %v1908
        %1910 = vmatprep.mubr.bf16.mxu0 0
        %1911 = vmatmul.mubr.bf16.gmra.mxu0 %v1330
        %v1912 = vpop.f32.mrf.mxu0
        %v1913 = vadd.f32 %v1720, %v1912
        %v1914 = vpop.f32.mrf.mxu0
        %v1915 = vadd.f32 %v1722, %v1914
        %v1916 = vpop.f32.mrf.mxu0
        %v1917 = vadd.f32 %v1724, %v1916
        %v1918 = vpop.f32.mrf.mxu0
        %v1919 = vadd.f32 %v1726, %v1918
        %1920 = vmatprep.mubr.bf16.mxu0 0
        %1921 = vmatmul.mubr.bf16.gmra.mxu0 %v1333
        %v1922 = vpop.f32.mrf.mxu0
        %v1923 = vadd.f32 %v1730, %v1922
        %v1924 = vpop.f32.mrf.mxu0
        %v1925 = vadd.f32 %v1732, %v1924
        %v1926 = vpop.f32.mrf.mxu0
        %v1927 = vadd.f32 %v1734, %v1926
        %v1928 = vpop.f32.mrf.mxu0
        %v1929 = vadd.f32 %v1736, %v1928
        %1930 = vmatprep.mubr.bf16.mxu0 0
        %1931 = vmatmul.mubr.bf16.gmra.mxu0 %v1336
        %v1932 = vpop.f32.mrf.mxu0
        %v1933 = vadd.f32 %v1740, %v1932
        %v1934 = vpop.f32.mrf.mxu0
        %v1935 = vadd.f32 %v1742, %v1934
        %v1936 = vpop.f32.mrf.mxu0
        %v1937 = vadd.f32 %v1744, %v1936
        %v1938 = vpop.f32.mrf.mxu0
        %v1939 = vadd.f32 %v1746, %v1938
        %1940 = vmatprep.mubr.bf16.mxu0 0
        %1941 = vmatmul.mubr.bf16.gmra.mxu0 %v1339
        %v1942 = vpop.f32.mrf.mxu0
        %v1943 = vadd.f32 %v1750, %v1942
        %v1944 = vpop.f32.mrf.mxu0
        %v1945 = vadd.f32 %v1752, %v1944
        %v1946 = vpop.f32.mrf.mxu0
        %v1947 = vadd.f32 %v1754, %v1946
        %v1948 = vpop.f32.mrf.mxu0
        %v1949 = vadd.f32 %v1756, %v1948
        %1950 = vmatprep.mubr.bf16.mxu0 0
        %1951 = vmatmul.mubr.bf16.gmra.mxu0 %v1342
        %v1952 = vpop.f32.mrf.mxu0
        %v1953 = vadd.f32 %v1760, %v1952
        %v1954 = vpop.f32.mrf.mxu0
        %v1955 = vadd.f32 %v1762, %v1954
        %v1956 = vpop.f32.mrf.mxu0
        %v1957 = vadd.f32 %v1764, %v1956
        %v1958 = vpop.f32.mrf.mxu0
        %v1959 = vadd.f32 %v1766, %v1958
        %1960 = vmatprep.mubr.bf16.mxu0 0
        %1961 = vmatmul.mubr.bf16.gmra.mxu0 %v1345
        %v1962 = vpop.f32.mrf.mxu0
        %v1963 = vadd.f32 %v1770, %v1962
        %v1964 = vpop.f32.mrf.mxu0
        %v1965 = vadd.f32 %v1772, %v1964
        %v1966 = vpop.f32.mrf.mxu0
        %v1967 = vadd.f32 %v1774, %v1966
        %v1968 = vpop.f32.mrf.mxu0
        %v1969 = vadd.f32 %v1776, %v1968
        %1970 = vmatprep.mubr.bf16.mxu0 0
        %1971 = vmatmul.mubr.bf16.gmra.mxu0 %v1348
        %v1972 = vpop.f32.mrf.mxu0
        %v1973 = vadd.f32 %v1780, %v1972
        %v1974 = vpop.f32.mrf.mxu0
        %v1975 = vadd.f32 %v1782, %v1974
        %v1976 = vpop.f32.mrf.mxu0
        %v1977 = vadd.f32 %v1784, %v1976
        %v1978 = vpop.f32.mrf.mxu0
        %v1979 = vadd.f32 %v1786, %v1978
        %1980 = vmatprep.mubr.bf16.mxu0 0
        %1981 = vmatmul.mubr.bf16.gmra.mxu0 %v1351
        %v1982 = vpop.f32.mrf.mxu0
        %v1983 = vadd.f32 %v1790, %v1982
        %v1984 = vpop.f32.mrf.mxu0
        %v1985 = vadd.f32 %v1792, %v1984
        %v1986 = vpop.f32.mrf.mxu0
        %v1987 = vadd.f32 %v1794, %v1986
        %v1988 = vpop.f32.mrf.mxu0
        %v1989 = vadd.f32 %v1796, %v1988
        %1990 = vmatprep.mubr.bf16.mxu0 0
        %1991 = vmatmul.mubr.bf16.gmra.mxu0 %v1354
        %v1992 = vpop.f32.mrf.mxu0
        %v1993 = vadd.f32 %v1800, %v1992
        %v1994 = vpop.f32.mrf.mxu0
        %v1995 = vadd.f32 %v1802, %v1994
        %v1996 = vpop.f32.mrf.mxu0
        %v1997 = vadd.f32 %v1804, %v1996
        %v1998 = vpop.f32.mrf.mxu0
        %v1999 = vadd.f32 %v1806, %v1998
        %2000 = vmatprep.mubr.bf16.mxu0 0
        %2001 = vmatmul.mubr.bf16.gmra.mxu0 %v1357
        %v2002 = vpop.f32.mrf.mxu0
        %v2003 = vadd.f32 %v1810, %v2002
        %v2004 = vpop.f32.mrf.mxu0
        %v2005 = vadd.f32 %v1812, %v2004
        %v2006 = vpop.f32.mrf.mxu0
        %v2007 = vadd.f32 %v1814, %v2006
        %v2008 = vpop.f32.mrf.mxu0
        %v2009 = vadd.f32 %v1816, %v2008
        %2010 = vmatprep.mubr.bf16.mxu0 0
        %2011 = vmatmul.mubr.bf16.gmra.mxu0 %v1360
        %v2012 = vpop.f32.mrf.mxu0
        %v2013 = vadd.f32 %v1820, %v2012
        %v2014 = vpop.f32.mrf.mxu0
        %v2015 = vadd.f32 %v1822, %v2014
        %v2016 = vpop.f32.mrf.mxu0
        %v2017 = vadd.f32 %v1824, %v2016
        %v2018 = vpop.f32.mrf.mxu0
        %v2019 = vadd.f32 %v1826, %v2018
        %2020 = vmatprep.mubr.bf16.mxu0 0
        %2021 = vmatmul.mubr.bf16.gmra.mxu0 %v1363
        %v2022 = vpop.f32.mrf.mxu0
        %v2023 = vadd.f32 %v1830, %v2022
        %v2024 = vpop.f32.mrf.mxu0
        %v2025 = vadd.f32 %v1832, %v2024
        %v2026 = vpop.f32.mrf.mxu0
        %v2027 = vadd.f32 %v1834, %v2026
        %v2028 = vpop.f32.mrf.mxu0
        %v2029 = vadd.f32 %v1836, %v2028
        %2030 = vmatprep.mubr.bf16.mxu0 0
        %2031 = vmatmul.mubr.bf16.gmra.mxu0 %v1366
        %v2032 = vpop.f32.mrf.mxu0
        %v2033 = vadd.f32 %v1840, %v2032
        %v2034 = vpop.f32.mrf.mxu0
        %v2035 = vadd.f32 %v1842, %v2034
        %v2036 = vpop.f32.mrf.mxu0
        %v2037 = vadd.f32 %v1844, %v2036
        %v2038 = vpop.f32.mrf.mxu0
        %v2039 = vadd.f32 %v1846, %v2038
        %2040 = vdwg.mxu0
        %2041 = vst [vmem:[#allocation3] sm:$0xff] %v1883
        %2042 = vst [vmem:[#allocation3 + $0x8] sm:$0xff] %v1885
        %2043 = vst [vmem:[#allocation3 + $0x10] sm:$0xff] %v1887
        %2044 = vst [vmem:[#allocation3 + $0x18] sm:$0xff] %v1889
        %2045 = vst [vmem:[#allocation3 + $0x20] sm:$0xff] %v1893
        %2046 = vst [vmem:[#allocation3 + $0x28] sm:$0xff] %v1895
        %2047 = vst [vmem:[#allocation3 + $0x30] sm:$0xff] %v1897
        %2048 = vst [vmem:[#allocation3 + $0x38] sm:$0xff] %v1899
        %2049 = vst [vmem:[#allocation3 + $0x40] sm:$0xff] %v1903
        %2050 = vst [vmem:[#allocation3 + $0x48] sm:$0xff] %v1905
        %2051 = vst [vmem:[#allocation3 + $0x50] sm:$0xff] %v1907
        %2052 = vst [vmem:[#allocation3 + $0x58] sm:$0xff] %v1909
        %2053 = vst [vmem:[#allocation3 + $0x60] sm:$0xff] %v1913
        %2054 = vst [vmem:[#allocation3 + $0x68] sm:$0xff] %v1915
        %2055 = vst [vmem:[#allocation3 + $0x70] sm:$0xff] %v1917
        %2056 = vst [vmem:[#allocation3 + $0x78] sm:$0xff] %v1919
        %2057 = vst [vmem:[#allocation3 + $0x80] sm:$0xff] %v1923
        %2058 = vst [vmem:[#allocation3 + $0x88] sm:$0xff] %v1925
        %2059 = vst [vmem:[#allocation3 + $0x90] sm:$0xff] %v1927
        %2060 = vst [vmem:[#allocation3 + $0x98] sm:$0xff] %v1929
        %2061 = vst [vmem:[#allocation3 + $0xa0] sm:$0xff] %v1933
        %2062 = vst [vmem:[#allocation3 + $0xa8] sm:$0xff] %v1935
        %2063 = vst [vmem:[#allocation3 + $0xb0] sm:$0xff] %v1937
        %2064 = vst [vmem:[#allocation3 + $0xb8] sm:$0xff] %v1939
        %2065 = vst [vmem:[#allocation3 + $0xc0] sm:$0xff] %v1943
        %2066 = vst [vmem:[#allocation3 + $0xc8] sm:$0xff] %v1945
        %2067 = vst [vmem:[#allocation3 + $0xd0] sm:$0xff] %v1947
        %2068 = vst [vmem:[#allocation3 + $0xd8] sm:$0xff] %v1949
        %2069 = vst [vmem:[#allocation3 + $0xe0] sm:$0xff] %v1953
        %2070 = vst [vmem:[#allocation3 + $0xe8] sm:$0xff] %v1955
        %2071 = vst [vmem:[#allocation3 + $0xf0] sm:$0xff] %v1957
        %2072 = vst [vmem:[#allocation3 + $0xf8] sm:$0xff] %v1959
        %2073 = vst [vmem:[#allocation3 + $0x100] sm:$0xff] %v1963
        %2074 = vst [vmem:[#allocation3 + $0x108] sm:$0xff] %v1965
        %2075 = vst [vmem:[#allocation3 + $0x110] sm:$0xff] %v1967
        %2076 = vst [vmem:[#allocation3 + $0x118] sm:$0xff] %v1969
        %2077 = vst [vmem:[#allocation3 + $0x120] sm:$0xff] %v1973
        %2078 = vst [vmem:[#allocation3 + $0x128] sm:$0xff] %v1975
        %2079 = vst [vmem:[#allocation3 + $0x130] sm:$0xff] %v1977
        %2080 = vst [vmem:[#allocation3 + $0x138] sm:$0xff] %v1979
        %2081 = vst [vmem:[#allocation3 + $0x140] sm:$0xff] %v1983
        %2082 = vst [vmem:[#allocation3 + $0x148] sm:$0xff] %v1985
        %2083 = vst [vmem:[#allocation3 + $0x150] sm:$0xff] %v1987
        %2084 = vst [vmem:[#allocation3 + $0x158] sm:$0xff] %v1989
        %2085 = vst [vmem:[#allocation3 + $0x160] sm:$0xff] %v1993
        %2086 = vst [vmem:[#allocation3 + $0x168] sm:$0xff] %v1995
        %2087 = vst [vmem:[#allocation3 + $0x170] sm:$0xff] %v1997
        %2088 = vst [vmem:[#allocation3 + $0x178] sm:$0xff] %v1999
        %2089 = vst [vmem:[#allocation3 + $0x180] sm:$0xff] %v2003
        %2090 = vst [vmem:[#allocation3 + $0x188] sm:$0xff] %v2005
        %2091 = vst [vmem:[#allocation3 + $0x190] sm:$0xff] %v2007
        %2092 = vst [vmem:[#allocation3 + $0x198] sm:$0xff] %v2009
        %2093 = vst [vmem:[#allocation3 + $0x1a0] sm:$0xff] %v2013
        %2094 = vst [vmem:[#allocation3 + $0x1a8] sm:$0xff] %v2015
        %2095 = vst [vmem:[#allocation3 + $0x1b0] sm:$0xff] %v2017
        %2096 = vst [vmem:[#allocation3 + $0x1b8] sm:$0xff] %v2019
        %2097 = vst [vmem:[#allocation3 + $0x1c0] sm:$0xff] %v2023
        %2098 = vst [vmem:[#allocation3 + $0x1c8] sm:$0xff] %v2025
        %2099 = vst [vmem:[#allocation3 + $0x1d0] sm:$0xff] %v2027
        %2100 = vst [vmem:[#allocation3 + $0x1d8] sm:$0xff] %v2029
        %2101 = vst [vmem:[#allocation3 + $0x1e0] sm:$0xff] %v2033
        %2102 = vst [vmem:[#allocation3 + $0x1e8] sm:$0xff] %v2035
        %2103 = vst [vmem:[#allocation3 + $0x1f0] sm:$0xff] %v2037
        %2104 = vst [vmem:[#allocation3 + $0x1f8] sm:$0xff] %v2039
        %v2105 = vld [vmem:[%s726] sm:$0xff]
        %v2106 = vld [vmem:[%s726 + $0x8] sm:$0xf]
        %v2107 = vld [vmem:[%s726 + $0xc] sm:$0xff]
        %v2108 = vld [vmem:[%s726 + $0x14] sm:$0xf]
        %v2109 = vld [vmem:[%s726 + $0x18] sm:$0xff]
        %v2110 = vld [vmem:[%s726 + $0x20] sm:$0xf]
        %v2111 = vld [vmem:[%s726 + $0x24] sm:$0xff]
        %v2112 = vld [vmem:[%s726 + $0x2c] sm:$0xf]
        %v2113 = vld [vmem:[%s726 + $0x30] sm:$0xff]
        %v2114 = vld [vmem:[%s726 + $0x38] sm:$0xf]
        %v2115 = vld [vmem:[%s726 + $0x3c] sm:$0xff]
        %v2116 = vld [vmem:[%s726 + $0x44] sm:$0xf]
        %v2117 = vld [vmem:[%s726 + $0x48] sm:$0xff]
        %v2118 = vld [vmem:[%s726 + $0x50] sm:$0xf]
        %v2119 = vld [vmem:[%s726 + $0x54] sm:$0xff]
        %v2120 = vld [vmem:[%s726 + $0x5c] sm:$0xf]
        %v2121 = vld [vmem:[%s726 + $0x60] sm:$0xff]
        %v2122 = vld [vmem:[%s726 + $0x68] sm:$0xf]
        %v2123 = vld [vmem:[%s726 + $0x6c] sm:$0xff]
        %v2124 = vld [vmem:[%s726 + $0x74] sm:$0xf]
        %v2125 = vld [vmem:[%s726 + $0x78] sm:$0xff]
        %v2126 = vld [vmem:[%s726 + $0x80] sm:$0xf]
        %v2127 = vld [vmem:[%s726 + $0x84] sm:$0xff]
        %v2128 = vld [vmem:[%s726 + $0x8c] sm:$0xf]
        %v2129 = vld [vmem:[%s726 + $0x90] sm:$0xff]
        %v2130 = vld [vmem:[%s726 + $0x98] sm:$0xf]
        %v2131 = vld [vmem:[%s726 + $0x9c] sm:$0xff]
        %v2132 = vld [vmem:[%s726 + $0xa4] sm:$0xf]
        %v2133 = vld [vmem:[%s726 + $0xa8] sm:$0xff]
        %v2134 = vld [vmem:[%s726 + $0xb0] sm:$0xf]
        %v2135 = vld [vmem:[%s726 + $0xb4] sm:$0xff]
        %v2136 = vld [vmem:[%s726 + $0xbc] sm:$0xf]
        %v2137 = vld [vmem:[%s726 + $0xc0] sm:$0xff]
        %v2138 = vld [vmem:[%s726 + $0xc8] sm:$0xf]
        %v2139 = vld [vmem:[%s726 + $0xcc] sm:$0xff]
        %v2140 = vld [vmem:[%s726 + $0xd4] sm:$0xf]
        %v2141 = vld [vmem:[%s726 + $0xd8] sm:$0xff]
        %v2142 = vld [vmem:[%s726 + $0xe0] sm:$0xf]
        %v2143 = vld [vmem:[%s726 + $0xe4] sm:$0xff]
        %v2144 = vld [vmem:[%s726 + $0xec] sm:$0xf]
        %v2145 = vld [vmem:[%s726 + $0xf0] sm:$0xff]
        %v2146 = vld [vmem:[%s726 + $0xf8] sm:$0xf]
        %v2147 = vld [vmem:[%s726 + $0xfc] sm:$0xff]
        %v2148 = vld [vmem:[%s726 + $0x104] sm:$0xf]
        %v2149 = vld [vmem:[%s726 + $0x108] sm:$0xff]
        %v2150 = vld [vmem:[%s726 + $0x110] sm:$0xf]
        %v2151 = vld [vmem:[%s726 + $0x114] sm:$0xff]
        %v2152 = vld [vmem:[%s726 + $0x11c] sm:$0xf]
        %v2153 = vld [vmem:[%s726 + $0x120] sm:$0xff]
        %v2154 = vld [vmem:[%s726 + $0x128] sm:$0xf]
        %v2155 = vld [vmem:[%s726 + $0x12c] sm:$0xff]
        %v2156 = vld [vmem:[%s726 + $0x134] sm:$0xf]
        %v2157 = vld [vmem:[%s726 + $0x138] sm:$0xff]
        %v2158 = vld [vmem:[%s726 + $0x140] sm:$0xf]
        %v2159 = vld [vmem:[%s726 + $0x144] sm:$0xff]
        %v2160 = vld [vmem:[%s726 + $0x14c] sm:$0xf]
        %v2161 = vld [vmem:[%s726 + $0x150] sm:$0xff]
        %v2162 = vld [vmem:[%s726 + $0x158] sm:$0xf]
        %v2163 = vld [vmem:[%s726 + $0x15c] sm:$0xff]
        %v2164 = vld [vmem:[%s726 + $0x164] sm:$0xf]
        %v2165 = vld [vmem:[%s726 + $0x168] sm:$0xff]
        %v2166 = vld [vmem:[%s726 + $0x170] sm:$0xf]
        %v2167 = vld [vmem:[%s726 + $0x174] sm:$0xff]
        %v2168 = vld [vmem:[%s726 + $0x17c] sm:$0xf]
        %s2169 = scalar_lea.vmem [#allocation7], 384
        %v2170 = vld [vmem:[%s2169] sm:$0xff]
        %v2171 = vld [vmem:[%s2169 + $0x8] sm:$0xff]
        %v2172 = vld [vmem:[%s2169 + $0x10] sm:$0xff]
        %v2173 = vld [vmem:[%s2169 + $0x18] sm:$0xff]
        %v2174 = vld [vmem:[%s2169 + $0x20] sm:$0xff]
        %v2175 = vld [vmem:[%s2169 + $0x28] sm:$0xff]
        %v2176 = vld [vmem:[%s2169 + $0x30] sm:$0xff]
        %v2177 = vld [vmem:[%s2169 + $0x38] sm:$0xff]
        %v2178 = vld [vmem:[%s2169 + $0x40] sm:$0xff]
        %v2179 = vld [vmem:[%s2169 + $0x48] sm:$0xff]
        %v2180 = vld [vmem:[%s2169 + $0x50] sm:$0xff]
        %v2181 = vld [vmem:[%s2169 + $0x58] sm:$0xff]
        %v2182 = vld [vmem:[%s2169 + $0x60] sm:$0xff]
        %v2183 = vld [vmem:[%s2169 + $0x68] sm:$0xff]
        %v2184 = vld [vmem:[%s2169 + $0x70] sm:$0xff]
        %v2185 = vld [vmem:[%s2169 + $0x78] sm:$0xff]
        %v2186 = vld [vmem:[%s2169 + $0x80] sm:$0xff]
        %v2187 = vld [vmem:[%s2169 + $0x88] sm:$0xff]
        %v2188 = vld [vmem:[%s2169 + $0x90] sm:$0xff]
        %v2189 = vld [vmem:[%s2169 + $0x98] sm:$0xff]
        %v2190 = vld [vmem:[%s2169 + $0xa0] sm:$0xff]
        %v2191 = vld [vmem:[%s2169 + $0xa8] sm:$0xff]
        %v2192 = vld [vmem:[%s2169 + $0xb0] sm:$0xff]
        %v2193 = vld [vmem:[%s2169 + $0xb8] sm:$0xff]
        %v2194 = vld [vmem:[%s2169 + $0xc0] sm:$0xff]
        %v2195 = vld [vmem:[%s2169 + $0xc8] sm:$0xff]
        %v2196 = vld [vmem:[%s2169 + $0xd0] sm:$0xff]
        %v2197 = vld [vmem:[%s2169 + $0xd8] sm:$0xff]
        %v2198 = vld [vmem:[%s2169 + $0xe0] sm:$0xff]
        %v2199 = vld [vmem:[%s2169 + $0xe8] sm:$0xff]
        %v2200 = vld [vmem:[%s2169 + $0xf0] sm:$0xff]
        %v2201 = vld [vmem:[%s2169 + $0xf8] sm:$0xff]
        %v2202 = vld [vmem:[%s2169 + $0x100] sm:$0xff]
        %v2203 = vld [vmem:[%s2169 + $0x108] sm:$0xff]
        %v2204 = vld [vmem:[%s2169 + $0x110] sm:$0xff]
        %v2205 = vld [vmem:[%s2169 + $0x118] sm:$0xff]
        %v2206 = vld [vmem:[%s2169 + $0x120] sm:$0xff]
        %v2207 = vld [vmem:[%s2169 + $0x128] sm:$0xff]
        %v2208 = vld [vmem:[%s2169 + $0x130] sm:$0xff]
        %v2209 = vld [vmem:[%s2169 + $0x138] sm:$0xff]
        %v2210 = vld [vmem:[%s2169 + $0x140] sm:$0xff]
        %v2211 = vld [vmem:[%s2169 + $0x148] sm:$0xff]
        %v2212 = vld [vmem:[%s2169 + $0x150] sm:$0xff]
        %v2213 = vld [vmem:[%s2169 + $0x158] sm:$0xff]
        %v2214 = vld [vmem:[%s2169 + $0x160] sm:$0xff]
        %v2215 = vld [vmem:[%s2169 + $0x168] sm:$0xff]
        %v2216 = vld [vmem:[%s2169 + $0x170] sm:$0xff]
        %v2217 = vld [vmem:[%s2169 + $0x178] sm:$0xff]
        %v2282 = vunpack.c.l.b16 %v2105
        %v2283 = vunpack.c.h.b16 %v2105
        %v2284 = vunpack.c.l.b16 %v2106
        %v2285 = vunpack.c.l.b16 %v2107
        %v2286 = vunpack.c.h.b16 %v2107
        %v2287 = vunpack.c.l.b16 %v2108
        %v2288 = vunpack.c.l.b16 %v2109
        %v2289 = vunpack.c.h.b16 %v2109
        %v2290 = vunpack.c.l.b16 %v2110
        %v2291 = vunpack.c.l.b16 %v2111
        %v2292 = vunpack.c.h.b16 %v2111
        %v2293 = vunpack.c.l.b16 %v2112
        %v2294 = vunpack.c.l.b16 %v2113
        %v2295 = vunpack.c.h.b16 %v2113
        %v2296 = vunpack.c.l.b16 %v2114
        %v2297 = vunpack.c.l.b16 %v2115
        %v2298 = vunpack.c.h.b16 %v2115
        %v2299 = vunpack.c.l.b16 %v2116
        %v2300 = vunpack.c.l.b16 %v2117
        %v2301 = vunpack.c.h.b16 %v2117
        %v2302 = vunpack.c.l.b16 %v2118
        %v2303 = vunpack.c.l.b16 %v2119
        %v2304 = vunpack.c.h.b16 %v2119
        %v2305 = vunpack.c.l.b16 %v2120
        %v2306 = vunpack.c.l.b16 %v2121
        %v2307 = vunpack.c.h.b16 %v2121
        %v2308 = vunpack.c.l.b16 %v2122
        %v2309 = vunpack.c.l.b16 %v2123
        %v2310 = vunpack.c.h.b16 %v2123
        %v2311 = vunpack.c.l.b16 %v2124
        %v2312 = vunpack.c.l.b16 %v2125
        %v2313 = vunpack.c.h.b16 %v2125
        %v2314 = vunpack.c.l.b16 %v2126
        %v2315 = vunpack.c.l.b16 %v2127
        %v2316 = vunpack.c.h.b16 %v2127
        %v2317 = vunpack.c.l.b16 %v2128
        %v2318 = vunpack.c.l.b16 %v2129
        %v2319 = vunpack.c.h.b16 %v2129
        %v2320 = vunpack.c.l.b16 %v2130
        %v2321 = vunpack.c.l.b16 %v2131
        %v2322 = vunpack.c.h.b16 %v2131
        %v2323 = vunpack.c.l.b16 %v2132
        %v2324 = vunpack.c.l.b16 %v2133
        %v2325 = vunpack.c.h.b16 %v2133
        %v2326 = vunpack.c.l.b16 %v2134
        %v2327 = vunpack.c.l.b16 %v2135
        %v2328 = vunpack.c.h.b16 %v2135
        %v2329 = vunpack.c.l.b16 %v2136
        %v2330 = vunpack.c.l.b16 %v2137
        %v2331 = vunpack.c.h.b16 %v2137
        %v2332 = vunpack.c.l.b16 %v2138
        %v2333 = vunpack.c.l.b16 %v2139
        %v2334 = vunpack.c.h.b16 %v2139
        %v2335 = vunpack.c.l.b16 %v2140
        %v2336 = vunpack.c.l.b16 %v2141
        %v2337 = vunpack.c.h.b16 %v2141
        %v2338 = vunpack.c.l.b16 %v2142
        %v2339 = vunpack.c.l.b16 %v2143
        %v2340 = vunpack.c.h.b16 %v2143
        %v2341 = vunpack.c.l.b16 %v2144
        %v2342 = vunpack.c.l.b16 %v2145
        %v2343 = vunpack.c.h.b16 %v2145
        %v2344 = vunpack.c.l.b16 %v2146
        %v2345 = vunpack.c.l.b16 %v2147
        %v2346 = vunpack.c.h.b16 %v2147
        %v2347 = vunpack.c.l.b16 %v2148
        %v2348 = vunpack.c.l.b16 %v2149
        %v2349 = vunpack.c.h.b16 %v2149
        %v2350 = vunpack.c.l.b16 %v2150
        %v2351 = vunpack.c.l.b16 %v2151
        %v2352 = vunpack.c.h.b16 %v2151
        %v2353 = vunpack.c.l.b16 %v2152
        %v2354 = vunpack.c.l.b16 %v2153
        %v2355 = vunpack.c.h.b16 %v2153
        %v2356 = vunpack.c.l.b16 %v2154
        %v2357 = vunpack.c.l.b16 %v2155
        %v2358 = vunpack.c.h.b16 %v2155
        %v2359 = vunpack.c.l.b16 %v2156
        %v2360 = vunpack.c.l.b16 %v2157
        %v2361 = vunpack.c.h.b16 %v2157
        %v2362 = vunpack.c.l.b16 %v2158
        %v2363 = vunpack.c.l.b16 %v2159
        %v2364 = vunpack.c.h.b16 %v2159
        %v2365 = vunpack.c.l.b16 %v2160
        %v2366 = vunpack.c.l.b16 %v2161
        %v2367 = vunpack.c.h.b16 %v2161
        %v2368 = vunpack.c.l.b16 %v2162
        %v2369 = vunpack.c.l.b16 %v2163
        %v2370 = vunpack.c.h.b16 %v2163
        %v2371 = vunpack.c.l.b16 %v2164
        %v2372 = vunpack.c.l.b16 %v2165
        %v2373 = vunpack.c.h.b16 %v2165
        %v2374 = vunpack.c.l.b16 %v2166
        %v2375 = vunpack.c.l.b16 %v2167
        %v2376 = vunpack.c.h.b16 %v2167
        %v2377 = vunpack.c.l.b16 %v2168
        %v2378 = vpack.c.b16 %v2285, %v2282
        %v2379 = vpack.c.b16 %v2286, %v2283
        %v2380 = vpack.c.b16 %v2287, %v2284
        %v2381 = vpack.c.b16 %v2291, %v2288
        %v2382 = vpack.c.b16 %v2292, %v2289
        %v2383 = vpack.c.b16 %v2293, %v2290
        %v2384 = vpack.c.b16 %v2297, %v2294
        %v2385 = vpack.c.b16 %v2298, %v2295
        %v2386 = vpack.c.b16 %v2299, %v2296
        %v2387 = vpack.c.b16 %v2303, %v2300
        %v2388 = vpack.c.b16 %v2304, %v2301
        %v2389 = vpack.c.b16 %v2305, %v2302
        %v2390 = vpack.c.b16 %v2309, %v2306
        %v2391 = vpack.c.b16 %v2310, %v2307
        %v2392 = vpack.c.b16 %v2311, %v2308
        %v2393 = vpack.c.b16 %v2315, %v2312
        %v2394 = vpack.c.b16 %v2316, %v2313
        %v2395 = vpack.c.b16 %v2317, %v2314
        %v2396 = vpack.c.b16 %v2321, %v2318
        %v2397 = vpack.c.b16 %v2322, %v2319
        %v2398 = vpack.c.b16 %v2323, %v2320
        %v2399 = vpack.c.b16 %v2327, %v2324
        %v2400 = vpack.c.b16 %v2328, %v2325
        %v2401 = vpack.c.b16 %v2329, %v2326
        %v2402 = vpack.c.b16 %v2333, %v2330
        %v2403 = vpack.c.b16 %v2334, %v2331
        %v2404 = vpack.c.b16 %v2335, %v2332
        %v2405 = vpack.c.b16 %v2339, %v2336
        %v2406 = vpack.c.b16 %v2340, %v2337
        %v2407 = vpack.c.b16 %v2341, %v2338
        %v2408 = vpack.c.b16 %v2345, %v2342
        %v2409 = vpack.c.b16 %v2346, %v2343
        %v2410 = vpack.c.b16 %v2347, %v2344
        %v2411 = vpack.c.b16 %v2351, %v2348
        %v2412 = vpack.c.b16 %v2352, %v2349
        %v2413 = vpack.c.b16 %v2353, %v2350
        %v2414 = vpack.c.b16 %v2357, %v2354
        %v2415 = vpack.c.b16 %v2358, %v2355
        %v2416 = vpack.c.b16 %v2359, %v2356
        %v2417 = vpack.c.b16 %v2363, %v2360
        %v2418 = vpack.c.b16 %v2364, %v2361
        %v2419 = vpack.c.b16 %v2365, %v2362
        %v2420 = vpack.c.b16 %v2369, %v2366
        %v2421 = vpack.c.b16 %v2370, %v2367
        %v2422 = vpack.c.b16 %v2371, %v2368
        %v2423 = vpack.c.b16 %v2375, %v2372
        %v2424 = vpack.c.b16 %v2376, %v2373
        %v2425 = vpack.c.b16 %v2377, %v2374
        %v2522 = vunpack.c.l.b16 %v2170
        %v2523 = vunpack.c.h.b16 %v2170
        %v2524 = vunpack.c.l.b16 %v2171
        %v2525 = vunpack.c.h.b16 %v2171
        %v2526 = vunpack.c.l.b16 %v2172
        %v2527 = vunpack.c.h.b16 %v2172
        %v2528 = vunpack.c.l.b16 %v2173
        %v2529 = vunpack.c.h.b16 %v2173
        %v2530 = vunpack.c.l.b16 %v2174
        %v2531 = vunpack.c.h.b16 %v2174
        %v2532 = vunpack.c.l.b16 %v2175
        %v2533 = vunpack.c.h.b16 %v2175
        %v2534 = vunpack.c.l.b16 %v2176
        %v2535 = vunpack.c.h.b16 %v2176
        %v2536 = vunpack.c.l.b16 %v2177
        %v2537 = vunpack.c.h.b16 %v2177
        %v2538 = vunpack.c.l.b16 %v2178
        %v2539 = vunpack.c.h.b16 %v2178
        %v2540 = vunpack.c.l.b16 %v2179
        %v2541 = vunpack.c.h.b16 %v2179
        %v2542 = vunpack.c.l.b16 %v2180
        %v2543 = vunpack.c.h.b16 %v2180
        %v2544 = vunpack.c.l.b16 %v2181
        %v2545 = vunpack.c.h.b16 %v2181
        %v2546 = vunpack.c.l.b16 %v2182
        %v2547 = vunpack.c.h.b16 %v2182
        %v2548 = vunpack.c.l.b16 %v2183
        %v2549 = vunpack.c.h.b16 %v2183
        %v2550 = vunpack.c.l.b16 %v2184
        %v2551 = vunpack.c.h.b16 %v2184
        %v2552 = vunpack.c.l.b16 %v2185
        %v2553 = vunpack.c.h.b16 %v2185
        %v2554 = vunpack.c.l.b16 %v2186
        %v2555 = vunpack.c.h.b16 %v2186
        %v2556 = vunpack.c.l.b16 %v2187
        %v2557 = vunpack.c.h.b16 %v2187
        %v2558 = vunpack.c.l.b16 %v2188
        %v2559 = vunpack.c.h.b16 %v2188
        %v2560 = vunpack.c.l.b16 %v2189
        %v2561 = vunpack.c.h.b16 %v2189
        %v2562 = vunpack.c.l.b16 %v2190
        %v2563 = vunpack.c.h.b16 %v2190
        %v2564 = vunpack.c.l.b16 %v2191
        %v2565 = vunpack.c.h.b16 %v2191
        %v2566 = vunpack.c.l.b16 %v2192
        %v2567 = vunpack.c.h.b16 %v2192
        %v2568 = vunpack.c.l.b16 %v2193
        %v2569 = vunpack.c.h.b16 %v2193
        %v2570 = vunpack.c.l.b16 %v2194
        %v2571 = vunpack.c.h.b16 %v2194
        %v2572 = vunpack.c.l.b16 %v2195
        %v2573 = vunpack.c.h.b16 %v2195
        %v2574 = vunpack.c.l.b16 %v2196
        %v2575 = vunpack.c.h.b16 %v2196
        %v2576 = vunpack.c.l.b16 %v2197
        %v2577 = vunpack.c.h.b16 %v2197
        %v2578 = vunpack.c.l.b16 %v2198
        %v2579 = vunpack.c.h.b16 %v2198
        %v2580 = vunpack.c.l.b16 %v2199
        %v2581 = vunpack.c.h.b16 %v2199
        %v2582 = vunpack.c.l.b16 %v2200
        %v2583 = vunpack.c.h.b16 %v2200
        %v2584 = vunpack.c.l.b16 %v2201
        %v2585 = vunpack.c.h.b16 %v2201
        %v2586 = vunpack.c.l.b16 %v2202
        %v2587 = vunpack.c.h.b16 %v2202
        %v2588 = vunpack.c.l.b16 %v2203
        %v2589 = vunpack.c.h.b16 %v2203
        %v2590 = vunpack.c.l.b16 %v2204
        %v2591 = vunpack.c.h.b16 %v2204
        %v2592 = vunpack.c.l.b16 %v2205
        %v2593 = vunpack.c.h.b16 %v2205
        %v2594 = vunpack.c.l.b16 %v2206
        %v2595 = vunpack.c.h.b16 %v2206
        %v2596 = vunpack.c.l.b16 %v2207
        %v2597 = vunpack.c.h.b16 %v2207
        %v2598 = vunpack.c.l.b16 %v2208
        %v2599 = vunpack.c.h.b16 %v2208
        %v2600 = vunpack.c.l.b16 %v2209
        %v2601 = vunpack.c.h.b16 %v2209
        %v2602 = vunpack.c.l.b16 %v2210
        %v2603 = vunpack.c.h.b16 %v2210
        %v2604 = vunpack.c.l.b16 %v2211
        %v2605 = vunpack.c.h.b16 %v2211
        %v2606 = vunpack.c.l.b16 %v2212
        %v2607 = vunpack.c.h.b16 %v2212
        %v2608 = vunpack.c.l.b16 %v2213
        %v2609 = vunpack.c.h.b16 %v2213
        %v2610 = vunpack.c.l.b16 %v2214
        %v2611 = vunpack.c.h.b16 %v2214
        %v2612 = vunpack.c.l.b16 %v2215
        %v2613 = vunpack.c.h.b16 %v2215
        %v2614 = vunpack.c.l.b16 %v2216
        %v2615 = vunpack.c.h.b16 %v2216
        %v2616 = vunpack.c.l.b16 %v2217
        %v2617 = vunpack.c.h.b16 %v2217
        %v2618 = vpack.c.b16 %v2524, %v2522
        %v2619 = vpack.c.b16 %v2525, %v2523
        %v2620 = vpack.c.b16 %v2528, %v2526
        %v2621 = vpack.c.b16 %v2529, %v2527
        %v2622 = vpack.c.b16 %v2532, %v2530
        %v2623 = vpack.c.b16 %v2533, %v2531
        %v2624 = vpack.c.b16 %v2536, %v2534
        %v2625 = vpack.c.b16 %v2537, %v2535
        %v2626 = vpack.c.b16 %v2540, %v2538
        %v2627 = vpack.c.b16 %v2541, %v2539
        %v2628 = vpack.c.b16 %v2544, %v2542
        %v2629 = vpack.c.b16 %v2545, %v2543
        %v2630 = vpack.c.b16 %v2548, %v2546
        %v2631 = vpack.c.b16 %v2549, %v2547
        %v2632 = vpack.c.b16 %v2552, %v2550
        %v2633 = vpack.c.b16 %v2553, %v2551
        %v2634 = vpack.c.b16 %v2556, %v2554
        %v2635 = vpack.c.b16 %v2557, %v2555
        %v2636 = vpack.c.b16 %v2560, %v2558
        %v2637 = vpack.c.b16 %v2561, %v2559
        %v2638 = vpack.c.b16 %v2564, %v2562
        %v2639 = vpack.c.b16 %v2565, %v2563
        %v2640 = vpack.c.b16 %v2568, %v2566
        %v2641 = vpack.c.b16 %v2569, %v2567
        %v2642 = vpack.c.b16 %v2572, %v2570
        %v2643 = vpack.c.b16 %v2573, %v2571
        %v2644 = vpack.c.b16 %v2576, %v2574
        %v2645 = vpack.c.b16 %v2577, %v2575
        %v2646 = vpack.c.b16 %v2580, %v2578
        %v2647 = vpack.c.b16 %v2581, %v2579
        %v2648 = vpack.c.b16 %v2584, %v2582
        %v2649 = vpack.c.b16 %v2585, %v2583
        %v2650 = vpack.c.b16 %v2588, %v2586
        %v2651 = vpack.c.b16 %v2589, %v2587
        %v2652 = vpack.c.b16 %v2592, %v2590
        %v2653 = vpack.c.b16 %v2593, %v2591
        %v2654 = vpack.c.b16 %v2596, %v2594
        %v2655 = vpack.c.b16 %v2597, %v2595
        %v2656 = vpack.c.b16 %v2600, %v2598
        %v2657 = vpack.c.b16 %v2601, %v2599
        %v2658 = vpack.c.b16 %v2604, %v2602
        %v2659 = vpack.c.b16 %v2605, %v2603
        %v2660 = vpack.c.b16 %v2608, %v2606
        %v2661 = vpack.c.b16 %v2609, %v2607
        %v2662 = vpack.c.b16 %v2612, %v2610
        %v2663 = vpack.c.b16 %v2613, %v2611
        %v2664 = vpack.c.b16 %v2616, %v2614
        %v2665 = vpack.c.b16 %v2617, %v2615
        %2714 = vmatprep.subr.bf16.mxu0 %v2633
        %2715 = vmatpush1.bf16.msra.mxu0 %v2632
        %2716 = vmatprep.subr.bf16.mxu0 %v2631
        %2717 = vmatpush1.bf16.msra.mxu0 %v2630
        %2718 = vmatprep.subr.bf16.mxu0 %v2629
        %2719 = vmatpush1.bf16.msra.mxu0 %v2628
        %2720 = vmatprep.subr.bf16.mxu0 %v2627
        %2721 = vmatpush1.bf16.msra.mxu0 %v2626
        %2722 = vmatprep.subr.bf16.mxu0 %v2625
        %2723 = vmatpush1.bf16.msra.mxu0 %v2624
        %2724 = vmatprep.subr.bf16.mxu0 %v2623
        %2725 = vmatpush1.bf16.msra.mxu0 %v2622
        %2726 = vmatprep.subr.bf16.mxu0 %v2621
        %2727 = vmatpush1.bf16.msra.mxu0 %v2620
        %2728 = vmatprep.subr.bf16.mxu0 %v2619
        %2729 = vmatpush1.bf16.msra.mxu0 %v2618
        %2730 = vmatprep.subr.bf16.mxu0 %v2649
        %2731 = vmatpush2.bf16.msra.mxu0 %v2648
        %2732 = vmatprep.subr.bf16.mxu0 %v2647
        %2733 = vmatpush2.bf16.msra.mxu0 %v2646
        %2734 = vmatprep.subr.bf16.mxu0 %v2645
        %2735 = vmatpush2.bf16.msra.mxu0 %v2644
        %2736 = vmatprep.subr.bf16.mxu0 %v2643
        %2737 = vmatpush2.bf16.msra.mxu0 %v2642
        %2738 = vmatprep.subr.bf16.mxu0 %v2641
        %2739 = vmatpush2.bf16.msra.mxu0 %v2640
        %2740 = vmatprep.subr.bf16.mxu0 %v2639
        %2741 = vmatpush2.bf16.msra.mxu0 %v2638
        %2742 = vmatprep.subr.bf16.mxu0 %v2637
        %2743 = vmatpush2.bf16.msra.mxu0 %v2636
        %2744 = vmatprep.subr.bf16.mxu0 %v2635
        %2745 = vmatpush2.bf16.msra.mxu0 %v2634
        %2746 = vmatprep.mubr.bf16.mxu0 %v2379
        %2747 = vmatmul.mubr.bf16.gmra.mxu0 %v2378
        %v2748 = vpop.f32.mrf.mxu0
        %v2749 = vadd.f32 0.0, %v2748
        %v2750 = vpop.f32.mrf.mxu0
        %v2751 = vadd.f32 0.0, %v2750
        %v2752 = vpop.f32.mrf.mxu0
        %v2753 = vadd.f32 0.0, %v2752
        %v2754 = vpop.f32.mrf.mxu0
        %v2755 = vadd.f32 0.0, %v2754
        %2756 = vmatprep.mubr.bf16.mxu0 %v2382
        %2757 = vmatmul.mubr.bf16.gmra.mxu0 %v2381
        %v2758 = vpop.f32.mrf.mxu0
        %v2759 = vadd.f32 0.0, %v2758
        %v2760 = vpop.f32.mrf.mxu0
        %v2761 = vadd.f32 0.0, %v2760
        %v2762 = vpop.f32.mrf.mxu0
        %v2763 = vadd.f32 0.0, %v2762
        %v2764 = vpop.f32.mrf.mxu0
        %v2765 = vadd.f32 0.0, %v2764
        %2766 = vmatprep.mubr.bf16.mxu0 %v2385
        %2767 = vmatmul.mubr.bf16.gmra.mxu0 %v2384
        %v2768 = vpop.f32.mrf.mxu0
        %v2769 = vadd.f32 0.0, %v2768
        %v2770 = vpop.f32.mrf.mxu0
        %v2771 = vadd.f32 0.0, %v2770
        %v2772 = vpop.f32.mrf.mxu0
        %v2773 = vadd.f32 0.0, %v2772
        %v2774 = vpop.f32.mrf.mxu0
        %v2775 = vadd.f32 0.0, %v2774
        %2776 = vmatprep.mubr.bf16.mxu0 %v2388
        %2777 = vmatmul.mubr.bf16.gmra.mxu0 %v2387
        %v2778 = vpop.f32.mrf.mxu0
        %v2779 = vadd.f32 0.0, %v2778
        %v2780 = vpop.f32.mrf.mxu0
        %v2781 = vadd.f32 0.0, %v2780
        %v2782 = vpop.f32.mrf.mxu0
        %v2783 = vadd.f32 0.0, %v2782
        %v2784 = vpop.f32.mrf.mxu0
        %v2785 = vadd.f32 0.0, %v2784
        %2786 = vmatprep.mubr.bf16.mxu0 %v2391
        %2787 = vmatmul.mubr.bf16.gmra.mxu0 %v2390
        %v2788 = vpop.f32.mrf.mxu0
        %v2789 = vadd.f32 0.0, %v2788
        %v2790 = vpop.f32.mrf.mxu0
        %v2791 = vadd.f32 0.0, %v2790
        %v2792 = vpop.f32.mrf.mxu0
        %v2793 = vadd.f32 0.0, %v2792
        %v2794 = vpop.f32.mrf.mxu0
        %v2795 = vadd.f32 0.0, %v2794
        %2796 = vmatprep.mubr.bf16.mxu0 %v2394
        %2797 = vmatmul.mubr.bf16.gmra.mxu0 %v2393
        %v2798 = vpop.f32.mrf.mxu0
        %v2799 = vadd.f32 0.0, %v2798
        %v2800 = vpop.f32.mrf.mxu0
        %v2801 = vadd.f32 0.0, %v2800
        %v2802 = vpop.f32.mrf.mxu0
        %v2803 = vadd.f32 0.0, %v2802
        %v2804 = vpop.f32.mrf.mxu0
        %v2805 = vadd.f32 0.0, %v2804
        %2806 = vmatprep.mubr.bf16.mxu0 %v2397
        %2807 = vmatmul.mubr.bf16.gmra.mxu0 %v2396
        %v2808 = vpop.f32.mrf.mxu0
        %v2809 = vadd.f32 0.0, %v2808
        %v2810 = vpop.f32.mrf.mxu0
        %v2811 = vadd.f32 0.0, %v2810
        %v2812 = vpop.f32.mrf.mxu0
        %v2813 = vadd.f32 0.0, %v2812
        %v2814 = vpop.f32.mrf.mxu0
        %v2815 = vadd.f32 0.0, %v2814
        %2816 = vmatprep.mubr.bf16.mxu0 %v2400
        %2817 = vmatmul.mubr.bf16.gmra.mxu0 %v2399
        %v2818 = vpop.f32.mrf.mxu0
        %v2819 = vadd.f32 0.0, %v2818
        %v2820 = vpop.f32.mrf.mxu0
        %v2821 = vadd.f32 0.0, %v2820
        %v2822 = vpop.f32.mrf.mxu0
        %v2823 = vadd.f32 0.0, %v2822
        %v2824 = vpop.f32.mrf.mxu0
        %v2825 = vadd.f32 0.0, %v2824
        %2826 = vmatprep.mubr.bf16.mxu0 %v2403
        %2827 = vmatmul.mubr.bf16.gmra.mxu0 %v2402
        %v2828 = vpop.f32.mrf.mxu0
        %v2829 = vadd.f32 0.0, %v2828
        %v2830 = vpop.f32.mrf.mxu0
        %v2831 = vadd.f32 0.0, %v2830
        %v2832 = vpop.f32.mrf.mxu0
        %v2833 = vadd.f32 0.0, %v2832
        %v2834 = vpop.f32.mrf.mxu0
        %v2835 = vadd.f32 0.0, %v2834
        %2836 = vmatprep.mubr.bf16.mxu0 %v2406
        %2837 = vmatmul.mubr.bf16.gmra.mxu0 %v2405
        %v2838 = vpop.f32.mrf.mxu0
        %v2839 = vadd.f32 0.0, %v2838
        %v2840 = vpop.f32.mrf.mxu0
        %v2841 = vadd.f32 0.0, %v2840
        %v2842 = vpop.f32.mrf.mxu0
        %v2843 = vadd.f32 0.0, %v2842
        %v2844 = vpop.f32.mrf.mxu0
        %v2845 = vadd.f32 0.0, %v2844
        %2846 = vmatprep.mubr.bf16.mxu0 %v2409
        %2847 = vmatmul.mubr.bf16.gmra.mxu0 %v2408
        %v2848 = vpop.f32.mrf.mxu0
        %v2849 = vadd.f32 0.0, %v2848
        %v2850 = vpop.f32.mrf.mxu0
        %v2851 = vadd.f32 0.0, %v2850
        %v2852 = vpop.f32.mrf.mxu0
        %v2853 = vadd.f32 0.0, %v2852
        %v2854 = vpop.f32.mrf.mxu0
        %v2855 = vadd.f32 0.0, %v2854
        %2856 = vmatprep.mubr.bf16.mxu0 %v2412
        %2857 = vmatmul.mubr.bf16.gmra.mxu0 %v2411
        %v2858 = vpop.f32.mrf.mxu0
        %v2859 = vadd.f32 0.0, %v2858
        %v2860 = vpop.f32.mrf.mxu0
        %v2861 = vadd.f32 0.0, %v2860
        %v2862 = vpop.f32.mrf.mxu0
        %v2863 = vadd.f32 0.0, %v2862
        %v2864 = vpop.f32.mrf.mxu0
        %v2865 = vadd.f32 0.0, %v2864
        %2866 = vmatprep.mubr.bf16.mxu0 %v2415
        %2867 = vmatmul.mubr.bf16.gmra.mxu0 %v2414
        %v2868 = vpop.f32.mrf.mxu0
        %v2869 = vadd.f32 0.0, %v2868
        %v2870 = vpop.f32.mrf.mxu0
        %v2871 = vadd.f32 0.0, %v2870
        %v2872 = vpop.f32.mrf.mxu0
        %v2873 = vadd.f32 0.0, %v2872
        %v2874 = vpop.f32.mrf.mxu0
        %v2875 = vadd.f32 0.0, %v2874
        %2876 = vmatprep.mubr.bf16.mxu0 %v2418
        %2877 = vmatmul.mubr.bf16.gmra.mxu0 %v2417
        %v2878 = vpop.f32.mrf.mxu0
        %v2879 = vadd.f32 0.0, %v2878
        %v2880 = vpop.f32.mrf.mxu0
        %v2881 = vadd.f32 0.0, %v2880
        %v2882 = vpop.f32.mrf.mxu0
        %v2883 = vadd.f32 0.0, %v2882
        %v2884 = vpop.f32.mrf.mxu0
        %v2885 = vadd.f32 0.0, %v2884
        %2886 = vmatprep.mubr.bf16.mxu0 %v2421
        %2887 = vmatmul.mubr.bf16.gmra.mxu0 %v2420
        %v2888 = vpop.f32.mrf.mxu0
        %v2889 = vadd.f32 0.0, %v2888
        %v2890 = vpop.f32.mrf.mxu0
        %v2891 = vadd.f32 0.0, %v2890
        %v2892 = vpop.f32.mrf.mxu0
        %v2893 = vadd.f32 0.0, %v2892
        %v2894 = vpop.f32.mrf.mxu0
        %v2895 = vadd.f32 0.0, %v2894
        %2896 = vmatprep.mubr.bf16.mxu0 %v2424
        %2897 = vmatmul.mubr.bf16.gmra.mxu0 %v2423
        %v2898 = vpop.f32.mrf.mxu0
        %v2899 = vadd.f32 0.0, %v2898
        %v2900 = vpop.f32.mrf.mxu0
        %v2901 = vadd.f32 0.0, %v2900
        %v2902 = vpop.f32.mrf.mxu0
        %v2903 = vadd.f32 0.0, %v2902
        %v2904 = vpop.f32.mrf.mxu0
        %v2905 = vadd.f32 0.0, %v2904
        %2906 = vdwg.mxu0
        %2907 = vmatprep.subr.bf16.mxu0 %v2665
        %2908 = vmatpush1.bf16.msra.mxu0 %v2664
        %2909 = vmatprep.subr.bf16.mxu0 %v2663
        %2910 = vmatpush1.bf16.msra.mxu0 %v2662
        %2911 = vmatprep.subr.bf16.mxu0 %v2661
        %2912 = vmatpush1.bf16.msra.mxu0 %v2660
        %2913 = vmatprep.subr.bf16.mxu0 %v2659
        %2914 = vmatpush1.bf16.msra.mxu0 %v2658
        %2915 = vmatprep.subr.bf16.mxu0 %v2657
        %2916 = vmatpush1.bf16.msra.mxu0 %v2656
        %2917 = vmatprep.subr.bf16.mxu0 %v2655
        %2918 = vmatpush1.bf16.msra.mxu0 %v2654
        %2919 = vmatprep.subr.bf16.mxu0 %v2653
        %2920 = vmatpush1.bf16.msra.mxu0 %v2652
        %2921 = vmatprep.subr.bf16.mxu0 %v2651
        %2922 = vmatpush1.bf16.msra.mxu0 %v2650
        %2923 = vmatprep.subr.bf16.mxu0 0
        %2924 = vmatpush2.bf16.msra.mxu0 0
        %2925 = vmatprep.subr.bf16.mxu0 0
        %2926 = vmatpush2.bf16.msra.mxu0 0
        %2927 = vmatprep.subr.bf16.mxu0 0
        %2928 = vmatpush2.bf16.msra.mxu0 0
        %2929 = vmatprep.subr.bf16.mxu0 0
        %2930 = vmatpush2.bf16.msra.mxu0 0
        %2931 = vmatprep.subr.bf16.mxu0 0
        %2932 = vmatpush2.bf16.msra.mxu0 0
        %2933 = vmatprep.subr.bf16.mxu0 0
        %2934 = vmatpush2.bf16.msra.mxu0 0
        %2935 = vmatprep.subr.bf16.mxu0 0
        %2936 = vmatpush2.bf16.msra.mxu0 0
        %2937 = vmatprep.subr.bf16.mxu0 0
        %2938 = vmatpush2.bf16.msra.mxu0 0
        %2939 = vmatprep.mubr.bf16.mxu0 0
        %2940 = vmatmul.mubr.bf16.gmra.mxu0 %v2380
        %v2941 = vpop.f32.mrf.mxu0
        %v2942 = vadd.f32 %v2749, %v2941
        %v2943 = vpop.f32.mrf.mxu0
        %v2944 = vadd.f32 %v2751, %v2943
        %v2945 = vpop.f32.mrf.mxu0
        %v2946 = vadd.f32 %v2753, %v2945
        %v2947 = vpop.f32.mrf.mxu0
        %v2948 = vadd.f32 %v2755, %v2947
        %2949 = vmatprep.mubr.bf16.mxu0 0
        %2950 = vmatmul.mubr.bf16.gmra.mxu0 %v2383
        %v2951 = vpop.f32.mrf.mxu0
        %v2952 = vadd.f32 %v2759, %v2951
        %v2953 = vpop.f32.mrf.mxu0
        %v2954 = vadd.f32 %v2761, %v2953
        %v2955 = vpop.f32.mrf.mxu0
        %v2956 = vadd.f32 %v2763, %v2955
        %v2957 = vpop.f32.mrf.mxu0
        %v2958 = vadd.f32 %v2765, %v2957
        %2959 = vmatprep.mubr.bf16.mxu0 0
        %2960 = vmatmul.mubr.bf16.gmra.mxu0 %v2386
        %v2961 = vpop.f32.mrf.mxu0
        %v2962 = vadd.f32 %v2769, %v2961
        %v2963 = vpop.f32.mrf.mxu0
        %v2964 = vadd.f32 %v2771, %v2963
        %v2965 = vpop.f32.mrf.mxu0
        %v2966 = vadd.f32 %v2773, %v2965
        %v2967 = vpop.f32.mrf.mxu0
        %v2968 = vadd.f32 %v2775, %v2967
        %2969 = vmatprep.mubr.bf16.mxu0 0
        %2970 = vmatmul.mubr.bf16.gmra.mxu0 %v2389
        %v2971 = vpop.f32.mrf.mxu0
        %v2972 = vadd.f32 %v2779, %v2971
        %v2973 = vpop.f32.mrf.mxu0
        %v2974 = vadd.f32 %v2781, %v2973
        %v2975 = vpop.f32.mrf.mxu0
        %v2976 = vadd.f32 %v2783, %v2975
        %v2977 = vpop.f32.mrf.mxu0
        %v2978 = vadd.f32 %v2785, %v2977
        %2979 = vmatprep.mubr.bf16.mxu0 0
        %2980 = vmatmul.mubr.bf16.gmra.mxu0 %v2392
        %v2981 = vpop.f32.mrf.mxu0
        %v2982 = vadd.f32 %v2789, %v2981
        %v2983 = vpop.f32.mrf.mxu0
        %v2984 = vadd.f32 %v2791, %v2983
        %v2985 = vpop.f32.mrf.mxu0
        %v2986 = vadd.f32 %v2793, %v2985
        %v2987 = vpop.f32.mrf.mxu0
        %v2988 = vadd.f32 %v2795, %v2987
        %2989 = vmatprep.mubr.bf16.mxu0 0
        %2990 = vmatmul.mubr.bf16.gmra.mxu0 %v2395
        %v2991 = vpop.f32.mrf.mxu0
        %v2992 = vadd.f32 %v2799, %v2991
        %v2993 = vpop.f32.mrf.mxu0
        %v2994 = vadd.f32 %v2801, %v2993
        %v2995 = vpop.f32.mrf.mxu0
        %v2996 = vadd.f32 %v2803, %v2995
        %v2997 = vpop.f32.mrf.mxu0
        %v2998 = vadd.f32 %v2805, %v2997
        %2999 = vmatprep.mubr.bf16.mxu0 0
        %3000 = vmatmul.mubr.bf16.gmra.mxu0 %v2398
        %v3001 = vpop.f32.mrf.mxu0
        %v3002 = vadd.f32 %v2809, %v3001
        %v3003 = vpop.f32.mrf.mxu0
        %v3004 = vadd.f32 %v2811, %v3003
        %v3005 = vpop.f32.mrf.mxu0
        %v3006 = vadd.f32 %v2813, %v3005
        %v3007 = vpop.f32.mrf.mxu0
        %v3008 = vadd.f32 %v2815, %v3007
        %3009 = vmatprep.mubr.bf16.mxu0 0
        %3010 = vmatmul.mubr.bf16.gmra.mxu0 %v2401
        %v3011 = vpop.f32.mrf.mxu0
        %v3012 = vadd.f32 %v2819, %v3011
        %v3013 = vpop.f32.mrf.mxu0
        %v3014 = vadd.f32 %v2821, %v3013
        %v3015 = vpop.f32.mrf.mxu0
        %v3016 = vadd.f32 %v2823, %v3015
        %v3017 = vpop.f32.mrf.mxu0
        %v3018 = vadd.f32 %v2825, %v3017
        %3019 = vmatprep.mubr.bf16.mxu0 0
        %3020 = vmatmul.mubr.bf16.gmra.mxu0 %v2404
        %v3021 = vpop.f32.mrf.mxu0
        %v3022 = vadd.f32 %v2829, %v3021
        %v3023 = vpop.f32.mrf.mxu0
        %v3024 = vadd.f32 %v2831, %v3023
        %v3025 = vpop.f32.mrf.mxu0
        %v3026 = vadd.f32 %v2833, %v3025
        %v3027 = vpop.f32.mrf.mxu0
        %v3028 = vadd.f32 %v2835, %v3027
        %3029 = vmatprep.mubr.bf16.mxu0 0
        %3030 = vmatmul.mubr.bf16.gmra.mxu0 %v2407
        %v3031 = vpop.f32.mrf.mxu0
        %v3032 = vadd.f32 %v2839, %v3031
        %v3033 = vpop.f32.mrf.mxu0
        %v3034 = vadd.f32 %v2841, %v3033
        %v3035 = vpop.f32.mrf.mxu0
        %v3036 = vadd.f32 %v2843, %v3035
        %v3037 = vpop.f32.mrf.mxu0
        %v3038 = vadd.f32 %v2845, %v3037
        %3039 = vmatprep.mubr.bf16.mxu0 0
        %3040 = vmatmul.mubr.bf16.gmra.mxu0 %v2410
        %v3041 = vpop.f32.mrf.mxu0
        %v3042 = vadd.f32 %v2849, %v3041
        %v3043 = vpop.f32.mrf.mxu0
        %v3044 = vadd.f32 %v2851, %v3043
        %v3045 = vpop.f32.mrf.mxu0
        %v3046 = vadd.f32 %v2853, %v3045
        %v3047 = vpop.f32.mrf.mxu0
        %v3048 = vadd.f32 %v2855, %v3047
        %3049 = vmatprep.mubr.bf16.mxu0 0
        %3050 = vmatmul.mubr.bf16.gmra.mxu0 %v2413
        %v3051 = vpop.f32.mrf.mxu0
        %v3052 = vadd.f32 %v2859, %v3051
        %v3053 = vpop.f32.mrf.mxu0
        %v3054 = vadd.f32 %v2861, %v3053
        %v3055 = vpop.f32.mrf.mxu0
        %v3056 = vadd.f32 %v2863, %v3055
        %v3057 = vpop.f32.mrf.mxu0
        %v3058 = vadd.f32 %v2865, %v3057
        %3059 = vmatprep.mubr.bf16.mxu0 0
        %3060 = vmatmul.mubr.bf16.gmra.mxu0 %v2416
        %v3061 = vpop.f32.mrf.mxu0
        %v3062 = vadd.f32 %v2869, %v3061
        %v3063 = vpop.f32.mrf.mxu0
        %v3064 = vadd.f32 %v2871, %v3063
        %v3065 = vpop.f32.mrf.mxu0
        %v3066 = vadd.f32 %v2873, %v3065
        %v3067 = vpop.f32.mrf.mxu0
        %v3068 = vadd.f32 %v2875, %v3067
        %3069 = vmatprep.mubr.bf16.mxu0 0
        %3070 = vmatmul.mubr.bf16.gmra.mxu0 %v2419
        %v3071 = vpop.f32.mrf.mxu0
        %v3072 = vadd.f32 %v2879, %v3071
        %v3073 = vpop.f32.mrf.mxu0
        %v3074 = vadd.f32 %v2881, %v3073
        %v3075 = vpop.f32.mrf.mxu0
        %v3076 = vadd.f32 %v2883, %v3075
        %v3077 = vpop.f32.mrf.mxu0
        %v3078 = vadd.f32 %v2885, %v3077
        %3079 = vmatprep.mubr.bf16.mxu0 0
        %3080 = vmatmul.mubr.bf16.gmra.mxu0 %v2422
        %v3081 = vpop.f32.mrf.mxu0
        %v3082 = vadd.f32 %v2889, %v3081
        %v3083 = vpop.f32.mrf.mxu0
        %v3084 = vadd.f32 %v2891, %v3083
        %v3085 = vpop.f32.mrf.mxu0
        %v3086 = vadd.f32 %v2893, %v3085
        %v3087 = vpop.f32.mrf.mxu0
        %v3088 = vadd.f32 %v2895, %v3087
        %3089 = vmatprep.mubr.bf16.mxu0 0
        %3090 = vmatmul.mubr.bf16.gmra.mxu0 %v2425
        %v3091 = vpop.f32.mrf.mxu0
        %v3092 = vadd.f32 %v2899, %v3091
        %v3093 = vpop.f32.mrf.mxu0
        %v3094 = vadd.f32 %v2901, %v3093
        %v3095 = vpop.f32.mrf.mxu0
        %v3096 = vadd.f32 %v2903, %v3095
        %v3097 = vpop.f32.mrf.mxu0
        %v3098 = vadd.f32 %v2905, %v3097
        %3099 = vdwg.mxu0
        %v3100 = vld [vmem:[#allocation3] sm:$0xff]
        %v3101 = vld [vmem:[#allocation3 + $0x8] sm:$0xff]
        %v3102 = vld [vmem:[#allocation3 + $0x10] sm:$0xff]
        %v3103 = vld [vmem:[#allocation3 + $0x18] sm:$0xff]
        %v3104 = vld [vmem:[#allocation3 + $0x20] sm:$0xff]
        %v3105 = vld [vmem:[#allocation3 + $0x28] sm:$0xff]
        %v3106 = vld [vmem:[#allocation3 + $0x30] sm:$0xff]
        %v3107 = vld [vmem:[#allocation3 + $0x38] sm:$0xff]
        %v3108 = vld [vmem:[#allocation3 + $0x40] sm:$0xff]
        %v3109 = vld [vmem:[#allocation3 + $0x48] sm:$0xff]
        %v3110 = vld [vmem:[#allocation3 + $0x50] sm:$0xff]
        %v3111 = vld [vmem:[#allocation3 + $0x58] sm:$0xff]
        %v3112 = vld [vmem:[#allocation3 + $0x60] sm:$0xff]
        %v3113 = vld [vmem:[#allocation3 + $0x68] sm:$0xff]
        %v3114 = vld [vmem:[#allocation3 + $0x70] sm:$0xff]
        %v3115 = vld [vmem:[#allocation3 + $0x78] sm:$0xff]
        %v3116 = vld [vmem:[#allocation3 + $0x80] sm:$0xff]
        %v3117 = vld [vmem:[#allocation3 + $0x88] sm:$0xff]
        %v3118 = vld [vmem:[#allocation3 + $0x90] sm:$0xff]
        %v3119 = vld [vmem:[#allocation3 + $0x98] sm:$0xff]
        %v3120 = vld [vmem:[#allocation3 + $0xa0] sm:$0xff]
        %v3121 = vld [vmem:[#allocation3 + $0xa8] sm:$0xff]
        %v3122 = vld [vmem:[#allocation3 + $0xb0] sm:$0xff]
        %v3123 = vld [vmem:[#allocation3 + $0xb8] sm:$0xff]
        %v3124 = vld [vmem:[#allocation3 + $0xc0] sm:$0xff]
        %v3125 = vld [vmem:[#allocation3 + $0xc8] sm:$0xff]
        %v3126 = vld [vmem:[#allocation3 + $0xd0] sm:$0xff]
        %v3127 = vld [vmem:[#allocation3 + $0xd8] sm:$0xff]
        %v3128 = vld [vmem:[#allocation3 + $0xe0] sm:$0xff]
        %v3129 = vld [vmem:[#allocation3 + $0xe8] sm:$0xff]
        %v3130 = vld [vmem:[#allocation3 + $0xf0] sm:$0xff]
        %v3131 = vld [vmem:[#allocation3 + $0xf8] sm:$0xff]
        %v3132 = vld [vmem:[#allocation3 + $0x100] sm:$0xff]
        %v3133 = vld [vmem:[#allocation3 + $0x108] sm:$0xff]
        %v3134 = vld [vmem:[#allocation3 + $0x110] sm:$0xff]
        %v3135 = vld [vmem:[#allocation3 + $0x118] sm:$0xff]
        %v3136 = vld [vmem:[#allocation3 + $0x120] sm:$0xff]
        %v3137 = vld [vmem:[#allocation3 + $0x128] sm:$0xff]
        %v3138 = vld [vmem:[#allocation3 + $0x130] sm:$0xff]
        %v3139 = vld [vmem:[#allocation3 + $0x138] sm:$0xff]
        %v3140 = vld [vmem:[#allocation3 + $0x140] sm:$0xff]
        %v3141 = vld [vmem:[#allocation3 + $0x148] sm:$0xff]
        %v3142 = vld [vmem:[#allocation3 + $0x150] sm:$0xff]
        %v3143 = vld [vmem:[#allocation3 + $0x158] sm:$0xff]
        %v3144 = vld [vmem:[#allocation3 + $0x160] sm:$0xff]
        %v3145 = vld [vmem:[#allocation3 + $0x168] sm:$0xff]
        %v3146 = vld [vmem:[#allocation3 + $0x170] sm:$0xff]
        %v3147 = vld [vmem:[#allocation3 + $0x178] sm:$0xff]
        %v3148 = vld [vmem:[#allocation3 + $0x180] sm:$0xff]
        %v3149 = vld [vmem:[#allocation3 + $0x188] sm:$0xff]
        %v3150 = vld [vmem:[#allocation3 + $0x190] sm:$0xff]
        %v3151 = vld [vmem:[#allocation3 + $0x198] sm:$0xff]
        %v3152 = vld [vmem:[#allocation3 + $0x1a0] sm:$0xff]
        %v3153 = vld [vmem:[#allocation3 + $0x1a8] sm:$0xff]
        %v3154 = vld [vmem:[#allocation3 + $0x1b0] sm:$0xff]
        %v3155 = vld [vmem:[#allocation3 + $0x1b8] sm:$0xff]
        %v3156 = vld [vmem:[#allocation3 + $0x1c0] sm:$0xff]
        %v3157 = vld [vmem:[#allocation3 + $0x1c8] sm:$0xff]
        %v3158 = vld [vmem:[#allocation3 + $0x1d0] sm:$0xff]
        %v3159 = vld [vmem:[#allocation3 + $0x1d8] sm:$0xff]
        %v3160 = vld [vmem:[#allocation3 + $0x1e0] sm:$0xff]
        %v3161 = vld [vmem:[#allocation3 + $0x1e8] sm:$0xff]
        %v3162 = vld [vmem:[#allocation3 + $0x1f0] sm:$0xff]
        %v3163 = vld [vmem:[#allocation3 + $0x1f8] sm:$0xff]
        %v3164 = vadd.f32 %v3100, %v2942
        %v3165 = vadd.f32 %v3101, %v2944
        %v3166 = vadd.f32 %v3102, %v2946
        %v3167 = vadd.f32 %v3103, %v2948
        %v3168 = vadd.f32 %v3104, %v2952
        %v3169 = vadd.f32 %v3105, %v2954
        %v3170 = vadd.f32 %v3106, %v2956
        %v3171 = vadd.f32 %v3107, %v2958
        %v3172 = vadd.f32 %v3108, %v2962
        %v3173 = vadd.f32 %v3109, %v2964
        %v3174 = vadd.f32 %v3110, %v2966
        %v3175 = vadd.f32 %v3111, %v2968
        %v3176 = vadd.f32 %v3112, %v2972
        %v3177 = vadd.f32 %v3113, %v2974
        %v3178 = vadd.f32 %v3114, %v2976
        %v3179 = vadd.f32 %v3115, %v2978
        %v3180 = vadd.f32 %v3116, %v2982
        %v3181 = vadd.f32 %v3117, %v2984
        %v3182 = vadd.f32 %v3118, %v2986
        %v3183 = vadd.f32 %v3119, %v2988
        %v3184 = vadd.f32 %v3120, %v2992
        %v3185 = vadd.f32 %v3121, %v2994
        %v3186 = vadd.f32 %v3122, %v2996
        %v3187 = vadd.f32 %v3123, %v2998
        %v3188 = vadd.f32 %v3124, %v3002
        %v3189 = vadd.f32 %v3125, %v3004
        %v3190 = vadd.f32 %v3126, %v3006
        %v3191 = vadd.f32 %v3127, %v3008
        %v3192 = vadd.f32 %v3128, %v3012
        %v3193 = vadd.f32 %v3129, %v3014
        %v3194 = vadd.f32 %v3130, %v3016
        %v3195 = vadd.f32 %v3131, %v3018
        %v3196 = vadd.f32 %v3132, %v3022
        %v3197 = vadd.f32 %v3133, %v3024
        %v3198 = vadd.f32 %v3134, %v3026
        %v3199 = vadd.f32 %v3135, %v3028
        %v3200 = vadd.f32 %v3136, %v3032
        %v3201 = vadd.f32 %v3137, %v3034
        %v3202 = vadd.f32 %v3138, %v3036
        %v3203 = vadd.f32 %v3139, %v3038
        %v3204 = vadd.f32 %v3140, %v3042
        %v3205 = vadd.f32 %v3141, %v3044
        %v3206 = vadd.f32 %v3142, %v3046
        %v3207 = vadd.f32 %v3143, %v3048
        %v3208 = vadd.f32 %v3144, %v3052
        %v3209 = vadd.f32 %v3145, %v3054
        %v3210 = vadd.f32 %v3146, %v3056
        %v3211 = vadd.f32 %v3147, %v3058
        %v3212 = vadd.f32 %v3148, %v3062
        %v3213 = vadd.f32 %v3149, %v3064
        %v3214 = vadd.f32 %v3150, %v3066
        %v3215 = vadd.f32 %v3151, %v3068
        %v3216 = vadd.f32 %v3152, %v3072
        %v3217 = vadd.f32 %v3153, %v3074
        %v3218 = vadd.f32 %v3154, %v3076
        %v3219 = vadd.f32 %v3155, %v3078
        %v3220 = vadd.f32 %v3156, %v3082
        %v3221 = vadd.f32 %v3157, %v3084
        %v3222 = vadd.f32 %v3158, %v3086
        %v3223 = vadd.f32 %v3159, %v3088
        %v3224 = vadd.f32 %v3160, %v3092
        %v3225 = vadd.f32 %v3161, %v3094
        %v3226 = vadd.f32 %v3162, %v3096
        %v3227 = vadd.f32 %v3163, %v3098
        %3228 = vst [vmem:[#allocation3] sm:$0xff] %v3164
        %3229 = vst [vmem:[#allocation3 + $0x8] sm:$0xff] %v3165
        %3230 = vst [vmem:[#allocation3 + $0x10] sm:$0xff] %v3166
        %3231 = vst [vmem:[#allocation3 + $0x18] sm:$0xff] %v3167
        %3232 = vst [vmem:[#allocation3 + $0x20] sm:$0xff] %v3168
        %3233 = vst [vmem:[#allocation3 + $0x28] sm:$0xff] %v3169
        %3234 = vst [vmem:[#allocation3 + $0x30] sm:$0xff] %v3170
        %3235 = vst [vmem:[#allocation3 + $0x38] sm:$0xff] %v3171
        %3236 = vst [vmem:[#allocation3 + $0x40] sm:$0xff] %v3172
        %3237 = vst [vmem:[#allocation3 + $0x48] sm:$0xff] %v3173
        %3238 = vst [vmem:[#allocation3 + $0x50] sm:$0xff] %v3174
        %3239 = vst [vmem:[#allocation3 + $0x58] sm:$0xff] %v3175
        %3240 = vst [vmem:[#allocation3 + $0x60] sm:$0xff] %v3176
        %3241 = vst [vmem:[#allocation3 + $0x68] sm:$0xff] %v3177
        %3242 = vst [vmem:[#allocation3 + $0x70] sm:$0xff] %v3178
        %3243 = vst [vmem:[#allocation3 + $0x78] sm:$0xff] %v3179
        %3244 = vst [vmem:[#allocation3 + $0x80] sm:$0xff] %v3180
        %3245 = vst [vmem:[#allocation3 + $0x88] sm:$0xff] %v3181
        %3246 = vst [vmem:[#allocation3 + $0x90] sm:$0xff] %v3182
        %3247 = vst [vmem:[#allocation3 + $0x98] sm:$0xff] %v3183
        %3248 = vst [vmem:[#allocation3 + $0xa0] sm:$0xff] %v3184
        %3249 = vst [vmem:[#allocation3 + $0xa8] sm:$0xff] %v3185
        %3250 = vst [vmem:[#allocation3 + $0xb0] sm:$0xff] %v3186
        %3251 = vst [vmem:[#allocation3 + $0xb8] sm:$0xff] %v3187
        %3252 = vst [vmem:[#allocation3 + $0xc0] sm:$0xff] %v3188
        %3253 = vst [vmem:[#allocation3 + $0xc8] sm:$0xff] %v3189
        %3254 = vst [vmem:[#allocation3 + $0xd0] sm:$0xff] %v3190
        %3255 = vst [vmem:[#allocation3 + $0xd8] sm:$0xff] %v3191
        %3256 = vst [vmem:[#allocation3 + $0xe0] sm:$0xff] %v3192
        %3257 = vst [vmem:[#allocation3 + $0xe8] sm:$0xff] %v3193
        %3258 = vst [vmem:[#allocation3 + $0xf0] sm:$0xff] %v3194
        %3259 = vst [vmem:[#allocation3 + $0xf8] sm:$0xff] %v3195
        %3260 = vst [vmem:[#allocation3 + $0x100] sm:$0xff] %v3196
        %3261 = vst [vmem:[#allocation3 + $0x108] sm:$0xff] %v3197
        %3262 = vst [vmem:[#allocation3 + $0x110] sm:$0xff] %v3198
        %3263 = vst [vmem:[#allocation3 + $0x118] sm:$0xff] %v3199
        %3264 = vst [vmem:[#allocation3 + $0x120] sm:$0xff] %v3200
        %3265 = vst [vmem:[#allocation3 + $0x128] sm:$0xff] %v3201
        %3266 = vst [vmem:[#allocation3 + $0x130] sm:$0xff] %v3202
        %3267 = vst [vmem:[#allocation3 + $0x138] sm:$0xff] %v3203
        %3268 = vst [vmem:[#allocation3 + $0x140] sm:$0xff] %v3204
        %3269 = vst [vmem:[#allocation3 + $0x148] sm:$0xff] %v3205
        %3270 = vst [vmem:[#allocation3 + $0x150] sm:$0xff] %v3206
        %3271 = vst [vmem:[#allocation3 + $0x158] sm:$0xff] %v3207
        %3272 = vst [vmem:[#allocation3 + $0x160] sm:$0xff] %v3208
        %3273 = vst [vmem:[#allocation3 + $0x168] sm:$0xff] %v3209
        %3274 = vst [vmem:[#allocation3 + $0x170] sm:$0xff] %v3210
        %3275 = vst [vmem:[#allocation3 + $0x178] sm:$0xff] %v3211
        %3276 = vst [vmem:[#allocation3 + $0x180] sm:$0xff] %v3212
        %3277 = vst [vmem:[#allocation3 + $0x188] sm:$0xff] %v3213
        %3278 = vst [vmem:[#allocation3 + $0x190] sm:$0xff] %v3214
        %3279 = vst [vmem:[#allocation3 + $0x198] sm:$0xff] %v3215
        %3280 = vst [vmem:[#allocation3 + $0x1a0] sm:$0xff] %v3216
        %3281 = vst [vmem:[#allocation3 + $0x1a8] sm:$0xff] %v3217
        %3282 = vst [vmem:[#allocation3 + $0x1b0] sm:$0xff] %v3218
        %3283 = vst [vmem:[#allocation3 + $0x1b8] sm:$0xff] %v3219
        %3284 = vst [vmem:[#allocation3 + $0x1c0] sm:$0xff] %v3220
        %3285 = vst [vmem:[#allocation3 + $0x1c8] sm:$0xff] %v3221
        %3286 = vst [vmem:[#allocation3 + $0x1d0] sm:$0xff] %v3222
        %3287 = vst [vmem:[#allocation3 + $0x1d8] sm:$0xff] %v3223
        %3288 = vst [vmem:[#allocation3 + $0x1e0] sm:$0xff] %v3224
        %3289 = vst [vmem:[#allocation3 + $0x1e8] sm:$0xff] %v3225
        %3290 = vst [vmem:[#allocation3 + $0x1f0] sm:$0xff] %v3226
        %3291 = vst [vmem:[#allocation3 + $0x1f8] sm:$0xff] %v3227
        %s3292 = scalar_lea.vmem [#allocation2], 48
        %v3293 = vld [vmem:[%s3292] sm:$0xff]
        %v3294 = vld [vmem:[%s3292 + $0x8] sm:$0xf]
        %v3295 = vld [vmem:[%s3292 + $0xc] sm:$0xff]
        %v3296 = vld [vmem:[%s3292 + $0x14] sm:$0xf]
        %v3297 = vld [vmem:[%s3292 + $0x18] sm:$0xff]
        %v3298 = vld [vmem:[%s3292 + $0x20] sm:$0xf]
        %v3299 = vld [vmem:[%s3292 + $0x24] sm:$0xff]
        %v3300 = vld [vmem:[%s3292 + $0x2c] sm:$0xf]
        %v3301 = vld [vmem:[%s3292 + $0x30] sm:$0xff]
        %v3302 = vld [vmem:[%s3292 + $0x38] sm:$0xf]
        %v3303 = vld [vmem:[%s3292 + $0x3c] sm:$0xff]
        %v3304 = vld [vmem:[%s3292 + $0x44] sm:$0xf]
        %v3305 = vld [vmem:[%s3292 + $0x48] sm:$0xff]
        %v3306 = vld [vmem:[%s3292 + $0x50] sm:$0xf]
        %v3307 = vld [vmem:[%s3292 + $0x54] sm:$0xff]
        %v3308 = vld [vmem:[%s3292 + $0x5c] sm:$0xf]
        %v3309 = vld [vmem:[%s3292 + $0x60] sm:$0xff]
        %v3310 = vld [vmem:[%s3292 + $0x68] sm:$0xf]
        %v3311 = vld [vmem:[%s3292 + $0x6c] sm:$0xff]
        %v3312 = vld [vmem:[%s3292 + $0x74] sm:$0xf]
        %v3313 = vld [vmem:[%s3292 + $0x78] sm:$0xff]
        %v3314 = vld [vmem:[%s3292 + $0x80] sm:$0xf]
        %v3315 = vld [vmem:[%s3292 + $0x84] sm:$0xff]
        %v3316 = vld [vmem:[%s3292 + $0x8c] sm:$0xf]
        %v3317 = vld [vmem:[%s3292 + $0x90] sm:$0xff]
        %v3318 = vld [vmem:[%s3292 + $0x98] sm:$0xf]
        %v3319 = vld [vmem:[%s3292 + $0x9c] sm:$0xff]
        %v3320 = vld [vmem:[%s3292 + $0xa4] sm:$0xf]
        %v3321 = vld [vmem:[%s3292 + $0xa8] sm:$0xff]
        %v3322 = vld [vmem:[%s3292 + $0xb0] sm:$0xf]
        %v3323 = vld [vmem:[%s3292 + $0xb4] sm:$0xff]
        %v3324 = vld [vmem:[%s3292 + $0xbc] sm:$0xf]
        %v3325 = vld [vmem:[%s3292 + $0xc0] sm:$0xff]
        %v3326 = vld [vmem:[%s3292 + $0xc8] sm:$0xf]
        %v3327 = vld [vmem:[%s3292 + $0xcc] sm:$0xff]
        %v3328 = vld [vmem:[%s3292 + $0xd4] sm:$0xf]
        %v3329 = vld [vmem:[%s3292 + $0xd8] sm:$0xff]
        %v3330 = vld [vmem:[%s3292 + $0xe0] sm:$0xf]
        %v3331 = vld [vmem:[%s3292 + $0xe4] sm:$0xff]
        %v3332 = vld [vmem:[%s3292 + $0xec] sm:$0xf]
        %v3333 = vld [vmem:[%s3292 + $0xf0] sm:$0xff]
        %v3334 = vld [vmem:[%s3292 + $0xf8] sm:$0xf]
        %v3335 = vld [vmem:[%s3292 + $0xfc] sm:$0xff]
        %v3336 = vld [vmem:[%s3292 + $0x104] sm:$0xf]
        %v3337 = vld [vmem:[%s3292 + $0x108] sm:$0xff]
        %v3338 = vld [vmem:[%s3292 + $0x110] sm:$0xf]
        %v3339 = vld [vmem:[%s3292 + $0x114] sm:$0xff]
        %v3340 = vld [vmem:[%s3292 + $0x11c] sm:$0xf]
        %v3341 = vld [vmem:[%s3292 + $0x120] sm:$0xff]
        %v3342 = vld [vmem:[%s3292 + $0x128] sm:$0xf]
        %v3343 = vld [vmem:[%s3292 + $0x12c] sm:$0xff]
        %v3344 = vld [vmem:[%s3292 + $0x134] sm:$0xf]
        %v3345 = vld [vmem:[%s3292 + $0x138] sm:$0xff]
        %v3346 = vld [vmem:[%s3292 + $0x140] sm:$0xf]
        %v3347 = vld [vmem:[%s3292 + $0x144] sm:$0xff]
        %v3348 = vld [vmem:[%s3292 + $0x14c] sm:$0xf]
        %v3349 = vld [vmem:[%s3292 + $0x150] sm:$0xff]
        %v3350 = vld [vmem:[%s3292 + $0x158] sm:$0xf]
        %v3351 = vld [vmem:[%s3292 + $0x15c] sm:$0xff]
        %v3352 = vld [vmem:[%s3292 + $0x164] sm:$0xf]
        %v3353 = vld [vmem:[%s3292 + $0x168] sm:$0xff]
        %v3354 = vld [vmem:[%s3292 + $0x170] sm:$0xf]
        %v3355 = vld [vmem:[%s3292 + $0x174] sm:$0xff]
        %v3356 = vld [vmem:[%s3292 + $0x17c] sm:$0xf]
        %s3357 = scalar_lea.vmem [#allocation7], 768
        %v3358 = vld [vmem:[%s3357] sm:$0xff]
        %v3359 = vld [vmem:[%s3357 + $0x8] sm:$0xff]
        %v3360 = vld [vmem:[%s3357 + $0x10] sm:$0xff]
        %v3361 = vld [vmem:[%s3357 + $0x18] sm:$0xff]
        %v3362 = vld [vmem:[%s3357 + $0x20] sm:$0xff]
        %v3363 = vld [vmem:[%s3357 + $0x28] sm:$0xff]
        %v3364 = vld [vmem:[%s3357 + $0x30] sm:$0xff]
        %v3365 = vld [vmem:[%s3357 + $0x38] sm:$0xff]
        %v3366 = vld [vmem:[%s3357 + $0x40] sm:$0xff]
        %v3367 = vld [vmem:[%s3357 + $0x48] sm:$0xff]
        %v3368 = vld [vmem:[%s3357 + $0x50] sm:$0xff]
        %v3369 = vld [vmem:[%s3357 + $0x58] sm:$0xff]
        %v3370 = vld [vmem:[%s3357 + $0x60] sm:$0xff]
        %v3371 = vld [vmem:[%s3357 + $0x68] sm:$0xff]
        %v3372 = vld [vmem:[%s3357 + $0x70] sm:$0xff]
        %v3373 = vld [vmem:[%s3357 + $0x78] sm:$0xff]
        %v3374 = vld [vmem:[%s3357 + $0x80] sm:$0xff]
        %v3375 = vld [vmem:[%s3357 + $0x88] sm:$0xff]
        %v3376 = vld [vmem:[%s3357 + $0x90] sm:$0xff]
        %v3377 = vld [vmem:[%s3357 + $0x98] sm:$0xff]
        %v3378 = vld [vmem:[%s3357 + $0xa0] sm:$0xff]
        %v3379 = vld [vmem:[%s3357 + $0xa8] sm:$0xff]
        %v3380 = vld [vmem:[%s3357 + $0xb0] sm:$0xff]
        %v3381 = vld [vmem:[%s3357 + $0xb8] sm:$0xff]
        %v3382 = vld [vmem:[%s3357 + $0xc0] sm:$0xff]
        %v3383 = vld [vmem:[%s3357 + $0xc8] sm:$0xff]
        %v3384 = vld [vmem:[%s3357 + $0xd0] sm:$0xff]
        %v3385 = vld [vmem:[%s3357 + $0xd8] sm:$0xff]
        %v3386 = vld [vmem:[%s3357 + $0xe0] sm:$0xff]
        %v3387 = vld [vmem:[%s3357 + $0xe8] sm:$0xff]
        %v3388 = vld [vmem:[%s3357 + $0xf0] sm:$0xff]
        %v3389 = vld [vmem:[%s3357 + $0xf8] sm:$0xff]
        %v3390 = vld [vmem:[%s3357 + $0x100] sm:$0xff]
        %v3391 = vld [vmem:[%s3357 + $0x108] sm:$0xff]
        %v3392 = vld [vmem:[%s3357 + $0x110] sm:$0xff]
        %v3393 = vld [vmem:[%s3357 + $0x118] sm:$0xff]
        %v3394 = vld [vmem:[%s3357 + $0x120] sm:$0xff]
        %v3395 = vld [vmem:[%s3357 + $0x128] sm:$0xff]
        %v3396 = vld [vmem:[%s3357 + $0x130] sm:$0xff]
        %v3397 = vld [vmem:[%s3357 + $0x138] sm:$0xff]
        %v3398 = vld [vmem:[%s3357 + $0x140] sm:$0xff]
        %v3399 = vld [vmem:[%s3357 + $0x148] sm:$0xff]
        %v3400 = vld [vmem:[%s3357 + $0x150] sm:$0xff]
        %v3401 = vld [vmem:[%s3357 + $0x158] sm:$0xff]
        %v3402 = vld [vmem:[%s3357 + $0x160] sm:$0xff]
        %v3403 = vld [vmem:[%s3357 + $0x168] sm:$0xff]
        %v3404 = vld [vmem:[%s3357 + $0x170] sm:$0xff]
        %v3405 = vld [vmem:[%s3357 + $0x178] sm:$0xff]
        %v3470 = vunpack.c.l.b16 %v3293
        %v3471 = vunpack.c.h.b16 %v3293
        %v3472 = vunpack.c.l.b16 %v3294
        %v3473 = vunpack.c.l.b16 %v3295
        %v3474 = vunpack.c.h.b16 %v3295
        %v3475 = vunpack.c.l.b16 %v3296
        %v3476 = vunpack.c.l.b16 %v3297
        %v3477 = vunpack.c.h.b16 %v3297
        %v3478 = vunpack.c.l.b16 %v3298
        %v3479 = vunpack.c.l.b16 %v3299
        %v3480 = vunpack.c.h.b16 %v3299
        %v3481 = vunpack.c.l.b16 %v3300
        %v3482 = vunpack.c.l.b16 %v3301
        %v3483 = vunpack.c.h.b16 %v3301
        %v3484 = vunpack.c.l.b16 %v3302
        %v3485 = vunpack.c.l.b16 %v3303
        %v3486 = vunpack.c.h.b16 %v3303
        %v3487 = vunpack.c.l.b16 %v3304
        %v3488 = vunpack.c.l.b16 %v3305
        %v3489 = vunpack.c.h.b16 %v3305
        %v3490 = vunpack.c.l.b16 %v3306
        %v3491 = vunpack.c.l.b16 %v3307
        %v3492 = vunpack.c.h.b16 %v3307
        %v3493 = vunpack.c.l.b16 %v3308
        %v3494 = vunpack.c.l.b16 %v3309
        %v3495 = vunpack.c.h.b16 %v3309
        %v3496 = vunpack.c.l.b16 %v3310
        %v3497 = vunpack.c.l.b16 %v3311
        %v3498 = vunpack.c.h.b16 %v3311
        %v3499 = vunpack.c.l.b16 %v3312
        %v3500 = vunpack.c.l.b16 %v3313
        %v3501 = vunpack.c.h.b16 %v3313
        %v3502 = vunpack.c.l.b16 %v3314
        %v3503 = vunpack.c.l.b16 %v3315
        %v3504 = vunpack.c.h.b16 %v3315
        %v3505 = vunpack.c.l.b16 %v3316
        %v3506 = vunpack.c.l.b16 %v3317
        %v3507 = vunpack.c.h.b16 %v3317
        %v3508 = vunpack.c.l.b16 %v3318
        %v3509 = vunpack.c.l.b16 %v3319
        %v3510 = vunpack.c.h.b16 %v3319
        %v3511 = vunpack.c.l.b16 %v3320
        %v3512 = vunpack.c.l.b16 %v3321
        %v3513 = vunpack.c.h.b16 %v3321
        %v3514 = vunpack.c.l.b16 %v3322
        %v3515 = vunpack.c.l.b16 %v3323
        %v3516 = vunpack.c.h.b16 %v3323
        %v3517 = vunpack.c.l.b16 %v3324
        %v3518 = vunpack.c.l.b16 %v3325
        %v3519 = vunpack.c.h.b16 %v3325
        %v3520 = vunpack.c.l.b16 %v3326
        %v3521 = vunpack.c.l.b16 %v3327
        %v3522 = vunpack.c.h.b16 %v3327
        %v3523 = vunpack.c.l.b16 %v3328
        %v3524 = vunpack.c.l.b16 %v3329
        %v3525 = vunpack.c.h.b16 %v3329
        %v3526 = vunpack.c.l.b16 %v3330
        %v3527 = vunpack.c.l.b16 %v3331
        %v3528 = vunpack.c.h.b16 %v3331
        %v3529 = vunpack.c.l.b16 %v3332
        %v3530 = vunpack.c.l.b16 %v3333
        %v3531 = vunpack.c.h.b16 %v3333
        %v3532 = vunpack.c.l.b16 %v3334
        %v3533 = vunpack.c.l.b16 %v3335
        %v3534 = vunpack.c.h.b16 %v3335
        %v3535 = vunpack.c.l.b16 %v3336
        %v3536 = vunpack.c.l.b16 %v3337
        %v3537 = vunpack.c.h.b16 %v3337
        %v3538 = vunpack.c.l.b16 %v3338
        %v3539 = vunpack.c.l.b16 %v3339
        %v3540 = vunpack.c.h.b16 %v3339
        %v3541 = vunpack.c.l.b16 %v3340
        %v3542 = vunpack.c.l.b16 %v3341
        %v3543 = vunpack.c.h.b16 %v3341
        %v3544 = vunpack.c.l.b16 %v3342
        %v3545 = vunpack.c.l.b16 %v3343
        %v3546 = vunpack.c.h.b16 %v3343
        %v3547 = vunpack.c.l.b16 %v3344
        %v3548 = vunpack.c.l.b16 %v3345
        %v3549 = vunpack.c.h.b16 %v3345
        %v3550 = vunpack.c.l.b16 %v3346
        %v3551 = vunpack.c.l.b16 %v3347
        %v3552 = vunpack.c.h.b16 %v3347
        %v3553 = vunpack.c.l.b16 %v3348
        %v3554 = vunpack.c.l.b16 %v3349
        %v3555 = vunpack.c.h.b16 %v3349
        %v3556 = vunpack.c.l.b16 %v3350
        %v3557 = vunpack.c.l.b16 %v3351
        %v3558 = vunpack.c.h.b16 %v3351
        %v3559 = vunpack.c.l.b16 %v3352
        %v3560 = vunpack.c.l.b16 %v3353
        %v3561 = vunpack.c.h.b16 %v3353
        %v3562 = vunpack.c.l.b16 %v3354
        %v3563 = vunpack.c.l.b16 %v3355
        %v3564 = vunpack.c.h.b16 %v3355
        %v3565 = vunpack.c.l.b16 %v3356
        %v3566 = vpack.c.b16 %v3473, %v3470
        %v3567 = vpack.c.b16 %v3474, %v3471
        %v3568 = vpack.c.b16 %v3475, %v3472
        %v3569 = vpack.c.b16 %v3479, %v3476
        %v3570 = vpack.c.b16 %v3480, %v3477
        %v3571 = vpack.c.b16 %v3481, %v3478
        %v3572 = vpack.c.b16 %v3485, %v3482
        %v3573 = vpack.c.b16 %v3486, %v3483
        %v3574 = vpack.c.b16 %v3487, %v3484
        %v3575 = vpack.c.b16 %v3491, %v3488
        %v3576 = vpack.c.b16 %v3492, %v3489
        %v3577 = vpack.c.b16 %v3493, %v3490
        %v3578 = vpack.c.b16 %v3497, %v3494
        %v3579 = vpack.c.b16 %v3498, %v3495
        %v3580 = vpack.c.b16 %v3499, %v3496
        %v3581 = vpack.c.b16 %v3503, %v3500
        %v3582 = vpack.c.b16 %v3504, %v3501
        %v3583 = vpack.c.b16 %v3505, %v3502
        %v3584 = vpack.c.b16 %v3509, %v3506
        %v3585 = vpack.c.b16 %v3510, %v3507
        %v3586 = vpack.c.b16 %v3511, %v3508
        %v3587 = vpack.c.b16 %v3515, %v3512
        %v3588 = vpack.c.b16 %v3516, %v3513
        %v3589 = vpack.c.b16 %v3517, %v3514
        %v3590 = vpack.c.b16 %v3521, %v3518
        %v3591 = vpack.c.b16 %v3522, %v3519
        %v3592 = vpack.c.b16 %v3523, %v3520
        %v3593 = vpack.c.b16 %v3527, %v3524
        %v3594 = vpack.c.b16 %v3528, %v3525
        %v3595 = vpack.c.b16 %v3529, %v3526
        %v3596 = vpack.c.b16 %v3533, %v3530
        %v3597 = vpack.c.b16 %v3534, %v3531
        %v3598 = vpack.c.b16 %v3535, %v3532
        %v3599 = vpack.c.b16 %v3539, %v3536
        %v3600 = vpack.c.b16 %v3540, %v3537
        %v3601 = vpack.c.b16 %v3541, %v3538
        %v3602 = vpack.c.b16 %v3545, %v3542
        %v3603 = vpack.c.b16 %v3546, %v3543
        %v3604 = vpack.c.b16 %v3547, %v3544
        %v3605 = vpack.c.b16 %v3551, %v3548
        %v3606 = vpack.c.b16 %v3552, %v3549
        %v3607 = vpack.c.b16 %v3553, %v3550
        %v3608 = vpack.c.b16 %v3557, %v3554
        %v3609 = vpack.c.b16 %v3558, %v3555
        %v3610 = vpack.c.b16 %v3559, %v3556
        %v3611 = vpack.c.b16 %v3563, %v3560
        %v3612 = vpack.c.b16 %v3564, %v3561
        %v3613 = vpack.c.b16 %v3565, %v3562
        %v3710 = vunpack.c.l.b16 %v3358
        %v3711 = vunpack.c.h.b16 %v3358
        %v3712 = vunpack.c.l.b16 %v3359
        %v3713 = vunpack.c.h.b16 %v3359
        %v3714 = vunpack.c.l.b16 %v3360
        %v3715 = vunpack.c.h.b16 %v3360
        %v3716 = vunpack.c.l.b16 %v3361
        %v3717 = vunpack.c.h.b16 %v3361
        %v3718 = vunpack.c.l.b16 %v3362
        %v3719 = vunpack.c.h.b16 %v3362
        %v3720 = vunpack.c.l.b16 %v3363
        %v3721 = vunpack.c.h.b16 %v3363
        %v3722 = vunpack.c.l.b16 %v3364
        %v3723 = vunpack.c.h.b16 %v3364
        %v3724 = vunpack.c.l.b16 %v3365
        %v3725 = vunpack.c.h.b16 %v3365
        %v3726 = vunpack.c.l.b16 %v3366
        %v3727 = vunpack.c.h.b16 %v3366
        %v3728 = vunpack.c.l.b16 %v3367
        %v3729 = vunpack.c.h.b16 %v3367
        %v3730 = vunpack.c.l.b16 %v3368
        %v3731 = vunpack.c.h.b16 %v3368
        %v3732 = vunpack.c.l.b16 %v3369
        %v3733 = vunpack.c.h.b16 %v3369
        %v3734 = vunpack.c.l.b16 %v3370
        %v3735 = vunpack.c.h.b16 %v3370
        %v3736 = vunpack.c.l.b16 %v3371
        %v3737 = vunpack.c.h.b16 %v3371
        %v3738 = vunpack.c.l.b16 %v3372
        %v3739 = vunpack.c.h.b16 %v3372
        %v3740 = vunpack.c.l.b16 %v3373
        %v3741 = vunpack.c.h.b16 %v3373
        %v3742 = vunpack.c.l.b16 %v3374
        %v3743 = vunpack.c.h.b16 %v3374
        %v3744 = vunpack.c.l.b16 %v3375
        %v3745 = vunpack.c.h.b16 %v3375
        %v3746 = vunpack.c.l.b16 %v3376
        %v3747 = vunpack.c.h.b16 %v3376
        %v3748 = vunpack.c.l.b16 %v3377
        %v3749 = vunpack.c.h.b16 %v3377
        %v3750 = vunpack.c.l.b16 %v3378
        %v3751 = vunpack.c.h.b16 %v3378
        %v3752 = vunpack.c.l.b16 %v3379
        %v3753 = vunpack.c.h.b16 %v3379
        %v3754 = vunpack.c.l.b16 %v3380
        %v3755 = vunpack.c.h.b16 %v3380
        %v3756 = vunpack.c.l.b16 %v3381
        %v3757 = vunpack.c.h.b16 %v3381
        %v3758 = vunpack.c.l.b16 %v3382
        %v3759 = vunpack.c.h.b16 %v3382
        %v3760 = vunpack.c.l.b16 %v3383
        %v3761 = vunpack.c.h.b16 %v3383
        %v3762 = vunpack.c.l.b16 %v3384
        %v3763 = vunpack.c.h.b16 %v3384
        %v3764 = vunpack.c.l.b16 %v3385
        %v3765 = vunpack.c.h.b16 %v3385
        %v3766 = vunpack.c.l.b16 %v3386
        %v3767 = vunpack.c.h.b16 %v3386
        %v3768 = vunpack.c.l.b16 %v3387
        %v3769 = vunpack.c.h.b16 %v3387
        %v3770 = vunpack.c.l.b16 %v3388
        %v3771 = vunpack.c.h.b16 %v3388
        %v3772 = vunpack.c.l.b16 %v3389
        %v3773 = vunpack.c.h.b16 %v3389
        %v3774 = vunpack.c.l.b16 %v3390
        %v3775 = vunpack.c.h.b16 %v3390
        %v3776 = vunpack.c.l.b16 %v3391
        %v3777 = vunpack.c.h.b16 %v3391
        %v3778 = vunpack.c.l.b16 %v3392
        %v3779 = vunpack.c.h.b16 %v3392
        %v3780 = vunpack.c.l.b16 %v3393
        %v3781 = vunpack.c.h.b16 %v3393
        %v3782 = vunpack.c.l.b16 %v3394
        %v3783 = vunpack.c.h.b16 %v3394
        %v3784 = vunpack.c.l.b16 %v3395
        %v3785 = vunpack.c.h.b16 %v3395
        %v3786 = vunpack.c.l.b16 %v3396
        %v3787 = vunpack.c.h.b16 %v3396
        %v3788 = vunpack.c.l.b16 %v3397
        %v3789 = vunpack.c.h.b16 %v3397
        %v3790 = vunpack.c.l.b16 %v3398
        %v3791 = vunpack.c.h.b16 %v3398
        %v3792 = vunpack.c.l.b16 %v3399
        %v3793 = vunpack.c.h.b16 %v3399
        %v3794 = vunpack.c.l.b16 %v3400
        %v3795 = vunpack.c.h.b16 %v3400
        %v3796 = vunpack.c.l.b16 %v3401
        %v3797 = vunpack.c.h.b16 %v3401
        %v3798 = vunpack.c.l.b16 %v3402
        %v3799 = vunpack.c.h.b16 %v3402
        %v3800 = vunpack.c.l.b16 %v3403
        %v3801 = vunpack.c.h.b16 %v3403
        %v3802 = vunpack.c.l.b16 %v3404
        %v3803 = vunpack.c.h.b16 %v3404
        %v3804 = vunpack.c.l.b16 %v3405
        %v3805 = vunpack.c.h.b16 %v3405
        %v3806 = vpack.c.b16 %v3712, %v3710
        %v3807 = vpack.c.b16 %v3713, %v3711
        %v3808 = vpack.c.b16 %v3716, %v3714
        %v3809 = vpack.c.b16 %v3717, %v3715
        %v3810 = vpack.c.b16 %v3720, %v3718
        %v3811 = vpack.c.b16 %v3721, %v3719
        %v3812 = vpack.c.b16 %v3724, %v3722
        %v3813 = vpack.c.b16 %v3725, %v3723
        %v3814 = vpack.c.b16 %v3728, %v3726
        %v3815 = vpack.c.b16 %v3729, %v3727
        %v3816 = vpack.c.b16 %v3732, %v3730
        %v3817 = vpack.c.b16 %v3733, %v3731
        %v3818 = vpack.c.b16 %v3736, %v3734
        %v3819 = vpack.c.b16 %v3737, %v3735
        %v3820 = vpack.c.b16 %v3740, %v3738
        %v3821 = vpack.c.b16 %v3741, %v3739
        %v3822 = vpack.c.b16 %v3744, %v3742
        %v3823 = vpack.c.b16 %v3745, %v3743
        %v3824 = vpack.c.b16 %v3748, %v3746
        %v3825 = vpack.c.b16 %v3749, %v3747
        %v3826 = vpack.c.b16 %v3752, %v3750
        %v3827 = vpack.c.b16 %v3753, %v3751
        %v3828 = vpack.c.b16 %v3756, %v3754
        %v3829 = vpack.c.b16 %v3757, %v3755
        %v3830 = vpack.c.b16 %v3760, %v3758
        %v3831 = vpack.c.b16 %v3761, %v3759
        %v3832 = vpack.c.b16 %v3764, %v3762
        %v3833 = vpack.c.b16 %v3765, %v3763
        %v3834 = vpack.c.b16 %v3768, %v3766
        %v3835 = vpack.c.b16 %v3769, %v3767
        %v3836 = vpack.c.b16 %v3772, %v3770
        %v3837 = vpack.c.b16 %v3773, %v3771
        %v3838 = vpack.c.b16 %v3776, %v3774
        %v3839 = vpack.c.b16 %v3777, %v3775
        %v3840 = vpack.c.b16 %v3780, %v3778
        %v3841 = vpack.c.b16 %v3781, %v3779
        %v3842 = vpack.c.b16 %v3784, %v3782
        %v3843 = vpack.c.b16 %v3785, %v3783
        %v3844 = vpack.c.b16 %v3788, %v3786
        %v3845 = vpack.c.b16 %v3789, %v3787
        %v3846 = vpack.c.b16 %v3792, %v3790
        %v3847 = vpack.c.b16 %v3793, %v3791
        %v3848 = vpack.c.b16 %v3796, %v3794
        %v3849 = vpack.c.b16 %v3797, %v3795
        %v3850 = vpack.c.b16 %v3800, %v3798
        %v3851 = vpack.c.b16 %v3801, %v3799
        %v3852 = vpack.c.b16 %v3804, %v3802
        %v3853 = vpack.c.b16 %v3805, %v3803
        %3902 = vmatprep.subr.bf16.mxu0 %v3821
        %3903 = vmatpush1.bf16.msra.mxu0 %v3820
        %3904 = vmatprep.subr.bf16.mxu0 %v3819
        %3905 = vmatpush1.bf16.msra.mxu0 %v3818
        %3906 = vmatprep.subr.bf16.mxu0 %v3817
        %3907 = vmatpush1.bf16.msra.mxu0 %v3816
        %3908 = vmatprep.subr.bf16.mxu0 %v3815
        %3909 = vmatpush1.bf16.msra.mxu0 %v3814
        %3910 = vmatprep.subr.bf16.mxu0 %v3813
        %3911 = vmatpush1.bf16.msra.mxu0 %v3812
        %3912 = vmatprep.subr.bf16.mxu0 %v3811
        %3913 = vmatpush1.bf16.msra.mxu0 %v3810
        %3914 = vmatprep.subr.bf16.mxu0 %v3809
        %3915 = vmatpush1.bf16.msra.mxu0 %v3808
        %3916 = vmatprep.subr.bf16.mxu0 %v3807
        %3917 = vmatpush1.bf16.msra.mxu0 %v3806
        %3918 = vmatprep.subr.bf16.mxu0 %v3837
        %3919 = vmatpush2.bf16.msra.mxu0 %v3836
        %3920 = vmatprep.subr.bf16.mxu0 %v3835
        %3921 = vmatpush2.bf16.msra.mxu0 %v3834
        %3922 = vmatprep.subr.bf16.mxu0 %v3833
        %3923 = vmatpush2.bf16.msra.mxu0 %v3832
        %3924 = vmatprep.subr.bf16.mxu0 %v3831
        %3925 = vmatpush2.bf16.msra.mxu0 %v3830
        %3926 = vmatprep.subr.bf16.mxu0 %v3829
        %3927 = vmatpush2.bf16.msra.mxu0 %v3828
        %3928 = vmatprep.subr.bf16.mxu0 %v3827
        %3929 = vmatpush2.bf16.msra.mxu0 %v3826
        %3930 = vmatprep.subr.bf16.mxu0 %v3825
        %3931 = vmatpush2.bf16.msra.mxu0 %v3824
        %3932 = vmatprep.subr.bf16.mxu0 %v3823
        %3933 = vmatpush2.bf16.msra.mxu0 %v3822
        %3934 = vmatprep.mubr.bf16.mxu0 %v3567
        %3935 = vmatmul.mubr.bf16.gmra.mxu0 %v3566
        %v3936 = vpop.f32.mrf.mxu0
        %v3937 = vadd.f32 0.0, %v3936
        %v3938 = vpop.f32.mrf.mxu0
        %v3939 = vadd.f32 0.0, %v3938
        %v3940 = vpop.f32.mrf.mxu0
        %v3941 = vadd.f32 0.0, %v3940
        %v3942 = vpop.f32.mrf.mxu0
        %v3943 = vadd.f32 0.0, %v3942
        %3944 = vmatprep.mubr.bf16.mxu0 %v3570
        %3945 = vmatmul.mubr.bf16.gmra.mxu0 %v3569
        %v3946 = vpop.f32.mrf.mxu0
        %v3947 = vadd.f32 0.0, %v3946
        %v3948 = vpop.f32.mrf.mxu0
        %v3949 = vadd.f32 0.0, %v3948
        %v3950 = vpop.f32.mrf.mxu0
        %v3951 = vadd.f32 0.0, %v3950
        %v3952 = vpop.f32.mrf.mxu0
        %v3953 = vadd.f32 0.0, %v3952
        %3954 = vmatprep.mubr.bf16.mxu0 %v3573
        %3955 = vmatmul.mubr.bf16.gmra.mxu0 %v3572
        %v3956 = vpop.f32.mrf.mxu0
        %v3957 = vadd.f32 0.0, %v3956
        %v3958 = vpop.f32.mrf.mxu0
        %v3959 = vadd.f32 0.0, %v3958
        %v3960 = vpop.f32.mrf.mxu0
        %v3961 = vadd.f32 0.0, %v3960
        %v3962 = vpop.f32.mrf.mxu0
        %v3963 = vadd.f32 0.0, %v3962
        %3964 = vmatprep.mubr.bf16.mxu0 %v3576
        %3965 = vmatmul.mubr.bf16.gmra.mxu0 %v3575
        %v3966 = vpop.f32.mrf.mxu0
        %v3967 = vadd.f32 0.0, %v3966
        %v3968 = vpop.f32.mrf.mxu0
        %v3969 = vadd.f32 0.0, %v3968
        %v3970 = vpop.f32.mrf.mxu0
        %v3971 = vadd.f32 0.0, %v3970
        %v3972 = vpop.f32.mrf.mxu0
        %v3973 = vadd.f32 0.0, %v3972
        %3974 = vmatprep.mubr.bf16.mxu0 %v3579
        %3975 = vmatmul.mubr.bf16.gmra.mxu0 %v3578
        %v3976 = vpop.f32.mrf.mxu0
        %v3977 = vadd.f32 0.0, %v3976
        %v3978 = vpop.f32.mrf.mxu0
        %v3979 = vadd.f32 0.0, %v3978
        %v3980 = vpop.f32.mrf.mxu0
        %v3981 = vadd.f32 0.0, %v3980
        %v3982 = vpop.f32.mrf.mxu0
        %v3983 = vadd.f32 0.0, %v3982
        %3984 = vmatprep.mubr.bf16.mxu0 %v3582
        %3985 = vmatmul.mubr.bf16.gmra.mxu0 %v3581
        %v3986 = vpop.f32.mrf.mxu0
        %v3987 = vadd.f32 0.0, %v3986
        %v3988 = vpop.f32.mrf.mxu0
        %v3989 = vadd.f32 0.0, %v3988
        %v3990 = vpop.f32.mrf.mxu0
        %v3991 = vadd.f32 0.0, %v3990
        %v3992 = vpop.f32.mrf.mxu0
        %v3993 = vadd.f32 0.0, %v3992
        %3994 = vmatprep.mubr.bf16.mxu0 %v3585
        %3995 = vmatmul.mubr.bf16.gmra.mxu0 %v3584
        %v3996 = vpop.f32.mrf.mxu0
        %v3997 = vadd.f32 0.0, %v3996
        %v3998 = vpop.f32.mrf.mxu0
        %v3999 = vadd.f32 0.0, %v3998
        %v4000 = vpop.f32.mrf.mxu0
        %v4001 = vadd.f32 0.0, %v4000
        %v4002 = vpop.f32.mrf.mxu0
        %v4003 = vadd.f32 0.0, %v4002
        %4004 = vmatprep.mubr.bf16.mxu0 %v3588
        %4005 = vmatmul.mubr.bf16.gmra.mxu0 %v3587
        %v4006 = vpop.f32.mrf.mxu0
        %v4007 = vadd.f32 0.0, %v4006
        %v4008 = vpop.f32.mrf.mxu0
        %v4009 = vadd.f32 0.0, %v4008
        %v4010 = vpop.f32.mrf.mxu0
        %v4011 = vadd.f32 0.0, %v4010
        %v4012 = vpop.f32.mrf.mxu0
        %v4013 = vadd.f32 0.0, %v4012
        %4014 = vmatprep.mubr.bf16.mxu0 %v3591
        %4015 = vmatmul.mubr.bf16.gmra.mxu0 %v3590
        %v4016 = vpop.f32.mrf.mxu0
        %v4017 = vadd.f32 0.0, %v4016
        %v4018 = vpop.f32.mrf.mxu0
        %v4019 = vadd.f32 0.0, %v4018
        %v4020 = vpop.f32.mrf.mxu0
        %v4021 = vadd.f32 0.0, %v4020
        %v4022 = vpop.f32.mrf.mxu0
        %v4023 = vadd.f32 0.0, %v4022
        %4024 = vmatprep.mubr.bf16.mxu0 %v3594
        %4025 = vmatmul.mubr.bf16.gmra.mxu0 %v3593
        %v4026 = vpop.f32.mrf.mxu0
        %v4027 = vadd.f32 0.0, %v4026
        %v4028 = vpop.f32.mrf.mxu0
        %v4029 = vadd.f32 0.0, %v4028
        %v4030 = vpop.f32.mrf.mxu0
        %v4031 = vadd.f32 0.0, %v4030
        %v4032 = vpop.f32.mrf.mxu0
        %v4033 = vadd.f32 0.0, %v4032
        %4034 = vmatprep.mubr.bf16.mxu0 %v3597
        %4035 = vmatmul.mubr.bf16.gmra.mxu0 %v3596
        %v4036 = vpop.f32.mrf.mxu0
        %v4037 = vadd.f32 0.0, %v4036
        %v4038 = vpop.f32.mrf.mxu0
        %v4039 = vadd.f32 0.0, %v4038
        %v4040 = vpop.f32.mrf.mxu0
        %v4041 = vadd.f32 0.0, %v4040
        %v4042 = vpop.f32.mrf.mxu0
        %v4043 = vadd.f32 0.0, %v4042
        %4044 = vmatprep.mubr.bf16.mxu0 %v3600
        %4045 = vmatmul.mubr.bf16.gmra.mxu0 %v3599
        %v4046 = vpop.f32.mrf.mxu0
        %v4047 = vadd.f32 0.0, %v4046
        %v4048 = vpop.f32.mrf.mxu0
        %v4049 = vadd.f32 0.0, %v4048
        %v4050 = vpop.f32.mrf.mxu0
        %v4051 = vadd.f32 0.0, %v4050
        %v4052 = vpop.f32.mrf.mxu0
        %v4053 = vadd.f32 0.0, %v4052
        %4054 = vmatprep.mubr.bf16.mxu0 %v3603
        %4055 = vmatmul.mubr.bf16.gmra.mxu0 %v3602
        %v4056 = vpop.f32.mrf.mxu0
        %v4057 = vadd.f32 0.0, %v4056
        %v4058 = vpop.f32.mrf.mxu0
        %v4059 = vadd.f32 0.0, %v4058
        %v4060 = vpop.f32.mrf.mxu0
        %v4061 = vadd.f32 0.0, %v4060
        %v4062 = vpop.f32.mrf.mxu0
        %v4063 = vadd.f32 0.0, %v4062
        %4064 = vmatprep.mubr.bf16.mxu0 %v3606
        %4065 = vmatmul.mubr.bf16.gmra.mxu0 %v3605
        %v4066 = vpop.f32.mrf.mxu0
        %v4067 = vadd.f32 0.0, %v4066
        %v4068 = vpop.f32.mrf.mxu0
        %v4069 = vadd.f32 0.0, %v4068
        %v4070 = vpop.f32.mrf.mxu0
        %v4071 = vadd.f32 0.0, %v4070
        %v4072 = vpop.f32.mrf.mxu0
        %v4073 = vadd.f32 0.0, %v4072
        %4074 = vmatprep.mubr.bf16.mxu0 %v3609
        %4075 = vmatmul.mubr.bf16.gmra.mxu0 %v3608
        %v4076 = vpop.f32.mrf.mxu0
        %v4077 = vadd.f32 0.0, %v4076
        %v4078 = vpop.f32.mrf.mxu0
        %v4079 = vadd.f32 0.0, %v4078
        %v4080 = vpop.f32.mrf.mxu0
        %v4081 = vadd.f32 0.0, %v4080
        %v4082 = vpop.f32.mrf.mxu0
        %v4083 = vadd.f32 0.0, %v4082
        %4084 = vmatprep.mubr.bf16.mxu0 %v3612
        %4085 = vmatmul.mubr.bf16.gmra.mxu0 %v3611
        %v4086 = vpop.f32.mrf.mxu0
        %v4087 = vadd.f32 0.0, %v4086
        %v4088 = vpop.f32.mrf.mxu0
        %v4089 = vadd.f32 0.0, %v4088
        %v4090 = vpop.f32.mrf.mxu0
        %v4091 = vadd.f32 0.0, %v4090
        %v4092 = vpop.f32.mrf.mxu0
        %v4093 = vadd.f32 0.0, %v4092
        %4094 = vdwg.mxu0
        %4095 = vmatprep.subr.bf16.mxu0 %v3853
        %4096 = vmatpush1.bf16.msra.mxu0 %v3852
        %4097 = vmatprep.subr.bf16.mxu0 %v3851
        %4098 = vmatpush1.bf16.msra.mxu0 %v3850
        %4099 = vmatprep.subr.bf16.mxu0 %v3849
        %4100 = vmatpush1.bf16.msra.mxu0 %v3848
        %4101 = vmatprep.subr.bf16.mxu0 %v3847
        %4102 = vmatpush1.bf16.msra.mxu0 %v3846
        %4103 = vmatprep.subr.bf16.mxu0 %v3845
        %4104 = vmatpush1.bf16.msra.mxu0 %v3844
        %4105 = vmatprep.subr.bf16.mxu0 %v3843
        %4106 = vmatpush1.bf16.msra.mxu0 %v3842
        %4107 = vmatprep.subr.bf16.mxu0 %v3841
        %4108 = vmatpush1.bf16.msra.mxu0 %v3840
        %4109 = vmatprep.subr.bf16.mxu0 %v3839
        %4110 = vmatpush1.bf16.msra.mxu0 %v3838
        %4111 = vmatprep.subr.bf16.mxu0 0
        %4112 = vmatpush2.bf16.msra.mxu0 0
        %4113 = vmatprep.subr.bf16.mxu0 0
        %4114 = vmatpush2.bf16.msra.mxu0 0
        %4115 = vmatprep.subr.bf16.mxu0 0
        %4116 = vmatpush2.bf16.msra.mxu0 0
        %4117 = vmatprep.subr.bf16.mxu0 0
        %4118 = vmatpush2.bf16.msra.mxu0 0
        %4119 = vmatprep.subr.bf16.mxu0 0
        %4120 = vmatpush2.bf16.msra.mxu0 0
        %4121 = vmatprep.subr.bf16.mxu0 0
        %4122 = vmatpush2.bf16.msra.mxu0 0
        %4123 = vmatprep.subr.bf16.mxu0 0
        %4124 = vmatpush2.bf16.msra.mxu0 0
        %4125 = vmatprep.subr.bf16.mxu0 0
        %4126 = vmatpush2.bf16.msra.mxu0 0
        %4127 = vmatprep.mubr.bf16.mxu0 0
        %4128 = vmatmul.mubr.bf16.gmra.mxu0 %v3568
        %v4129 = vpop.f32.mrf.mxu0
        %v4130 = vadd.f32 %v3937, %v4129
        %v4131 = vpop.f32.mrf.mxu0
        %v4132 = vadd.f32 %v3939, %v4131
        %v4133 = vpop.f32.mrf.mxu0
        %v4134 = vadd.f32 %v3941, %v4133
        %v4135 = vpop.f32.mrf.mxu0
        %v4136 = vadd.f32 %v3943, %v4135
        %4137 = vmatprep.mubr.bf16.mxu0 0
        %4138 = vmatmul.mubr.bf16.gmra.mxu0 %v3571
        %v4139 = vpop.f32.mrf.mxu0
        %v4140 = vadd.f32 %v3947, %v4139
        %v4141 = vpop.f32.mrf.mxu0
        %v4142 = vadd.f32 %v3949, %v4141
        %v4143 = vpop.f32.mrf.mxu0
        %v4144 = vadd.f32 %v3951, %v4143
        %v4145 = vpop.f32.mrf.mxu0
        %v4146 = vadd.f32 %v3953, %v4145
        %4147 = vmatprep.mubr.bf16.mxu0 0
        %4148 = vmatmul.mubr.bf16.gmra.mxu0 %v3574
        %v4149 = vpop.f32.mrf.mxu0
        %v4150 = vadd.f32 %v3957, %v4149
        %v4151 = vpop.f32.mrf.mxu0
        %v4152 = vadd.f32 %v3959, %v4151
        %v4153 = vpop.f32.mrf.mxu0
        %v4154 = vadd.f32 %v3961, %v4153
        %v4155 = vpop.f32.mrf.mxu0
        %v4156 = vadd.f32 %v3963, %v4155
        %4157 = vmatprep.mubr.bf16.mxu0 0
        %4158 = vmatmul.mubr.bf16.gmra.mxu0 %v3577
        %v4159 = vpop.f32.mrf.mxu0
        %v4160 = vadd.f32 %v3967, %v4159
        %v4161 = vpop.f32.mrf.mxu0
        %v4162 = vadd.f32 %v3969, %v4161
        %v4163 = vpop.f32.mrf.mxu0
        %v4164 = vadd.f32 %v3971, %v4163
        %v4165 = vpop.f32.mrf.mxu0
        %v4166 = vadd.f32 %v3973, %v4165
        %4167 = vmatprep.mubr.bf16.mxu0 0
        %4168 = vmatmul.mubr.bf16.gmra.mxu0 %v3580
        %v4169 = vpop.f32.mrf.mxu0
        %v4170 = vadd.f32 %v3977, %v4169
        %v4171 = vpop.f32.mrf.mxu0
        %v4172 = vadd.f32 %v3979, %v4171
        %v4173 = vpop.f32.mrf.mxu0
        %v4174 = vadd.f32 %v3981, %v4173
        %v4175 = vpop.f32.mrf.mxu0
        %v4176 = vadd.f32 %v3983, %v4175
        %4177 = vmatprep.mubr.bf16.mxu0 0
        %4178 = vmatmul.mubr.bf16.gmra.mxu0 %v3583
        %v4179 = vpop.f32.mrf.mxu0
        %v4180 = vadd.f32 %v3987, %v4179
        %v4181 = vpop.f32.mrf.mxu0
        %v4182 = vadd.f32 %v3989, %v4181
        %v4183 = vpop.f32.mrf.mxu0
        %v4184 = vadd.f32 %v3991, %v4183
        %v4185 = vpop.f32.mrf.mxu0
        %v4186 = vadd.f32 %v3993, %v4185
        %4187 = vmatprep.mubr.bf16.mxu0 0
        %4188 = vmatmul.mubr.bf16.gmra.mxu0 %v3586
        %v4189 = vpop.f32.mrf.mxu0
        %v4190 = vadd.f32 %v3997, %v4189
        %v4191 = vpop.f32.mrf.mxu0
        %v4192 = vadd.f32 %v3999, %v4191
        %v4193 = vpop.f32.mrf.mxu0
        %v4194 = vadd.f32 %v4001, %v4193
        %v4195 = vpop.f32.mrf.mxu0
        %v4196 = vadd.f32 %v4003, %v4195
        %4197 = vmatprep.mubr.bf16.mxu0 0
        %4198 = vmatmul.mubr.bf16.gmra.mxu0 %v3589
        %v4199 = vpop.f32.mrf.mxu0
        %v4200 = vadd.f32 %v4007, %v4199
        %v4201 = vpop.f32.mrf.mxu0
        %v4202 = vadd.f32 %v4009, %v4201
        %v4203 = vpop.f32.mrf.mxu0
        %v4204 = vadd.f32 %v4011, %v4203
        %v4205 = vpop.f32.mrf.mxu0
        %v4206 = vadd.f32 %v4013, %v4205
        %4207 = vmatprep.mubr.bf16.mxu0 0
        %4208 = vmatmul.mubr.bf16.gmra.mxu0 %v3592
        %v4209 = vpop.f32.mrf.mxu0
        %v4210 = vadd.f32 %v4017, %v4209
        %v4211 = vpop.f32.mrf.mxu0
        %v4212 = vadd.f32 %v4019, %v4211
        %v4213 = vpop.f32.mrf.mxu0
        %v4214 = vadd.f32 %v4021, %v4213
        %v4215 = vpop.f32.mrf.mxu0
        %v4216 = vadd.f32 %v4023, %v4215
        %4217 = vmatprep.mubr.bf16.mxu0 0
        %4218 = vmatmul.mubr.bf16.gmra.mxu0 %v3595
        %v4219 = vpop.f32.mrf.mxu0
        %v4220 = vadd.f32 %v4027, %v4219
        %v4221 = vpop.f32.mrf.mxu0
        %v4222 = vadd.f32 %v4029, %v4221
        %v4223 = vpop.f32.mrf.mxu0
        %v4224 = vadd.f32 %v4031, %v4223
        %v4225 = vpop.f32.mrf.mxu0
        %v4226 = vadd.f32 %v4033, %v4225
        %4227 = vmatprep.mubr.bf16.mxu0 0
        %4228 = vmatmul.mubr.bf16.gmra.mxu0 %v3598
        %v4229 = vpop.f32.mrf.mxu0
        %v4230 = vadd.f32 %v4037, %v4229
        %v4231 = vpop.f32.mrf.mxu0
        %v4232 = vadd.f32 %v4039, %v4231
        %v4233 = vpop.f32.mrf.mxu0
        %v4234 = vadd.f32 %v4041, %v4233
        %v4235 = vpop.f32.mrf.mxu0
        %v4236 = vadd.f32 %v4043, %v4235
        %4237 = vmatprep.mubr.bf16.mxu0 0
        %4238 = vmatmul.mubr.bf16.gmra.mxu0 %v3601
        %v4239 = vpop.f32.mrf.mxu0
        %v4240 = vadd.f32 %v4047, %v4239
        %v4241 = vpop.f32.mrf.mxu0
        %v4242 = vadd.f32 %v4049, %v4241
        %v4243 = vpop.f32.mrf.mxu0
        %v4244 = vadd.f32 %v4051, %v4243
        %v4245 = vpop.f32.mrf.mxu0
        %v4246 = vadd.f32 %v4053, %v4245
        %4247 = vmatprep.mubr.bf16.mxu0 0
        %4248 = vmatmul.mubr.bf16.gmra.mxu0 %v3604
        %v4249 = vpop.f32.mrf.mxu0
        %v4250 = vadd.f32 %v4057, %v4249
        %v4251 = vpop.f32.mrf.mxu0
        %v4252 = vadd.f32 %v4059, %v4251
        %v4253 = vpop.f32.mrf.mxu0
        %v4254 = vadd.f32 %v4061, %v4253
        %v4255 = vpop.f32.mrf.mxu0
        %v4256 = vadd.f32 %v4063, %v4255
        %4257 = vmatprep.mubr.bf16.mxu0 0
        %4258 = vmatmul.mubr.bf16.gmra.mxu0 %v3607
        %v4259 = vpop.f32.mrf.mxu0
        %v4260 = vadd.f32 %v4067, %v4259
        %v4261 = vpop.f32.mrf.mxu0
        %v4262 = vadd.f32 %v4069, %v4261
        %v4263 = vpop.f32.mrf.mxu0
        %v4264 = vadd.f32 %v4071, %v4263
        %v4265 = vpop.f32.mrf.mxu0
        %v4266 = vadd.f32 %v4073, %v4265
        %4267 = vmatprep.mubr.bf16.mxu0 0
        %4268 = vmatmul.mubr.bf16.gmra.mxu0 %v3610
        %v4269 = vpop.f32.mrf.mxu0
        %v4270 = vadd.f32 %v4077, %v4269
        %v4271 = vpop.f32.mrf.mxu0
        %v4272 = vadd.f32 %v4079, %v4271
        %v4273 = vpop.f32.mrf.mxu0
        %v4274 = vadd.f32 %v4081, %v4273
        %v4275 = vpop.f32.mrf.mxu0
        %v4276 = vadd.f32 %v4083, %v4275
        %4277 = vmatprep.mubr.bf16.mxu0 0
        %4278 = vmatmul.mubr.bf16.gmra.mxu0 %v3613
        %v4279 = vpop.f32.mrf.mxu0
        %v4280 = vadd.f32 %v4087, %v4279
        %v4281 = vpop.f32.mrf.mxu0
        %v4282 = vadd.f32 %v4089, %v4281
        %v4283 = vpop.f32.mrf.mxu0
        %v4284 = vadd.f32 %v4091, %v4283
        %v4285 = vpop.f32.mrf.mxu0
        %v4286 = vadd.f32 %v4093, %v4285
        %4287 = vdwg.mxu0
        %v4288 = vld [vmem:[#allocation3] sm:$0xff]
        %v4289 = vld [vmem:[#allocation3 + $0x8] sm:$0xff]
        %v4290 = vld [vmem:[#allocation3 + $0x10] sm:$0xff]
        %v4291 = vld [vmem:[#allocation3 + $0x18] sm:$0xff]
        %v4292 = vld [vmem:[#allocation3 + $0x20] sm:$0xff]
        %v4293 = vld [vmem:[#allocation3 + $0x28] sm:$0xff]
        %v4294 = vld [vmem:[#allocation3 + $0x30] sm:$0xff]
        %v4295 = vld [vmem:[#allocation3 + $0x38] sm:$0xff]
        %v4296 = vld [vmem:[#allocation3 + $0x40] sm:$0xff]
        %v4297 = vld [vmem:[#allocation3 + $0x48] sm:$0xff]
        %v4298 = vld [vmem:[#allocation3 + $0x50] sm:$0xff]
        %v4299 = vld [vmem:[#allocation3 + $0x58] sm:$0xff]
        %v4300 = vld [vmem:[#allocation3 + $0x60] sm:$0xff]
        %v4301 = vld [vmem:[#allocation3 + $0x68] sm:$0xff]
        %v4302 = vld [vmem:[#allocation3 + $0x70] sm:$0xff]
        %v4303 = vld [vmem:[#allocation3 + $0x78] sm:$0xff]
        %v4304 = vld [vmem:[#allocation3 + $0x80] sm:$0xff]
        %v4305 = vld [vmem:[#allocation3 + $0x88] sm:$0xff]
        %v4306 = vld [vmem:[#allocation3 + $0x90] sm:$0xff]
        %v4307 = vld [vmem:[#allocation3 + $0x98] sm:$0xff]
        %v4308 = vld [vmem:[#allocation3 + $0xa0] sm:$0xff]
        %v4309 = vld [vmem:[#allocation3 + $0xa8] sm:$0xff]
        %v4310 = vld [vmem:[#allocation3 + $0xb0] sm:$0xff]
        %v4311 = vld [vmem:[#allocation3 + $0xb8] sm:$0xff]
        %v4312 = vld [vmem:[#allocation3 + $0xc0] sm:$0xff]
        %v4313 = vld [vmem:[#allocation3 + $0xc8] sm:$0xff]
        %v4314 = vld [vmem:[#allocation3 + $0xd0] sm:$0xff]
        %v4315 = vld [vmem:[#allocation3 + $0xd8] sm:$0xff]
        %v4316 = vld [vmem:[#allocation3 + $0xe0] sm:$0xff]
        %v4317 = vld [vmem:[#allocation3 + $0xe8] sm:$0xff]
        %v4318 = vld [vmem:[#allocation3 + $0xf0] sm:$0xff]
        %v4319 = vld [vmem:[#allocation3 + $0xf8] sm:$0xff]
        %v4320 = vld [vmem:[#allocation3 + $0x100] sm:$0xff]
        %v4321 = vld [vmem:[#allocation3 + $0x108] sm:$0xff]
        %v4322 = vld [vmem:[#allocation3 + $0x110] sm:$0xff]
        %v4323 = vld [vmem:[#allocation3 + $0x118] sm:$0xff]
        %v4324 = vld [vmem:[#allocation3 + $0x120] sm:$0xff]
        %v4325 = vld [vmem:[#allocation3 + $0x128] sm:$0xff]
        %v4326 = vld [vmem:[#allocation3 + $0x130] sm:$0xff]
        %v4327 = vld [vmem:[#allocation3 + $0x138] sm:$0xff]
        %v4328 = vld [vmem:[#allocation3 + $0x140] sm:$0xff]
        %v4329 = vld [vmem:[#allocation3 + $0x148] sm:$0xff]
        %v4330 = vld [vmem:[#allocation3 + $0x150] sm:$0xff]
        %v4331 = vld [vmem:[#allocation3 + $0x158] sm:$0xff]
        %v4332 = vld [vmem:[#allocation3 + $0x160] sm:$0xff]
        %v4333 = vld [vmem:[#allocation3 + $0x168] sm:$0xff]
        %v4334 = vld [vmem:[#allocation3 + $0x170] sm:$0xff]
        %v4335 = vld [vmem:[#allocation3 + $0x178] sm:$0xff]
        %v4336 = vld [vmem:[#allocation3 + $0x180] sm:$0xff]
        %v4337 = vld [vmem:[#allocation3 + $0x188] sm:$0xff]
        %v4338 = vld [vmem:[#allocation3 + $0x190] sm:$0xff]
        %v4339 = vld [vmem:[#allocation3 + $0x198] sm:$0xff]
        %v4340 = vld [vmem:[#allocation3 + $0x1a0] sm:$0xff]
        %v4341 = vld [vmem:[#allocation3 + $0x1a8] sm:$0xff]
        %v4342 = vld [vmem:[#allocation3 + $0x1b0] sm:$0xff]
        %v4343 = vld [vmem:[#allocation3 + $0x1b8] sm:$0xff]
        %v4344 = vld [vmem:[#allocation3 + $0x1c0] sm:$0xff]
        %v4345 = vld [vmem:[#allocation3 + $0x1c8] sm:$0xff]
        %v4346 = vld [vmem:[#allocation3 + $0x1d0] sm:$0xff]
        %v4347 = vld [vmem:[#allocation3 + $0x1d8] sm:$0xff]
        %v4348 = vld [vmem:[#allocation3 + $0x1e0] sm:$0xff]
        %v4349 = vld [vmem:[#allocation3 + $0x1e8] sm:$0xff]
        %v4350 = vld [vmem:[#allocation3 + $0x1f0] sm:$0xff]
        %v4351 = vld [vmem:[#allocation3 + $0x1f8] sm:$0xff]
        %v4352 = vadd.f32 %v4288, %v4130
        %v4353 = vadd.f32 %v4289, %v4132
        %v4354 = vadd.f32 %v4290, %v4134
        %v4355 = vadd.f32 %v4291, %v4136
        %v4356 = vadd.f32 %v4292, %v4140
        %v4357 = vadd.f32 %v4293, %v4142
        %v4358 = vadd.f32 %v4294, %v4144
        %v4359 = vadd.f32 %v4295, %v4146
        %v4360 = vadd.f32 %v4296, %v4150
        %v4361 = vadd.f32 %v4297, %v4152
        %v4362 = vadd.f32 %v4298, %v4154
        %v4363 = vadd.f32 %v4299, %v4156
        %v4364 = vadd.f32 %v4300, %v4160
        %v4365 = vadd.f32 %v4301, %v4162
        %v4366 = vadd.f32 %v4302, %v4164
        %v4367 = vadd.f32 %v4303, %v4166
        %v4368 = vadd.f32 %v4304, %v4170
        %v4369 = vadd.f32 %v4305, %v4172
        %v4370 = vadd.f32 %v4306, %v4174
        %v4371 = vadd.f32 %v4307, %v4176
        %v4372 = vadd.f32 %v4308, %v4180
        %v4373 = vadd.f32 %v4309, %v4182
        %v4374 = vadd.f32 %v4310, %v4184
        %v4375 = vadd.f32 %v4311, %v4186
        %v4376 = vadd.f32 %v4312, %v4190
        %v4377 = vadd.f32 %v4313, %v4192
        %v4378 = vadd.f32 %v4314, %v4194
        %v4379 = vadd.f32 %v4315, %v4196
        %v4380 = vadd.f32 %v4316, %v4200
        %v4381 = vadd.f32 %v4317, %v4202
        %v4382 = vadd.f32 %v4318, %v4204
        %v4383 = vadd.f32 %v4319, %v4206
        %v4384 = vadd.f32 %v4320, %v4210
        %v4385 = vadd.f32 %v4321, %v4212
        %v4386 = vadd.f32 %v4322, %v4214
        %v4387 = vadd.f32 %v4323, %v4216
        %v4388 = vadd.f32 %v4324, %v4220
        %v4389 = vadd.f32 %v4325, %v4222
        %v4390 = vadd.f32 %v4326, %v4224
        %v4391 = vadd.f32 %v4327, %v4226
        %v4392 = vadd.f32 %v4328, %v4230
        %v4393 = vadd.f32 %v4329, %v4232
        %v4394 = vadd.f32 %v4330, %v4234
        %v4395 = vadd.f32 %v4331, %v4236
        %v4396 = vadd.f32 %v4332, %v4240
        %v4397 = vadd.f32 %v4333, %v4242
        %v4398 = vadd.f32 %v4334, %v4244
        %v4399 = vadd.f32 %v4335, %v4246
        %v4400 = vadd.f32 %v4336, %v4250
        %v4401 = vadd.f32 %v4337, %v4252
        %v4402 = vadd.f32 %v4338, %v4254
        %v4403 = vadd.f32 %v4339, %v4256
        %v4404 = vadd.f32 %v4340, %v4260
        %v4405 = vadd.f32 %v4341, %v4262
        %v4406 = vadd.f32 %v4342, %v4264
        %v4407 = vadd.f32 %v4343, %v4266
        %v4408 = vadd.f32 %v4344, %v4270
        %v4409 = vadd.f32 %v4345, %v4272
        %v4410 = vadd.f32 %v4346, %v4274
        %v4411 = vadd.f32 %v4347, %v4276
        %v4412 = vadd.f32 %v4348, %v4280
        %v4413 = vadd.f32 %v4349, %v4282
        %v4414 = vadd.f32 %v4350, %v4284
        %v4415 = vadd.f32 %v4351, %v4286
        %4416 = vst [vmem:[#allocation3] sm:$0xff] %v4352
        %4417 = vst [vmem:[#allocation3 + $0x8] sm:$0xff] %v4353
        %4418 = vst [vmem:[#allocation3 + $0x10] sm:$0xff] %v4354
        %4419 = vst [vmem:[#allocation3 + $0x18] sm:$0xff] %v4355
        %4420 = vst [vmem:[#allocation3 + $0x20] sm:$0xff] %v4356
        %4421 = vst [vmem:[#allocation3 + $0x28] sm:$0xff] %v4357
        %4422 = vst [vmem:[#allocation3 + $0x30] sm:$0xff] %v4358
        %4423 = vst [vmem:[#allocation3 + $0x38] sm:$0xff] %v4359
        %4424 = vst [vmem:[#allocation3 + $0x40] sm:$0xff] %v4360
        %4425 = vst [vmem:[#allocation3 + $0x48] sm:$0xff] %v4361
        %4426 = vst [vmem:[#allocation3 + $0x50] sm:$0xff] %v4362
        %4427 = vst [vmem:[#allocation3 + $0x58] sm:$0xff] %v4363
        %4428 = vst [vmem:[#allocation3 + $0x60] sm:$0xff] %v4364
        %4429 = vst [vmem:[#allocation3 + $0x68] sm:$0xff] %v4365
        %4430 = vst [vmem:[#allocation3 + $0x70] sm:$0xff] %v4366
        %4431 = vst [vmem:[#allocation3 + $0x78] sm:$0xff] %v4367
        %4432 = vst [vmem:[#allocation3 + $0x80] sm:$0xff] %v4368
        %4433 = vst [vmem:[#allocation3 + $0x88] sm:$0xff] %v4369
        %4434 = vst [vmem:[#allocation3 + $0x90] sm:$0xff] %v4370
        %4435 = vst [vmem:[#allocation3 + $0x98] sm:$0xff] %v4371
        %4436 = vst [vmem:[#allocation3 + $0xa0] sm:$0xff] %v4372
        %4437 = vst [vmem:[#allocation3 + $0xa8] sm:$0xff] %v4373
        %4438 = vst [vmem:[#allocation3 + $0xb0] sm:$0xff] %v4374
        %4439 = vst [vmem:[#allocation3 + $0xb8] sm:$0xff] %v4375
        %4440 = vst [vmem:[#allocation3 + $0xc0] sm:$0xff] %v4376
        %4441 = vst [vmem:[#allocation3 + $0xc8] sm:$0xff] %v4377
        %4442 = vst [vmem:[#allocation3 + $0xd0] sm:$0xff] %v4378
        %4443 = vst [vmem:[#allocation3 + $0xd8] sm:$0xff] %v4379
        %4444 = vst [vmem:[#allocation3 + $0xe0] sm:$0xff] %v4380
        %4445 = vst [vmem:[#allocation3 + $0xe8] sm:$0xff] %v4381
        %4446 = vst [vmem:[#allocation3 + $0xf0] sm:$0xff] %v4382
        %4447 = vst [vmem:[#allocation3 + $0xf8] sm:$0xff] %v4383
        %4448 = vst [vmem:[#allocation3 + $0x100] sm:$0xff] %v4384
        %4449 = vst [vmem:[#allocation3 + $0x108] sm:$0xff] %v4385
        %4450 = vst [vmem:[#allocation3 + $0x110] sm:$0xff] %v4386
        %4451 = vst [vmem:[#allocation3 + $0x118] sm:$0xff] %v4387
        %4452 = vst [vmem:[#allocation3 + $0x120] sm:$0xff] %v4388
        %4453 = vst [vmem:[#allocation3 + $0x128] sm:$0xff] %v4389
        %4454 = vst [vmem:[#allocation3 + $0x130] sm:$0xff] %v4390
        %4455 = vst [vmem:[#allocation3 + $0x138] sm:$0xff] %v4391
        %4456 = vst [vmem:[#allocation3 + $0x140] sm:$0xff] %v4392
        %4457 = vst [vmem:[#allocation3 + $0x148] sm:$0xff] %v4393
        %4458 = vst [vmem:[#allocation3 + $0x150] sm:$0xff] %v4394
        %4459 = vst [vmem:[#allocation3 + $0x158] sm:$0xff] %v4395
        %4460 = vst [vmem:[#allocation3 + $0x160] sm:$0xff] %v4396
        %4461 = vst [vmem:[#allocation3 + $0x168] sm:$0xff] %v4397
        %4462 = vst [vmem:[#allocation3 + $0x170] sm:$0xff] %v4398
        %4463 = vst [vmem:[#allocation3 + $0x178] sm:$0xff] %v4399
        %4464 = vst [vmem:[#allocation3 + $0x180] sm:$0xff] %v4400
        %4465 = vst [vmem:[#allocation3 + $0x188] sm:$0xff] %v4401
        %4466 = vst [vmem:[#allocation3 + $0x190] sm:$0xff] %v4402
        %4467 = vst [vmem:[#allocation3 + $0x198] sm:$0xff] %v4403
        %4468 = vst [vmem:[#allocation3 + $0x1a0] sm:$0xff] %v4404
        %4469 = vst [vmem:[#allocation3 + $0x1a8] sm:$0xff] %v4405
        %4470 = vst [vmem:[#allocation3 + $0x1b0] sm:$0xff] %v4406
        %4471 = vst [vmem:[#allocation3 + $0x1b8] sm:$0xff] %v4407
        %4472 = vst [vmem:[#allocation3 + $0x1c0] sm:$0xff] %v4408
        %4473 = vst [vmem:[#allocation3 + $0x1c8] sm:$0xff] %v4409
        %4474 = vst [vmem:[#allocation3 + $0x1d0] sm:$0xff] %v4410
        %4475 = vst [vmem:[#allocation3 + $0x1d8] sm:$0xff] %v4411
        %4476 = vst [vmem:[#allocation3 + $0x1e0] sm:$0xff] %v4412
        %4477 = vst [vmem:[#allocation3 + $0x1e8] sm:$0xff] %v4413
        %4478 = vst [vmem:[#allocation3 + $0x1f0] sm:$0xff] %v4414
        %4479 = vst [vmem:[#allocation3 + $0x1f8] sm:$0xff] %v4415
        %v4480 = vld [vmem:[#allocation3] sm:$0xff]
        %v4481 = vld [vmem:[#allocation3 + $0x8] sm:$0xff]
        %v4482 = vld [vmem:[#allocation3 + $0x10] sm:$0xff]
        %v4483 = vld [vmem:[#allocation3 + $0x18] sm:$0xff]
        %v4484 = vld [vmem:[#allocation3 + $0x20] sm:$0xff]
        %v4485 = vld [vmem:[#allocation3 + $0x28] sm:$0xff]
        %v4486 = vld [vmem:[#allocation3 + $0x30] sm:$0xff]
        %v4487 = vld [vmem:[#allocation3 + $0x38] sm:$0xff]
        %v4488 = vld [vmem:[#allocation3 + $0x40] sm:$0xff]
        %v4489 = vld [vmem:[#allocation3 + $0x48] sm:$0xff]
        %v4490 = vld [vmem:[#allocation3 + $0x50] sm:$0xff]
        %v4491 = vld [vmem:[#allocation3 + $0x58] sm:$0xff]
        %v4492 = vld [vmem:[#allocation3 + $0x60] sm:$0xff]
        %v4493 = vld [vmem:[#allocation3 + $0x68] sm:$0xff]
        %v4494 = vld [vmem:[#allocation3 + $0x70] sm:$0xff]
        %v4495 = vld [vmem:[#allocation3 + $0x78] sm:$0xff]
        %v4496 = vld [vmem:[#allocation3 + $0x80] sm:$0xff]
        %v4497 = vld [vmem:[#allocation3 + $0x88] sm:$0xff]
        %v4498 = vld [vmem:[#allocation3 + $0x90] sm:$0xff]
        %v4499 = vld [vmem:[#allocation3 + $0x98] sm:$0xff]
        %v4500 = vld [vmem:[#allocation3 + $0xa0] sm:$0xff]
        %v4501 = vld [vmem:[#allocation3 + $0xa8] sm:$0xff]
        %v4502 = vld [vmem:[#allocation3 + $0xb0] sm:$0xff]
        %v4503 = vld [vmem:[#allocation3 + $0xb8] sm:$0xff]
        %v4504 = vld [vmem:[#allocation3 + $0xc0] sm:$0xff]
        %v4505 = vld [vmem:[#allocation3 + $0xc8] sm:$0xff]
        %v4506 = vld [vmem:[#allocation3 + $0xd0] sm:$0xff]
        %v4507 = vld [vmem:[#allocation3 + $0xd8] sm:$0xff]
        %v4508 = vld [vmem:[#allocation3 + $0xe0] sm:$0xff]
        %v4509 = vld [vmem:[#allocation3 + $0xe8] sm:$0xff]
        %v4510 = vld [vmem:[#allocation3 + $0xf0] sm:$0xff]
        %v4511 = vld [vmem:[#allocation3 + $0xf8] sm:$0xff]
        %v4512 = vld [vmem:[#allocation3 + $0x100] sm:$0xff]
        %v4513 = vld [vmem:[#allocation3 + $0x108] sm:$0xff]
        %v4514 = vld [vmem:[#allocation3 + $0x110] sm:$0xff]
        %v4515 = vld [vmem:[#allocation3 + $0x118] sm:$0xff]
        %v4516 = vld [vmem:[#allocation3 + $0x120] sm:$0xff]
        %v4517 = vld [vmem:[#allocation3 + $0x128] sm:$0xff]
        %v4518 = vld [vmem:[#allocation3 + $0x130] sm:$0xff]
        %v4519 = vld [vmem:[#allocation3 + $0x138] sm:$0xff]
        %v4520 = vld [vmem:[#allocation3 + $0x140] sm:$0xff]
        %v4521 = vld [vmem:[#allocation3 + $0x148] sm:$0xff]
        %v4522 = vld [vmem:[#allocation3 + $0x150] sm:$0xff]
        %v4523 = vld [vmem:[#allocation3 + $0x158] sm:$0xff]
        %v4524 = vld [vmem:[#allocation3 + $0x160] sm:$0xff]
        %v4525 = vld [vmem:[#allocation3 + $0x168] sm:$0xff]
        %v4526 = vld [vmem:[#allocation3 + $0x170] sm:$0xff]
        %v4527 = vld [vmem:[#allocation3 + $0x178] sm:$0xff]
        %v4528 = vld [vmem:[#allocation3 + $0x180] sm:$0xff]
        %v4529 = vld [vmem:[#allocation3 + $0x188] sm:$0xff]
        %v4530 = vld [vmem:[#allocation3 + $0x190] sm:$0xff]
        %v4531 = vld [vmem:[#allocation3 + $0x198] sm:$0xff]
        %v4532 = vld [vmem:[#allocation3 + $0x1a0] sm:$0xff]
        %v4533 = vld [vmem:[#allocation3 + $0x1a8] sm:$0xff]
        %v4534 = vld [vmem:[#allocation3 + $0x1b0] sm:$0xff]
        %v4535 = vld [vmem:[#allocation3 + $0x1b8] sm:$0xff]
        %v4536 = vld [vmem:[#allocation3 + $0x1c0] sm:$0xff]
        %v4537 = vld [vmem:[#allocation3 + $0x1c8] sm:$0xff]
        %v4538 = vld [vmem:[#allocation3 + $0x1d0] sm:$0xff]
        %v4539 = vld [vmem:[#allocation3 + $0x1d8] sm:$0xff]
        %v4540 = vld [vmem:[#allocation3 + $0x1e0] sm:$0xff]
        %v4541 = vld [vmem:[#allocation3 + $0x1e8] sm:$0xff]
        %v4542 = vld [vmem:[#allocation3 + $0x1f0] sm:$0xff]
        %v4543 = vld [vmem:[#allocation3 + $0x1f8] sm:$0xff]
        %v4544 = vadd.f32 %v4480, %v4482
        %v4545 = vadd.f32 %v4544, %v4484
        %v4546 = vadd.f32 %v4545, %v4486
        %v4547 = vadd.f32 %v4546, %v4488
        %v4548 = vadd.f32 %v4547, %v4490
        %v4549 = vadd.f32 %v4548, %v4492
        %v4550 = vadd.f32 %v4549, %v4494
        %v4551 = vadd.f32 %v4550, %v4496
        %v4552 = vadd.f32 %v4551, %v4498
        %v4553 = vadd.f32 %v4552, %v4500
        %v4554 = vadd.f32 %v4553, %v4502
        %v4555 = vadd.f32 %v4554, %v4504
        %v4556 = vadd.f32 %v4555, %v4506
        %v4557 = vadd.f32 %v4556, %v4508
        %v4558 = vadd.f32 %v4557, %v4510
        %v4559 = vadd.f32 %v4558, %v4512
        %v4560 = vadd.f32 %v4559, %v4514
        %v4561 = vadd.f32 %v4560, %v4516
        %v4562 = vadd.f32 %v4561, %v4518
        %v4563 = vadd.f32 %v4562, %v4520
        %v4564 = vadd.f32 %v4563, %v4522
        %v4565 = vadd.f32 %v4564, %v4524
        %v4566 = vadd.f32 %v4565, %v4526
        %v4567 = vadd.f32 %v4566, %v4528
        %v4568 = vadd.f32 %v4567, %v4530
        %v4569 = vadd.f32 %v4568, %v4532
        %v4570 = vadd.f32 %v4569, %v4534
        %v4571 = vadd.f32 %v4570, %v4536
        %v4572 = vadd.f32 %v4571, %v4538
        %v4573 = vadd.f32 %v4572, %v4540
        %v4574 = vadd.f32 %v4573, %v4542
        %v4575 = vrot.slane %v4574, 4
        %v4576 = vadd.f32 %v4574, %v4575
        %v4577 = vrot.slane %v4576, 2
        %v4578 = vadd.f32 %v4576, %v4577
        %v4579 = vrot.slane %v4578, 1
        %v4580 = vadd.f32 %v4578, %v4579
        %v4581 = vadd.f32 %v4481, %v4483
        %v4582 = vadd.f32 %v4581, %v4485
        %v4583 = vadd.f32 %v4582, %v4487
        %v4584 = vadd.f32 %v4583, %v4489
        %v4585 = vadd.f32 %v4584, %v4491
        %v4586 = vadd.f32 %v4585, %v4493
        %v4587 = vadd.f32 %v4586, %v4495
        %v4588 = vadd.f32 %v4587, %v4497
        %v4589 = vadd.f32 %v4588, %v4499
        %v4590 = vadd.f32 %v4589, %v4501
        %v4591 = vadd.f32 %v4590, %v4503
        %v4592 = vadd.f32 %v4591, %v4505
        %v4593 = vadd.f32 %v4592, %v4507
        %v4594 = vadd.f32 %v4593, %v4509
        %v4595 = vadd.f32 %v4594, %v4511
        %v4596 = vadd.f32 %v4595, %v4513
        %v4597 = vadd.f32 %v4596, %v4515
        %v4598 = vadd.f32 %v4597, %v4517
        %v4599 = vadd.f32 %v4598, %v4519
        %v4600 = vadd.f32 %v4599, %v4521
        %v4601 = vadd.f32 %v4600, %v4523
        %v4602 = vadd.f32 %v4601, %v4525
        %v4603 = vadd.f32 %v4602, %v4527
        %v4604 = vadd.f32 %v4603, %v4529
        %v4605 = vadd.f32 %v4604, %v4531
        %v4606 = vadd.f32 %v4605, %v4533
        %v4607 = vadd.f32 %v4606, %v4535
        %v4608 = vadd.f32 %v4607, %v4537
        %v4609 = vadd.f32 %v4608, %v4539
        %v4610 = vadd.f32 %v4609, %v4541
        %v4611 = vadd.f32 %v4610, %v4543
        %v4612 = vrot.slane %v4611, 4
        %v4613 = vadd.f32 %v4611, %v4612
        %v4614 = vrot.slane %v4613, 2
        %v4615 = vadd.f32 %v4613, %v4614
        %v4616 = vrot.slane %v4615, 1
        %v4617 = vadd.f32 %v4615, %v4616
        %v4618 = vld [vmem:[%s4] sm:$0xff]
        %v4619 = vld [vmem:[%s4 + $0x8] sm:$0xff]
        %v4620 = vld [vmem:[%s4 + $0x10] sm:$0xff]
        %v4621 = vld [vmem:[%s4 + $0x18] sm:$0xff]
        %v4622 = vld [vmem:[%s4 + $0x20] sm:$0xff]
        %v4623 = vld [vmem:[%s4 + $0x28] sm:$0xff]
        %v4624 = vld [vmem:[%s4 + $0x30] sm:$0xff]
        %v4625 = vld [vmem:[%s4 + $0x38] sm:$0xff]
        %v4626 = vld [vmem:[%s4 + $0x40] sm:$0xff]
        %v4627 = vld [vmem:[%s4 + $0x48] sm:$0xff]
        %v4628 = vld [vmem:[%s4 + $0x50] sm:$0xff]
        %v4629 = vld [vmem:[%s4 + $0x58] sm:$0xff]
        %v4630 = vld [vmem:[%s4 + $0x60] sm:$0xff]
        %v4631 = vld [vmem:[%s4 + $0x68] sm:$0xff]
        %v4632 = vld [vmem:[%s4 + $0x70] sm:$0xff]
        %v4633 = vld [vmem:[%s4 + $0x78] sm:$0xff]
        %v4634 = vld [vmem:[%s4 + $0x80] sm:$0xff]
        %v4635 = vld [vmem:[%s4 + $0x88] sm:$0xff]
        %v4636 = vld [vmem:[%s4 + $0x90] sm:$0xff]
        %v4637 = vld [vmem:[%s4 + $0x98] sm:$0xff]
        %v4638 = vld [vmem:[%s4 + $0xa0] sm:$0xff]
        %v4639 = vld [vmem:[%s4 + $0xa8] sm:$0xff]
        %v4640 = vld [vmem:[%s4 + $0xb0] sm:$0xff]
        %v4641 = vld [vmem:[%s4 + $0xb8] sm:$0xff]
        %v4642 = vld [vmem:[%s4 + $0xc0] sm:$0xff]
        %v4643 = vld [vmem:[%s4 + $0xc8] sm:$0xff]
        %v4644 = vld [vmem:[%s4 + $0xd0] sm:$0xff]
        %v4645 = vld [vmem:[%s4 + $0xd8] sm:$0xff]
        %v4646 = vld [vmem:[%s4 + $0xe0] sm:$0xff]
        %v4647 = vld [vmem:[%s4 + $0xe8] sm:$0xff]
        %v4648 = vld [vmem:[%s4 + $0xf0] sm:$0xff]
        %v4649 = vld [vmem:[%s4 + $0xf8] sm:$0xff]
        %4650 = vmatprep.subr.mxu0 0.0
        %4651 = vmatpush1.msra.mxu0 %v4633
        %4652 = vmatprep.subr.mxu0 0.0
        %4653 = vmatpush1.msra.mxu0 %v4632
        %4654 = vmatprep.subr.mxu0 0.0
        %4655 = vmatpush1.msra.mxu0 %v4631
        %4656 = vmatprep.subr.mxu0 0.0
        %4657 = vmatpush1.msra.mxu0 %v4630
        %4658 = vmatprep.subr.mxu0 0.0
        %4659 = vmatpush1.msra.mxu0 %v4629
        %4660 = vmatprep.subr.mxu0 0.0
        %4661 = vmatpush1.msra.mxu0 %v4628
        %4662 = vmatprep.subr.mxu0 0.0
        %4663 = vmatpush1.msra.mxu0 %v4627
        %4664 = vmatprep.subr.mxu0 0.0
        %4665 = vmatpush1.msra.mxu0 %v4626
        %4666 = vmatprep.subr.mxu0 0.0
        %4667 = vmatpush1.msra.mxu0 %v4625
        %4668 = vmatprep.subr.mxu0 0.0
        %4669 = vmatpush1.msra.mxu0 %v4624
        %4670 = vmatprep.subr.mxu0 0.0
        %4671 = vmatpush1.msra.mxu0 %v4623
        %4672 = vmatprep.subr.mxu0 0.0
        %4673 = vmatpush1.msra.mxu0 %v4622
        %4674 = vmatprep.subr.mxu0 0.0
        %4675 = vmatpush1.msra.mxu0 %v4621
        %4676 = vmatprep.subr.mxu0 0.0
        %4677 = vmatpush1.msra.mxu0 %v4620
        %4678 = vmatprep.subr.mxu0 0.0
        %4679 = vmatpush1.msra.mxu0 %v4619
        %4680 = vmatprep.subr.mxu0 0.0
        %4681 = vmatpush1.msra.mxu0 %v4618
        %4682 = vmatprep.subr.mxu0 0.0
        %4683 = vmatpush2.msra.mxu0 %v4649
        %4684 = vmatprep.subr.mxu0 0.0
        %4685 = vmatpush2.msra.mxu0 %v4648
        %4686 = vmatprep.subr.mxu0 0.0
        %4687 = vmatpush2.msra.mxu0 %v4647
        %4688 = vmatprep.subr.mxu0 0.0
        %4689 = vmatpush2.msra.mxu0 %v4646
        %4690 = vmatprep.subr.mxu0 0.0
        %4691 = vmatpush2.msra.mxu0 %v4645
        %4692 = vmatprep.subr.mxu0 0.0
        %4693 = vmatpush2.msra.mxu0 %v4644
        %4694 = vmatprep.subr.mxu0 0.0
        %4695 = vmatpush2.msra.mxu0 %v4643
        %4696 = vmatprep.subr.mxu0 0.0
        %4697 = vmatpush2.msra.mxu0 %v4642
        %4698 = vmatprep.subr.mxu0 0.0
        %4699 = vmatpush2.msra.mxu0 %v4641
        %4700 = vmatprep.subr.mxu0 0.0
        %4701 = vmatpush2.msra.mxu0 %v4640
        %4702 = vmatprep.subr.mxu0 0.0
        %4703 = vmatpush2.msra.mxu0 %v4639
        %4704 = vmatprep.subr.mxu0 0.0
        %4705 = vmatpush2.msra.mxu0 %v4638
        %4706 = vmatprep.subr.mxu0 0.0
        %4707 = vmatpush2.msra.mxu0 %v4637
        %4708 = vmatprep.subr.mxu0 0.0
        %4709 = vmatpush2.msra.mxu0 %v4636
        %4710 = vmatprep.subr.mxu0 0.0
        %4711 = vmatpush2.msra.mxu0 %v4635
        %4712 = vmatprep.subr.mxu0 0.0
        %4713 = vmatpush2.msra.mxu0 %v4634
        %4714 = vmatprep.mubr.f32.mxu0 %v4617
        %4715 = vmatmul.mubr.f32.gmra.mxu0 %v4580
        %v4716 = vpop.f32.mrf.mxu0
        %v4717 = vadd.f32 0.0, %v4716
        %v4718 = vpop.f32.mrf.mxu0
        %4719 = vdwg.mxu0
        %v4720 = vmul.f32 %v4717, 0.0009765625
        %v4721 = vld [vmem:[%s5] sm:$0xff]
        %v4722 = vld [vmem:[%s5 + $0x8] sm:$0xff]
        %v4723 = vld [vmem:[%s5 + $0x10] sm:$0xff]
        %v4724 = vld [vmem:[%s5 + $0x18] sm:$0xff]
        %v4725 = vld [vmem:[%s5 + $0x20] sm:$0xff]
        %v4726 = vld [vmem:[%s5 + $0x28] sm:$0xff]
        %v4727 = vld [vmem:[%s5 + $0x30] sm:$0xff]
        %v4728 = vld [vmem:[%s5 + $0x38] sm:$0xff]
        %v4729 = vld [vmem:[%s5 + $0x40] sm:$0xff]
        %v4730 = vld [vmem:[%s5 + $0x48] sm:$0xff]
        %v4731 = vld [vmem:[%s5 + $0x50] sm:$0xff]
        %v4732 = vld [vmem:[%s5 + $0x58] sm:$0xff]
        %v4733 = vld [vmem:[%s5 + $0x60] sm:$0xff]
        %v4734 = vld [vmem:[%s5 + $0x68] sm:$0xff]
        %v4735 = vld [vmem:[%s5 + $0x70] sm:$0xff]
        %v4736 = vld [vmem:[%s5 + $0x78] sm:$0xff]
        %vm4737 = vcmask 523264
        %v4739 = vsel %vm4737, %v4720, 0
        %4741 = vmatprep.subr.mxu0 0.0
        %4742 = vmatpush1.msra.mxu0 0.0
        %4743 = vmatprep.subr.mxu0 0.0
        %4744 = vmatpush1.msra.mxu0 0.0
        %4745 = vmatprep.subr.mxu0 0.0
        %4746 = vmatpush1.msra.mxu0 0.0
        %4747 = vmatprep.subr.mxu0 0.0
        %4748 = vmatpush1.msra.mxu0 0.0
        %4749 = vmatprep.subr.mxu0 0.0
        %4750 = vmatpush1.msra.mxu0 0.0
        %4751 = vmatprep.subr.mxu0 0.0
        %4752 = vmatpush1.msra.mxu0 0.0
        %4753 = vmatprep.subr.mxu0 0.0
        %4754 = vmatpush1.msra.mxu0 0.0
        %4755 = vmatprep.subr.mxu0 0.0
        %4756 = vmatpush1.msra.mxu0 0.0
        %4757 = vmatprep.subr.mxu0 %v4736
        %4758 = vmatpush1.msra.mxu0 %v4735
        %4759 = vmatprep.subr.mxu0 %v4734
        %4760 = vmatpush1.msra.mxu0 %v4733
        %4761 = vmatprep.subr.mxu0 %v4732
        %4762 = vmatpush1.msra.mxu0 %v4731
        %4763 = vmatprep.subr.mxu0 %v4730
        %4764 = vmatpush1.msra.mxu0 %v4729
        %4765 = vmatprep.subr.mxu0 %v4728
        %4766 = vmatpush1.msra.mxu0 %v4727
        %4767 = vmatprep.subr.mxu0 %v4726
        %4768 = vmatpush1.msra.mxu0 %v4725
        %4769 = vmatprep.subr.mxu0 %v4724
        %4770 = vmatpush1.msra.mxu0 %v4723
        %4771 = vmatprep.subr.mxu0 %v4722
        %4772 = vmatpush1.msra.mxu0 %v4721
        %4773 = vmatprep.subr.mxu0 0.0
        %4774 = vmatpush2.msra.mxu0 0.0
        %4775 = vmatprep.subr.mxu0 0.0
        %4776 = vmatpush2.msra.mxu0 0.0
        %4777 = vmatprep.subr.mxu0 0.0
        %4778 = vmatpush2.msra.mxu0 0.0
        %4779 = vmatprep.subr.mxu0 0.0
        %4780 = vmatpush2.msra.mxu0 0.0
        %4781 = vmatprep.subr.mxu0 0.0
        %4782 = vmatpush2.msra.mxu0 0.0
        %4783 = vmatprep.subr.mxu0 0.0
        %4784 = vmatpush2.msra.mxu0 0.0
        %4785 = vmatprep.subr.mxu0 0.0
        %4786 = vmatpush2.msra.mxu0 0.0
        %4787 = vmatprep.subr.mxu0 0.0
        %4788 = vmatpush2.msra.mxu0 0.0
        %4789 = vmatprep.subr.mxu0 0.0
        %4790 = vmatpush2.msra.mxu0 0.0
        %4791 = vmatprep.subr.mxu0 0.0
        %4792 = vmatpush2.msra.mxu0 0.0
        %4793 = vmatprep.subr.mxu0 0.0
        %4794 = vmatpush2.msra.mxu0 0.0
        %4795 = vmatprep.subr.mxu0 0.0
        %4796 = vmatpush2.msra.mxu0 0.0
        %4797 = vmatprep.subr.mxu0 0.0
        %4798 = vmatpush2.msra.mxu0 0.0
        %4799 = vmatprep.subr.mxu0 0.0
        %4800 = vmatpush2.msra.mxu0 0.0
        %4801 = vmatprep.subr.mxu0 0.0
        %4802 = vmatpush2.msra.mxu0 0.0
        %4803 = vmatprep.subr.mxu0 0.0
        %4804 = vmatpush2.msra.mxu0 0.0
        %4805 = vmatprep.mubr.f32.mxu0 0.0
        %4806 = vmatmul.mubr.f32.gmra.mxu0 %v4739
        %v4807 = vpop.f32.mrf.mxu0
        %v4808 = vadd.f32 0.0, %v4807
        %v4809 = vpop.f32.mrf.mxu0
        %v4810 = vadd.f32 0.0, %v4809
        %4811 = vdwg.mxu0
        %v4812 = vlaneseq
        %v4813 = vshrl.u32 %v4812, 7
        %v4814 = vsub.s32 0, %v4813
        %v4815 = vrot.slane %v4808, %v4814
        %v4816 = vlaneseq
        %v4817 = vshrl.u32 %v4816, 7
        %v4818 = vsub.s32 0, %v4817
        %v4819 = vrot.slane %v4810, %v4818
        %v4820 = vsub.f32 %v4480, %v4815
        %v4821 = vsub.f32 %v4481, %v4819
        %v4822 = vsub.f32 %v4482, %v4815
        %v4823 = vsub.f32 %v4483, %v4819
        %v4824 = vsub.f32 %v4484, %v4815
        %v4825 = vsub.f32 %v4485, %v4819
        %v4826 = vsub.f32 %v4486, %v4815
        %v4827 = vsub.f32 %v4487, %v4819
        %v4828 = vsub.f32 %v4488, %v4815
        %v4829 = vsub.f32 %v4489, %v4819
        %v4830 = vsub.f32 %v4490, %v4815
        %v4831 = vsub.f32 %v4491, %v4819
        %v4832 = vsub.f32 %v4492, %v4815
        %v4833 = vsub.f32 %v4493, %v4819
        %v4834 = vsub.f32 %v4494, %v4815
        %v4835 = vsub.f32 %v4495, %v4819
        %v4836 = vsub.f32 %v4496, %v4815
        %v4837 = vsub.f32 %v4497, %v4819
        %v4838 = vsub.f32 %v4498, %v4815
        %v4839 = vsub.f32 %v4499, %v4819
        %v4840 = vsub.f32 %v4500, %v4815
        %v4841 = vsub.f32 %v4501, %v4819
        %v4842 = vsub.f32 %v4502, %v4815
        %v4843 = vsub.f32 %v4503, %v4819
        %v4844 = vsub.f32 %v4504, %v4815
        %v4845 = vsub.f32 %v4505, %v4819
        %v4846 = vsub.f32 %v4506, %v4815
        %v4847 = vsub.f32 %v4507, %v4819
        %v4848 = vsub.f32 %v4508, %v4815
        %v4849 = vsub.f32 %v4509, %v4819
        %v4850 = vsub.f32 %v4510, %v4815
        %v4851 = vsub.f32 %v4511, %v4819
        %v4852 = vsub.f32 %v4512, %v4815
        %v4853 = vsub.f32 %v4513, %v4819
        %v4854 = vsub.f32 %v4514, %v4815
        %v4855 = vsub.f32 %v4515, %v4819
        %v4856 = vsub.f32 %v4516, %v4815
        %v4857 = vsub.f32 %v4517, %v4819
        %v4858 = vsub.f32 %v4518, %v4815
        %v4859 = vsub.f32 %v4519, %v4819
        %v4860 = vsub.f32 %v4520, %v4815
        %v4861 = vsub.f32 %v4521, %v4819
        %v4862 = vsub.f32 %v4522, %v4815
        %v4863 = vsub.f32 %v4523, %v4819
        %v4864 = vsub.f32 %v4524, %v4815
        %v4865 = vsub.f32 %v4525, %v4819
        %v4866 = vsub.f32 %v4526, %v4815
        %v4867 = vsub.f32 %v4527, %v4819
        %v4868 = vsub.f32 %v4528, %v4815
        %v4869 = vsub.f32 %v4529, %v4819
        %v4870 = vsub.f32 %v4530, %v4815
        %v4871 = vsub.f32 %v4531, %v4819
        %v4872 = vsub.f32 %v4532, %v4815
        %v4873 = vsub.f32 %v4533, %v4819
        %v4874 = vsub.f32 %v4534, %v4815
        %v4875 = vsub.f32 %v4535, %v4819
        %v4876 = vsub.f32 %v4536, %v4815
        %v4877 = vsub.f32 %v4537, %v4819
        %v4878 = vsub.f32 %v4538, %v4815
        %v4879 = vsub.f32 %v4539, %v4819
        %v4880 = vsub.f32 %v4540, %v4815
        %v4881 = vsub.f32 %v4541, %v4819
        %v4882 = vsub.f32 %v4542, %v4815
        %v4883 = vsub.f32 %v4543, %v4819
        %v4884 = vmul.f32 %v4820, %v4820
        %v4885 = vmul.f32 %v4821, %v4821
        %v4886 = vmul.f32 %v4822, %v4822
        %v4887 = vmul.f32 %v4823, %v4823
        %v4888 = vmul.f32 %v4824, %v4824
        %v4889 = vmul.f32 %v4825, %v4825
        %v4890 = vmul.f32 %v4826, %v4826
        %v4891 = vmul.f32 %v4827, %v4827
        %v4892 = vmul.f32 %v4828, %v4828
        %v4893 = vmul.f32 %v4829, %v4829
        %v4894 = vmul.f32 %v4830, %v4830
        %v4895 = vmul.f32 %v4831, %v4831
        %v4896 = vmul.f32 %v4832, %v4832
        %v4897 = vmul.f32 %v4833, %v4833
        %v4898 = vmul.f32 %v4834, %v4834
        %v4899 = vmul.f32 %v4835, %v4835
        %v4900 = vmul.f32 %v4836, %v4836
        %v4901 = vmul.f32 %v4837, %v4837
        %v4902 = vmul.f32 %v4838, %v4838
        %v4903 = vmul.f32 %v4839, %v4839
        %v4904 = vmul.f32 %v4840, %v4840
        %v4905 = vmul.f32 %v4841, %v4841
        %v4906 = vmul.f32 %v4842, %v4842
        %v4907 = vmul.f32 %v4843, %v4843
        %v4908 = vmul.f32 %v4844, %v4844
        %v4909 = vmul.f32 %v4845, %v4845
        %v4910 = vmul.f32 %v4846, %v4846
        %v4911 = vmul.f32 %v4847, %v4847
        %v4912 = vmul.f32 %v4848, %v4848
        %v4913 = vmul.f32 %v4849, %v4849
        %v4914 = vmul.f32 %v4850, %v4850
        %v4915 = vmul.f32 %v4851, %v4851
        %v4916 = vmul.f32 %v4852, %v4852
        %v4917 = vmul.f32 %v4853, %v4853
        %v4918 = vmul.f32 %v4854, %v4854
        %v4919 = vmul.f32 %v4855, %v4855
        %v4920 = vmul.f32 %v4856, %v4856
        %v4921 = vmul.f32 %v4857, %v4857
        %v4922 = vmul.f32 %v4858, %v4858
        %v4923 = vmul.f32 %v4859, %v4859
        %v4924 = vmul.f32 %v4860, %v4860
        %v4925 = vmul.f32 %v4861, %v4861
        %v4926 = vmul.f32 %v4862, %v4862
        %v4927 = vmul.f32 %v4863, %v4863
        %v4928 = vmul.f32 %v4864, %v4864
        %v4929 = vmul.f32 %v4865, %v4865
        %v4930 = vmul.f32 %v4866, %v4866
        %v4931 = vmul.f32 %v4867, %v4867
        %v4932 = vmul.f32 %v4868, %v4868
        %v4933 = vmul.f32 %v4869, %v4869
        %v4934 = vmul.f32 %v4870, %v4870
        %v4935 = vmul.f32 %v4871, %v4871
        %v4936 = vmul.f32 %v4872, %v4872
        %v4937 = vmul.f32 %v4873, %v4873
        %v4938 = vmul.f32 %v4874, %v4874
        %v4939 = vmul.f32 %v4875, %v4875
        %v4940 = vmul.f32 %v4876, %v4876
        %v4941 = vmul.f32 %v4877, %v4877
        %v4942 = vmul.f32 %v4878, %v4878
        %v4943 = vmul.f32 %v4879, %v4879
        %v4944 = vmul.f32 %v4880, %v4880
        %v4945 = vmul.f32 %v4881, %v4881
        %v4946 = vmul.f32 %v4882, %v4882
        %v4947 = vmul.f32 %v4883, %v4883
        %v4948 = vadd.f32 %v4884, %v4886
        %v4949 = vadd.f32 %v4948, %v4888
        %v4950 = vadd.f32 %v4949, %v4890
        %v4951 = vadd.f32 %v4950, %v4892
        %v4952 = vadd.f32 %v4951, %v4894
        %v4953 = vadd.f32 %v4952, %v4896
        %v4954 = vadd.f32 %v4953, %v4898
        %v4955 = vadd.f32 %v4954, %v4900
        %v4956 = vadd.f32 %v4955, %v4902
        %v4957 = vadd.f32 %v4956, %v4904
        %v4958 = vadd.f32 %v4957, %v4906
        %v4959 = vadd.f32 %v4958, %v4908
        %v4960 = vadd.f32 %v4959, %v4910
        %v4961 = vadd.f32 %v4960, %v4912
        %v4962 = vadd.f32 %v4961, %v4914
        %v4963 = vadd.f32 %v4962, %v4916
        %v4964 = vadd.f32 %v4963, %v4918
        %v4965 = vadd.f32 %v4964, %v4920
        %v4966 = vadd.f32 %v4965, %v4922
        %v4967 = vadd.f32 %v4966, %v4924
        %v4968 = vadd.f32 %v4967, %v4926
        %v4969 = vadd.f32 %v4968, %v4928
        %v4970 = vadd.f32 %v4969, %v4930
        %v4971 = vadd.f32 %v4970, %v4932
        %v4972 = vadd.f32 %v4971, %v4934
        %v4973 = vadd.f32 %v4972, %v4936
        %v4974 = vadd.f32 %v4973, %v4938
        %v4975 = vadd.f32 %v4974, %v4940
        %v4976 = vadd.f32 %v4975, %v4942
        %v4977 = vadd.f32 %v4976, %v4944
        %v4978 = vadd.f32 %v4977, %v4946
        %v4979 = vrot.slane %v4978, 4
        %v4980 = vadd.f32 %v4978, %v4979
        %v4981 = vrot.slane %v4980, 2
        %v4982 = vadd.f32 %v4980, %v4981
        %v4983 = vrot.slane %v4982, 1
        %v4984 = vadd.f32 %v4982, %v4983
        %v4985 = vadd.f32 %v4885, %v4887
        %v4986 = vadd.f32 %v4985, %v4889
        %v4987 = vadd.f32 %v4986, %v4891
        %v4988 = vadd.f32 %v4987, %v4893
        %v4989 = vadd.f32 %v4988, %v4895
        %v4990 = vadd.f32 %v4989, %v4897
        %v4991 = vadd.f32 %v4990, %v4899
        %v4992 = vadd.f32 %v4991, %v4901
        %v4993 = vadd.f32 %v4992, %v4903
        %v4994 = vadd.f32 %v4993, %v4905
        %v4995 = vadd.f32 %v4994, %v4907
        %v4996 = vadd.f32 %v4995, %v4909
        %v4997 = vadd.f32 %v4996, %v4911
        %v4998 = vadd.f32 %v4997, %v4913
        %v4999 = vadd.f32 %v4998, %v4915
        %v5000 = vadd.f32 %v4999, %v4917
        %v5001 = vadd.f32 %v5000, %v4919
        %v5002 = vadd.f32 %v5001, %v4921
        %v5003 = vadd.f32 %v5002, %v4923
        %v5004 = vadd.f32 %v5003, %v4925
        %v5005 = vadd.f32 %v5004, %v4927
        %v5006 = vadd.f32 %v5005, %v4929
        %v5007 = vadd.f32 %v5006, %v4931
        %v5008 = vadd.f32 %v5007, %v4933
        %v5009 = vadd.f32 %v5008, %v4935
        %v5010 = vadd.f32 %v5009, %v4937
        %v5011 = vadd.f32 %v5010, %v4939
        %v5012 = vadd.f32 %v5011, %v4941
        %v5013 = vadd.f32 %v5012, %v4943
        %v5014 = vadd.f32 %v5013, %v4945
        %v5015 = vadd.f32 %v5014, %v4947
        %v5016 = vrot.slane %v5015, 4
        %v5017 = vadd.f32 %v5015, %v5016
        %v5018 = vrot.slane %v5017, 2
        %v5019 = vadd.f32 %v5017, %v5018
        %v5020 = vrot.slane %v5019, 1
        %v5021 = vadd.f32 %v5019, %v5020
        %5022 = vmatprep.subr.mxu0 0.0
        %5023 = vmatpush1.msra.mxu0 %v4633
        %5024 = vmatprep.subr.mxu0 0.0
        %5025 = vmatpush1.msra.mxu0 %v4632
        %5026 = vmatprep.subr.mxu0 0.0
        %5027 = vmatpush1.msra.mxu0 %v4631
        %5028 = vmatprep.subr.mxu0 0.0
        %5029 = vmatpush1.msra.mxu0 %v4630
        %5030 = vmatprep.subr.mxu0 0.0
        %5031 = vmatpush1.msra.mxu0 %v4629
        %5032 = vmatprep.subr.mxu0 0.0
        %5033 = vmatpush1.msra.mxu0 %v4628
        %5034 = vmatprep.subr.mxu0 0.0
        %5035 = vmatpush1.msra.mxu0 %v4627
        %5036 = vmatprep.subr.mxu0 0.0
        %5037 = vmatpush1.msra.mxu0 %v4626
        %5038 = vmatprep.subr.mxu0 0.0
        %5039 = vmatpush1.msra.mxu0 %v4625
        %5040 = vmatprep.subr.mxu0 0.0
        %5041 = vmatpush1.msra.mxu0 %v4624
        %5042 = vmatprep.subr.mxu0 0.0
        %5043 = vmatpush1.msra.mxu0 %v4623
        %5044 = vmatprep.subr.mxu0 0.0
        %5045 = vmatpush1.msra.mxu0 %v4622
        %5046 = vmatprep.subr.mxu0 0.0
        %5047 = vmatpush1.msra.mxu0 %v4621
        %5048 = vmatprep.subr.mxu0 0.0
        %5049 = vmatpush1.msra.mxu0 %v4620
        %5050 = vmatprep.subr.mxu0 0.0
        %5051 = vmatpush1.msra.mxu0 %v4619
        %5052 = vmatprep.subr.mxu0 0.0
        %5053 = vmatpush1.msra.mxu0 %v4618
        %5054 = vmatprep.subr.mxu0 0.0
        %5055 = vmatpush2.msra.mxu0 %v4649
        %5056 = vmatprep.subr.mxu0 0.0
        %5057 = vmatpush2.msra.mxu0 %v4648
        %5058 = vmatprep.subr.mxu0 0.0
        %5059 = vmatpush2.msra.mxu0 %v4647
        %5060 = vmatprep.subr.mxu0 0.0
        %5061 = vmatpush2.msra.mxu0 %v4646
        %5062 = vmatprep.subr.mxu0 0.0
        %5063 = vmatpush2.msra.mxu0 %v4645
        %5064 = vmatprep.subr.mxu0 0.0
        %5065 = vmatpush2.msra.mxu0 %v4644
        %5066 = vmatprep.subr.mxu0 0.0
        %5067 = vmatpush2.msra.mxu0 %v4643
        %5068 = vmatprep.subr.mxu0 0.0
        %5069 = vmatpush2.msra.mxu0 %v4642
        %5070 = vmatprep.subr.mxu0 0.0
        %5071 = vmatpush2.msra.mxu0 %v4641
        %5072 = vmatprep.subr.mxu0 0.0
        %5073 = vmatpush2.msra.mxu0 %v4640
        %5074 = vmatprep.subr.mxu0 0.0
        %5075 = vmatpush2.msra.mxu0 %v4639
        %5076 = vmatprep.subr.mxu0 0.0
        %5077 = vmatpush2.msra.mxu0 %v4638
        %5078 = vmatprep.subr.mxu0 0.0
        %5079 = vmatpush2.msra.mxu0 %v4637
        %5080 = vmatprep.subr.mxu0 0.0
        %5081 = vmatpush2.msra.mxu0 %v4636
        %5082 = vmatprep.subr.mxu0 0.0
        %5083 = vmatpush2.msra.mxu0 %v4635
        %5084 = vmatprep.subr.mxu0 0.0
        %5085 = vmatpush2.msra.mxu0 %v4634
        %5086 = vmatprep.mubr.f32.mxu0 %v5021
        %5087 = vmatmul.mubr.f32.gmra.mxu0 %v4984
        %v5088 = vpop.f32.mrf.mxu0
        %v5089 = vadd.f32 0.0, %v5088
        %v5090 = vpop.f32.mrf.mxu0
        %5091 = vdwg.mxu0
        %v5092 = vmul.f32 %v5089, 0.0009765625
        %v5093 = vadd.f32 %v5092, 1e-05
        %v5094 = vrsqrt.pop %v5093
        %v5096 = vsel %vm4737, %v5094, 0
        %5098 = vmatprep.subr.mxu0 0.0
        %5099 = vmatpush1.msra.mxu0 0.0
        %5100 = vmatprep.subr.mxu0 0.0
        %5101 = vmatpush1.msra.mxu0 0.0
        %5102 = vmatprep.subr.mxu0 0.0
        %5103 = vmatpush1.msra.mxu0 0.0
        %5104 = vmatprep.subr.mxu0 0.0
        %5105 = vmatpush1.msra.mxu0 0.0
        %5106 = vmatprep.subr.mxu0 0.0
        %5107 = vmatpush1.msra.mxu0 0.0
        %5108 = vmatprep.subr.mxu0 0.0
        %5109 = vmatpush1.msra.mxu0 0.0
        %5110 = vmatprep.subr.mxu0 0.0
        %5111 = vmatpush1.msra.mxu0 0.0
        %5112 = vmatprep.subr.mxu0 0.0
        %5113 = vmatpush1.msra.mxu0 0.0
        %5114 = vmatprep.subr.mxu0 %v4736
        %5115 = vmatpush1.msra.mxu0 %v4735
        %5116 = vmatprep.subr.mxu0 %v4734
        %5117 = vmatpush1.msra.mxu0 %v4733
        %5118 = vmatprep.subr.mxu0 %v4732
        %5119 = vmatpush1.msra.mxu0 %v4731
        %5120 = vmatprep.subr.mxu0 %v4730
        %5121 = vmatpush1.msra.mxu0 %v4729
        %5122 = vmatprep.subr.mxu0 %v4728
        %5123 = vmatpush1.msra.mxu0 %v4727
        %5124 = vmatprep.subr.mxu0 %v4726
        %5125 = vmatpush1.msra.mxu0 %v4725
        %5126 = vmatprep.subr.mxu0 %v4724
        %5127 = vmatpush1.msra.mxu0 %v4723
        %5128 = vmatprep.subr.mxu0 %v4722
        %5129 = vmatpush1.msra.mxu0 %v4721
        %5130 = vmatprep.subr.mxu0 0.0
        %5131 = vmatpush2.msra.mxu0 0.0
        %5132 = vmatprep.subr.mxu0 0.0
        %5133 = vmatpush2.msra.mxu0 0.0
        %5134 = vmatprep.subr.mxu0 0.0
        %5135 = vmatpush2.msra.mxu0 0.0
        %5136 = vmatprep.subr.mxu0 0.0
        %5137 = vmatpush2.msra.mxu0 0.0
        %5138 = vmatprep.subr.mxu0 0.0
        %5139 = vmatpush2.msra.mxu0 0.0
        %5140 = vmatprep.subr.mxu0 0.0
        %5141 = vmatpush2.msra.mxu0 0.0
        %5142 = vmatprep.subr.mxu0 0.0
        %5143 = vmatpush2.msra.mxu0 0.0
        %5144 = vmatprep.subr.mxu0 0.0
        %5145 = vmatpush2.msra.mxu0 0.0
        %5146 = vmatprep.subr.mxu0 0.0
        %5147 = vmatpush2.msra.mxu0 0.0
        %5148 = vmatprep.subr.mxu0 0.0
        %5149 = vmatpush2.msra.mxu0 0.0
        %5150 = vmatprep.subr.mxu0 0.0
        %5151 = vmatpush2.msra.mxu0 0.0
        %5152 = vmatprep.subr.mxu0 0.0
        %5153 = vmatpush2.msra.mxu0 0.0
        %5154 = vmatprep.subr.mxu0 0.0
        %5155 = vmatpush2.msra.mxu0 0.0
        %5156 = vmatprep.subr.mxu0 0.0
        %5157 = vmatpush2.msra.mxu0 0.0
        %5158 = vmatprep.subr.mxu0 0.0
        %5159 = vmatpush2.msra.mxu0 0.0
        %5160 = vmatprep.subr.mxu0 0.0
        %5161 = vmatpush2.msra.mxu0 0.0
        %5162 = vmatprep.mubr.f32.mxu0 0.0
        %5163 = vmatmul.mubr.f32.gmra.mxu0 %v5096
        %v5164 = vpop.f32.mrf.mxu0
        %v5165 = vadd.f32 0.0, %v5164
        %v5166 = vpop.f32.mrf.mxu0
        %v5167 = vadd.f32 0.0, %v5166
        %5168 = vdwg.mxu0
        %v5169 = vld [vmem:[%s2] sm:$0x3]
        %v5172 = vcombine.low %v5165, %v5167
        %v5174 = vunpack.c.l.s4 1966171168
        %v5175 = vunpack.c.0.s8 %v5174
        %v5176 = vlaneseq
        %v5177 = vshrl.u32 %v5176, 7
        %v5178 = vsub.s32 %v5175, %v5177
        %v5179 = vrot.slane %v5172, %v5178
        %v5181 = vunpack.c.l.s4 1966171168
        %v5182 = vunpack.c.0.s8 %v5181
        %v5183 = vlaneseq
        %v5184 = vshrl.u32 %v5183, 7
        %v5185 = vsub.s32 %v5182, %v5184
        %v5186 = vrot.slane %v5179, %v5185
        %v5188 = vmul.f32 %v5169, %v5186
        %v5190 = vlaneseq
        %v5191 = vshrl.u32 %v5190, 7
        %v5192 = vsub.s32 0, %v5191
        %v5193 = vrot.slane %v5188, %v5192
        %v5194 = vlaneseq
        %v5195 = vshrl.u32 %v5194, 7
        %v5196 = vsub.s32 1, %v5195
        %v5197 = vrot.slane %v5188, %v5196
        %v5200 = vmul.f32 %v4820, %v5193
        %v5201 = vmul.f32 %v4821, %v5197
        %v5202 = vmul.f32 %v4822, %v5193
        %v5203 = vmul.f32 %v4823, %v5197
        %v5204 = vmul.f32 %v4824, %v5193
        %v5205 = vmul.f32 %v4825, %v5197
        %v5206 = vmul.f32 %v4826, %v5193
        %v5207 = vmul.f32 %v4827, %v5197
        %v5208 = vmul.f32 %v4828, %v5193
        %v5209 = vmul.f32 %v4829, %v5197
        %v5210 = vmul.f32 %v4830, %v5193
        %v5211 = vmul.f32 %v4831, %v5197
        %v5212 = vmul.f32 %v4832, %v5193
        %v5213 = vmul.f32 %v4833, %v5197
        %v5214 = vmul.f32 %v4834, %v5193
        %v5215 = vmul.f32 %v4835, %v5197
        %v5216 = vmul.f32 %v4836, %v5193
        %v5217 = vmul.f32 %v4837, %v5197
        %v5218 = vmul.f32 %v4838, %v5193
        %v5219 = vmul.f32 %v4839, %v5197
        %v5220 = vmul.f32 %v4840, %v5193
        %v5221 = vmul.f32 %v4841, %v5197
        %v5222 = vmul.f32 %v4842, %v5193
        %v5223 = vmul.f32 %v4843, %v5197
        %v5224 = vmul.f32 %v4844, %v5193
        %v5225 = vmul.f32 %v4845, %v5197
        %v5226 = vmul.f32 %v4846, %v5193
        %v5227 = vmul.f32 %v4847, %v5197
        %v5228 = vmul.f32 %v4848, %v5193
        %v5229 = vmul.f32 %v4849, %v5197
        %v5230 = vmul.f32 %v4850, %v5193
        %v5231 = vmul.f32 %v4851, %v5197
        %v5232 = vmul.f32 %v4852, %v5193
        %v5233 = vmul.f32 %v4853, %v5197
        %v5234 = vmul.f32 %v4854, %v5193
        %v5235 = vmul.f32 %v4855, %v5197
        %v5236 = vmul.f32 %v4856, %v5193
        %v5237 = vmul.f32 %v4857, %v5197
        %v5238 = vmul.f32 %v4858, %v5193
        %v5239 = vmul.f32 %v4859, %v5197
        %v5240 = vmul.f32 %v4860, %v5193
        %v5241 = vmul.f32 %v4861, %v5197
        %v5242 = vmul.f32 %v4862, %v5193
        %v5243 = vmul.f32 %v4863, %v5197
        %v5244 = vmul.f32 %v4864, %v5193
        %v5245 = vmul.f32 %v4865, %v5197
        %v5246 = vmul.f32 %v4866, %v5193
        %v5247 = vmul.f32 %v4867, %v5197
        %v5248 = vmul.f32 %v4868, %v5193
        %v5249 = vmul.f32 %v4869, %v5197
        %v5250 = vmul.f32 %v4870, %v5193
        %v5251 = vmul.f32 %v4871, %v5197
        %v5252 = vmul.f32 %v4872, %v5193
        %v5253 = vmul.f32 %v4873, %v5197
        %v5254 = vmul.f32 %v4874, %v5193
        %v5255 = vmul.f32 %v4875, %v5197
        %v5256 = vmul.f32 %v4876, %v5193
        %v5257 = vmul.f32 %v4877, %v5197
        %v5258 = vmul.f32 %v4878, %v5193
        %v5259 = vmul.f32 %v4879, %v5197
        %v5260 = vmul.f32 %v4880, %v5193
        %v5261 = vmul.f32 %v4881, %v5197
        %v5262 = vmul.f32 %v4882, %v5193
        %v5263 = vmul.f32 %v4883, %v5197
        %v5264 = vld [vmem:[%s3] sm:$0x3]
        %v5266 = vlaneseq
        %v5267 = vshrl.u32 %v5266, 7
        %v5268 = vsub.s32 0, %v5267
        %v5269 = vrot.slane %v5264, %v5268
        %v5270 = vlaneseq
        %v5271 = vshrl.u32 %v5270, 7
        %v5272 = vsub.s32 1, %v5271
        %v5273 = vrot.slane %v5264, %v5272
        %v5276 = vadd.f32 %v5200, %v5269
        %v5277 = vadd.f32 %v5201, %v5273
        %v5278 = vadd.f32 %v5202, %v5269
        %v5279 = vadd.f32 %v5203, %v5273
        %v5280 = vadd.f32 %v5204, %v5269
        %v5281 = vadd.f32 %v5205, %v5273
        %v5282 = vadd.f32 %v5206, %v5269
        %v5283 = vadd.f32 %v5207, %v5273
        %v5284 = vadd.f32 %v5208, %v5269
        %v5285 = vadd.f32 %v5209, %v5273
        %v5286 = vadd.f32 %v5210, %v5269
        %v5287 = vadd.f32 %v5211, %v5273
        %v5288 = vadd.f32 %v5212, %v5269
        %v5289 = vadd.f32 %v5213, %v5273
        %v5290 = vadd.f32 %v5214, %v5269
        %v5291 = vadd.f32 %v5215, %v5273
        %v5292 = vadd.f32 %v5216, %v5269
        %v5293 = vadd.f32 %v5217, %v5273
        %v5294 = vadd.f32 %v5218, %v5269
        %v5295 = vadd.f32 %v5219, %v5273
        %v5296 = vadd.f32 %v5220, %v5269
        %v5297 = vadd.f32 %v5221, %v5273
        %v5298 = vadd.f32 %v5222, %v5269
        %v5299 = vadd.f32 %v5223, %v5273
        %v5300 = vadd.f32 %v5224, %v5269
        %v5301 = vadd.f32 %v5225, %v5273
        %v5302 = vadd.f32 %v5226, %v5269
        %v5303 = vadd.f32 %v5227, %v5273
        %v5304 = vadd.f32 %v5228, %v5269
        %v5305 = vadd.f32 %v5229, %v5273
        %v5306 = vadd.f32 %v5230, %v5269
        %v5307 = vadd.f32 %v5231, %v5273
        %v5308 = vadd.f32 %v5232, %v5269
        %v5309 = vadd.f32 %v5233, %v5273
        %v5310 = vadd.f32 %v5234, %v5269
        %v5311 = vadd.f32 %v5235, %v5273
        %v5312 = vadd.f32 %v5236, %v5269
        %v5313 = vadd.f32 %v5237, %v5273
        %v5314 = vadd.f32 %v5238, %v5269
        %v5315 = vadd.f32 %v5239, %v5273
        %v5316 = vadd.f32 %v5240, %v5269
        %v5317 = vadd.f32 %v5241, %v5273
        %v5318 = vadd.f32 %v5242, %v5269
        %v5319 = vadd.f32 %v5243, %v5273
        %v5320 = vadd.f32 %v5244, %v5269
        %v5321 = vadd.f32 %v5245, %v5273
        %v5322 = vadd.f32 %v5246, %v5269
        %v5323 = vadd.f32 %v5247, %v5273
        %v5324 = vadd.f32 %v5248, %v5269
        %v5325 = vadd.f32 %v5249, %v5273
        %v5326 = vadd.f32 %v5250, %v5269
        %v5327 = vadd.f32 %v5251, %v5273
        %v5328 = vadd.f32 %v5252, %v5269
        %v5329 = vadd.f32 %v5253, %v5273
        %v5330 = vadd.f32 %v5254, %v5269
        %v5331 = vadd.f32 %v5255, %v5273
        %v5332 = vadd.f32 %v5256, %v5269
        %v5333 = vadd.f32 %v5257, %v5273
        %v5334 = vadd.f32 %v5258, %v5269
        %v5335 = vadd.f32 %v5259, %v5273
        %v5336 = vadd.f32 %v5260, %v5269
        %v5337 = vadd.f32 %v5261, %v5273
        %v5338 = vadd.f32 %v5262, %v5269
        %v5339 = vadd.f32 %v5263, %v5273
        %v5340 = vmax.f32 %v5276, 0.0
        %v5341 = vmax.f32 %v5277, 0.0
        %v5342 = vmax.f32 %v5278, 0.0
        %v5343 = vmax.f32 %v5279, 0.0
        %v5344 = vmax.f32 %v5280, 0.0
        %v5345 = vmax.f32 %v5281, 0.0
        %v5346 = vmax.f32 %v5282, 0.0
        %v5347 = vmax.f32 %v5283, 0.0
        %v5348 = vmax.f32 %v5284, 0.0
        %v5349 = vmax.f32 %v5285, 0.0
        %v5350 = vmax.f32 %v5286, 0.0
        %v5351 = vmax.f32 %v5287, 0.0
        %v5352 = vmax.f32 %v5288, 0.0
        %v5353 = vmax.f32 %v5289, 0.0
        %v5354 = vmax.f32 %v5290, 0.0
        %v5355 = vmax.f32 %v5291, 0.0
        %v5356 = vmax.f32 %v5292, 0.0
        %v5357 = vmax.f32 %v5293, 0.0
        %v5358 = vmax.f32 %v5294, 0.0
        %v5359 = vmax.f32 %v5295, 0.0
        %v5360 = vmax.f32 %v5296, 0.0
        %v5361 = vmax.f32 %v5297, 0.0
        %v5362 = vmax.f32 %v5298, 0.0
        %v5363 = vmax.f32 %v5299, 0.0
        %v5364 = vmax.f32 %v5300, 0.0
        %v5365 = vmax.f32 %v5301, 0.0
        %v5366 = vmax.f32 %v5302, 0.0
        %v5367 = vmax.f32 %v5303, 0.0
        %v5368 = vmax.f32 %v5304, 0.0
        %v5369 = vmax.f32 %v5305, 0.0
        %v5370 = vmax.f32 %v5306, 0.0
        %v5371 = vmax.f32 %v5307, 0.0
        %v5372 = vmax.f32 %v5308, 0.0
        %v5373 = vmax.f32 %v5309, 0.0
        %v5374 = vmax.f32 %v5310, 0.0
        %v5375 = vmax.f32 %v5311, 0.0
        %v5376 = vmax.f32 %v5312, 0.0
        %v5377 = vmax.f32 %v5313, 0.0
        %v5378 = vmax.f32 %v5314, 0.0
        %v5379 = vmax.f32 %v5315, 0.0
        %v5380 = vmax.f32 %v5316, 0.0
        %v5381 = vmax.f32 %v5317, 0.0
        %v5382 = vmax.f32 %v5318, 0.0
        %v5383 = vmax.f32 %v5319, 0.0
        %v5384 = vmax.f32 %v5320, 0.0
        %v5385 = vmax.f32 %v5321, 0.0
        %v5386 = vmax.f32 %v5322, 0.0
        %v5387 = vmax.f32 %v5323, 0.0
        %v5388 = vmax.f32 %v5324, 0.0
        %v5389 = vmax.f32 %v5325, 0.0
        %v5390 = vmax.f32 %v5326, 0.0
        %v5391 = vmax.f32 %v5327, 0.0
        %v5392 = vmax.f32 %v5328, 0.0
        %v5393 = vmax.f32 %v5329, 0.0
        %v5394 = vmax.f32 %v5330, 0.0
        %v5395 = vmax.f32 %v5331, 0.0
        %v5396 = vmax.f32 %v5332, 0.0
        %v5397 = vmax.f32 %v5333, 0.0
        %v5398 = vmax.f32 %v5334, 0.0
        %v5399 = vmax.f32 %v5335, 0.0
        %v5400 = vmax.f32 %v5336, 0.0
        %v5401 = vmax.f32 %v5337, 0.0
        %v5402 = vmax.f32 %v5338, 0.0
        %v5403 = vmax.f32 %v5339, 0.0
        %5404 = vst [vmem:[%s315] sm:$0xff] %v5340
        %5405 = vst [vmem:[%s315 + $0x8] sm:$0xff] %v5342
        %5406 = vst [vmem:[%s315 + $0x10] sm:$0xff] %v5344
        %5407 = vst [vmem:[%s315 + $0x18] sm:$0xff] %v5346
        %5408 = vst [vmem:[%s315 + $0x20] sm:$0xff] %v5348
        %5409 = vst [vmem:[%s315 + $0x28] sm:$0xff] %v5350
        %5410 = vst [vmem:[%s315 + $0x30] sm:$0xff] %v5352
        %5411 = vst [vmem:[%s315 + $0x38] sm:$0xff] %v5354
        %5412 = vst [vmem:[%s315 + $0x40] sm:$0xff] %v5356
        %5413 = vst [vmem:[%s315 + $0x48] sm:$0xff] %v5358
        %5414 = vst [vmem:[%s315 + $0x50] sm:$0xff] %v5360
        %5415 = vst [vmem:[%s315 + $0x58] sm:$0xff] %v5362
        %5416 = vst [vmem:[%s315 + $0x60] sm:$0xff] %v5364
        %5417 = vst [vmem:[%s315 + $0x68] sm:$0xff] %v5366
        %5418 = vst [vmem:[%s315 + $0x70] sm:$0xff] %v5368
        %5419 = vst [vmem:[%s315 + $0x78] sm:$0xff] %v5370
        %5420 = vst [vmem:[%s315 + $0x80] sm:$0xff] %v5372
        %5421 = vst [vmem:[%s315 + $0x88] sm:$0xff] %v5374
        %5422 = vst [vmem:[%s315 + $0x90] sm:$0xff] %v5376
        %5423 = vst [vmem:[%s315 + $0x98] sm:$0xff] %v5378
        %5424 = vst [vmem:[%s315 + $0xa0] sm:$0xff] %v5380
        %5425 = vst [vmem:[%s315 + $0xa8] sm:$0xff] %v5382
        %5426 = vst [vmem:[%s315 + $0xb0] sm:$0xff] %v5384
        %5427 = vst [vmem:[%s315 + $0xb8] sm:$0xff] %v5386
        %5428 = vst [vmem:[%s315 + $0xc0] sm:$0xff] %v5388
        %5429 = vst [vmem:[%s315 + $0xc8] sm:$0xff] %v5390
        %5430 = vst [vmem:[%s315 + $0xd0] sm:$0xff] %v5392
        %5431 = vst [vmem:[%s315 + $0xd8] sm:$0xff] %v5394
        %5432 = vst [vmem:[%s315 + $0xe0] sm:$0xff] %v5396
        %5433 = vst [vmem:[%s315 + $0xe8] sm:$0xff] %v5398
        %5434 = vst [vmem:[%s315 + $0xf0] sm:$0xff] %v5400
        %5435 = vst [vmem:[%s315 + $0xf8] sm:$0xff] %v5402
        %5436 = vst [vmem:[%s322] sm:$0xff] %v5341
        %5437 = vst [vmem:[%s322 + $0x8] sm:$0xff] %v5343
        %5438 = vst [vmem:[%s322 + $0x10] sm:$0xff] %v5345
        %5439 = vst [vmem:[%s322 + $0x18] sm:$0xff] %v5347
        %5440 = vst [vmem:[%s322 + $0x20] sm:$0xff] %v5349
        %5441 = vst [vmem:[%s322 + $0x28] sm:$0xff] %v5351
        %5442 = vst [vmem:[%s322 + $0x30] sm:$0xff] %v5353
        %5443 = vst [vmem:[%s322 + $0x38] sm:$0xff] %v5355
        %5444 = vst [vmem:[%s322 + $0x40] sm:$0xff] %v5357
        %5445 = vst [vmem:[%s322 + $0x48] sm:$0xff] %v5359
        %5446 = vst [vmem:[%s322 + $0x50] sm:$0xff] %v5361
        %5447 = vst [vmem:[%s322 + $0x58] sm:$0xff] %v5363
        %5448 = vst [vmem:[%s322 + $0x60] sm:$0xff] %v5365
        %5449 = vst [vmem:[%s322 + $0x68] sm:$0xff] %v5367
        %5450 = vst [vmem:[%s322 + $0x70] sm:$0xff] %v5369
        %5451 = vst [vmem:[%s322 + $0x78] sm:$0xff] %v5371
        %5452 = vst [vmem:[%s322 + $0x80] sm:$0xff] %v5373
        %5453 = vst [vmem:[%s322 + $0x88] sm:$0xff] %v5375
        %5454 = vst [vmem:[%s322 + $0x90] sm:$0xff] %v5377
        %5455 = vst [vmem:[%s322 + $0x98] sm:$0xff] %v5379
        %5456 = vst [vmem:[%s322 + $0xa0] sm:$0xff] %v5381
        %5457 = vst [vmem:[%s322 + $0xa8] sm:$0xff] %v5383
        %5458 = vst [vmem:[%s322 + $0xb0] sm:$0xff] %v5385
        %5459 = vst [vmem:[%s322 + $0xb8] sm:$0xff] %v5387
        %5460 = vst [vmem:[%s322 + $0xc0] sm:$0xff] %v5389
        %5461 = vst [vmem:[%s322 + $0xc8] sm:$0xff] %v5391
        %5462 = vst [vmem:[%s322 + $0xd0] sm:$0xff] %v5393
        %5463 = vst [vmem:[%s322 + $0xd8] sm:$0xff] %v5395
        %5464 = vst [vmem:[%s322 + $0xe0] sm:$0xff] %v5397
        %5465 = vst [vmem:[%s322 + $0xe8] sm:$0xff] %v5399
        %5466 = vst [vmem:[%s322 + $0xf0] sm:$0xff] %v5401
        %5467 = vst [vmem:[%s322 + $0xf8] sm:$0xff] %v5403
        %s5468 = sand.u32 %s168, 1
        %s5469 = scalar_lea.sflag [#allocation6], %s5468
        %s5470 = sand.u32 %s168, 1
        %s5471 = smul.addr %s5470, 256
        %s5472 = scalar_lea.vmem [#allocation9], %s5471
        %s5473 = sand.u32 %s194, 1
        %s5474 = scalar_lea.sflag [#allocation11], %s5473
        %s5475 = sand.u32 %s194, 1
        %s5476 = smul.addr %s5475, 256
        %s5477 = scalar_lea.vmem [#allocation10], %s5476
        // Predicated region
        $region53: #{tpu_custom_call.1} parent=43 // pred_check
          %p5478 = pneg %p178
        $region54: #{tpu_custom_call.1} parent=43 // pred_check_branch
          %5480 = sbr.rel (%p5478) target = $region56
        $region55: #{tpu_custom_call.1} parent=43 // pred_region
          %s5482 = ssub.s32 4096, 4096
          %5483 = vsyncadd %s5469, %s5482
          %s5484 = smul.addr %s29, 32
          %s5485 = smul.addr %s5484, 128
          %s5486 = scalar_lea.hbm %s6, %s5485
          %s5487 = sshll.u32 %s5472, 4
          %s5488 = int_to_ptr.vmem [resolvable:$true] %s5487
          %5493 = dma.vmem_to_hbm [thread:$0]  %s5488, 4096, %s5486, %s5469, 128, 128, 8
        $region56: #{tpu_custom_call.1} parent=43 // pred_fallthru
          _
        // Predicated region
        $region57: #{tpu_custom_call.1} parent=43 // pred_check
          %p5494 = pneg %p204
        $region58: #{tpu_custom_call.1} parent=43 // pred_check_branch
          %5496 = sbr.rel (%p5494) target = $region60
        $region59: #{tpu_custom_call.1} parent=43 // pred_region
          %s5498 = ssub.s32 4096, 4096
          %5499 = vsyncadd %s5474, %s5498
          %s5500 = smul.addr %s29, 32
          %s5501 = smul.addr %s5500, 128
          %s5502 = scalar_lea.hbm %s7, %s5501
          %s5503 = sshll.u32 %s5477, 4
          %s5504 = int_to_ptr.vmem [resolvable:$true] %s5503
          %5509 = dma.vmem_to_hbm [thread:$0]  %s5504, 4096, %s5502, %s5474, 128, 128, 8
        $region60: #{tpu_custom_call.1} parent=43 // pred_fallthru
          _
      $region44: #{tpu_custom_call.1} parent=5 // pred_fallthru
        _
      %p5510 = scmp.le.s32.totalorder 2, %s24
      // Predicated region
      $region61: #{tpu_custom_call.1} parent=5 // pred_check
        %p5511 = pneg %p5510
      $region62: #{tpu_custom_call.1} parent=5 // pred_check_branch
        %5513 = sbr.rel (%p5511) target = $region64
      $region63: #{tpu_custom_call.1} parent=5 // pred_region
        %s5514 = ssub.s32 %s24, 2
        // Predicated region
        $region65: #{tpu_custom_call.1} parent=63 // pred_check
          %p5515 = pneg %p184
        $region66: #{tpu_custom_call.1} parent=63 // pred_check_branch
          %5517 = sbr.rel (%p5515) target = $region68
        $region67: #{tpu_custom_call.1} parent=63 // pred_region
          %s5518 = sand.u32 %s169, 1
          %s5519 = scalar_lea.sflag [#allocation6], %s5518
          %s5520 = sand.u32 %s169, 1
          %s5521 = smul.addr %s5520, 256
          %s5522 = scalar_lea.vmem [#allocation9], %s5521
          %5523 = dma.done %s5519, 4096
        $region68: #{tpu_custom_call.1} parent=63 // pred_fallthru
          _
        // Predicated region
        $region69: #{tpu_custom_call.1} parent=63 // pred_check
          %p5524 = pneg %p210
        $region70: #{tpu_custom_call.1} parent=63 // pred_check_branch
          %5526 = sbr.rel (%p5524) target = $region72
        $region71: #{tpu_custom_call.1} parent=63 // pred_region
          %s5527 = sand.u32 %s195, 1
          %s5528 = scalar_lea.sflag [#allocation11], %s5527
          %s5529 = sand.u32 %s195, 1
          %s5530 = smul.addr %s5529, 256
          %s5531 = scalar_lea.vmem [#allocation10], %s5530
          %5532 = dma.done %s5528, 4096
        $region72: #{tpu_custom_call.1} parent=63 // pred_fallthru
          _
      $region64: #{tpu_custom_call.1} parent=5 // pred_fallthru
        _
    $region6: #{tpu_custom_call.1} parent=1 // loop_footer
      %s28 = sadd.s32 1, %s24
    $region7: #{tpu_custom_call.1} parent=1 // loop_footer_branch
      %23 = sbr.rel target = $region3
    $region8: #{tpu_custom_call.1} parent=1 // loop_exit
      _
    %5533 = vsyncpa [#allocation5], 1
    %s5534 = scalar_lea.sflag [#allocation5], 1
    %5535 = vsyncpa %s5534, 1
    %5536 = vsyncpa [#allocation8], 1
    %5537 = vsyncpa [#allocation6], 1
    %s5538 = scalar_lea.sflag [#allocation6], 1
    %5539 = vsyncpa %s5538, 1
    %5540 = vsyncpa [#allocation11], 1
    %s5541 = scalar_lea.sflag [#allocation11], 1
    %5542 = vsyncpa %s5541, 1

// kernel: tpu_custom_call.1
$region0: #{tpu_custom_call.1}
  #allocation0 [shape = 'u32[]', space=smem, size = 0x4, offset = 0x4, fixed_abs, tag = 'smem constant byte address 0x4 - core index']
  #allocation1 [shape = 'u32[144,128]{1,0:T(1,128)}', space=vmem, size = 0x12000, scoped, tag = 'internal scratch']
  #allocation2 [shape = 'bf16[18,16,384]{2,1,0:T(8,128)(2,1)}', space=vmem, size = 0x36000, scoped, tag = 'scratch operand']
  #allocation3 [shape = 'f32[256,256]{1,0:T(8,128)}', space=vmem, size = 0x40000, scoped, tag = 'scratch operand']
  %s0 = inlined_call_operand.hbm [shape: f32[2,16,16,128], index: 0, kind: input, shape index: {}]
  %s1 = inlined_call_operand.hbm [shape: bf16[3,384,256], index: 1, kind: input, shape index: {}]
  %s2 = inlined_call_operand.vmem [shape: f32[1,256], index: 2, kind: input, shape index: {}]
  %s3 = inlined_call_operand.vmem [shape: f32[1,256], index: 3, kind: input, shape index: {}]
  %s4 = inlined_call_operand.vmem [shape: f32[256,64], index: 4, kind: input, shape index: {}]
  %s5 = inlined_call_operand.vmem [shape: f32[64,256], index: 5, kind: input, shape index: {}]
  %s6 = inlined_call_operand.hbm [shape: f32[2,16,16,128], index: 6, kind: output, shape index: {0}]
  %s7 = inlined_call_operand.hbm [shape: f32[2,16,16,128], index: 7, kind: output, shape index: {1}]
  %8 = xla_tuple %s6, %s7
  %s9 = sld [smem:[#allocation0]]
  $region73: #{tpu_custom_call.1} parent=0
    _
  %s11 = ssub.s32 1, %s9
  %s12 = scalar_select 0, %s11, %s9
  $region1: #{tpu_custom_call.1} parent=0
    #allocation4 [shape = 'u8[262144]{0}', space=vmem, size = 0x40000, scoped, tag = 'input window, operand 0']
    #allocation5 [shape = 's32[2]{0}', space=sflag, size = 0x8, scoped, tag = 'scoped memory for tpu_custom_call.1']
    #allocation6 [shape = 's32[2]{0}', space=sflag, size = 0x8, scoped, tag = 'scoped memory for tpu_custom_call.1']
    #allocation7 [shape = 'u8[589824]{0}', space=vmem, size = 0x90000, scoped, tag = 'input window, operand 1, single buffered']
    #allocation8 [shape = 's32[1]{0}', space=sflag, size = 0x4, scoped, tag = 'scoped memory for tpu_custom_call.1']
    #allocation9 [shape = 'u8[262144]{0}', space=vmem, size = 0x40000, scoped, tag = 'output window, operand 0']
    #allocation10 [shape = 'u8[262144]{0}', space=vmem, size = 0x40000, scoped, tag = 'output window, operand 1']
    #allocation11 [shape = 's32[2]{0}', space=sflag, size = 0x8, scoped, tag = 'scoped memory for tpu_custom_call.1']
    %13 = vsyncpa [#allocation5], 0
    %s14 = scalar_lea.sflag [#allocation5], 1
    %15 = vsyncpa %s14, 0
    %16 = vsyncpa [#allocation8], 0
    %17 = vsyncpa [#allocation6], 0
    %s18 = scalar_lea.sflag [#allocation6], 1
    %19 = vsyncpa %s18, 0
    %20 = vsyncpa [#allocation11], 0
    %s21 = scalar_lea.sflag [#allocation11], 1
    %22 = vsyncpa %s21, 0
    loop: start=0, step=1, limit=4
    $region2: #{tpu_custom_call.1} parent=1 // loop_pre_header
      _
    $region3: #{tpu_custom_call.1} parent=1 // loop_header
      %s24 = sphi 0, %s28
      %p25 = scmp.ge.s32.totalorder %s24, 4
      %s34 = sphi 0, %s36
      %s37 = sphi 0, %s34
      %s38 = sphi 0, %s37
      %s54 = sphi 0, %s38
      %s58 = sphi 0, %s58
      %s60 = sphi 0, %s58
      %s61 = sphi 0, %s60
      %s75 = sphi 0, %s61
      %s79 = sphi 0, %s79
      %s81 = sphi 0, %s79
      %s82 = sphi 0, %s81
      %s96 = sphi 0, %s82
      %s100 = sphi 0, %s100
      %s102 = sphi 0, %s100
      %s103 = sphi 0, %s102
      %s117 = sphi 0, %s103
      %s121 = sphi 0, %s121
      %s123 = sphi 0, %s121
      %s124 = sphi 0, %s123
      %s138 = sphi 0, %s124
      %s142 = sphi 0, %s142
      %s144 = sphi 0, %s142
      %s145 = sphi 0, %s144
      %s159 = sphi 0, %s145
      %s165 = sphi 0, %s167
      %s168 = sphi 0, %s165
      %s169 = sphi 0, %s168
      %s185 = sphi 0, %s169
      %s191 = sphi 0, %s193
      %s194 = sphi 0, %s191
      %s195 = sphi 0, %s194
      %s211 = sphi 0, %s195
    $region4: #{tpu_custom_call.1} parent=1 // loop_header_branch
      %27 = sbr.rel (%p25) target = $region8
    $region5: #{tpu_custom_call.1} parent=1 // loop_body
      %s29 = ssub.s32 %s24, 1
      %s30 = ssub.s32 %s24, 2
      %s31 = sadd.s32 %s24, 1
      %s32 = ssub.s32 %s24, %s31
      %p33 = scmp.eq.s32.totalorder %s32, 0
      %s35 = sadd.s32 %s34, 1
      %s36 = scalar_select %p33, %s34, %s35
      %p39 = pneg %p33
      %p40 = scmp.eq.s32.totalorder %s24, 1
      %p41 = por %p39, %p40
      %p42 = scmp.ne.s32.totalorder %s34, %s37
      %p43 = scmp.eq.s32.totalorder %s24, 0
      %p44 = por %p42, %p43
      %p45 = scmp.ne.s32.totalorder %s34, %s37
      %p46 = scmp.eq.s32.totalorder %s29, 1
      %p47 = por %p45, %p46
      %p48 = scmp.ne.s32.totalorder %s37, %s38
      %p49 = scmp.eq.s32.totalorder %s29, 0
      %p50 = por %p48, %p49
      %p51 = scmp.ne.s32.totalorder %s37, %s38
      %p52 = scmp.eq.s32.totalorder %s30, 1
      %p53 = por %p51, %p52
      %p55 = scmp.ne.s32.totalorder %s38, %s54
      %p56 = scmp.eq.s32.totalorder %s30, 0
      %p57 = por %p55, %p56
      %s59 = sadd.s32 %s58, 1
      %p62 = scmp.eq.s32.totalorder %s24, 1
      %p63 = scmp.ne.s32.totalorder %s58, %s60
      %p64 = scmp.eq.s32.totalorder %s24, 0
      %p65 = por %p63, %p64
      %p66 = scmp.ne.s32.totalorder %s58, %s60
      %p67 = scmp.eq.s32.totalorder %s29, 1
      %p68 = por %p66, %p67
      %p69 = scmp.ne.s32.totalorder %s60, %s61
      %p70 = scmp.eq.s32.totalorder %s29, 0
      %p71 = por %p69, %p70
      %p72 = scmp.ne.s32.totalorder %s60, %s61
      %p73 = scmp.eq.s32.totalorder %s30, 1
      %p74 = por %p72, %p73
      %p76 = scmp.ne.s32.totalorder %s61, %s75
      %p77 = scmp.eq.s32.totalorder %s30, 0
      %p78 = por %p76, %p77
      %s80 = sadd.s32 %s79, 1
      %p83 = scmp.eq.s32.totalorder %s24, 1
      %p84 = scmp.ne.s32.totalorder %s79, %s81
      %p85 = scmp.eq.s32.totalorder %s24, 0
      %p86 = por %p84, %p85
      %p87 = scmp.ne.s32.totalorder %s79, %s81
      %p88 = scmp.eq.s32.totalorder %s29, 1
      %p89 = por %p87, %p88
      %p90 = scmp.ne.s32.totalorder %s81, %s82
      %p91 = scmp.eq.s32.totalorder %s29, 0
      %p92 = por %p90, %p91
      %p93 = scmp.ne.s32.totalorder %s81, %s82
      %p94 = scmp.eq.s32.totalorder %s30, 1
      %p95 = por %p93, %p94
      %p97 = scmp.ne.s32.totalorder %s82, %s96
      %p98 = scmp.eq.s32.totalorder %s30, 0
      %p99 = por %p97, %p98
      %s101 = sadd.s32 %s100, 1
      %p104 = scmp.eq.s32.totalorder %s24, 1
      %p105 = scmp.ne.s32.totalorder %s100, %s102
      %p106 = scmp.eq.s32.totalorder %s24, 0
      %p107 = por %p105, %p106
      %p108 = scmp.ne.s32.totalorder %s100, %s102
      %p109 = scmp.eq.s32.totalorder %s29, 1
      %p110 = por %p108, %p109
      %p111 = scmp.ne.s32.totalorder %s102, %s103
      %p112 = scmp.eq.s32.totalorder %s29, 0
      %p113 = por %p111, %p112
      %p114 = scmp.ne.s32.totalorder %s102, %s103
      %p115 = scmp.eq.s32.totalorder %s30, 1
      %p116 = por %p114, %p115
      %p118 = scmp.ne.s32.totalorder %s103, %s117
      %p119 = scmp.eq.s32.totalorder %s30, 0
      %p120 = por %p118, %p119
      %s122 = sadd.s32 %s121, 1
      %p125 = scmp.eq.s32.totalorder %s24, 1
      %p126 = scmp.ne.s32.totalorder %s121, %s123
      %p127 = scmp.eq.s32.totalorder %s24, 0
      %p128 = por %p126, %p127
      %p129 = scmp.ne.s32.totalorder %s121, %s123
      %p130 = scmp.eq.s32.totalorder %s29, 1
      %p131 = por %p129, %p130
      %p132 = scmp.ne.s32.totalorder %s123, %s124
      %p133 = scmp.eq.s32.totalorder %s29, 0
      %p134 = por %p132, %p133
      %p135 = scmp.ne.s32.totalorder %s123, %s124
      %p136 = scmp.eq.s32.totalorder %s30, 1
      %p137 = por %p135, %p136
      %p139 = scmp.ne.s32.totalorder %s124, %s138
      %p140 = scmp.eq.s32.totalorder %s30, 0
      %p141 = por %p139, %p140
      %s143 = sadd.s32 %s142, 1
      %p146 = scmp.eq.s32.totalorder %s24, 1
      %p147 = scmp.ne.s32.totalorder %s142, %s144
      %p148 = scmp.eq.s32.totalorder %s24, 0
      %p149 = por %p147, %p148
      %p150 = scmp.ne.s32.totalorder %s142, %s144
      %p151 = scmp.eq.s32.totalorder %s29, 1
      %p152 = por %p150, %p151
      %p153 = scmp.ne.s32.totalorder %s144, %s145
      %p154 = scmp.eq.s32.totalorder %s29, 0
      %p155 = por %p153, %p154
      %p156 = scmp.ne.s32.totalorder %s144, %s145
      %p157 = scmp.eq.s32.totalorder %s30, 1
      %p158 = por %p156, %p157
      %p160 = scmp.ne.s32.totalorder %s145, %s159
      %p161 = scmp.eq.s32.totalorder %s30, 0
      %p162 = por %p160, %p161
      %s163 = ssub.s32 %s24, %s31
      %p164 = scmp.eq.s32.totalorder %s163, 0
      %s166 = sadd.s32 %s165, 1
      %s167 = scalar_select %p164, %s165, %s166
      %p170 = pneg %p164
      %p171 = scmp.eq.s32.totalorder %s24, 1
      %p172 = por %p170, %p171
      %p173 = scmp.ne.s32.totalorder %s165, %s168
      %p174 = scmp.eq.s32.totalorder %s24, 0
      %p175 = por %p173, %p174
      %p176 = scmp.ne.s32.totalorder %s165, %s168
      %p177 = scmp.eq.s32.totalorder %s29, 1
      %p178 = por %p176, %p177
      %p179 = scmp.ne.s32.totalorder %s168, %s169
      %p180 = scmp.eq.s32.totalorder %s29, 0
      %p181 = por %p179, %p180
      %p182 = scmp.ne.s32.totalorder %s168, %s169
      %p183 = scmp.eq.s32.totalorder %s30, 1
      %p184 = por %p182, %p183
      %p186 = scmp.ne.s32.totalorder %s169, %s185
      %p187 = scmp.eq.s32.totalorder %s30, 0
      %p188 = por %p186, %p187
      %s189 = ssub.s32 %s24, %s31
      %p190 = scmp.eq.s32.totalorder %s189, 0
      %s192 = sadd.s32 %s191, 1
      %s193 = scalar_select %p190, %s191, %s192
      %p196 = pneg %p190
      %p197 = scmp.eq.s32.totalorder %s24, 1
      %p198 = por %p196, %p197
      %p199 = scmp.ne.s32.totalorder %s191, %s194
      %p200 = scmp.eq.s32.totalorder %s24, 0
      %p201 = por %p199, %p200
      %p202 = scmp.ne.s32.totalorder %s191, %s194
      %p203 = scmp.eq.s32.totalorder %s29, 1
      %p204 = por %p202, %p203
      %p205 = scmp.ne.s32.totalorder %s194, %s195
      %p206 = scmp.eq.s32.totalorder %s29, 0
      %p207 = por %p205, %p206
      %p208 = scmp.ne.s32.totalorder %s194, %s195
      %p209 = scmp.eq.s32.totalorder %s30, 1
      %p210 = por %p208, %p209
      %p212 = scmp.ne.s32.totalorder %s195, %s211
      %p213 = scmp.eq.s32.totalorder %s30, 0
      %p214 = por %p212, %p213
      %p215 = scmp.le.s32.totalorder 1, %s24
      %p216 = scmp.lt.s32.totalorder %s24, 3
      %p217 = pnand %p215, %p216
      %p218 = pneg %p217
      // Predicated region
      $region9: #{tpu_custom_call.1} parent=5 // pred_check
        _
      $region10: #{tpu_custom_call.1} parent=5 // pred_check_branch
        %220 = sbr.rel (%p217) target = $region12
      $region11: #{tpu_custom_call.1} parent=5 // pred_region
        %s221 = ssub.s32 %s24, 1
        // Predicated region
        $region13: #{tpu_custom_call.1} parent=11 // pred_check
          %p222 = pneg %p71
        $region14: #{tpu_custom_call.1} parent=11 // pred_check_branch
          %224 = sbr.rel (%p222) target = $region16
        $region15: #{tpu_custom_call.1} parent=11 // pred_region
          %s226 = ssub.s32 18432, 18432
          %227 = vsyncadd [#allocation8], %s226
          %s228 = sshll.u32 [#allocation7], 4
          %s229 = int_to_ptr.vmem [resolvable:$true] %s228
          %234 = dma.hbm_to_vmem [thread:$0]  %s1, 18432, %s229, [#allocation8], 128, 128, 8
        $region16: #{tpu_custom_call.1} parent=11 // pred_fallthru
          _
        // Predicated region
        $region17: #{tpu_custom_call.1} parent=11 // pred_check
          %p235 = pneg %p92
        $region18: #{tpu_custom_call.1} parent=11 // pred_check_branch
          %237 = sbr.rel (%p235) target = $region20
        $region19: #{tpu_custom_call.1} parent=11 // pred_region
          _
        $region20: #{tpu_custom_call.1} parent=11 // pred_fallthru
          _
        // Predicated region
        $region21: #{tpu_custom_call.1} parent=11 // pred_check
          %p238 = pneg %p113
        $region22: #{tpu_custom_call.1} parent=11 // pred_check_branch
          %240 = sbr.rel (%p238) target = $region24
        $region23: #{tpu_custom_call.1} parent=11 // pred_region
          _
        $region24: #{tpu_custom_call.1} parent=11 // pred_fallthru
          _
        // Predicated region
        $region25: #{tpu_custom_call.1} parent=11 // pred_check
          %p241 = pneg %p134
        $region26: #{tpu_custom_call.1} parent=11 // pred_check_branch
          %243 = sbr.rel (%p241) target = $region28
        $region27: #{tpu_custom_call.1} parent=11 // pred_region
          _
        $region28: #{tpu_custom_call.1} parent=11 // pred_fallthru
          _
        // Predicated region
        $region29: #{tpu_custom_call.1} parent=11 // pred_check
          %p244 = pneg %p155
        $region30: #{tpu_custom_call.1} parent=11 // pred_check_branch
          %246 = sbr.rel (%p244) target = $region32
        $region31: #{tpu_custom_call.1} parent=11 // pred_region
          _
        $region32: #{tpu_custom_call.1} parent=11 // pred_fallthru
          _
      $region12: #{tpu_custom_call.1} parent=5 // pred_fallthru
        _
      %p247 = scmp.lt.s32.totalorder %s24, 2
      // Predicated region
      $region33: #{tpu_custom_call.1} parent=5 // pred_check
        %p248 = pneg %p247
      $region34: #{tpu_custom_call.1} parent=5 // pred_check_branch
        %250 = sbr.rel (%p248) target = $region36
      $region35: #{tpu_custom_call.1} parent=5 // pred_region
        // Predicated region
        $region37: #{tpu_custom_call.1} parent=35 // pred_check
          %p251 = pneg %p44
        $region38: #{tpu_custom_call.1} parent=35 // pred_check_branch
          %253 = sbr.rel (%p251) target = $region40
        $region39: #{tpu_custom_call.1} parent=35 // pred_region
          %s254 = sand.u32 %s34, 1
          %s255 = scalar_lea.sflag [#allocation5], %s254
          %s256 = sand.u32 %s34, 1
          %s257 = smul.addr %s256, 256
          %s258 = scalar_lea.vmem [#allocation4], %s257
          %s260 = ssub.s32 4096, 4096
          %261 = vsyncadd %s255, %s260
          %s262 = smul.addr %s24, 32
          %s263 = smul.addr %s262, 128
          %s264 = scalar_lea.hbm %s0, %s263
          %s265 = sshll.u32 %s258, 4
          %s266 = int_to_ptr.vmem [resolvable:$true] %s265
          %271 = dma.hbm_to_vmem [thread:$0]  %s264, 4096, %s266, %s255, 128, 128, 8
        $region40: #{tpu_custom_call.1} parent=35 // pred_fallthru
          _
      $region36: #{tpu_custom_call.1} parent=5 // pred_fallthru
        _
      %p272 = scmp.le.s32.totalorder 1, %s24
      %p273 = scmp.lt.s32.totalorder %s24, 3
      %p274 = pnand %p272, %p273
      %p275 = pneg %p274
      // Predicated region
      $region41: #{tpu_custom_call.1} parent=5 // pred_check
        _
      $region42: #{tpu_custom_call.1} parent=5 // pred_check_branch
        %277 = sbr.rel (%p274) target = $region44
      $region43: #{tpu_custom_call.1} parent=5 // pred_region
        %s278 = ssub.s32 %s24, 1
        %s279 = sand.u32 %s37, 1
        %s280 = scalar_lea.sflag [#allocation5], %s279
        %s281 = sand.u32 %s37, 1
        %s282 = smul.addr %s281, 256
        %s283 = scalar_lea.vmem [#allocation4], %s282
        // Predicated region
        $region45: #{tpu_custom_call.1} parent=43 // pred_check
          %p284 = pneg %p50
        $region46: #{tpu_custom_call.1} parent=43 // pred_check_branch
          %286 = sbr.rel (%p284) target = $region48
        $region47: #{tpu_custom_call.1} parent=43 // pred_region
          %287 = dma.done %s280, 4096
        $region48: #{tpu_custom_call.1} parent=43 // pred_fallthru
          _
        // Predicated region
        $region49: #{tpu_custom_call.1} parent=43 // pred_check
          %p288 = pneg %p71
        $region50: #{tpu_custom_call.1} parent=43 // pred_check_branch
          %290 = sbr.rel (%p288) target = $region52
        $region51: #{tpu_custom_call.1} parent=43 // pred_region
          %291 = dma.done [#allocation8], 18432
        $region52: #{tpu_custom_call.1} parent=43 // pred_fallthru
          _
        %s292 = sand.u32 %s37, 1
        %s293 = scalar_lea.sflag [#allocation5], %s292
        %s294 = sand.u32 %s37, 1
        %s295 = smul.addr %s294, 256
        %s296 = scalar_lea.vmem [#allocation4], %s295
        %p297 = pneg %p50
        %p298 = pneg %p47
        %p299 = pneg %p71
        %p300 = pneg %p68
        %p301 = pneg %p92
        %p302 = pneg %p89
        %p303 = pneg %p113
        %p304 = pneg %p110
        %p305 = pneg %p134
        %p306 = pneg %p131
        %p307 = pneg %p155
        %p308 = pneg %p152
        %p309 = pneg %p181
        %p310 = pneg %p178
        %s311 = sand.u32 %s168, 1
        %s312 = scalar_lea.sflag [#allocation6], %s311
        %s313 = sand.u32 %s168, 1
        %s314 = smul.addr %s313, 256
        %s315 = scalar_lea.vmem [#allocation9], %s314
        %p316 = pneg %p207
        %p317 = pneg %p204
        %s318 = sand.u32 %s194, 1
        %s319 = scalar_lea.sflag [#allocation11], %s318
        %s320 = sand.u32 %s194, 1
        %s321 = smul.addr %s320, 256
        %s322 = scalar_lea.vmem [#allocation10], %s321
        %v324 = vld [vmem:[%s283] sm:$0xff]
        %v325 = vld [vmem:[%s283 + $0x8] sm:$0xff]
        %v326 = vld [vmem:[%s283 + $0x10] sm:$0xff]
        %v327 = vld [vmem:[%s283 + $0x18] sm:$0xff]
        %v328 = vld [vmem:[%s283 + $0x20] sm:$0xff]
        %v329 = vld [vmem:[%s283 + $0x28] sm:$0xff]
        %v330 = vld [vmem:[%s283 + $0x30] sm:$0xff]
        %v331 = vld [vmem:[%s283 + $0x38] sm:$0xff]
        %v332 = vld [vmem:[%s283 + $0x40] sm:$0xff]
        %v333 = vld [vmem:[%s283 + $0x48] sm:$0xff]
        %v334 = vld [vmem:[%s283 + $0x50] sm:$0xff]
        %v335 = vld [vmem:[%s283 + $0x58] sm:$0xff]
        %v336 = vld [vmem:[%s283 + $0x60] sm:$0xff]
        %v337 = vld [vmem:[%s283 + $0x68] sm:$0xff]
        %v338 = vld [vmem:[%s283 + $0x70] sm:$0xff]
        %v339 = vld [vmem:[%s283 + $0x78] sm:$0xff]
        %v340 = vld [vmem:[%s283 + $0x80] sm:$0xff]
        %v341 = vld [vmem:[%s283 + $0x88] sm:$0xff]
        %v342 = vld [vmem:[%s283 + $0x90] sm:$0xff]
        %v343 = vld [vmem:[%s283 + $0x98] sm:$0xff]
        %v344 = vld [vmem:[%s283 + $0xa0] sm:$0xff]
        %v345 = vld [vmem:[%s283 + $0xa8] sm:$0xff]
        %v346 = vld [vmem:[%s283 + $0xb0] sm:$0xff]
        %v347 = vld [vmem:[%s283 + $0xb8] sm:$0xff]
        %v348 = vld [vmem:[%s283 + $0xc0] sm:$0xff]
        %v349 = vld [vmem:[%s283 + $0xc8] sm:$0xff]
        %v350 = vld [vmem:[%s283 + $0xd0] sm:$0xff]
        %v351 = vld [vmem:[%s283 + $0xd8] sm:$0xff]
        %v352 = vld [vmem:[%s283 + $0xe0] sm:$0xff]
        %v353 = vld [vmem:[%s283 + $0xe8] sm:$0xff]
        %v354 = vld [vmem:[%s283 + $0xf0] sm:$0xff]
        %v355 = vld [vmem:[%s283 + $0xf8] sm:$0xff]
        %v356 = vlaneseq
        %v357 = vshrl.u32 %v356, 7
        %v358 = vadd.s32 %v357, 8
        %vm359 = vcmp.ge.s32.totalorder %v357, 1
        %vm360 = vcmp.ge.s32.totalorder %v358, 1
        %v361 = vrot.slane %v324, 7
        %v362 = vrot.slane %v326, 7
        %v363 = vrot.slane %v328, 7
        %v364 = vrot.slane %v330, 7
        %v365 = vrot.slane %v332, 7
        %v366 = vrot.slane %v334, 7
        %v367 = vrot.slane %v336, 7
        %v368 = vrot.slane %v338, 7
        %v369 = vrot.slane %v340, 7
        %v370 = vrot.slane %v342, 7
        %v371 = vrot.slane %v344, 7
        %v372 = vrot.slane %v346, 7
        %v373 = vrot.slane %v348, 7
        %v374 = vrot.slane %v350, 7
        %v375 = vrot.slane %v352, 7
        %v376 = vrot.slane %v354, 7
        %v377 = vrot.slane %v325, 7
        %v378 = vrot.slane %v327, 7
        %v379 = vrot.slane %v329, 7
        %v380 = vrot.slane %v331, 7
        %v381 = vrot.slane %v333, 7
        %v382 = vrot.slane %v335, 7
        %v383 = vrot.slane %v337, 7
        %v384 = vrot.slane %v339, 7
        %v385 = vrot.slane %v341, 7
        %v386 = vrot.slane %v343, 7
        %v387 = vrot.slane %v345, 7
        %v388 = vrot.slane %v347, 7
        %v389 = vrot.slane %v349, 7
        %v390 = vrot.slane %v351, 7
        %v391 = vrot.slane %v353, 7
        %v392 = vrot.slane %v355, 7
        %vm393 = vcmp.lt.s32.totalorder %v357, 1
        %v394 = vsel %vm393, %v361, %v377
        %v395 = vsel %vm393, %v362, %v378
        %v396 = vsel %vm393, %v363, %v379
        %v397 = vsel %vm393, %v364, %v380
        %v398 = vsel %vm393, %v365, %v381
        %v399 = vsel %vm393, %v366, %v382
        %v400 = vsel %vm393, %v367, %v383
        %v401 = vsel %vm393, %v368, %v384
        %v402 = vsel %vm393, %v369, %v385
        %v403 = vsel %vm393, %v370, %v386
        %v404 = vsel %vm393, %v371, %v387
        %v405 = vsel %vm393, %v372, %v388
        %v406 = vsel %vm393, %v373, %v389
        %v407 = vsel %vm393, %v374, %v390
        %v408 = vsel %vm393, %v375, %v391
        %v409 = vsel %vm393, %v376, %v392
        %v410 = vsel %vm393, %v377, %v361
        %v411 = vsel %vm393, %v378, %v362
        %v412 = vsel %vm393, %v379, %v363
        %v413 = vsel %vm393, %v380, %v364
        %v414 = vsel %vm393, %v381, %v365
        %v415 = vsel %vm393, %v382, %v366
        %v416 = vsel %vm393, %v383, %v367
        %v417 = vsel %vm393, %v384, %v368
        %v418 = vsel %vm393, %v385, %v369
        %v419 = vsel %vm393, %v386, %v370
        %v420 = vsel %vm393, %v387, %v371
        %v421 = vsel %vm393, %v388, %v372
        %v422 = vsel %vm393, %v389, %v373
        %v423 = vsel %vm393, %v390, %v374
        %v424 = vsel %vm393, %v391, %v375
        %v425 = vsel %vm393, %v392, %v376
        %v426 = vsel %vm359, %v410, 0.0
        %v427 = vsel %vm360, %v394, 0.0
        %v428 = vsel %vm359, %v411, 0.0
        %v429 = vsel %vm360, %v395, 0.0
        %v430 = vsel %vm359, %v412, 0.0
        %v431 = vsel %vm360, %v396, 0.0
        %v432 = vsel %vm359, %v413, 0.0
        %v433 = vsel %vm360, %v397, 0.0
        %v434 = vsel %vm359, %v414, 0.0
        %v435 = vsel %vm360, %v398, 0.0
        %v436 = vsel %vm359, %v415, 0.0
        %v437 = vsel %vm360, %v399, 0.0
        %v438 = vsel %vm359, %v416, 0.0
        %v439 = vsel %vm360, %v400, 0.0
        %v440 = vsel %vm359, %v417, 0.0
        %v441 = vsel %vm360, %v401, 0.0
        %v442 = vsel %vm359, %v418, 0.0
        %v443 = vsel %vm360, %v402, 0.0
        %v444 = vsel %vm359, %v419, 0.0
        %v445 = vsel %vm360, %v403, 0.0
        %v446 = vsel %vm359, %v420, 0.0
        %v447 = vsel %vm360, %v404, 0.0
        %v448 = vsel %vm359, %v421, 0.0
        %v449 = vsel %vm360, %v405, 0.0
        %v450 = vsel %vm359, %v422, 0.0
        %v451 = vsel %vm360, %v406, 0.0
        %v452 = vsel %vm359, %v423, 0.0
        %v453 = vsel %vm360, %v407, 0.0
        %v454 = vsel %vm359, %v424, 0.0
        %v455 = vsel %vm360, %v408, 0.0
        %v456 = vsel %vm359, %v425, 0.0
        %v457 = vsel %vm360, %v409, 0.0
        %v458 = vpack.c.bf16 %v427, %v426
        %v459 = vpack.c.bf16 %v429, %v428
        %v460 = vpack.c.bf16 %v431, %v430
        %v461 = vpack.c.bf16 %v433, %v432
        %v462 = vpack.c.bf16 %v435, %v434
        %v463 = vpack.c.bf16 %v437, %v436
        %v464 = vpack.c.bf16 %v439, %v438
        %v465 = vpack.c.bf16 %v441, %v440
        %v466 = vpack.c.bf16 %v443, %v442
        %v467 = vpack.c.bf16 %v445, %v444
        %v468 = vpack.c.bf16 %v447, %v446
        %v469 = vpack.c.bf16 %v449, %v448
        %v470 = vpack.c.bf16 %v451, %v450
        %v471 = vpack.c.bf16 %v453, %v452
        %v472 = vpack.c.bf16 %v455, %v454
        %v473 = vpack.c.bf16 %v457, %v456
        %vm474 = vcmp.le.s32.totalorder %v357, 14
        %vm475 = vcmp.le.s32.totalorder %v358, 14
        %v476 = vrot.slane %v324, 1
        %v477 = vrot.slane %v326, 1
        %v478 = vrot.slane %v328, 1
        %v479 = vrot.slane %v330, 1
        %v480 = vrot.slane %v332, 1
        %v481 = vrot.slane %v334, 1
        %v482 = vrot.slane %v336, 1
        %v483 = vrot.slane %v338, 1
        %v484 = vrot.slane %v340, 1
        %v485 = vrot.slane %v342, 1
        %v486 = vrot.slane %v344, 1
        %v487 = vrot.slane %v346, 1
        %v488 = vrot.slane %v348, 1
        %v489 = vrot.slane %v350, 1
        %v490 = vrot.slane %v352, 1
        %v491 = vrot.slane %v354, 1
        %v492 = vrot.slane %v325, 1
        %v493 = vrot.slane %v327, 1
        %v494 = vrot.slane %v329, 1
        %v495 = vrot.slane %v331, 1
        %v496 = vrot.slane %v333, 1
        %v497 = vrot.slane %v335, 1
        %v498 = vrot.slane %v337, 1
        %v499 = vrot.slane %v339, 1
        %v500 = vrot.slane %v341, 1
        %v501 = vrot.slane %v343, 1
        %v502 = vrot.slane %v345, 1
        %v503 = vrot.slane %v347, 1
        %v504 = vrot.slane %v349, 1
        %v505 = vrot.slane %v351, 1
        %v506 = vrot.slane %v353, 1
        %v507 = vrot.slane %v355, 1
        %vm508 = vcmp.lt.s32.totalorder %v357, 7
        %v509 = vsel %vm508, %v476, %v492
        %v510 = vsel %vm508, %v477, %v493
        %v511 = vsel %vm508, %v478, %v494
        %v512 = vsel %vm508, %v479, %v495
        %v513 = vsel %vm508, %v480, %v496
        %v514 = vsel %vm508, %v481, %v497
        %v515 = vsel %vm508, %v482, %v498
        %v516 = vsel %vm508, %v483, %v499
        %v517 = vsel %vm508, %v484, %v500
        %v518 = vsel %vm508, %v485, %v501
        %v519 = vsel %vm508, %v486, %v502
        %v520 = vsel %vm508, %v487, %v503
        %v521 = vsel %vm508, %v488, %v504
        %v522 = vsel %vm508, %v489, %v505
        %v523 = vsel %vm508, %v490, %v506
        %v524 = vsel %vm508, %v491, %v507
        %v525 = vsel %vm508, %v492, %v476
        %v526 = vsel %vm508, %v493, %v477
        %v527 = vsel %vm508, %v494, %v478
        %v528 = vsel %vm508, %v495, %v479
        %v529 = vsel %vm508, %v496, %v480
        %v530 = vsel %vm508, %v497, %v481
        %v531 = vsel %vm508, %v498, %v482
        %v532 = vsel %vm508, %v499, %v483
        %v533 = vsel %vm508, %v500, %v484
        %v534 = vsel %vm508, %v501, %v485
        %v535 = vsel %vm508, %v502, %v486
        %v536 = vsel %vm508, %v503, %v487
        %v537 = vsel %vm508, %v504, %v488
        %v538 = vsel %vm508, %v505, %v489
        %v539 = vsel %vm508, %v506, %v490
        %v540 = vsel %vm508, %v507, %v491
        %v541 = vsel %vm474, %v509, 0.0
        %v542 = vsel %vm475, %v525, 0.0
        %v543 = vsel %vm474, %v510, 0.0
        %v544 = vsel %vm475, %v526, 0.0
        %v545 = vsel %vm474, %v511, 0.0
        %v546 = vsel %vm475, %v527, 0.0
        %v547 = vsel %vm474, %v512, 0.0
        %v548 = vsel %vm475, %v528, 0.0
        %v549 = vsel %vm474, %v513, 0.0
        %v550 = vsel %vm475, %v529, 0.0
        %v551 = vsel %vm474, %v514, 0.0
        %v552 = vsel %vm475, %v530, 0.0
        %v553 = vsel %vm474, %v515, 0.0
        %v554 = vsel %vm475, %v531, 0.0
        %v555 = vsel %vm474, %v516, 0.0
        %v556 = vsel %vm475, %v532, 0.0
        %v557 = vsel %vm474, %v517, 0.0
        %v558 = vsel %vm475, %v533, 0.0
        %v559 = vsel %vm474, %v518, 0.0
        %v560 = vsel %vm475, %v534, 0.0
        %v561 = vsel %vm474, %v519, 0.0
        %v562 = vsel %vm475, %v535, 0.0
        %v563 = vsel %vm474, %v520, 0.0
        %v564 = vsel %vm475, %v536, 0.0
        %v565 = vsel %vm474, %v521, 0.0
        %v566 = vsel %vm475, %v537, 0.0
        %v567 = vsel %vm474, %v522, 0.0
        %v568 = vsel %vm475, %v538, 0.0
        %v569 = vsel %vm474, %v523, 0.0
        %v570 = vsel %vm475, %v539, 0.0
        %v571 = vsel %vm474, %v524, 0.0
        %v572 = vsel %vm475, %v540, 0.0
        %v573 = vpack.c.bf16 %v542, %v541
        %v574 = vpack.c.bf16 %v544, %v543
        %v575 = vpack.c.bf16 %v546, %v545
        %v576 = vpack.c.bf16 %v548, %v547
        %v577 = vpack.c.bf16 %v550, %v549
        %v578 = vpack.c.bf16 %v552, %v551
        %v579 = vpack.c.bf16 %v554, %v553
        %v580 = vpack.c.bf16 %v556, %v555
        %v581 = vpack.c.bf16 %v558, %v557
        %v582 = vpack.c.bf16 %v560, %v559
        %v583 = vpack.c.bf16 %v562, %v561
        %v584 = vpack.c.bf16 %v564, %v563
        %v585 = vpack.c.bf16 %v566, %v565
        %v586 = vpack.c.bf16 %v568, %v567
        %v587 = vpack.c.bf16 %v570, %v569
        %v588 = vpack.c.bf16 %v572, %v571
        %v589 = vpack.c.bf16 %v325, %v324
        %v590 = vpack.c.bf16 %v327, %v326
        %v591 = vpack.c.bf16 %v329, %v328
        %v592 = vpack.c.bf16 %v331, %v330
        %v593 = vpack.c.bf16 %v333, %v332
        %v594 = vpack.c.bf16 %v335, %v334
        %v595 = vpack.c.bf16 %v337, %v336
        %v596 = vpack.c.bf16 %v339, %v338
        %v597 = vpack.c.bf16 %v341, %v340
        %v598 = vpack.c.bf16 %v343, %v342
        %v599 = vpack.c.bf16 %v345, %v344
        %v600 = vpack.c.bf16 %v347, %v346
        %v601 = vpack.c.bf16 %v349, %v348
        %v602 = vpack.c.bf16 %v351, %v350
        %v603 = vpack.c.bf16 %v353, %v352
        %v604 = vpack.c.bf16 %v355, %v354
        %605 = vst [vmem:[#allocation2] sm:$0xff] 0
        %606 = vst [vmem:[#allocation2 + $0x8] sm:$0xf] 0
        %607 = vst [vmem:[#allocation2 + $0xc] sm:$0xff] 0
        %608 = vst [vmem:[#allocation2 + $0x14] sm:$0xf] 0
        %s609 = scalar_lea.vmem [#allocation2], 408
        %610 = vst [vmem:[%s609] sm:$0xff] 0
        %611 = vst [vmem:[%s609 + $0x8] sm:$0xf] 0
        %612 = vst [vmem:[%s609 + $0xc] sm:$0xff] 0
        %613 = vst [vmem:[%s609 + $0x14] sm:$0xf] 0
        %v630 = vunpack.c.l.b16 %v458
        %v631 = vunpack.c.h.b16 %v458
        %v632 = vunpack.c.l.b16 %v459
        %v633 = vunpack.c.h.b16 %v459
        %v634 = vunpack.c.l.b16 %v460
        %v635 = vunpack.c.h.b16 %v460
        %v636 = vunpack.c.l.b16 %v461
        %v637 = vunpack.c.h.b16 %v461
        %v638 = vunpack.c.l.b16 %v462
        %v639 = vunpack.c.h.b16 %v462
        %v640 = vunpack.c.l.b16 %v463
        %v641 = vunpack.c.h.b16 %v463
        %v642 = vunpack.c.l.b16 %v464
        %v643 = vunpack.c.h.b16 %v464
        %v644 = vunpack.c.l.b16 %v465
        %v645 = vunpack.c.h.b16 %v465
        %v646 = vunpack.c.l.b16 %v466
        %v647 = vunpack.c.h.b16 %v466
        %v648 = vunpack.c.l.b16 %v467
        %v649 = vunpack.c.h.b16 %v467
        %v650 = vunpack.c.l.b16 %v468
        %v651 = vunpack.c.h.b16 %v468
        %v652 = vunpack.c.l.b16 %v469
        %v653 = vunpack.c.h.b16 %v469
        %v654 = vunpack.c.l.b16 %v470
        %v655 = vunpack.c.h.b16 %v470
        %v656 = vunpack.c.l.b16 %v471
        %v657 = vunpack.c.h.b16 %v471
        %v658 = vunpack.c.l.b16 %v472
        %v659 = vunpack.c.h.b16 %v472
        %v660 = vunpack.c.l.b16 %v473
        %v661 = vunpack.c.h.b16 %v473
        %v662 = vpack.c.b16 %v630, %v630
        %v663 = vpack.c.b16 %v631, %v631
        %v664 = vpack.c.b16 %v632, %v632
        %v665 = vpack.c.b16 %v633, %v633
        %v666 = vpack.c.b16 %v634, %v634
        %v667 = vpack.c.b16 %v635, %v635
        %v668 = vpack.c.b16 %v636, %v636
        %v669 = vpack.c.b16 %v637, %v637
        %v670 = vpack.c.b16 %v638, %v638
        %v671 = vpack.c.b16 %v639, %v639
        %v672 = vpack.c.b16 %v640, %v640
        %v673 = vpack.c.b16 %v641, %v641
        %v674 = vpack.c.b16 %v642, %v642
        %v675 = vpack.c.b16 %v643, %v643
        %v676 = vpack.c.b16 %v644, %v644
        %v677 = vpack.c.b16 %v645, %v645
        %v678 = vpack.c.b16 %v646, %v646
        %v679 = vpack.c.b16 %v647, %v647
        %v680 = vpack.c.b16 %v648, %v648
        %v681 = vpack.c.b16 %v649, %v649
        %v682 = vpack.c.b16 %v650, %v650
        %v683 = vpack.c.b16 %v651, %v651
        %v684 = vpack.c.b16 %v652, %v652
        %v685 = vpack.c.b16 %v653, %v653
        %v686 = vpack.c.b16 %v654, %v654
        %v687 = vpack.c.b16 %v655, %v655
        %v688 = vpack.c.b16 %v656, %v656
        %v689 = vpack.c.b16 %v657, %v657
        %v690 = vpack.c.b16 %v658, %v658
        %v691 = vpack.c.b16 %v659, %v659
        %v692 = vpack.c.b16 %v660, %v660
        %v693 = vpack.c.b16 %v661, %v661
        %s726 = scalar_lea.vmem [#allocation2], 24
        %727 = vst [vmem:[%s726] sm:$0xf] %v662
        %728 = vst [vmem:[%s726 + $0xc] sm:$0xf] %v663
        %729 = vst [vmem:[%s726 + $0x18] sm:$0xf] %v664
        %730 = vst [vmem:[%s726 + $0x24] sm:$0xf] %v665
        %731 = vst [vmem:[%s726 + $0x30] sm:$0xf] %v666
        %732 = vst [vmem:[%s726 + $0x3c] sm:$0xf] %v667
        %733 = vst [vmem:[%s726 + $0x48] sm:$0xf] %v668
        %734 = vst [vmem:[%s726 + $0x54] sm:$0xf] %v669
        %735 = vst [vmem:[%s726 + $0x60] sm:$0xf] %v670
        %736 = vst [vmem:[%s726 + $0x6c] sm:$0xf] %v671
        %737 = vst [vmem:[%s726 + $0x78] sm:$0xf] %v672
        %738 = vst [vmem:[%s726 + $0x84] sm:$0xf] %v673
        %739 = vst [vmem:[%s726 + $0x90] sm:$0xf] %v674
        %740 = vst [vmem:[%s726 + $0x9c] sm:$0xf] %v675
        %741 = vst [vmem:[%s726 + $0xa8] sm:$0xf] %v676
        %742 = vst [vmem:[%s726 + $0xb4] sm:$0xf] %v677
        %743 = vst [vmem:[%s726 + $0xc0] sm:$0xf] %v678
        %744 = vst [vmem:[%s726 + $0xcc] sm:$0xf] %v679
        %745 = vst [vmem:[%s726 + $0xd8] sm:$0xf] %v680
        %746 = vst [vmem:[%s726 + $0xe4] sm:$0xf] %v681
        %747 = vst [vmem:[%s726 + $0xf0] sm:$0xf] %v682
        %748 = vst [vmem:[%s726 + $0xfc] sm:$0xf] %v683
        %749 = vst [vmem:[%s726 + $0x108] sm:$0xf] %v684
        %750 = vst [vmem:[%s726 + $0x114] sm:$0xf] %v685
        %751 = vst [vmem:[%s726 + $0x120] sm:$0xf] %v686
        %752 = vst [vmem:[%s726 + $0x12c] sm:$0xf] %v687
        %753 = vst [vmem:[%s726 + $0x138] sm:$0xf] %v688
        %754 = vst [vmem:[%s726 + $0x144] sm:$0xf] %v689
        %755 = vst [vmem:[%s726 + $0x150] sm:$0xf] %v690
        %756 = vst [vmem:[%s726 + $0x15c] sm:$0xf] %v691
        %757 = vst [vmem:[%s726 + $0x168] sm:$0xf] %v692
        %758 = vst [vmem:[%s726 + $0x174] sm:$0xf] %v693
        %v775 = vunpack.c.l.b16 %v589
        %v776 = vunpack.c.h.b16 %v589
        %v777 = vunpack.c.l.b16 %v590
        %v778 = vunpack.c.h.b16 %v590
        %v779 = vunpack.c.l.b16 %v591
        %v780 = vunpack.c.h.b16 %v591
        %v781 = vunpack.c.l.b16 %v592
        %v782 = vunpack.c.h.b16 %v592
        %v783 = vunpack.c.l.b16 %v593
        %v784 = vunpack.c.h.b16 %v593
        %v785 = vunpack.c.l.b16 %v594
        %v786 = vunpack.c.h.b16 %v594
        %v787 = vunpack.c.l.b16 %v595
        %v788 = vunpack.c.h.b16 %v595
        %v789 = vunpack.c.l.b16 %v596
        %v790 = vunpack.c.h.b16 %v596
        %v791 = vunpack.c.l.b16 %v597
        %v792 = vunpack.c.h.b16 %v597
        %v793 = vunpack.c.l.b16 %v598
        %v794 = vunpack.c.h.b16 %v598
        %v795 = vunpack.c.l.b16 %v599
        %v796 = vunpack.c.h.b16 %v599
        %v797 = vunpack.c.l.b16 %v600
        %v798 = vunpack.c.h.b16 %v600
        %v799 = vunpack.c.l.b16 %v601
        %v800 = vunpack.c.h.b16 %v601
        %v801 = vunpack.c.l.b16 %v602
        %v802 = vunpack.c.h.b16 %v602
        %v803 = vunpack.c.l.b16 %v603
        %v804 = vunpack.c.h.b16 %v603
        %v805 = vunpack.c.l.b16 %v604
        %v806 = vunpack.c.h.b16 %v604
        %v807 = vpack.c.b16 %v775, %v775
        %v808 = vpack.c.b16 %v776, %v776
        %v809 = vpack.c.b16 %v777, %v777
        %v810 = vpack.c.b16 %v778, %v778
        %v811 = vpack.c.b16 %v779, %v779
        %v812 = vpack.c.b16 %v780, %v780
        %v813 = vpack.c.b16 %v781, %v781
        %v814 = vpack.c.b16 %v782, %v782
        %v815 = vpack.c.b16 %v783, %v783
        %v816 = vpack.c.b16 %v784, %v784
        %v817 = vpack.c.b16 %v785, %v785
        %v818 = vpack.c.b16 %v786, %v786
        %v819 = vpack.c.b16 %v787, %v787
        %v820 = vpack.c.b16 %v788, %v788
        %v821 = vpack.c.b16 %v789, %v789
        %v822 = vpack.c.b16 %v790, %v790
        %v823 = vpack.c.b16 %v791, %v791
        %v824 = vpack.c.b16 %v792, %v792
        %v825 = vpack.c.b16 %v793, %v793
        %v826 = vpack.c.b16 %v794, %v794
        %v827 = vpack.c.b16 %v795, %v795
        %v828 = vpack.c.b16 %v796, %v796
        %v829 = vpack.c.b16 %v797, %v797
        %v830 = vpack.c.b16 %v798, %v798
        %v831 = vpack.c.b16 %v799, %v799
        %v832 = vpack.c.b16 %v800, %v800
        %v833 = vpack.c.b16 %v801, %v801
        %v834 = vpack.c.b16 %v802, %v802
        %v835 = vpack.c.b16 %v803, %v803
        %v836 = vpack.c.b16 %v804, %v804
        %v837 = vpack.c.b16 %v805, %v805
        %v838 = vpack.c.b16 %v806, %v806
        %871 = vst [vmem:[%s726 + $0x4] sm:$0xf] %v807
        %872 = vst [vmem:[%s726 + $0x10] sm:$0xf] %v808
        %873 = vst [vmem:[%s726 + $0x1c] sm:$0xf] %v809
        %874 = vst [vmem:[%s726 + $0x28] sm:$0xf] %v810
        %875 = vst [vmem:[%s726 + $0x34] sm:$0xf] %v811
        %876 = vst [vmem:[%s726 + $0x40] sm:$0xf] %v812
        %877 = vst [vmem:[%s726 + $0x4c] sm:$0xf] %v813
        %878 = vst [vmem:[%s726 + $0x58] sm:$0xf] %v814
        %879 = vst [vmem:[%s726 + $0x64] sm:$0xf] %v815
        %880 = vst [vmem:[%s726 + $0x70] sm:$0xf] %v816
        %881 = vst [vmem:[%s726 + $0x7c] sm:$0xf] %v817
        %882 = vst [vmem:[%s726 + $0x88] sm:$0xf] %v818
        %883 = vst [vmem:[%s726 + $0x94] sm:$0xf] %v819
        %884 = vst [vmem:[%s726 + $0xa0] sm:$0xf] %v820
        %885 = vst [vmem:[%s726 + $0xac] sm:$0xf] %v821
        %886 = vst [vmem:[%s726 + $0xb8] sm:$0xf] %v822
        %887 = vst [vmem:[%s726 + $0xc4] sm:$0xf] %v823
        %888 = vst [vmem:[%s726 + $0xd0] sm:$0xf] %v824
        %889 = vst [vmem:[%s726 + $0xdc] sm:$0xf] %v825
        %890 = vst [vmem:[%s726 + $0xe8] sm:$0xf] %v826
        %891 = vst [vmem:[%s726 + $0xf4] sm:$0xf] %v827
        %892 = vst [vmem:[%s726 + $0x100] sm:$0xf] %v828
        %893 = vst [vmem:[%s726 + $0x10c] sm:$0xf] %v829
        %894 = vst [vmem:[%s726 + $0x118] sm:$0xf] %v830
        %895 = vst [vmem:[%s726 + $0x124] sm:$0xf] %v831
        %896 = vst [vmem:[%s726 + $0x130] sm:$0xf] %v832
        %897 = vst [vmem:[%s726 + $0x13c] sm:$0xf] %v833
        %898 = vst [vmem:[%s726 + $0x148] sm:$0xf] %v834
        %899 = vst [vmem:[%s726 + $0x154] sm:$0xf] %v835
        %900 = vst [vmem:[%s726 + $0x160] sm:$0xf] %v836
        %901 = vst [vmem:[%s726 + $0x16c] sm:$0xf] %v837
        %902 = vst [vmem:[%s726 + $0x178] sm:$0xf] %v838
        %v919 = vunpack.c.l.b16 %v573
        %v920 = vunpack.c.h.b16 %v573
        %v921 = vunpack.c.l.b16 %v574
        %v922 = vunpack.c.h.b16 %v574
        %v923 = vunpack.c.l.b16 %v575
        %v924 = vunpack.c.h.b16 %v575
        %v925 = vunpack.c.l.b16 %v576
        %v926 = vunpack.c.h.b16 %v576
        %v927 = vunpack.c.l.b16 %v577
        %v928 = vunpack.c.h.b16 %v577
        %v929 = vunpack.c.l.b16 %v578
        %v930 = vunpack.c.h.b16 %v578
        %v931 = vunpack.c.l.b16 %v579
        %v932 = vunpack.c.h.b16 %v579
        %v933 = vunpack.c.l.b16 %v580
        %v934 = vunpack.c.h.b16 %v580
        %v935 = vunpack.c.l.b16 %v581
        %v936 = vunpack.c.h.b16 %v581
        %v937 = vunpack.c.l.b16 %v582
        %v938 = vunpack.c.h.b16 %v582
        %v939 = vunpack.c.l.b16 %v583
        %v940 = vunpack.c.h.b16 %v583
        %v941 = vunpack.c.l.b16 %v584
        %v942 = vunpack.c.h.b16 %v584
        %v943 = vunpack.c.l.b16 %v585
        %v944 = vunpack.c.h.b16 %v585
        %v945 = vunpack.c.l.b16 %v586
        %v946 = vunpack.c.h.b16 %v586
        %v947 = vunpack.c.l.b16 %v587
        %v948 = vunpack.c.h.b16 %v587
        %v949 = vunpack.c.l.b16 %v588
        %v950 = vunpack.c.h.b16 %v588
        %v951 = vpack.c.b16 %v919, %v919
        %v952 = vpack.c.b16 %v920, %v920
        %v953 = vpack.c.b16 %v921, %v921
        %v954 = vpack.c.b16 %v922, %v922
        %v955 = vpack.c.b16 %v923, %v923
        %v956 = vpack.c.b16 %v924, %v924
        %v957 = vpack.c.b16 %v925, %v925
        %v958 = vpack.c.b16 %v926, %v926
        %v959 = vpack.c.b16 %v927, %v927
        %v960 = vpack.c.b16 %v928, %v928
        %v961 = vpack.c.b16 %v929, %v929
        %v962 = vpack.c.b16 %v930, %v930
        %v963 = vpack.c.b16 %v931, %v931
        %v964 = vpack.c.b16 %v932, %v932
        %v965 = vpack.c.b16 %v933, %v933
        %v966 = vpack.c.b16 %v934, %v934
        %v967 = vpack.c.b16 %v935, %v935
        %v968 = vpack.c.b16 %v936, %v936
        %v969 = vpack.c.b16 %v937, %v937
        %v970 = vpack.c.b16 %v938, %v938
        %v971 = vpack.c.b16 %v939, %v939
        %v972 = vpack.c.b16 %v940, %v940
        %v973 = vpack.c.b16 %v941, %v941
        %v974 = vpack.c.b16 %v942, %v942
        %v975 = vpack.c.b16 %v943, %v943
        %v976 = vpack.c.b16 %v944, %v944
        %v977 = vpack.c.b16 %v945, %v945
        %v978 = vpack.c.b16 %v946, %v946
        %v979 = vpack.c.b16 %v947, %v947
        %v980 = vpack.c.b16 %v948, %v948
        %v981 = vpack.c.b16 %v949, %v949
        %v982 = vpack.c.b16 %v950, %v950
        %1015 = vst [vmem:[%s726 + $0x8] sm:$0xf] %v951
        %1016 = vst [vmem:[%s726 + $0x14] sm:$0xf] %v952
        %1017 = vst [vmem:[%s726 + $0x20] sm:$0xf] %v953
        %1018 = vst [vmem:[%s726 + $0x2c] sm:$0xf] %v954
        %1019 = vst [vmem:[%s726 + $0x38] sm:$0xf] %v955
        %1020 = vst [vmem:[%s726 + $0x44] sm:$0xf] %v956
        %1021 = vst [vmem:[%s726 + $0x50] sm:$0xf] %v957
        %1022 = vst [vmem:[%s726 + $0x5c] sm:$0xf] %v958
        %1023 = vst [vmem:[%s726 + $0x68] sm:$0xf] %v959
        %1024 = vst [vmem:[%s726 + $0x74] sm:$0xf] %v960
        %1025 = vst [vmem:[%s726 + $0x80] sm:$0xf] %v961
        %1026 = vst [vmem:[%s726 + $0x8c] sm:$0xf] %v962
        %1027 = vst [vmem:[%s726 + $0x98] sm:$0xf] %v963
        %1028 = vst [vmem:[%s726 + $0xa4] sm:$0xf] %v964
        %1029 = vst [vmem:[%s726 + $0xb0] sm:$0xf] %v965
        %1030 = vst [vmem:[%s726 + $0xbc] sm:$0xf] %v966
        %1031 = vst [vmem:[%s726 + $0xc8] sm:$0xf] %v967
        %1032 = vst [vmem:[%s726 + $0xd4] sm:$0xf] %v968
        %1033 = vst [vmem:[%s726 + $0xe0] sm:$0xf] %v969
        %1034 = vst [vmem:[%s726 + $0xec] sm:$0xf] %v970
        %1035 = vst [vmem:[%s726 + $0xf8] sm:$0xf] %v971
        %1036 = vst [vmem:[%s726 + $0x104] sm:$0xf] %v972
        %1037 = vst [vmem:[%s726 + $0x110] sm:$0xf] %v973
        %1038 = vst [vmem:[%s726 + $0x11c] sm:$0xf] %v974
        %1039 = vst [vmem:[%s726 + $0x128] sm:$0xf] %v975
        %1040 = vst [vmem:[%s726 + $0x134] sm:$0xf] %v976
        %1041 = vst [vmem:[%s726 + $0x140] sm:$0xf] %v977
        %1042 = vst [vmem:[%s726 + $0x14c] sm:$0xf] %v978
        %1043 = vst [vmem:[%s726 + $0x158] sm:$0xf] %v979
        %1044 = vst [vmem:[%s726 + $0x164] sm:$0xf] %v980
        %1045 = vst [vmem:[%s726 + $0x170] sm:$0xf] %v981
        %1046 = vst [vmem:[%s726 + $0x17c] sm:$0xf] %v982
        %v1047 = vld [vmem:[#allocation2] sm:$0xff]
        %v1048 = vld [vmem:[#allocation2 + $0x8] sm:$0xf]
        %v1049 = vld [vmem:[#allocation2 + $0xc] sm:$0xff]
        %v1050 = vld [vmem:[#allocation2 + $0x14] sm:$0xf]
        %v1051 = vld [vmem:[#allocation2 + $0x18] sm:$0xff]
        %v1052 = vld [vmem:[#allocation2 + $0x20] sm:$0xf]
        %v1053 = vld [vmem:[#allocation2 + $0x24] sm:$0xff]
        %v1054 = vld [vmem:[#allocation2 + $0x2c] sm:$0xf]
        %v1055 = vld [vmem:[#allocation2 + $0x30] sm:$0xff]
        %v1056 = vld [vmem:[#allocation2 + $0x38] sm:$0xf]
        %v1057 = vld [vmem:[#allocation2 + $0x3c] sm:$0xff]
        %v1058 = vld [vmem:[#allocation2 + $0x44] sm:$0xf]
        %v1059 = vld [vmem:[#allocation2 + $0x48] sm:$0xff]
        %v1060 = vld [vmem:[#allocation2 + $0x50] sm:$0xf]
        %v1061 = vld [vmem:[#allocation2 + $0x54] sm:$0xff]
        %v1062 = vld [vmem:[#allocation2 + $0x5c] sm:$0xf]
        %v1063 = vld [vmem:[#allocation2 + $0x60] sm:$0xff]
        %v1064 = vld [vmem:[#allocation2 + $0x68] sm:$0xf]
        %v1065 = vld [vmem:[#allocation2 + $0x6c] sm:$0xff]
        %v1066 = vld [vmem:[#allocation2 + $0x74] sm:$0xf]
        %v1067 = vld [vmem:[#allocation2 + $0x78] sm:$0xff]
        %v1068 = vld [vmem:[#allocation2 + $0x80] sm:$0xf]
        %v1069 = vld [vmem:[#allocation2 + $0x84] sm:$0xff]
        %v1070 = vld [vmem:[#allocation2 + $0x8c] sm:$0xf]
        %v1071 = vld [vmem:[#allocation2 + $0x90] sm:$0xff]
        %v1072 = vld [vmem:[#allocation2 + $0x98] sm:$0xf]
        %v1073 = vld [vmem:[#allocation2 + $0x9c] sm:$0xff]
        %v1074 = vld [vmem:[#allocation2 + $0xa4] sm:$0xf]
        %v1075 = vld [vmem:[#allocation2 + $0xa8] sm:$0xff]
        %v1076 = vld [vmem:[#allocation2 + $0xb0] sm:$0xf]
        %v1077 = vld [vmem:[#allocation2 + $0xb4] sm:$0xff]
        %v1078 = vld [vmem:[#allocation2 + $0xbc] sm:$0xf]
        %v1079 = vld [vmem:[#allocation2 + $0xc0] sm:$0xff]
        %v1080 = vld [vmem:[#allocation2 + $0xc8] sm:$0xf]
        %v1081 = vld [vmem:[#allocation2 + $0xcc] sm:$0xff]
        %v1082 = vld [vmem:[#allocation2 + $0xd4] sm:$0xf]
        %v1083 = vld [vmem:[#allocation2 + $0xd8] sm:$0xff]
        %v1084 = vld [vmem:[#allocation2 + $0xe0] sm:$0xf]
        %v1085 = vld [vmem:[#allocation2 + $0xe4] sm:$0xff]
        %v1086 = vld [vmem:[#allocation2 + $0xec] sm:$0xf]
        %v1087 = vld [vmem:[#allocation2 + $0xf0] sm:$0xff]
        %v1088 = vld [vmem:[#allocation2 + $0xf8] sm:$0xf]
        %v1089 = vld [vmem:[#allocation2 + $0xfc] sm:$0xff]
        %v1090 = vld [vmem:[#allocation2 + $0x104] sm:$0xf]
        %v1091 = vld [vmem:[#allocation2 + $0x108] sm:$0xff]
        %v1092 = vld [vmem:[#allocation2 + $0x110] sm:$0xf]
        %v1093 = vld [vmem:[#allocation2 + $0x114] sm:$0xff]
        %v1094 = vld [vmem:[#allocation2 + $0x11c] sm:$0xf]
        %v1095 = vld [vmem:[#allocation2 + $0x120] sm:$0xff]
        %v1096 = vld [vmem:[#allocation2 + $0x128] sm:$0xf]
        %v1097 = vld [vmem:[#allocation2 + $0x12c] sm:$0xff]
        %v1098 = vld [vmem:[#allocation2 + $0x134] sm:$0xf]
        %v1099 = vld [vmem:[#allocation2 + $0x138] sm:$0xff]
        %v1100 = vld [vmem:[#allocation2 + $0x140] sm:$0xf]
        %v1101 = vld [vmem:[#allocation2 + $0x144] sm:$0xff]
        %v1102 = vld [vmem:[#allocation2 + $0x14c] sm:$0xf]
        %v1103 = vld [vmem:[#allocation2 + $0x150] sm:$0xff]
        %v1104 = vld [vmem:[#allocation2 + $0x158] sm:$0xf]
        %v1105 = vld [vmem:[#allocation2 + $0x15c] sm:$0xff]
        %v1106 = vld [vmem:[#allocation2 + $0x164] sm:$0xf]
        %v1107 = vld [vmem:[#allocation2 + $0x168] sm:$0xff]
        %v1108 = vld [vmem:[#allocation2 + $0x170] sm:$0xf]
        %v1109 = vld [vmem:[#allocation2 + $0x174] sm:$0xff]
        %v1110 = vld [vmem:[#allocation2 + $0x17c] sm:$0xf]
        %v1111 = vld [vmem:[#allocation7] sm:$0xff]
        %v1112 = vld [vmem:[#allocation7 + $0x8] sm:$0xff]
        %v1113 = vld [vmem:[#allocation7 + $0x10] sm:$0xff]
        %v1114 = vld [vmem:[#allocation7 + $0x18] sm:$0xff]
        %v1115 = vld [vmem:[#allocation7 + $0x20] sm:$0xff]
        %v1116 = vld [vmem:[#allocation7 + $0x28] sm:$0xff]
        %v1117 = vld [vmem:[#allocation7 + $0x30] sm:$0xff]
        %v1118 = vld [vmem:[#allocation7 + $0x38] sm:$0xff]
        %v1119 = vld [vmem:[#allocation7 + $0x40] sm:$0xff]
        %v1120 = vld [vmem:[#allocation7 + $0x48] sm:$0xff]
        %v1121 = vld [vmem:[#allocation7 + $0x50] sm:$0xff]
        %v1122 = vld [vmem:[#allocation7 + $0x58] sm:$0xff]
        %v1123 = vld [vmem:[#allocation7 + $0x60] sm:$0xff]
        %v1124 = vld [vmem:[#allocation7 + $0x68] sm:$0xff]
        %v1125 = vld [vmem:[#allocation7 + $0x70] sm:$0xff]
        %v1126 = vld [vmem:[#allocation7 + $0x78] sm:$0xff]
        %v1127 = vld [vmem:[#allocation7 + $0x80] sm:$0xff]
        %v1128 = vld [vmem:[#allocation7 + $0x88] sm:$0xff]
        %v1129 = vld [vmem:[#allocation7 + $0x90] sm:$0xff]
        %v1130 = vld [vmem:[#allocation7 + $0x98] sm:$0xff]
        %v1131 = vld [vmem:[#allocation7 + $0xa0] sm:$0xff]
        %v1132 = vld [vmem:[#allocation7 + $0xa8] sm:$0xff]
        %v1133 = vld [vmem:[#allocation7 + $0xb0] sm:$0xff]
        %v1134 = vld [vmem:[#allocation7 + $0xb8] sm:$0xff]
        %v1135 = vld [vmem:[#allocation7 + $0xc0] sm:$0xff]
        %v1136 = vld [vmem:[#allocation7 + $0xc8] sm:$0xff]
        %v1137 = vld [vmem:[#allocation7 + $0xd0] sm:$0xff]
        %v1138 = vld [vmem:[#allocation7 + $0xd8] sm:$0xff]
        %v1139 = vld [vmem:[#allocation7 + $0xe0] sm:$0xff]
        %v1140 = vld [vmem:[#allocation7 + $0xe8] sm:$0xff]
        %v1141 = vld [vmem:[#allocation7 + $0xf0] sm:$0xff]
        %v1142 = vld [vmem:[#allocation7 + $0xf8] sm:$0xff]
        %v1143 = vld [vmem:[#allocation7 + $0x100] sm:$0xff]
        %v1144 = vld [vmem:[#allocation7 + $0x108] sm:$0xff]
        %v1145 = vld [vmem:[#allocation7 + $0x110] sm:$0xff]
        %v1146 = vld [vmem:[#allocation7 + $0x118] sm:$0xff]
        %v1147 = vld [vmem:[#allocation7 + $0x120] sm:$0xff]
        %v1148 = vld [vmem:[#allocation7 + $0x128] sm:$0xff]
        %v1149 = vld [vmem:[#allocation7 + $0x130] sm:$0xff]
        %v1150 = vld [vmem:[#allocation7 + $0x138] sm:$0xff]
        %v1151 = vld [vmem:[#allocation7 + $0x140] sm:$0xff]
        %v1152 = vld [vmem:[#allocation7 + $0x148] sm:$0xff]
        %v1153 = vld [vmem:[#allocation7 + $0x150] sm:$0xff]
        %v1154 = vld [vmem:[#allocation7 + $0x158] sm:$0xff]
        %v1155 = vld [vmem:[#allocation7 + $0x160] sm:$0xff]
        %v1156 = vld [vmem:[#allocation7 + $0x168] sm:$0xff]
        %v1157 = vld [vmem:[#allocation7 + $0x170] sm:$0xff]
        %v1158 = vld [vmem:[#allocation7 + $0x178] sm:$0xff]
        %v1223 = vunpack.c.l.b16 %v1047
        %v1224 = vunpack.c.h.b16 %v1047
        %v1225 = vunpack.c.l.b16 %v1048
        %v1226 = vunpack.c.l.b16 %v1049
        %v1227 = vunpack.c.h.b16 %v1049
        %v1228 = vunpack.c.l.b16 %v1050
        %v1229 = vunpack.c.l.b16 %v1051
        %v1230 = vunpack.c.h.b16 %v1051
        %v1231 = vunpack.c.l.b16 %v1052
        %v1232 = vunpack.c.l.b16 %v1053
        %v1233 = vunpack.c.h.b16 %v1053
        %v1234 = vunpack.c.l.b16 %v1054
        %v1235 = vunpack.c.l.b16 %v1055
        %v1236 = vunpack.c.h.b16 %v1055
        %v1237 = vunpack.c.l.b16 %v1056
        %v1238 = vunpack.c.l.b16 %v1057
        %v1239 = vunpack.c.h.b16 %v1057
        %v1240 = vunpack.c.l.b16 %v1058
        %v1241 = vunpack.c.l.b16 %v1059
        %v1242 = vunpack.c.h.b16 %v1059
        %v1243 = vunpack.c.l.b16 %v1060
        %v1244 = vunpack.c.l.b16 %v1061
        %v1245 = vunpack.c.h.b16 %v1061
        %v1246 = vunpack.c.l.b16 %v1062
        %v1247 = vunpack.c.l.b16 %v1063
        %v1248 = vunpack.c.h.b16 %v1063
        %v1249 = vunpack.c.l.b16 %v1064
        %v1250 = vunpack.c.l.b16 %v1065
        %v1251 = vunpack.c.h.b16 %v1065
        %v1252 = vunpack.c.l.b16 %v1066
        %v1253 = vunpack.c.l.b16 %v1067
        %v1254 = vunpack.c.h.b16 %v1067
        %v1255 = vunpack.c.l.b16 %v1068
        %v1256 = vunpack.c.l.b16 %v1069
        %v1257 = vunpack.c.h.b16 %v1069
        %v1258 = vunpack.c.l.b16 %v1070
        %v1259 = vunpack.c.l.b16 %v1071
        %v1260 = vunpack.c.h.b16 %v1071
        %v1261 = vunpack.c.l.b16 %v1072
        %v1262 = vunpack.c.l.b16 %v1073
        %v1263 = vunpack.c.h.b16 %v1073
        %v1264 = vunpack.c.l.b16 %v1074
        %v1265 = vunpack.c.l.b16 %v1075
        %v1266 = vunpack.c.h.b16 %v1075
        %v1267 = vunpack.c.l.b16 %v1076
        %v1268 = vunpack.c.l.b16 %v1077
        %v1269 = vunpack.c.h.b16 %v1077
        %v1270 = vunpack.c.l.b16 %v1078
        %v1271 = vunpack.c.l.b16 %v1079
        %v1272 = vunpack.c.h.b16 %v1079
        %v1273 = vunpack.c.l.b16 %v1080
        %v1274 = vunpack.c.l.b16 %v1081
        %v1275 = vunpack.c.h.b16 %v1081
        %v1276 = vunpack.c.l.b16 %v1082
        %v1277 = vunpack.c.l.b16 %v1083
        %v1278 = vunpack.c.h.b16 %v1083
        %v1279 = vunpack.c.l.b16 %v1084
        %v1280 = vunpack.c.l.b16 %v1085
        %v1281 = vunpack.c.h.b16 %v1085
        %v1282 = vunpack.c.l.b16 %v1086
        %v1283 = vunpack.c.l.b16 %v1087
        %v1284 = vunpack.c.h.b16 %v1087
        %v1285 = vunpack.c.l.b16 %v1088
        %v1286 = vunpack.c.l.b16 %v1089
        %v1287 = vunpack.c.h.b16 %v1089
        %v1288 = vunpack.c.l.b16 %v1090
        %v1289 = vunpack.c.l.b16 %v1091
        %v1290 = vunpack.c.h.b16 %v1091
        %v1291 = vunpack.c.l.b16 %v1092
        %v1292 = vunpack.c.l.b16 %v1093
        %v1293 = vunpack.c.h.b16 %v1093
        %v1294 = vunpack.c.l.b16 %v1094
        %v1295 = vunpack.c.l.b16 %v1095
        %v1296 = vunpack.c.h.b16 %v1095
        %v1297 = vunpack.c.l.b16 %v1096
        %v1298 = vunpack.c.l.b16 %v1097
        %v1299 = vunpack.c.h.b16 %v1097
        %v1300 = vunpack.c.l.b16 %v1098
        %v1301 = vunpack.c.l.b16 %v1099
        %v1302 = vunpack.c.h.b16 %v1099
        %v1303 = vunpack.c.l.b16 %v1100
        %v1304 = vunpack.c.l.b16 %v1101
        %v1305 = vunpack.c.h.b16 %v1101
        %v1306 = vunpack.c.l.b16 %v1102
        %v1307 = vunpack.c.l.b16 %v1103
        %v1308 = vunpack.c.h.b16 %v1103
        %v1309 = vunpack.c.l.b16 %v1104
        %v1310 = vunpack.c.l.b16 %v1105
        %v1311 = vunpack.c.h.b16 %v1105
        %v1312 = vunpack.c.l.b16 %v1106
        %v1313 = vunpack.c.l.b16 %v1107
        %v1314 = vunpack.c.h.b16 %v1107
        %v1315 = vunpack.c.l.b16 %v1108
        %v1316 = vunpack.c.l.b16 %v1109
        %v1317 = vunpack.c.h.b16 %v1109
        %v1318 = vunpack.c.l.b16 %v1110
        %v1319 = vpack.c.b16 %v1226, %v1223
        %v1320 = vpack.c.b16 %v1227, %v1224
        %v1321 = vpack.c.b16 %v1228, %v1225
        %v1322 = vpack.c.b16 %v1232, %v1229
        %v1323 = vpack.c.b16 %v1233, %v1230
        %v1324 = vpack.c.b16 %v1234, %v1231
        %v1325 = vpack.c.b16 %v1238, %v1235
        %v1326 = vpack.c.b16 %v1239, %v1236
        %v1327 = vpack.c.b16 %v1240, %v1237
        %v1328 = vpack.c.b16 %v1244, %v1241
        %v1329 = vpack.c.b16 %v1245, %v1242
        %v1330 = vpack.c.b16 %v1246, %v1243
        %v1331 = vpack.c.b16 %v1250, %v1247
        %v1332 = vpack.c.b16 %v1251, %v1248
        %v1333 = vpack.c.b16 %v1252, %v1249
        %v1334 = vpack.c.b16 %v1256, %v1253
        %v1335 = vpack.c.b16 %v1257, %v1254
        %v1336 = vpack.c.b16 %v1258, %v1255
        %v1337 = vpack.c.b16 %v1262, %v1259
        %v1338 = vpack.c.b16 %v1263, %v1260
        %v1339 = vpack.c.b16 %v1264, %v1261
        %v1340 = vpack.c.b16 %v1268, %v1265
        %v1341 = vpack.c.b16 %v1269, %v1266
        %v1342 = vpack.c.b16 %v1270, %v1267
        %v1343 = vpack.c.b16 %v1274, %v1271
        %v1344 = vpack.c.b16 %v1275, %v1272
        %v1345 = vpack.c.b16 %v1276, %v1273
        %v1346 = vpack.c.b16 %v1280, %v1277
        %v1347 = vpack.c.b16 %v1281, %v1278
        %v1348 = vpack.c.b16 %v1282, %v1279
        %v1349 = vpack.c.b16 %v1286, %v1283
        %v1350 = vpack.c.b16 %v1287, %v1284
        %v1351 = vpack.c.b16 %v1288, %v1285
        %v1352 = vpack.c.b16 %v1292, %v1289
        %v1353 = vpack.c.b16 %v1293, %v1290
        %v1354 = vpack.c.b16 %v1294, %v1291
        %v1355 = vpack.c.b16 %v1298, %v1295
        %v1356 = vpack.c.b16 %v1299, %v1296
        %v1357 = vpack.c.b16 %v1300, %v1297
        %v1358 = vpack.c.b16 %v1304, %v1301
        %v1359 = vpack.c.b16 %v1305, %v1302
        %v1360 = vpack.c.b16 %v1306, %v1303
        %v1361 = vpack.c.b16 %v1310, %v1307
        %v1362 = vpack.c.b16 %v1311, %v1308
        %v1363 = vpack.c.b16 %v1312, %v1309
        %v1364 = vpack.c.b16 %v1316, %v1313
        %v1365 = vpack.c.b16 %v1317, %v1314
        %v1366 = vpack.c.b16 %v1318, %v1315
        %v1463 = vunpack.c.l.b16 %v1111
        %v1464 = vunpack.c.h.b16 %v1111
        %v1465 = vunpack.c.l.b16 %v1112
        %v1466 = vunpack.c.h.b16 %v1112
        %v1467 = vunpack.c.l.b16 %v1113
        %v1468 = vunpack.c.h.b16 %v1113
        %v1469 = vunpack.c.l.b16 %v1114
        %v1470 = vunpack.c.h.b16 %v1114
        %v1471 = vunpack.c.l.b16 %v1115
        %v1472 = vunpack.c.h.b16 %v1115
        %v1473 = vunpack.c.l.b16 %v1116
        %v1474 = vunpack.c.h.b16 %v1116
        %v1475 = vunpack.c.l.b16 %v1117
        %v1476 = vunpack.c.h.b16 %v1117
        %v1477 = vunpack.c.l.b16 %v1118
        %v1478 = vunpack.c.h.b16 %v1118
        %v1479 = vunpack.c.l.b16 %v1119
        %v1480 = vunpack.c.h.b16 %v1119
        %v1481 = vunpack.c.l.b16 %v1120
        %v1482 = vunpack.c.h.b16 %v1120
        %v1483 = vunpack.c.l.b16 %v1121
        %v1484 = vunpack.c.h.b16 %v1121
        %v1485 = vunpack.c.l.b16 %v1122
        %v1486 = vunpack.c.h.b16 %v1122
        %v1487 = vunpack.c.l.b16 %v1123
        %v1488 = vunpack.c.h.b16 %v1123
        %v1489 = vunpack.c.l.b16 %v1124
        %v1490 = vunpack.c.h.b16 %v1124
        %v1491 = vunpack.c.l.b16 %v1125
        %v1492 = vunpack.c.h.b16 %v1125
        %v1493 = vunpack.c.l.b16 %v1126
        %v1494 = vunpack.c.h.b16 %v1126
        %v1495 = vunpack.c.l.b16 %v1127
        %v1496 = vunpack.c.h.b16 %v1127
        %v1497 = vunpack.c.l.b16 %v1128
        %v1498 = vunpack.c.h.b16 %v1128
        %v1499 = vunpack.c.l.b16 %v1129
        %v1500 = vunpack.c.h.b16 %v1129
        %v1501 = vunpack.c.l.b16 %v1130
        %v1502 = vunpack.c.h.b16 %v1130
        %v1503 = vunpack.c.l.b16 %v1131
        %v1504 = vunpack.c.h.b16 %v1131
        %v1505 = vunpack.c.l.b16 %v1132
        %v1506 = vunpack.c.h.b16 %v1132
        %v1507 = vunpack.c.l.b16 %v1133
        %v1508 = vunpack.c.h.b16 %v1133
        %v1509 = vunpack.c.l.b16 %v1134
        %v1510 = vunpack.c.h.b16 %v1134
        %v1511 = vunpack.c.l.b16 %v1135
        %v1512 = vunpack.c.h.b16 %v1135
        %v1513 = vunpack.c.l.b16 %v1136
        %v1514 = vunpack.c.h.b16 %v1136
        %v1515 = vunpack.c.l.b16 %v1137
        %v1516 = vunpack.c.h.b16 %v1137
        %v1517 = vunpack.c.l.b16 %v1138
        %v1518 = vunpack.c.h.b16 %v1138
        %v1519 = vunpack.c.l.b16 %v1139
        %v1520 = vunpack.c.h.b16 %v1139
        %v1521 = vunpack.c.l.b16 %v1140
        %v1522 = vunpack.c.h.b16 %v1140
        %v1523 = vunpack.c.l.b16 %v1141
        %v1524 = vunpack.c.h.b16 %v1141
        %v1525 = vunpack.c.l.b16 %v1142
        %v1526 = vunpack.c.h.b16 %v1142
        %v1527 = vunpack.c.l.b16 %v1143
        %v1528 = vunpack.c.h.b16 %v1143
        %v1529 = vunpack.c.l.b16 %v1144
        %v1530 = vunpack.c.h.b16 %v1144
        %v1531 = vunpack.c.l.b16 %v1145
        %v1532 = vunpack.c.h.b16 %v1145
        %v1533 = vunpack.c.l.b16 %v1146
        %v1534 = vunpack.c.h.b16 %v1146
        %v1535 = vunpack.c.l.b16 %v1147
        %v1536 = vunpack.c.h.b16 %v1147
        %v1537 = vunpack.c.l.b16 %v1148
        %v1538 = vunpack.c.h.b16 %v1148
        %v1539 = vunpack.c.l.b16 %v1149
        %v1540 = vunpack.c.h.b16 %v1149
        %v1541 = vunpack.c.l.b16 %v1150
        %v1542 = vunpack.c.h.b16 %v1150
        %v1543 = vunpack.c.l.b16 %v1151
        %v1544 = vunpack.c.h.b16 %v1151
        %v1545 = vunpack.c.l.b16 %v1152
        %v1546 = vunpack.c.h.b16 %v1152
        %v1547 = vunpack.c.l.b16 %v1153
        %v1548 = vunpack.c.h.b16 %v1153
        %v1549 = vunpack.c.l.b16 %v1154
        %v1550 = vunpack.c.h.b16 %v1154
        %v1551 = vunpack.c.l.b16 %v1155
        %v1552 = vunpack.c.h.b16 %v1155
        %v1553 = vunpack.c.l.b16 %v1156
        %v1554 = vunpack.c.h.b16 %v1156
        %v1555 = vunpack.c.l.b16 %v1157
        %v1556 = vunpack.c.h.b16 %v1157
        %v1557 = vunpack.c.l.b16 %v1158
        %v1558 = vunpack.c.h.b16 %v1158
        %v1559 = vpack.c.b16 %v1465, %v1463
        %v1560 = vpack.c.b16 %v1466, %v1464
        %v1561 = vpack.c.b16 %v1469, %v1467
        %v1562 = vpack.c.b16 %v1470, %v1468
        %v1563 = vpack.c.b16 %v1473, %v1471
        %v1564 = vpack.c.b16 %v1474, %v1472
        %v1565 = vpack.c.b16 %v1477, %v1475
        %v1566 = vpack.c.b16 %v1478, %v1476
        %v1567 = vpack.c.b16 %v1481, %v1479
        %v1568 = vpack.c.b16 %v1482, %v1480
        %v1569 = vpack.c.b16 %v1485, %v1483
        %v1570 = vpack.c.b16 %v1486, %v1484
        %v1571 = vpack.c.b16 %v1489, %v1487
        %v1572 = vpack.c.b16 %v1490, %v1488
        %v1573 = vpack.c.b16 %v1493, %v1491
        %v1574 = vpack.c.b16 %v1494, %v1492
        %v1575 = vpack.c.b16 %v1497, %v1495
        %v1576 = vpack.c.b16 %v1498, %v1496
        %v1577 = vpack.c.b16 %v1501, %v1499
        %v1578 = vpack.c.b16 %v1502, %v1500
        %v1579 = vpack.c.b16 %v1505, %v1503
        %v1580 = vpack.c.b16 %v1506, %v1504
        %v1581 = vpack.c.b16 %v1509, %v1507
        %v1582 = vpack.c.b16 %v1510, %v1508
        %v1583 = vpack.c.b16 %v1513, %v1511
        %v1584 = vpack.c.b16 %v1514, %v1512
        %v1585 = vpack.c.b16 %v1517, %v1515
        %v1586 = vpack.c.b16 %v1518, %v1516
        %v1587 = vpack.c.b16 %v1521, %v1519
        %v1588 = vpack.c.b16 %v1522, %v1520
        %v1589 = vpack.c.b16 %v1525, %v1523
        %v1590 = vpack.c.b16 %v1526, %v1524
        %v1591 = vpack.c.b16 %v1529, %v1527
        %v1592 = vpack.c.b16 %v1530, %v1528
        %v1593 = vpack.c.b16 %v1533, %v1531
        %v1594 = vpack.c.b16 %v1534, %v1532
        %v1595 = vpack.c.b16 %v1537, %v1535
        %v1596 = vpack.c.b16 %v1538, %v1536
        %v1597 = vpack.c.b16 %v1541, %v1539
        %v1598 = vpack.c.b16 %v1542, %v1540
        %v1599 = vpack.c.b16 %v1545, %v1543
        %v1600 = vpack.c.b16 %v1546, %v1544
        %v1601 = vpack.c.b16 %v1549, %v1547
        %v1602 = vpack.c.b16 %v1550, %v1548
        %v1603 = vpack.c.b16 %v1553, %v1551
        %v1604 = vpack.c.b16 %v1554, %v1552
        %v1605 = vpack.c.b16 %v1557, %v1555
        %v1606 = vpack.c.b16 %v1558, %v1556
        %1655 = vmatprep.subr.bf16.mxu0 %v1574
        %1656 = vmatpush1.bf16.msra.mxu0 %v1573
        %1657 = vmatprep.subr.bf16.mxu0 %v1572
        %1658 = vmatpush1.bf16.msra.mxu0 %v1571
        %1659 = vmatprep.subr.bf16.mxu0 %v1570
        %1660 = vmatpush1.bf16.msra.mxu0 %v1569
        %1661 = vmatprep.subr.bf16.mxu0 %v1568
        %1662 = vmatpush1.bf16.msra.mxu0 %v1567
        %1663 = vmatprep.subr.bf16.mxu0 %v1566
        %1664 = vmatpush1.bf16.msra.mxu0 %v1565
        %1665 = vmatprep.subr.bf16.mxu0 %v1564
        %1666 = vmatpush1.bf16.msra.mxu0 %v1563
        %1667 = vmatprep.subr.bf16.mxu0 %v1562
        %1668 = vmatpush1.bf16.msra.mxu0 %v1561
        %1669 = vmatprep.subr.bf16.mxu0 %v1560
        %1670 = vmatpush1.bf16.msra.mxu0 %v1559
        %1671 = vmatprep.subr.bf16.mxu0 %v1590
        %1672 = vmatpush2.bf16.msra.mxu0 %v1589
        %1673 = vmatprep.subr.bf16.mxu0 %v1588
        %1674 = vmatpush2.bf16.msra.mxu0 %v1587
        %1675 = vmatprep.subr.bf16.mxu0 %v1586
        %1676 = vmatpush2.bf16.msra.mxu0 %v1585
        %1677 = vmatprep.subr.bf16.mxu0 %v1584
        %1678 = vmatpush2.bf16.msra.mxu0 %v1583
        %1679 = vmatprep.subr.bf16.mxu0 %v1582
        %1680 = vmatpush2.bf16.msra.mxu0 %v1581
        %1681 = vmatprep.subr.bf16.mxu0 %v1580
        %1682 = vmatpush2.bf16.msra.mxu0 %v1579
        %1683 = vmatprep.subr.bf16.mxu0 %v1578
        %1684 = vmatpush2.bf16.msra.mxu0 %v1577
        %1685 = vmatprep.subr.bf16.mxu0 %v1576
        %1686 = vmatpush2.bf16.msra.mxu0 %v1575
        %1687 = vmatprep.mubr.bf16.mxu0 %v1320
        %1688 = vmatmul.mubr.bf16.gmra.mxu0 %v1319
        %v1689 = vpop.f32.mrf.mxu0
        %v1690 = vadd.f32 0.0, %v1689
        %v1691 = vpop.f32.mrf.mxu0
        %v1692 = vadd.f32 0.0, %v1691
        %v1693 = vpop.f32.mrf.mxu0
        %v1694 = vadd.f32 0.0, %v1693
        %v1695 = vpop.f32.mrf.mxu0
        %v1696 = vadd.f32 0.0, %v1695
        %1697 = vmatprep.mubr.bf16.mxu0 %v1323
        %1698 = vmatmul.mubr.bf16.gmra.mxu0 %v1322
        %v1699 = vpop.f32.mrf.mxu0
        %v1700 = vadd.f32 0.0, %v1699
        %v1701 = vpop.f32.mrf.mxu0
        %v1702 = vadd.f32 0.0, %v1701
        %v1703 = vpop.f32.mrf.mxu0
        %v1704 = vadd.f32 0.0, %v1703
        %v1705 = vpop.f32.mrf.mxu0
        %v1706 = vadd.f32 0.0, %v1705
        %1707 = vmatprep.mubr.bf16.mxu0 %v1326
        %1708 = vmatmul.mubr.bf16.gmra.mxu0 %v1325
        %v1709 = vpop.f32.mrf.mxu0
        %v1710 = vadd.f32 0.0, %v1709
        %v1711 = vpop.f32.mrf.mxu0
        %v1712 = vadd.f32 0.0, %v1711
        %v1713 = vpop.f32.mrf.mxu0
        %v1714 = vadd.f32 0.0, %v1713
        %v1715 = vpop.f32.mrf.mxu0
        %v1716 = vadd.f32 0.0, %v1715
        %1717 = vmatprep.mubr.bf16.mxu0 %v1329
        %1718 = vmatmul.mubr.bf16.gmra.mxu0 %v1328
        %v1719 = vpop.f32.mrf.mxu0
        %v1720 = vadd.f32 0.0, %v1719
        %v1721 = vpop.f32.mrf.mxu0
        %v1722 = vadd.f32 0.0, %v1721
        %v1723 = vpop.f32.mrf.mxu0
        %v1724 = vadd.f32 0.0, %v1723
        %v1725 = vpop.f32.mrf.mxu0
        %v1726 = vadd.f32 0.0, %v1725
        %1727 = vmatprep.mubr.bf16.mxu0 %v1332
        %1728 = vmatmul.mubr.bf16.gmra.mxu0 %v1331
        %v1729 = vpop.f32.mrf.mxu0
        %v1730 = vadd.f32 0.0, %v1729
        %v1731 = vpop.f32.mrf.mxu0
        %v1732 = vadd.f32 0.0, %v1731
        %v1733 = vpop.f32.mrf.mxu0
        %v1734 = vadd.f32 0.0, %v1733
        %v1735 = vpop.f32.mrf.mxu0
        %v1736 = vadd.f32 0.0, %v1735
        %1737 = vmatprep.mubr.bf16.mxu0 %v1335
        %1738 = vmatmul.mubr.bf16.gmra.mxu0 %v1334
        %v1739 = vpop.f32.mrf.mxu0
        %v1740 = vadd.f32 0.0, %v1739
        %v1741 = vpop.f32.mrf.mxu0
        %v1742 = vadd.f32 0.0, %v1741
        %v1743 = vpop.f32.mrf.mxu0
        %v1744 = vadd.f32 0.0, %v1743
        %v1745 = vpop.f32.mrf.mxu0
        %v1746 = vadd.f32 0.0, %v1745
        %1747 = vmatprep.mubr.bf16.mxu0 %v1338
        %1748 = vmatmul.mubr.bf16.gmra.mxu0 %v1337
        %v1749 = vpop.f32.mrf.mxu0
        %v1750 = vadd.f32 0.0, %v1749
        %v1751 = vpop.f32.mrf.mxu0
        %v1752 = vadd.f32 0.0, %v1751
        %v1753 = vpop.f32.mrf.mxu0
        %v1754 = vadd.f32 0.0, %v1753
        %v1755 = vpop.f32.mrf.mxu0
        %v1756 = vadd.f32 0.0, %v1755
        %1757 = vmatprep.mubr.bf16.mxu0 %v1341
        %1758 = vmatmul.mubr.bf16.gmra.mxu0 %v1340
        %v1759 = vpop.f32.mrf.mxu0
        %v1760 = vadd.f32 0.0, %v1759
        %v1761 = vpop.f32.mrf.mxu0
        %v1762 = vadd.f32 0.0, %v1761
        %v1763 = vpop.f32.mrf.mxu0
        %v1764 = vadd.f32 0.0, %v1763
        %v1765 = vpop.f32.mrf.mxu0
        %v1766 = vadd.f32 0.0, %v1765
        %1767 = vmatprep.mubr.bf16.mxu0 %v1344
        %1768 = vmatmul.mubr.bf16.gmra.mxu0 %v1343
        %v1769 = vpop.f32.mrf.mxu0
        %v1770 = vadd.f32 0.0, %v1769
        %v1771 = vpop.f32.mrf.mxu0
        %v1772 = vadd.f32 0.0, %v1771
        %v1773 = vpop.f32.mrf.mxu0
        %v1774 = vadd.f32 0.0, %v1773
        %v1775 = vpop.f32.mrf.mxu0
        %v1776 = vadd.f32 0.0, %v1775
        %1777 = vmatprep.mubr.bf16.mxu0 %v1347
        %1778 = vmatmul.mubr.bf16.gmra.mxu0 %v1346
        %v1779 = vpop.f32.mrf.mxu0
        %v1780 = vadd.f32 0.0, %v1779
        %v1781 = vpop.f32.mrf.mxu0
        %v1782 = vadd.f32 0.0, %v1781
        %v1783 = vpop.f32.mrf.mxu0
        %v1784 = vadd.f32 0.0, %v1783
        %v1785 = vpop.f32.mrf.mxu0
        %v1786 = vadd.f32 0.0, %v1785
        %1787 = vmatprep.mubr.bf16.mxu0 %v1350
        %1788 = vmatmul.mubr.bf16.gmra.mxu0 %v1349
        %v1789 = vpop.f32.mrf.mxu0
        %v1790 = vadd.f32 0.0, %v1789
        %v1791 = vpop.f32.mrf.mxu0
        %v1792 = vadd.f32 0.0, %v1791
        %v1793 = vpop.f32.mrf.mxu0
        %v1794 = vadd.f32 0.0, %v1793
        %v1795 = vpop.f32.mrf.mxu0
        %v1796 = vadd.f32 0.0, %v1795
        %1797 = vmatprep.mubr.bf16.mxu0 %v1353
        %1798 = vmatmul.mubr.bf16.gmra.mxu0 %v1352
        %v1799 = vpop.f32.mrf.mxu0
        %v1800 = vadd.f32 0.0, %v1799
        %v1801 = vpop.f32.mrf.mxu0
        %v1802 = vadd.f32 0.0, %v1801
        %v1803 = vpop.f32.mrf.mxu0
        %v1804 = vadd.f32 0.0, %v1803
        %v1805 = vpop.f32.mrf.mxu0
        %v1806 = vadd.f32 0.0, %v1805
        %1807 = vmatprep.mubr.bf16.mxu0 %v1356
        %1808 = vmatmul.mubr.bf16.gmra.mxu0 %v1355
        %v1809 = vpop.f32.mrf.mxu0
        %v1810 = vadd.f32 0.0, %v1809
        %v1811 = vpop.f32.mrf.mxu0
        %v1812 = vadd.f32 0.0, %v1811
        %v1813 = vpop.f32.mrf.mxu0
        %v1814 = vadd.f32 0.0, %v1813
        %v1815 = vpop.f32.mrf.mxu0
        %v1816 = vadd.f32 0.0, %v1815
        %1817 = vmatprep.mubr.bf16.mxu0 %v1359
        %1818 = vmatmul.mubr.bf16.gmra.mxu0 %v1358
        %v1819 = vpop.f32.mrf.mxu0
        %v1820 = vadd.f32 0.0, %v1819
        %v1821 = vpop.f32.mrf.mxu0
        %v1822 = vadd.f32 0.0, %v1821
        %v1823 = vpop.f32.mrf.mxu0
        %v1824 = vadd.f32 0.0, %v1823
        %v1825 = vpop.f32.mrf.mxu0
        %v1826 = vadd.f32 0.0, %v1825
        %1827 = vmatprep.mubr.bf16.mxu0 %v1362
        %1828 = vmatmul.mubr.bf16.gmra.mxu0 %v1361
        %v1829 = vpop.f32.mrf.mxu0
        %v1830 = vadd.f32 0.0, %v1829
        %v1831 = vpop.f32.mrf.mxu0
        %v1832 = vadd.f32 0.0, %v1831
        %v1833 = vpop.f32.mrf.mxu0
        %v1834 = vadd.f32 0.0, %v1833
        %v1835 = vpop.f32.mrf.mxu0
        %v1836 = vadd.f32 0.0, %v1835
        %1837 = vmatprep.mubr.bf16.mxu0 %v1365
        %1838 = vmatmul.mubr.bf16.gmra.mxu0 %v1364
        %v1839 = vpop.f32.mrf.mxu0
        %v1840 = vadd.f32 0.0, %v1839
        %v1841 = vpop.f32.mrf.mxu0
        %v1842 = vadd.f32 0.0, %v1841
        %v1843 = vpop.f32.mrf.mxu0
        %v1844 = vadd.f32 0.0, %v1843
        %v1845 = vpop.f32.mrf.mxu0
        %v1846 = vadd.f32 0.0, %v1845
        %1847 = vdwg.mxu0
        %1848 = vmatprep.subr.bf16.mxu0 %v1606
        %1849 = vmatpush1.bf16.msra.mxu0 %v1605
        %1850 = vmatprep.subr.bf16.mxu0 %v1604
        %1851 = vmatpush1.bf16.msra.mxu0 %v1603
        %1852 = vmatprep.subr.bf16.mxu0 %v1602
        %1853 = vmatpush1.bf16.msra.mxu0 %v1601
        %1854 = vmatprep.subr.bf16.mxu0 %v1600
        %1855 = vmatpush1.bf16.msra.mxu0 %v1599
        %1856 = vmatprep.subr.bf16.mxu0 %v1598
        %1857 = vmatpush1.bf16.msra.mxu0 %v1597
        %1858 = vmatprep.subr.bf16.mxu0 %v1596
        %1859 = vmatpush1.bf16.msra.mxu0 %v1595
        %1860 = vmatprep.subr.bf16.mxu0 %v1594
        %1861 = vmatpush1.bf16.msra.mxu0 %v1593
        %1862 = vmatprep.subr.bf16.mxu0 %v1592
        %1863 = vmatpush1.bf16.msra.mxu0 %v1591
        %1864 = vmatprep.subr.bf16.mxu0 0
        %1865 = vmatpush2.bf16.msra.mxu0 0
        %1866 = vmatprep.subr.bf16.mxu0 0
        %1867 = vmatpush2.bf16.msra.mxu0 0
        %1868 = vmatprep.subr.bf16.mxu0 0
        %1869 = vmatpush2.bf16.msra.mxu0 0
        %1870 = vmatprep.subr.bf16.mxu0 0
        %1871 = vmatpush2.bf16.msra.mxu0 0
        %1872 = vmatprep.subr.bf16.mxu0 0
        %1873 = vmatpush2.bf16.msra.mxu0 0
        %1874 = vmatprep.subr.bf16.mxu0 0
        %1875 = vmatpush2.bf16.msra.mxu0 0
        %1876 = vmatprep.subr.bf16.mxu0 0
        %1877 = vmatpush2.bf16.msra.mxu0 0
        %1878 = vmatprep.subr.bf16.mxu0 0
        %1879 = vmatpush2.bf16.msra.mxu0 0
        %1880 = vmatprep.mubr.bf16.mxu0 0
        %1881 = vmatmul.mubr.bf16.gmra.mxu0 %v1321
        %v1882 = vpop.f32.mrf.mxu0
        %v1883 = vadd.f32 %v1690, %v1882
        %v1884 = vpop.f32.mrf.mxu0
        %v1885 = vadd.f32 %v1692, %v1884
        %v1886 = vpop.f32.mrf.mxu0
        %v1887 = vadd.f32 %v1694, %v1886
        %v1888 = vpop.f32.mrf.mxu0
        %v1889 = vadd.f32 %v1696, %v1888
        %1890 = vmatprep.mubr.bf16.mxu0 0
        %1891 = vmatmul.mubr.bf16.gmra.mxu0 %v1324
        %v1892 = vpop.f32.mrf.mxu0
        %v1893 = vadd.f32 %v1700, %v1892
        %v1894 = vpop.f32.mrf.mxu0
        %v1895 = vadd.f32 %v1702, %v1894
        %v1896 = vpop.f32.mrf.mxu0
        %v1897 = vadd.f32 %v1704, %v1896
        %v1898 = vpop.f32.mrf.mxu0
        %v1899 = vadd.f32 %v1706, %v1898
        %1900 = vmatprep.mubr.bf16.mxu0 0
        %1901 = vmatmul.mubr.bf16.gmra.mxu0 %v1327
        %v1902 = vpop.f32.mrf.mxu0
        %v1903 = vadd.f32 %v1710, %v1902
        %v1904 = vpop.f32.mrf.mxu0
        %v1905 = vadd.f32 %v1712, %v1904
        %v1906 = vpop.f32.mrf.mxu0
        %v1907 = vadd.f32 %v1714, %v1906
        %v1908 = vpop.f32.mrf.mxu0
        %v1909 = vadd.f32 %v1716, %v1908
        %1910 = vmatprep.mubr.bf16.mxu0 0
        %1911 = vmatmul.mubr.bf16.gmra.mxu0 %v1330
        %v1912 = vpop.f32.mrf.mxu0
        %v1913 = vadd.f32 %v1720, %v1912
        %v1914 = vpop.f32.mrf.mxu0
        %v1915 = vadd.f32 %v1722, %v1914
        %v1916 = vpop.f32.mrf.mxu0
        %v1917 = vadd.f32 %v1724, %v1916
        %v1918 = vpop.f32.mrf.mxu0
        %v1919 = vadd.f32 %v1726, %v1918
        %1920 = vmatprep.mubr.bf16.mxu0 0
        %1921 = vmatmul.mubr.bf16.gmra.mxu0 %v1333
        %v1922 = vpop.f32.mrf.mxu0
        %v1923 = vadd.f32 %v1730, %v1922
        %v1924 = vpop.f32.mrf.mxu0
        %v1925 = vadd.f32 %v1732, %v1924
        %v1926 = vpop.f32.mrf.mxu0
        %v1927 = vadd.f32 %v1734, %v1926
        %v1928 = vpop.f32.mrf.mxu0
        %v1929 = vadd.f32 %v1736, %v1928
        %1930 = vmatprep.mubr.bf16.mxu0 0
        %1931 = vmatmul.mubr.bf16.gmra.mxu0 %v1336
        %v1932 = vpop.f32.mrf.mxu0
        %v1933 = vadd.f32 %v1740, %v1932
        %v1934 = vpop.f32.mrf.mxu0
        %v1935 = vadd.f32 %v1742, %v1934
        %v1936 = vpop.f32.mrf.mxu0
        %v1937 = vadd.f32 %v1744, %v1936
        %v1938 = vpop.f32.mrf.mxu0
        %v1939 = vadd.f32 %v1746, %v1938
        %1940 = vmatprep.mubr.bf16.mxu0 0
        %1941 = vmatmul.mubr.bf16.gmra.mxu0 %v1339
        %v1942 = vpop.f32.mrf.mxu0
        %v1943 = vadd.f32 %v1750, %v1942
        %v1944 = vpop.f32.mrf.mxu0
        %v1945 = vadd.f32 %v1752, %v1944
        %v1946 = vpop.f32.mrf.mxu0
        %v1947 = vadd.f32 %v1754, %v1946
        %v1948 = vpop.f32.mrf.mxu0
        %v1949 = vadd.f32 %v1756, %v1948
        %1950 = vmatprep.mubr.bf16.mxu0 0
        %1951 = vmatmul.mubr.bf16.gmra.mxu0 %v1342
        %v1952 = vpop.f32.mrf.mxu0
        %v1953 = vadd.f32 %v1760, %v1952
        %v1954 = vpop.f32.mrf.mxu0
        %v1955 = vadd.f32 %v1762, %v1954
        %v1956 = vpop.f32.mrf.mxu0
        %v1957 = vadd.f32 %v1764, %v1956
        %v1958 = vpop.f32.mrf.mxu0
        %v1959 = vadd.f32 %v1766, %v1958
        %1960 = vmatprep.mubr.bf16.mxu0 0
        %1961 = vmatmul.mubr.bf16.gmra.mxu0 %v1345
        %v1962 = vpop.f32.mrf.mxu0
        %v1963 = vadd.f32 %v1770, %v1962
        %v1964 = vpop.f32.mrf.mxu0
        %v1965 = vadd.f32 %v1772, %v1964
        %v1966 = vpop.f32.mrf.mxu0
        %v1967 = vadd.f32 %v1774, %v1966
        %v1968 = vpop.f32.mrf.mxu0
        %v1969 = vadd.f32 %v1776, %v1968
        %1970 = vmatprep.mubr.bf16.mxu0 0
        %1971 = vmatmul.mubr.bf16.gmra.mxu0 %v1348
        %v1972 = vpop.f32.mrf.mxu0
        %v1973 = vadd.f32 %v1780, %v1972
        %v1974 = vpop.f32.mrf.mxu0
        %v1975 = vadd.f32 %v1782, %v1974
        %v1976 = vpop.f32.mrf.mxu0
        %v1977 = vadd.f32 %v1784, %v1976
        %v1978 = vpop.f32.mrf.mxu0
        %v1979 = vadd.f32 %v1786, %v1978
        %1980 = vmatprep.mubr.bf16.mxu0 0
        %1981 = vmatmul.mubr.bf16.gmra.mxu0 %v1351
        %v1982 = vpop.f32.mrf.mxu0
        %v1983 = vadd.f32 %v1790, %v1982
        %v1984 = vpop.f32.mrf.mxu0
        %v1985 = vadd.f32 %v1792, %v1984
        %v1986 = vpop.f32.mrf.mxu0
        %v1987 = vadd.f32 %v1794, %v1986
        %v1988 = vpop.f32.mrf.mxu0
        %v1989 = vadd.f32 %v1796, %v1988
        %1990 = vmatprep.mubr.bf16.mxu0 0
        %1991 = vmatmul.mubr.bf16.gmra.mxu0 %v1354
        %v1992 = vpop.f32.mrf.mxu0
        %v1993 = vadd.f32 %v1800, %v1992
        %v1994 = vpop.f32.mrf.mxu0
        %v1995 = vadd.f32 %v1802, %v1994
        %v1996 = vpop.f32.mrf.mxu0
        %v1997 = vadd.f32 %v1804, %v1996
        %v1998 = vpop.f32.mrf.mxu0
        %v1999 = vadd.f32 %v1806, %v1998
        %2000 = vmatprep.mubr.bf16.mxu0 0
        %2001 = vmatmul.mubr.bf16.gmra.mxu0 %v1357
        %v2002 = vpop.f32.mrf.mxu0
        %v2003 = vadd.f32 %v1810, %v2002
        %v2004 = vpop.f32.mrf.mxu0
        %v2005 = vadd.f32 %v1812, %v2004
        %v2006 = vpop.f32.mrf.mxu0
        %v2007 = vadd.f32 %v1814, %v2006
        %v2008 = vpop.f32.mrf.mxu0
        %v2009 = vadd.f32 %v1816, %v2008
        %2010 = vmatprep.mubr.bf16.mxu0 0
        %2011 = vmatmul.mubr.bf16.gmra.mxu0 %v1360
        %v2012 = vpop.f32.mrf.mxu0
        %v2013 = vadd.f32 %v1820, %v2012
        %v2014 = vpop.f32.mrf.mxu0
        %v2015 = vadd.f32 %v1822, %v2014
        %v2016 = vpop.f32.mrf.mxu0
        %v2017 = vadd.f32 %v1824, %v2016
        %v2018 = vpop.f32.mrf.mxu0
        %v2019 = vadd.f32 %v1826, %v2018
        %2020 = vmatprep.mubr.bf16.mxu0 0
        %2021 = vmatmul.mubr.bf16.gmra.mxu0 %v1363
        %v2022 = vpop.f32.mrf.mxu0
        %v2023 = vadd.f32 %v1830, %v2022
        %v2024 = vpop.f32.mrf.mxu0
        %v2025 = vadd.f32 %v1832, %v2024
        %v2026 = vpop.f32.mrf.mxu0
        %v2027 = vadd.f32 %v1834, %v2026
        %v2028 = vpop.f32.mrf.mxu0
        %v2029 = vadd.f32 %v1836, %v2028
        %2030 = vmatprep.mubr.bf16.mxu0 0
        %2031 = vmatmul.mubr.bf16.gmra.mxu0 %v1366
        %v2032 = vpop.f32.mrf.mxu0
        %v2033 = vadd.f32 %v1840, %v2032
        %v2034 = vpop.f32.mrf.mxu0
        %v2035 = vadd.f32 %v1842, %v2034
        %v2036 = vpop.f32.mrf.mxu0
        %v2037 = vadd.f32 %v1844, %v2036
        %v2038 = vpop.f32.mrf.mxu0
        %v2039 = vadd.f32 %v1846, %v2038
        %2040 = vdwg.mxu0
        %2041 = vst [vmem:[#allocation3] sm:$0xff] %v1883
        %2042 = vst [vmem:[#allocation3 + $0x8] sm:$0xff] %v1885
        %2043 = vst [vmem:[#allocation3 + $0x10] sm:$0xff] %v1887
        %2044 = vst [vmem:[#allocation3 + $0x18] sm:$0xff] %v1889
        %2045 = vst [vmem:[#allocation3 + $0x20] sm:$0xff] %v1893
        %2046 = vst [vmem:[#allocation3 + $0x28] sm:$0xff] %v1895
        %2047 = vst [vmem:[#allocation3 + $0x30] sm:$0xff] %v1897
        %2048 = vst [vmem:[#allocation3 + $0x38] sm:$0xff] %v1899
        %2049 = vst [vmem:[#allocation3 + $0x40] sm:$0xff] %v1903
        %2050 = vst [vmem:[#allocation3 + $0x48] sm:$0xff] %v1905
        %2051 = vst [vmem:[#allocation3 + $0x50] sm:$0xff] %v1907
        %2052 = vst [vmem:[#allocation3 + $0x58] sm:$0xff] %v1909
        %2053 = vst [vmem:[#allocation3 + $0x60] sm:$0xff] %v1913
        %2054 = vst [vmem:[#allocation3 + $0x68] sm:$0xff] %v1915
        %2055 = vst [vmem:[#allocation3 + $0x70] sm:$0xff] %v1917
        %2056 = vst [vmem:[#allocation3 + $0x78] sm:$0xff] %v1919
        %2057 = vst [vmem:[#allocation3 + $0x80] sm:$0xff] %v1923
        %2058 = vst [vmem:[#allocation3 + $0x88] sm:$0xff] %v1925
        %2059 = vst [vmem:[#allocation3 + $0x90] sm:$0xff] %v1927
        %2060 = vst [vmem:[#allocation3 + $0x98] sm:$0xff] %v1929
        %2061 = vst [vmem:[#allocation3 + $0xa0] sm:$0xff] %v1933
        %2062 = vst [vmem:[#allocation3 + $0xa8] sm:$0xff] %v1935
        %2063 = vst [vmem:[#allocation3 + $0xb0] sm:$0xff] %v1937
        %2064 = vst [vmem:[#allocation3 + $0xb8] sm:$0xff] %v1939
        %2065 = vst [vmem:[#allocation3 + $0xc0] sm:$0xff] %v1943
        %2066 = vst [vmem:[#allocation3 + $0xc8] sm:$0xff] %v1945
        %2067 = vst [vmem:[#allocation3 + $0xd0] sm:$0xff] %v1947
        %2068 = vst [vmem:[#allocation3 + $0xd8] sm:$0xff] %v1949
        %2069 = vst [vmem:[#allocation3 + $0xe0] sm:$0xff] %v1953
        %2070 = vst [vmem:[#allocation3 + $0xe8] sm:$0xff] %v1955
        %2071 = vst [vmem:[#allocation3 + $0xf0] sm:$0xff] %v1957
        %2072 = vst [vmem:[#allocation3 + $0xf8] sm:$0xff] %v1959
        %2073 = vst [vmem:[#allocation3 + $0x100] sm:$0xff] %v1963
        %2074 = vst [vmem:[#allocation3 + $0x108] sm:$0xff] %v1965
        %2075 = vst [vmem:[#allocation3 + $0x110] sm:$0xff] %v1967
        %2076 = vst [vmem:[#allocation3 + $0x118] sm:$0xff] %v1969
        %2077 = vst [vmem:[#allocation3 + $0x120] sm:$0xff] %v1973
        %2078 = vst [vmem:[#allocation3 + $0x128] sm:$0xff] %v1975
        %2079 = vst [vmem:[#allocation3 + $0x130] sm:$0xff] %v1977
        %2080 = vst [vmem:[#allocation3 + $0x138] sm:$0xff] %v1979
        %2081 = vst [vmem:[#allocation3 + $0x140] sm:$0xff] %v1983
        %2082 = vst [vmem:[#allocation3 + $0x148] sm:$0xff] %v1985
        %2083 = vst [vmem:[#allocation3 + $0x150] sm:$0xff] %v1987
        %2084 = vst [vmem:[#allocation3 + $0x158] sm:$0xff] %v1989
        %2085 = vst [vmem:[#allocation3 + $0x160] sm:$0xff] %v1993
        %2086 = vst [vmem:[#allocation3 + $0x168] sm:$0xff] %v1995
        %2087 = vst [vmem:[#allocation3 + $0x170] sm:$0xff] %v1997
        %2088 = vst [vmem:[#allocation3 + $0x178] sm:$0xff] %v1999
        %2089 = vst [vmem:[#allocation3 + $0x180] sm:$0xff] %v2003
        %2090 = vst [vmem:[#allocation3 + $0x188] sm:$0xff] %v2005
        %2091 = vst [vmem:[#allocation3 + $0x190] sm:$0xff] %v2007
        %2092 = vst [vmem:[#allocation3 + $0x198] sm:$0xff] %v2009
        %2093 = vst [vmem:[#allocation3 + $0x1a0] sm:$0xff] %v2013
        %2094 = vst [vmem:[#allocation3 + $0x1a8] sm:$0xff] %v2015
        %2095 = vst [vmem:[#allocation3 + $0x1b0] sm:$0xff] %v2017
        %2096 = vst [vmem:[#allocation3 + $0x1b8] sm:$0xff] %v2019
        %2097 = vst [vmem:[#allocation3 + $0x1c0] sm:$0xff] %v2023
        %2098 = vst [vmem:[#allocation3 + $0x1c8] sm:$0xff] %v2025
        %2099 = vst [vmem:[#allocation3 + $0x1d0] sm:$0xff] %v2027
        %2100 = vst [vmem:[#allocation3 + $0x1d8] sm:$0xff] %v2029
        %2101 = vst [vmem:[#allocation3 + $0x1e0] sm:$0xff] %v2033
        %2102 = vst [vmem:[#allocation3 + $0x1e8] sm:$0xff] %v2035
        %2103 = vst [vmem:[#allocation3 + $0x1f0] sm:$0xff] %v2037
        %2104 = vst [vmem:[#allocation3 + $0x1f8] sm:$0xff] %v2039
        %v2105 = vld [vmem:[%s726] sm:$0xff]
        %v2106 = vld [vmem:[%s726 + $0x8] sm:$0xf]
        %v2107 = vld [vmem:[%s726 + $0xc] sm:$0xff]
        %v2108 = vld [vmem:[%s726 + $0x14] sm:$0xf]
        %v2109 = vld [vmem:[%s726 + $0x18] sm:$0xff]
        %v2110 = vld [vmem:[%s726 + $0x20] sm:$0xf]
        %v2111 = vld [vmem:[%s726 + $0x24] sm:$0xff]
        %v2112 = vld [vmem:[%s726 + $0x2c] sm:$0xf]
        %v2113 = vld [vmem:[%s726 + $0x30] sm:$0xff]
        %v2114 = vld [vmem:[%s726 + $0x38] sm:$0xf]
        %v2115 = vld [vmem:[%s726 + $0x3c] sm:$0xff]
        %v2116 = vld [vmem:[%s726 + $0x44] sm:$0xf]
        %v2117 = vld [vmem:[%s726 + $0x48] sm:$0xff]
        %v2118 = vld [vmem:[%s726 + $0x50] sm:$0xf]
        %v2119 = vld [vmem:[%s726 + $0x54] sm:$0xff]
        %v2120 = vld [vmem:[%s726 + $0x5c] sm:$0xf]
        %v2121 = vld [vmem:[%s726 + $0x60] sm:$0xff]
        %v2122 = vld [vmem:[%s726 + $0x68] sm:$0xf]
        %v2123 = vld [vmem:[%s726 + $0x6c] sm:$0xff]
        %v2124 = vld [vmem:[%s726 + $0x74] sm:$0xf]
        %v2125 = vld [vmem:[%s726 + $0x78] sm:$0xff]
        %v2126 = vld [vmem:[%s726 + $0x80] sm:$0xf]
        %v2127 = vld [vmem:[%s726 + $0x84] sm:$0xff]
        %v2128 = vld [vmem:[%s726 + $0x8c] sm:$0xf]
        %v2129 = vld [vmem:[%s726 + $0x90] sm:$0xff]
        %v2130 = vld [vmem:[%s726 + $0x98] sm:$0xf]
        %v2131 = vld [vmem:[%s726 + $0x9c] sm:$0xff]
        %v2132 = vld [vmem:[%s726 + $0xa4] sm:$0xf]
        %v2133 = vld [vmem:[%s726 + $0xa8] sm:$0xff]
        %v2134 = vld [vmem:[%s726 + $0xb0] sm:$0xf]
        %v2135 = vld [vmem:[%s726 + $0xb4] sm:$0xff]
        %v2136 = vld [vmem:[%s726 + $0xbc] sm:$0xf]
        %v2137 = vld [vmem:[%s726 + $0xc0] sm:$0xff]
        %v2138 = vld [vmem:[%s726 + $0xc8] sm:$0xf]
        %v2139 = vld [vmem:[%s726 + $0xcc] sm:$0xff]
        %v2140 = vld [vmem:[%s726 + $0xd4] sm:$0xf]
        %v2141 = vld [vmem:[%s726 + $0xd8] sm:$0xff]
        %v2142 = vld [vmem:[%s726 + $0xe0] sm:$0xf]
        %v2143 = vld [vmem:[%s726 + $0xe4] sm:$0xff]
        %v2144 = vld [vmem:[%s726 + $0xec] sm:$0xf]
        %v2145 = vld [vmem:[%s726 + $0xf0] sm:$0xff]
        %v2146 = vld [vmem:[%s726 + $0xf8] sm:$0xf]
        %v2147 = vld [vmem:[%s726 + $0xfc] sm:$0xff]
        %v2148 = vld [vmem:[%s726 + $0x104] sm:$0xf]
        %v2149 = vld [vmem:[%s726 + $0x108] sm:$0xff]
        %v2150 = vld [vmem:[%s726 + $0x110] sm:$0xf]
        %v2151 = vld [vmem:[%s726 + $0x114] sm:$0xff]
        %v2152 = vld [vmem:[%s726 + $0x11c] sm:$0xf]
        %v2153 = vld [vmem:[%s726 + $0x120] sm:$0xff]
        %v2154 = vld [vmem:[%s726 + $0x128] sm:$0xf]
        %v2155 = vld [vmem:[%s726 + $0x12c] sm:$0xff]
        %v2156 = vld [vmem:[%s726 + $0x134] sm:$0xf]
        %v2157 = vld [vmem:[%s726 + $0x138] sm:$0xff]
        %v2158 = vld [vmem:[%s726 + $0x140] sm:$0xf]
        %v2159 = vld [vmem:[%s726 + $0x144] sm:$0xff]
        %v2160 = vld [vmem:[%s726 + $0x14c] sm:$0xf]
        %v2161 = vld [vmem:[%s726 + $0x150] sm:$0xff]
        %v2162 = vld [vmem:[%s726 + $0x158] sm:$0xf]
        %v2163 = vld [vmem:[%s726 + $0x15c] sm:$0xff]
        %v2164 = vld [vmem:[%s726 + $0x164] sm:$0xf]
        %v2165 = vld [vmem:[%s726 + $0x168] sm:$0xff]
        %v2166 = vld [vmem:[%s726 + $0x170] sm:$0xf]
        %v2167 = vld [vmem:[%s726 + $0x174] sm:$0xff]
        %v2168 = vld [vmem:[%s726 + $0x17c] sm:$0xf]
        %s2169 = scalar_lea.vmem [#allocation7], 384
        %v2170 = vld [vmem:[%s2169] sm:$0xff]
        %v2171 = vld [vmem:[%s2169 + $0x8] sm:$0xff]
        %v2172 = vld [vmem:[%s2169 + $0x10] sm:$0xff]
        %v2173 = vld [vmem:[%s2169 + $0x18] sm:$0xff]
        %v2174 = vld [vmem:[%s2169 + $0x20] sm:$0xff]
        %v2175 = vld [vmem:[%s2169 + $0x28] sm:$0xff]
        %v2176 = vld [vmem:[%s2169 + $0x30] sm:$0xff]
        %v2177 = vld [vmem:[%s2169 + $0x38] sm:$0xff]
        %v2178 = vld [vmem:[%s2169 + $0x40] sm:$0xff]
        %v2179 = vld [vmem:[%s2169 + $0x48] sm:$0xff]
        %v2180 = vld [vmem:[%s2169 + $0x50] sm:$0xff]
        %v2181 = vld [vmem:[%s2169 + $0x58] sm:$0xff]
        %v2182 = vld [vmem:[%s2169 + $0x60] sm:$0xff]
        %v2183 = vld [vmem:[%s2169 + $0x68] sm:$0xff]
        %v2184 = vld [vmem:[%s2169 + $0x70] sm:$0xff]
        %v2185 = vld [vmem:[%s2169 + $0x78] sm:$0xff]
        %v2186 = vld [vmem:[%s2169 + $0x80] sm:$0xff]
        %v2187 = vld [vmem:[%s2169 + $0x88] sm:$0xff]
        %v2188 = vld [vmem:[%s2169 + $0x90] sm:$0xff]
        %v2189 = vld [vmem:[%s2169 + $0x98] sm:$0xff]
        %v2190 = vld [vmem:[%s2169 + $0xa0] sm:$0xff]
        %v2191 = vld [vmem:[%s2169 + $0xa8] sm:$0xff]
        %v2192 = vld [vmem:[%s2169 + $0xb0] sm:$0xff]
        %v2193 = vld [vmem:[%s2169 + $0xb8] sm:$0xff]
        %v2194 = vld [vmem:[%s2169 + $0xc0] sm:$0xff]
        %v2195 = vld [vmem:[%s2169 + $0xc8] sm:$0xff]
        %v2196 = vld [vmem:[%s2169 + $0xd0] sm:$0xff]
        %v2197 = vld [vmem:[%s2169 + $0xd8] sm:$0xff]
        %v2198 = vld [vmem:[%s2169 + $0xe0] sm:$0xff]
        %v2199 = vld [vmem:[%s2169 + $0xe8] sm:$0xff]
        %v2200 = vld [vmem:[%s2169 + $0xf0] sm:$0xff]
        %v2201 = vld [vmem:[%s2169 + $0xf8] sm:$0xff]
        %v2202 = vld [vmem:[%s2169 + $0x100] sm:$0xff]
        %v2203 = vld [vmem:[%s2169 + $0x108] sm:$0xff]
        %v2204 = vld [vmem:[%s2169 + $0x110] sm:$0xff]
        %v2205 = vld [vmem:[%s2169 + $0x118] sm:$0xff]
        %v2206 = vld [vmem:[%s2169 + $0x120] sm:$0xff]
        %v2207 = vld [vmem:[%s2169 + $0x128] sm:$0xff]
        %v2208 = vld [vmem:[%s2169 + $0x130] sm:$0xff]
        %v2209 = vld [vmem:[%s2169 + $0x138] sm:$0xff]
        %v2210 = vld [vmem:[%s2169 + $0x140] sm:$0xff]
        %v2211 = vld [vmem:[%s2169 + $0x148] sm:$0xff]
        %v2212 = vld [vmem:[%s2169 + $0x150] sm:$0xff]
        %v2213 = vld [vmem:[%s2169 + $0x158] sm:$0xff]
        %v2214 = vld [vmem:[%s2169 + $0x160] sm:$0xff]
        %v2215 = vld [vmem:[%s2169 + $0x168] sm:$0xff]
        %v2216 = vld [vmem:[%s2169 + $0x170] sm:$0xff]
        %v2217 = vld [vmem:[%s2169 + $0x178] sm:$0xff]
        %v2282 = vunpack.c.l.b16 %v2105
        %v2283 = vunpack.c.h.b16 %v2105
        %v2284 = vunpack.c.l.b16 %v2106
        %v2285 = vunpack.c.l.b16 %v2107
        %v2286 = vunpack.c.h.b16 %v2107
        %v2287 = vunpack.c.l.b16 %v2108
        %v2288 = vunpack.c.l.b16 %v2109
        %v2289 = vunpack.c.h.b16 %v2109
        %v2290 = vunpack.c.l.b16 %v2110
        %v2291 = vunpack.c.l.b16 %v2111
        %v2292 = vunpack.c.h.b16 %v2111
        %v2293 = vunpack.c.l.b16 %v2112
        %v2294 = vunpack.c.l.b16 %v2113
        %v2295 = vunpack.c.h.b16 %v2113
        %v2296 = vunpack.c.l.b16 %v2114
        %v2297 = vunpack.c.l.b16 %v2115
        %v2298 = vunpack.c.h.b16 %v2115
        %v2299 = vunpack.c.l.b16 %v2116
        %v2300 = vunpack.c.l.b16 %v2117
        %v2301 = vunpack.c.h.b16 %v2117
        %v2302 = vunpack.c.l.b16 %v2118
        %v2303 = vunpack.c.l.b16 %v2119
        %v2304 = vunpack.c.h.b16 %v2119
        %v2305 = vunpack.c.l.b16 %v2120
        %v2306 = vunpack.c.l.b16 %v2121
        %v2307 = vunpack.c.h.b16 %v2121
        %v2308 = vunpack.c.l.b16 %v2122
        %v2309 = vunpack.c.l.b16 %v2123
        %v2310 = vunpack.c.h.b16 %v2123
        %v2311 = vunpack.c.l.b16 %v2124
        %v2312 = vunpack.c.l.b16 %v2125
        %v2313 = vunpack.c.h.b16 %v2125
        %v2314 = vunpack.c.l.b16 %v2126
        %v2315 = vunpack.c.l.b16 %v2127
        %v2316 = vunpack.c.h.b16 %v2127
        %v2317 = vunpack.c.l.b16 %v2128
        %v2318 = vunpack.c.l.b16 %v2129
        %v2319 = vunpack.c.h.b16 %v2129
        %v2320 = vunpack.c.l.b16 %v2130
        %v2321 = vunpack.c.l.b16 %v2131
        %v2322 = vunpack.c.h.b16 %v2131
        %v2323 = vunpack.c.l.b16 %v2132
        %v2324 = vunpack.c.l.b16 %v2133
        %v2325 = vunpack.c.h.b16 %v2133
        %v2326 = vunpack.c.l.b16 %v2134
        %v2327 = vunpack.c.l.b16 %v2135
        %v2328 = vunpack.c.h.b16 %v2135
        %v2329 = vunpack.c.l.b16 %v2136
        %v2330 = vunpack.c.l.b16 %v2137
        %v2331 = vunpack.c.h.b16 %v2137
        %v2332 = vunpack.c.l.b16 %v2138
        %v2333 = vunpack.c.l.b16 %v2139
        %v2334 = vunpack.c.h.b16 %v2139
        %v2335 = vunpack.c.l.b16 %v2140
        %v2336 = vunpack.c.l.b16 %v2141
        %v2337 = vunpack.c.h.b16 %v2141
        %v2338 = vunpack.c.l.b16 %v2142
        %v2339 = vunpack.c.l.b16 %v2143
        %v2340 = vunpack.c.h.b16 %v2143
        %v2341 = vunpack.c.l.b16 %v2144
        %v2342 = vunpack.c.l.b16 %v2145
        %v2343 = vunpack.c.h.b16 %v2145
        %v2344 = vunpack.c.l.b16 %v2146
        %v2345 = vunpack.c.l.b16 %v2147
        %v2346 = vunpack.c.h.b16 %v2147
        %v2347 = vunpack.c.l.b16 %v2148
        %v2348 = vunpack.c.l.b16 %v2149
        %v2349 = vunpack.c.h.b16 %v2149
        %v2350 = vunpack.c.l.b16 %v2150
        %v2351 = vunpack.c.l.b16 %v2151
        %v2352 = vunpack.c.h.b16 %v2151
        %v2353 = vunpack.c.l.b16 %v2152
        %v2354 = vunpack.c.l.b16 %v2153
        %v2355 = vunpack.c.h.b16 %v2153
        %v2356 = vunpack.c.l.b16 %v2154
        %v2357 = vunpack.c.l.b16 %v2155
        %v2358 = vunpack.c.h.b16 %v2155
        %v2359 = vunpack.c.l.b16 %v2156
        %v2360 = vunpack.c.l.b16 %v2157
        %v2361 = vunpack.c.h.b16 %v2157
        %v2362 = vunpack.c.l.b16 %v2158
        %v2363 = vunpack.c.l.b16 %v2159
        %v2364 = vunpack.c.h.b16 %v2159
        %v2365 = vunpack.c.l.b16 %v2160
        %v2366 = vunpack.c.l.b16 %v2161
        %v2367 = vunpack.c.h.b16 %v2161
        %v2368 = vunpack.c.l.b16 %v2162
        %v2369 = vunpack.c.l.b16 %v2163
        %v2370 = vunpack.c.h.b16 %v2163
        %v2371 = vunpack.c.l.b16 %v2164
        %v2372 = vunpack.c.l.b16 %v2165
        %v2373 = vunpack.c.h.b16 %v2165
        %v2374 = vunpack.c.l.b16 %v2166
        %v2375 = vunpack.c.l.b16 %v2167
        %v2376 = vunpack.c.h.b16 %v2167
        %v2377 = vunpack.c.l.b16 %v2168
        %v2378 = vpack.c.b16 %v2285, %v2282
        %v2379 = vpack.c.b16 %v2286, %v2283
        %v2380 = vpack.c.b16 %v2287, %v2284
        %v2381 = vpack.c.b16 %v2291, %v2288
        %v2382 = vpack.c.b16 %v2292, %v2289
        %v2383 = vpack.c.b16 %v2293, %v2290
        %v2384 = vpack.c.b16 %v2297, %v2294
        %v2385 = vpack.c.b16 %v2298, %v2295
        %v2386 = vpack.c.b16 %v2299, %v2296
        %v2387 = vpack.c.b16 %v2303, %v2300
        %v2388 = vpack.c.b16 %v2304, %v2301
        %v2389 = vpack.c.b16 %v2305, %v2302
        %v2390 = vpack.c.b16 %v2309, %v2306
        %v2391 = vpack.c.b16 %v2310, %v2307
        %v2392 = vpack.c.b16 %v2311, %v2308
        %v2393 = vpack.c.b16 %v2315, %v2312
        %v2394 = vpack.c.b16 %v2316, %v2313
        %v2395 = vpack.c.b16 %v2317, %v2314
        %v2396 = vpack.c.b16 %v2321, %v2318
        %v2397 = vpack.c.b16 %v2322, %v2319
        %v2398 = vpack.c.b16 %v2323, %v2320
        %v2399 = vpack.c.b16 %v2327, %v2324
        %v2400 = vpack.c.b16 %v2328, %v2325
        %v2401 = vpack.c.b16 %v2329, %v2326
        %v2402 = vpack.c.b16 %v2333, %v2330
        %v2403 = vpack.c.b16 %v2334, %v2331
        %v2404 = vpack.c.b16 %v2335, %v2332
        %v2405 = vpack.c.b16 %v2339, %v2336
        %v2406 = vpack.c.b16 %v2340, %v2337
        %v2407 = vpack.c.b16 %v2341, %v2338
        %v2408 = vpack.c.b16 %v2345, %v2342
        %v2409 = vpack.c.b16 %v2346, %v2343
        %v2410 = vpack.c.b16 %v2347, %v2344
        %v2411 = vpack.c.b16 %v2351, %v2348
        %v2412 = vpack.c.b16 %v2352, %v2349
        %v2413 = vpack.c.b16 %v2353, %v2350
        %v2414 = vpack.c.b16 %v2357, %v2354
        %v2415 = vpack.c.b16 %v2358, %v2355
        %v2416 = vpack.c.b16 %v2359, %v2356
        %v2417 = vpack.c.b16 %v2363, %v2360
        %v2418 = vpack.c.b16 %v2364, %v2361
        %v2419 = vpack.c.b16 %v2365, %v2362
        %v2420 = vpack.c.b16 %v2369, %v2366
        %v2421 = vpack.c.b16 %v2370, %v2367
        %v2422 = vpack.c.b16 %v2371, %v2368
        %v2423 = vpack.c.b16 %v2375, %v2372
        %v2424 = vpack.c.b16 %v2376, %v2373
        %v2425 = vpack.c.b16 %v2377, %v2374
        %v2522 = vunpack.c.l.b16 %v2170
        %v2523 = vunpack.c.h.b16 %v2170
        %v2524 = vunpack.c.l.b16 %v2171
        %v2525 = vunpack.c.h.b16 %v2171
        %v2526 = vunpack.c.l.b16 %v2172
        %v2527 = vunpack.c.h.b16 %v2172
        %v2528 = vunpack.c.l.b16 %v2173
        %v2529 = vunpack.c.h.b16 %v2173
        %v2530 = vunpack.c.l.b16 %v2174
        %v2531 = vunpack.c.h.b16 %v2174
        %v2532 = vunpack.c.l.b16 %v2175
        %v2533 = vunpack.c.h.b16 %v2175
        %v2534 = vunpack.c.l.b16 %v2176
        %v2535 = vunpack.c.h.b16 %v2176
        %v2536 = vunpack.c.l.b16 %v2177
        %v2537 = vunpack.c.h.b16 %v2177
        %v2538 = vunpack.c.l.b16 %v2178
        %v2539 = vunpack.c.h.b16 %v2178
        %v2540 = vunpack.c.l.b16 %v2179
        %v2541 = vunpack.c.h.b16 %v2179
        %v2542 = vunpack.c.l.b16 %v2180
        %v2543 = vunpack.c.h.b16 %v2180
        %v2544 = vunpack.c.l.b16 %v2181
        %v2545 = vunpack.c.h.b16 %v2181
        %v2546 = vunpack.c.l.b16 %v2182
        %v2547 = vunpack.c.h.b16 %v2182
        %v2548 = vunpack.c.l.b16 %v2183
        %v2549 = vunpack.c.h.b16 %v2183
        %v2550 = vunpack.c.l.b16 %v2184
        %v2551 = vunpack.c.h.b16 %v2184
        %v2552 = vunpack.c.l.b16 %v2185
        %v2553 = vunpack.c.h.b16 %v2185
        %v2554 = vunpack.c.l.b16 %v2186
        %v2555 = vunpack.c.h.b16 %v2186
        %v2556 = vunpack.c.l.b16 %v2187
        %v2557 = vunpack.c.h.b16 %v2187
        %v2558 = vunpack.c.l.b16 %v2188
        %v2559 = vunpack.c.h.b16 %v2188
        %v2560 = vunpack.c.l.b16 %v2189
        %v2561 = vunpack.c.h.b16 %v2189
        %v2562 = vunpack.c.l.b16 %v2190
        %v2563 = vunpack.c.h.b16 %v2190
        %v2564 = vunpack.c.l.b16 %v2191
        %v2565 = vunpack.c.h.b16 %v2191
        %v2566 = vunpack.c.l.b16 %v2192
        %v2567 = vunpack.c.h.b16 %v2192
        %v2568 = vunpack.c.l.b16 %v2193
        %v2569 = vunpack.c.h.b16 %v2193
        %v2570 = vunpack.c.l.b16 %v2194
        %v2571 = vunpack.c.h.b16 %v2194
        %v2572 = vunpack.c.l.b16 %v2195
        %v2573 = vunpack.c.h.b16 %v2195
        %v2574 = vunpack.c.l.b16 %v2196
        %v2575 = vunpack.c.h.b16 %v2196
        %v2576 = vunpack.c.l.b16 %v2197
        %v2577 = vunpack.c.h.b16 %v2197
        %v2578 = vunpack.c.l.b16 %v2198
        %v2579 = vunpack.c.h.b16 %v2198
        %v2580 = vunpack.c.l.b16 %v2199
        %v2581 = vunpack.c.h.b16 %v2199
        %v2582 = vunpack.c.l.b16 %v2200
        %v2583 = vunpack.c.h.b16 %v2200
        %v2584 = vunpack.c.l.b16 %v2201
        %v2585 = vunpack.c.h.b16 %v2201
        %v2586 = vunpack.c.l.b16 %v2202
        %v2587 = vunpack.c.h.b16 %v2202
        %v2588 = vunpack.c.l.b16 %v2203
        %v2589 = vunpack.c.h.b16 %v2203
        %v2590 = vunpack.c.l.b16 %v2204
        %v2591 = vunpack.c.h.b16 %v2204
        %v2592 = vunpack.c.l.b16 %v2205
        %v2593 = vunpack.c.h.b16 %v2205
        %v2594 = vunpack.c.l.b16 %v2206
        %v2595 = vunpack.c.h.b16 %v2206
        %v2596 = vunpack.c.l.b16 %v2207
        %v2597 = vunpack.c.h.b16 %v2207
        %v2598 = vunpack.c.l.b16 %v2208
        %v2599 = vunpack.c.h.b16 %v2208
        %v2600 = vunpack.c.l.b16 %v2209
        %v2601 = vunpack.c.h.b16 %v2209
        %v2602 = vunpack.c.l.b16 %v2210
        %v2603 = vunpack.c.h.b16 %v2210
        %v2604 = vunpack.c.l.b16 %v2211
        %v2605 = vunpack.c.h.b16 %v2211
        %v2606 = vunpack.c.l.b16 %v2212
        %v2607 = vunpack.c.h.b16 %v2212
        %v2608 = vunpack.c.l.b16 %v2213
        %v2609 = vunpack.c.h.b16 %v2213
        %v2610 = vunpack.c.l.b16 %v2214
        %v2611 = vunpack.c.h.b16 %v2214
        %v2612 = vunpack.c.l.b16 %v2215
        %v2613 = vunpack.c.h.b16 %v2215
        %v2614 = vunpack.c.l.b16 %v2216
        %v2615 = vunpack.c.h.b16 %v2216
        %v2616 = vunpack.c.l.b16 %v2217
        %v2617 = vunpack.c.h.b16 %v2217
        %v2618 = vpack.c.b16 %v2524, %v2522
        %v2619 = vpack.c.b16 %v2525, %v2523
        %v2620 = vpack.c.b16 %v2528, %v2526
        %v2621 = vpack.c.b16 %v2529, %v2527
        %v2622 = vpack.c.b16 %v2532, %v2530
        %v2623 = vpack.c.b16 %v2533, %v2531
        %v2624 = vpack.c.b16 %v2536, %v2534
        %v2625 = vpack.c.b16 %v2537, %v2535
        %v2626 = vpack.c.b16 %v2540, %v2538
        %v2627 = vpack.c.b16 %v2541, %v2539
        %v2628 = vpack.c.b16 %v2544, %v2542
        %v2629 = vpack.c.b16 %v2545, %v2543
        %v2630 = vpack.c.b16 %v2548, %v2546
        %v2631 = vpack.c.b16 %v2549, %v2547
        %v2632 = vpack.c.b16 %v2552, %v2550
        %v2633 = vpack.c.b16 %v2553, %v2551
        %v2634 = vpack.c.b16 %v2556, %v2554
        %v2635 = vpack.c.b16 %v2557, %v2555
        %v2636 = vpack.c.b16 %v2560, %v2558
        %v2637 = vpack.c.b16 %v2561, %v2559
        %v2638 = vpack.c.b16 %v2564, %v2562
        %v2639 = vpack.c.b16 %v2565, %v2563
        %v2640 = vpack.c.b16 %v2568, %v2566
        %v2641 = vpack.c.b16 %v2569, %v2567
        %v2642 = vpack.c.b16 %v2572, %v2570
        %v2643 = vpack.c.b16 %v2573, %v2571
        %v2644 = vpack.c.b16 %v2576, %v2574
        %v2645 = vpack.c.b16 %v2577, %v2575
        %v2646 = vpack.c.b16 %v2580, %v2578
        %v2647 = vpack.c.b16 %v2581, %v2579
        %v2648 = vpack.c.b16 %v2584, %v2582
        %v2649 = vpack.c.b16 %v2585, %v2583
        %v2650 = vpack.c.b16 %v2588, %v2586
        %v2651 = vpack.c.b16 %v2589, %v2587
        %v2652 = vpack.c.b16 %v2592, %v2590
        %v2653 = vpack.c.b16 %v2593, %v2591
        %v2654 = vpack.c.b16 %v2596, %v2594
        %v2655 = vpack.c.b16 %v2597, %v2595
        %v2656 = vpack.c.b16 %v2600, %v2598
        %v2657 = vpack.c.b16 %v2601, %v2599
        %v2658 = vpack.c.b16 %v2604, %v2602
        %v2659 = vpack.c.b16 %v2605, %v2603
        %v2660 = vpack.c.b16 %v2608, %v2606
        %v2661 = vpack.c.b16 %v2609, %v2607
        %v2662 = vpack.c.b16 %v2612, %v2610
        %v2663 = vpack.c.b16 %v2613, %v2611
        %v2664 = vpack.c.b16 %v2616, %v2614
        %v2665 = vpack.c.b16 %v2617, %v2615
        %2714 = vmatprep.subr.bf16.mxu0 %v2633
        %2715 = vmatpush1.bf16.msra.mxu0 %v2632
        %2716 = vmatprep.subr.bf16.mxu0 %v2631
        %2717 = vmatpush1.bf16.msra.mxu0 %v2630
        %2718 = vmatprep.subr.bf16.mxu0 %v2629
        %2719 = vmatpush1.bf16.msra.mxu0 %v2628
        %2720 = vmatprep.subr.bf16.mxu0 %v2627
        %2721 = vmatpush1.bf16.msra.mxu0 %v2626
        %2722 = vmatprep.subr.bf16.mxu0 %v2625
        %2723 = vmatpush1.bf16.msra.mxu0 %v2624
        %2724 = vmatprep.subr.bf16.mxu0 %v2623
        %2725 = vmatpush1.bf16.msra.mxu0 %v2622
        %2726 = vmatprep.subr.bf16.mxu0 %v2621
        %2727 = vmatpush1.bf16.msra.mxu0 %v2620
        %2728 = vmatprep.subr.bf16.mxu0 %v2619
        %2729 = vmatpush1.bf16.msra.mxu0 %v2618
        %2730 = vmatprep.subr.bf16.mxu0 %v2649
        %2731 = vmatpush2.bf16.msra.mxu0 %v2648
        %2732 = vmatprep.subr.bf16.mxu0 %v2647
        %2733 = vmatpush2.bf16.msra.mxu0 %v2646
        %2734 = vmatprep.subr.bf16.mxu0 %v2645
        %2735 = vmatpush2.bf16.msra.mxu0 %v2644
        %2736 = vmatprep.subr.bf16.mxu0 %v2643
        %2737 = vmatpush2.bf16.msra.mxu0 %v2642
        %2738 = vmatprep.subr.bf16.mxu0 %v2641
        %2739 = vmatpush2.bf16.msra.mxu0 %v2640
        %2740 = vmatprep.subr.bf16.mxu0 %v2639
        %2741 = vmatpush2.bf16.msra.mxu0 %v2638
        %2742 = vmatprep.subr.bf16.mxu0 %v2637
        %2743 = vmatpush2.bf16.msra.mxu0 %v2636
        %2744 = vmatprep.subr.bf16.mxu0 %v2635
        %2745 = vmatpush2.bf16.msra.mxu0 %v2634
        %2746 = vmatprep.mubr.bf16.mxu0 %v2379
        %2747 = vmatmul.mubr.bf16.gmra.mxu0 %v2378
        %v2748 = vpop.f32.mrf.mxu0
        %v2749 = vadd.f32 0.0, %v2748
        %v2750 = vpop.f32.mrf.mxu0
        %v2751 = vadd.f32 0.0, %v2750
        %v2752 = vpop.f32.mrf.mxu0
        %v2753 = vadd.f32 0.0, %v2752
        %v2754 = vpop.f32.mrf.mxu0
        %v2755 = vadd.f32 0.0, %v2754
        %2756 = vmatprep.mubr.bf16.mxu0 %v2382
        %2757 = vmatmul.mubr.bf16.gmra.mxu0 %v2381
        %v2758 = vpop.f32.mrf.mxu0
        %v2759 = vadd.f32 0.0, %v2758
        %v2760 = vpop.f32.mrf.mxu0
        %v2761 = vadd.f32 0.0, %v2760
        %v2762 = vpop.f32.mrf.mxu0
        %v2763 = vadd.f32 0.0, %v2762
        %v2764 = vpop.f32.mrf.mxu0
        %v2765 = vadd.f32 0.0, %v2764
        %2766 = vmatprep.mubr.bf16.mxu0 %v2385
        %2767 = vmatmul.mubr.bf16.gmra.mxu0 %v2384
        %v2768 = vpop.f32.mrf.mxu0
        %v2769 = vadd.f32 0.0, %v2768
        %v2770 = vpop.f32.mrf.mxu0
        %v2771 = vadd.f32 0.0, %v2770
        %v2772 = vpop.f32.mrf.mxu0
        %v2773 = vadd.f32 0.0, %v2772
        %v2774 = vpop.f32.mrf.mxu0
        %v2775 = vadd.f32 0.0, %v2774
        %2776 = vmatprep.mubr.bf16.mxu0 %v2388
        %2777 = vmatmul.mubr.bf16.gmra.mxu0 %v2387
        %v2778 = vpop.f32.mrf.mxu0
        %v2779 = vadd.f32 0.0, %v2778
        %v2780 = vpop.f32.mrf.mxu0
        %v2781 = vadd.f32 0.0, %v2780
        %v2782 = vpop.f32.mrf.mxu0
        %v2783 = vadd.f32 0.0, %v2782
        %v2784 = vpop.f32.mrf.mxu0
        %v2785 = vadd.f32 0.0, %v2784
        %2786 = vmatprep.mubr.bf16.mxu0 %v2391
        %2787 = vmatmul.mubr.bf16.gmra.mxu0 %v2390
        %v2788 = vpop.f32.mrf.mxu0
        %v2789 = vadd.f32 0.0, %v2788
        %v2790 = vpop.f32.mrf.mxu0
        %v2791 = vadd.f32 0.0, %v2790
        %v2792 = vpop.f32.mrf.mxu0
        %v2793 = vadd.f32 0.0, %v2792
        %v2794 = vpop.f32.mrf.mxu0
        %v2795 = vadd.f32 0.0, %v2794
        %2796 = vmatprep.mubr.bf16.mxu0 %v2394
        %2797 = vmatmul.mubr.bf16.gmra.mxu0 %v2393
        %v2798 = vpop.f32.mrf.mxu0
        %v2799 = vadd.f32 0.0, %v2798
        %v2800 = vpop.f32.mrf.mxu0
        %v2801 = vadd.f32 0.0, %v2800
        %v2802 = vpop.f32.mrf.mxu0
        %v2803 = vadd.f32 0.0, %v2802
        %v2804 = vpop.f32.mrf.mxu0
        %v2805 = vadd.f32 0.0, %v2804
        %2806 = vmatprep.mubr.bf16.mxu0 %v2397
        %2807 = vmatmul.mubr.bf16.gmra.mxu0 %v2396
        %v2808 = vpop.f32.mrf.mxu0
        %v2809 = vadd.f32 0.0, %v2808
        %v2810 = vpop.f32.mrf.mxu0
        %v2811 = vadd.f32 0.0, %v2810
        %v2812 = vpop.f32.mrf.mxu0
        %v2813 = vadd.f32 0.0, %v2812
        %v2814 = vpop.f32.mrf.mxu0
        %v2815 = vadd.f32 0.0, %v2814
        %2816 = vmatprep.mubr.bf16.mxu0 %v2400
        %2817 = vmatmul.mubr.bf16.gmra.mxu0 %v2399
        %v2818 = vpop.f32.mrf.mxu0
        %v2819 = vadd.f32 0.0, %v2818
        %v2820 = vpop.f32.mrf.mxu0
        %v2821 = vadd.f32 0.0, %v2820
        %v2822 = vpop.f32.mrf.mxu0
        %v2823 = vadd.f32 0.0, %v2822
        %v2824 = vpop.f32.mrf.mxu0
        %v2825 = vadd.f32 0.0, %v2824
        %2826 = vmatprep.mubr.bf16.mxu0 %v2403
        %2827 = vmatmul.mubr.bf16.gmra.mxu0 %v2402
        %v2828 = vpop.f32.mrf.mxu0
        %v2829 = vadd.f32 0.0, %v2828
        %v2830 = vpop.f32.mrf.mxu0
        %v2831 = vadd.f32 0.0, %v2830
        %v2832 = vpop.f32.mrf.mxu0
        %v2833 = vadd.f32 0.0, %v2832
        %v2834 = vpop.f32.mrf.mxu0
        %v2835 = vadd.f32 0.0, %v2834
        %2836 = vmatprep.mubr.bf16.mxu0 %v2406
        %2837 = vmatmul.mubr.bf16.gmra.mxu0 %v2405
        %v2838 = vpop.f32.mrf.mxu0
        %v2839 = vadd.f32 0.0, %v2838
        %v2840 = vpop.f32.mrf.mxu0
        %v2841 = vadd.f32 0.0, %v2840
        %v2842 = vpop.f32.mrf.mxu0
        %v2843 = vadd.f32 0.0, %v2842
        %v2844 = vpop.f32.mrf.mxu0
        %v2845 = vadd.f32 0.0, %v2844
        %2846 = vmatprep.mubr.bf16.mxu0 %v2409
        %2847 = vmatmul.mubr.bf16.gmra.mxu0 %v2408
        %v2848 = vpop.f32.mrf.mxu0
        %v2849 = vadd.f32 0.0, %v2848
        %v2850 = vpop.f32.mrf.mxu0
        %v2851 = vadd.f32 0.0, %v2850
        %v2852 = vpop.f32.mrf.mxu0
        %v2853 = vadd.f32 0.0, %v2852
        %v2854 = vpop.f32.mrf.mxu0
        %v2855 = vadd.f32 0.0, %v2854
        %2856 = vmatprep.mubr.bf16.mxu0 %v2412
        %2857 = vmatmul.mubr.bf16.gmra.mxu0 %v2411
        %v2858 = vpop.f32.mrf.mxu0
        %v2859 = vadd.f32 0.0, %v2858
        %v2860 = vpop.f32.mrf.mxu0
        %v2861 = vadd.f32 0.0, %v2860
        %v2862 = vpop.f32.mrf.mxu0
        %v2863 = vadd.f32 0.0, %v2862
        %v2864 = vpop.f32.mrf.mxu0
        %v2865 = vadd.f32 0.0, %v2864
        %2866 = vmatprep.mubr.bf16.mxu0 %v2415
        %2867 = vmatmul.mubr.bf16.gmra.mxu0 %v2414
        %v2868 = vpop.f32.mrf.mxu0
        %v2869 = vadd.f32 0.0, %v2868
        %v2870 = vpop.f32.mrf.mxu0
        %v2871 = vadd.f32 0.0, %v2870
        %v2872 = vpop.f32.mrf.mxu0
        %v2873 = vadd.f32 0.0, %v2872
        %v2874 = vpop.f32.mrf.mxu0
        %v2875 = vadd.f32 0.0, %v2874
        %2876 = vmatprep.mubr.bf16.mxu0 %v2418
        %2877 = vmatmul.mubr.bf16.gmra.mxu0 %v2417
        %v2878 = vpop.f32.mrf.mxu0
        %v2879 = vadd.f32 0.0, %v2878
        %v2880 = vpop.f32.mrf.mxu0
        %v2881 = vadd.f32 0.0, %v2880
        %v2882 = vpop.f32.mrf.mxu0
        %v2883 = vadd.f32 0.0, %v2882
        %v2884 = vpop.f32.mrf.mxu0
        %v2885 = vadd.f32 0.0, %v2884
        %2886 = vmatprep.mubr.bf16.mxu0 %v2421
        %2887 = vmatmul.mubr.bf16.gmra.mxu0 %v2420
        %v2888 = vpop.f32.mrf.mxu0
        %v2889 = vadd.f32 0.0, %v2888
        %v2890 = vpop.f32.mrf.mxu0
        %v2891 = vadd.f32 0.0, %v2890
        %v2892 = vpop.f32.mrf.mxu0
        %v2893 = vadd.f32 0.0, %v2892
        %v2894 = vpop.f32.mrf.mxu0
        %v2895 = vadd.f32 0.0, %v2894
        %2896 = vmatprep.mubr.bf16.mxu0 %v2424
        %2897 = vmatmul.mubr.bf16.gmra.mxu0 %v2423
        %v2898 = vpop.f32.mrf.mxu0
        %v2899 = vadd.f32 0.0, %v2898
        %v2900 = vpop.f32.mrf.mxu0
        %v2901 = vadd.f32 0.0, %v2900
        %v2902 = vpop.f32.mrf.mxu0
        %v2903 = vadd.f32 0.0, %v2902
        %v2904 = vpop.f32.mrf.mxu0
        %v2905 = vadd.f32 0.0, %v2904
        %2906 = vdwg.mxu0
        %2907 = vmatprep.subr.bf16.mxu0 %v2665
        %2908 = vmatpush1.bf16.msra.mxu0 %v2664
        %2909 = vmatprep.subr.bf16.mxu0 %v2663
        %2910 = vmatpush1.bf16.msra.mxu0 %v2662
        %2911 = vmatprep.subr.bf16.mxu0 %v2661
        %2912 = vmatpush1.bf16.msra.mxu0 %v2660
        %2913 = vmatprep.subr.bf16.mxu0 %v2659
        %2914 = vmatpush1.bf16.msra.mxu0 %v2658
        %2915 = vmatprep.subr.bf16.mxu0 %v2657
        %2916 = vmatpush1.bf16.msra.mxu0 %v2656
        %2917 = vmatprep.subr.bf16.mxu0 %v2655
        %2918 = vmatpush1.bf16.msra.mxu0 %v2654
        %2919 = vmatprep.subr.bf16.mxu0 %v2653
        %2920 = vmatpush1.bf16.msra.mxu0 %v2652
        %2921 = vmatprep.subr.bf16.mxu0 %v2651
        %2922 = vmatpush1.bf16.msra.mxu0 %v2650
        %2923 = vmatprep.subr.bf16.mxu0 0
        %2924 = vmatpush2.bf16.msra.mxu0 0
        %2925 = vmatprep.subr.bf16.mxu0 0
        %2926 = vmatpush2.bf16.msra.mxu0 0
        %2927 = vmatprep.subr.bf16.mxu0 0
        %2928 = vmatpush2.bf16.msra.mxu0 0
        %2929 = vmatprep.subr.bf16.mxu0 0
        %2930 = vmatpush2.bf16.msra.mxu0 0
        %2931 = vmatprep.subr.bf16.mxu0 0
        %2932 = vmatpush2.bf16.msra.mxu0 0
        %2933 = vmatprep.subr.bf16.mxu0 0
        %2934 = vmatpush2.bf16.msra.mxu0 0
        %2935 = vmatprep.subr.bf16.mxu0 0
        %2936 = vmatpush2.bf16.msra.mxu0 0
        %2937 = vmatprep.subr.bf16.mxu0 0
        %2938 = vmatpush2.bf16.msra.mxu0 0
        %2939 = vmatprep.mubr.bf16.mxu0 0
        %2940 = vmatmul.mubr.bf16.gmra.mxu0 %v2380
        %v2941 = vpop.f32.mrf.mxu0
        %v2942 = vadd.f32 %v2749, %v2941
        %v2943 = vpop.f32.mrf.mxu0
        %v2944 = vadd.f32 %v2751, %v2943
        %v2945 = vpop.f32.mrf.mxu0
        %v2946 = vadd.f32 %v2753, %v2945
        %v2947 = vpop.f32.mrf.mxu0
        %v2948 = vadd.f32 %v2755, %v2947
        %2949 = vmatprep.mubr.bf16.mxu0 0
        %2950 = vmatmul.mubr.bf16.gmra.mxu0 %v2383
        %v2951 = vpop.f32.mrf.mxu0
        %v2952 = vadd.f32 %v2759, %v2951
        %v2953 = vpop.f32.mrf.mxu0
        %v2954 = vadd.f32 %v2761, %v2953
        %v2955 = vpop.f32.mrf.mxu0
        %v2956 = vadd.f32 %v2763, %v2955
        %v2957 = vpop.f32.mrf.mxu0
        %v2958 = vadd.f32 %v2765, %v2957
        %2959 = vmatprep.mubr.bf16.mxu0 0
        %2960 = vmatmul.mubr.bf16.gmra.mxu0 %v2386
        %v2961 = vpop.f32.mrf.mxu0
        %v2962 = vadd.f32 %v2769, %v2961
        %v2963 = vpop.f32.mrf.mxu0
        %v2964 = vadd.f32 %v2771, %v2963
        %v2965 = vpop.f32.mrf.mxu0
        %v2966 = vadd.f32 %v2773, %v2965
        %v2967 = vpop.f32.mrf.mxu0
        %v2968 = vadd.f32 %v2775, %v2967
        %2969 = vmatprep.mubr.bf16.mxu0 0
        %2970 = vmatmul.mubr.bf16.gmra.mxu0 %v2389
        %v2971 = vpop.f32.mrf.mxu0
        %v2972 = vadd.f32 %v2779, %v2971
        %v2973 = vpop.f32.mrf.mxu0
        %v2974 = vadd.f32 %v2781, %v2973
        %v2975 = vpop.f32.mrf.mxu0
        %v2976 = vadd.f32 %v2783, %v2975
        %v2977 = vpop.f32.mrf.mxu0
        %v2978 = vadd.f32 %v2785, %v2977
        %2979 = vmatprep.mubr.bf16.mxu0 0
        %2980 = vmatmul.mubr.bf16.gmra.mxu0 %v2392
        %v2981 = vpop.f32.mrf.mxu0
        %v2982 = vadd.f32 %v2789, %v2981
        %v2983 = vpop.f32.mrf.mxu0
        %v2984 = vadd.f32 %v2791, %v2983
        %v2985 = vpop.f32.mrf.mxu0
        %v2986 = vadd.f32 %v2793, %v2985
        %v2987 = vpop.f32.mrf.mxu0
        %v2988 = vadd.f32 %v2795, %v2987
        %2989 = vmatprep.mubr.bf16.mxu0 0
        %2990 = vmatmul.mubr.bf16.gmra.mxu0 %v2395
        %v2991 = vpop.f32.mrf.mxu0
        %v2992 = vadd.f32 %v2799, %v2991
        %v2993 = vpop.f32.mrf.mxu0
        %v2994 = vadd.f32 %v2801, %v2993
        %v2995 = vpop.f32.mrf.mxu0
        %v2996 = vadd.f32 %v2803, %v2995
        %v2997 = vpop.f32.mrf.mxu0
        %v2998 = vadd.f32 %v2805, %v2997
        %2999 = vmatprep.mubr.bf16.mxu0 0
        %3000 = vmatmul.mubr.bf16.gmra.mxu0 %v2398
        %v3001 = vpop.f32.mrf.mxu0
        %v3002 = vadd.f32 %v2809, %v3001
        %v3003 = vpop.f32.mrf.mxu0
        %v3004 = vadd.f32 %v2811, %v3003
        %v3005 = vpop.f32.mrf.mxu0
        %v3006 = vadd.f32 %v2813, %v3005
        %v3007 = vpop.f32.mrf.mxu0
        %v3008 = vadd.f32 %v2815, %v3007
        %3009 = vmatprep.mubr.bf16.mxu0 0
        %3010 = vmatmul.mubr.bf16.gmra.mxu0 %v2401
        %v3011 = vpop.f32.mrf.mxu0
        %v3012 = vadd.f32 %v2819, %v3011
        %v3013 = vpop.f32.mrf.mxu0
        %v3014 = vadd.f32 %v2821, %v3013
        %v3015 = vpop.f32.mrf.mxu0
        %v3016 = vadd.f32 %v2823, %v3015
        %v3017 = vpop.f32.mrf.mxu0
        %v3018 = vadd.f32 %v2825, %v3017
        %3019 = vmatprep.mubr.bf16.mxu0 0
        %3020 = vmatmul.mubr.bf16.gmra.mxu0 %v2404
        %v3021 = vpop.f32.mrf.mxu0
        %v3022 = vadd.f32 %v2829, %v3021
        %v3023 = vpop.f32.mrf.mxu0
        %v3024 = vadd.f32 %v2831, %v3023
        %v3025 = vpop.f32.mrf.mxu0
        %v3026 = vadd.f32 %v2833, %v3025
        %v3027 = vpop.f32.mrf.mxu0
        %v3028 = vadd.f32 %v2835, %v3027
        %3029 = vmatprep.mubr.bf16.mxu0 0
        %3030 = vmatmul.mubr.bf16.gmra.mxu0 %v2407
        %v3031 = vpop.f32.mrf.mxu0
        %v3032 = vadd.f32 %v2839, %v3031
        %v3033 = vpop.f32.mrf.mxu0
        %v3034 = vadd.f32 %v2841, %v3033
        %v3035 = vpop.f32.mrf.mxu0
        %v3036 = vadd.f32 %v2843, %v3035
        %v3037 = vpop.f32.mrf.mxu0
        %v3038 = vadd.f32 %v2845, %v3037
        %3039 = vmatprep.mubr.bf16.mxu0 0
        %3040 = vmatmul.mubr.bf16.gmra.mxu0 %v2410
        %v3041 = vpop.f32.mrf.mxu0
        %v3042 = vadd.f32 %v2849, %v3041
        %v3043 = vpop.f32.mrf.mxu0
        %v3044 = vadd.f32 %v2851, %v3043
        %v3045 = vpop.f32.mrf.mxu0
        %v3046 = vadd.f32 %v2853, %v3045
        %v3047 = vpop.f32.mrf.mxu0
        %v3048 = vadd.f32 %v2855, %v3047
        %3049 = vmatprep.mubr.bf16.mxu0 0
        %3050 = vmatmul.mubr.bf16.gmra.mxu0 %v2413
        %v3051 = vpop.f32.mrf.mxu0
        %v3052 = vadd.f32 %v2859, %v3051
        %v3053 = vpop.f32.mrf.mxu0
        %v3054 = vadd.f32 %v2861, %v3053
        %v3055 = vpop.f32.mrf.mxu0
        %v3056 = vadd.f32 %v2863, %v3055
        %v3057 = vpop.f32.mrf.mxu0
        %v3058 = vadd.f32 %v2865, %v3057
        %3059 = vmatprep.mubr.bf16.mxu0 0
        %3060 = vmatmul.mubr.bf16.gmra.mxu0 %v2416
        %v3061 = vpop.f32.mrf.mxu0
        %v3062 = vadd.f32 %v2869, %v3061
        %v3063 = vpop.f32.mrf.mxu0
        %v3064 = vadd.f32 %v2871, %v3063
        %v3065 = vpop.f32.mrf.mxu0
        %v3066 = vadd.f32 %v2873, %v3065
        %v3067 = vpop.f32.mrf.mxu0
        %v3068 = vadd.f32 %v2875, %v3067
        %3069 = vmatprep.mubr.bf16.mxu0 0
        %3070 = vmatmul.mubr.bf16.gmra.mxu0 %v2419
        %v3071 = vpop.f32.mrf.mxu0
        %v3072 = vadd.f32 %v2879, %v3071
        %v3073 = vpop.f32.mrf.mxu0
        %v3074 = vadd.f32 %v2881, %v3073
        %v3075 = vpop.f32.mrf.mxu0
        %v3076 = vadd.f32 %v2883, %v3075
        %v3077 = vpop.f32.mrf.mxu0
        %v3078 = vadd.f32 %v2885, %v3077
        %3079 = vmatprep.mubr.bf16.mxu0 0
        %3080 = vmatmul.mubr.bf16.gmra.mxu0 %v2422
        %v3081 = vpop.f32.mrf.mxu0
        %v3082 = vadd.f32 %v2889, %v3081
        %v3083 = vpop.f32.mrf.mxu0
        %v3084 = vadd.f32 %v2891, %v3083
        %v3085 = vpop.f32.mrf.mxu0
        %v3086 = vadd.f32 %v2893, %v3085
        %v3087 = vpop.f32.mrf.mxu0
        %v3088 = vadd.f32 %v2895, %v3087
        %3089 = vmatprep.mubr.bf16.mxu0 0
        %3090 = vmatmul.mubr.bf16.gmra.mxu0 %v2425
        %v3091 = vpop.f32.mrf.mxu0
        %v3092 = vadd.f32 %v2899, %v3091
        %v3093 = vpop.f32.mrf.mxu0
        %v3094 = vadd.f32 %v2901, %v3093
        %v3095 = vpop.f32.mrf.mxu0
        %v3096 = vadd.f32 %v2903, %v3095
        %v3097 = vpop.f32.mrf.mxu0
        %v3098 = vadd.f32 %v2905, %v3097
        %3099 = vdwg.mxu0
        %v3100 = vld [vmem:[#allocation3] sm:$0xff]
        %v3101 = vld [vmem:[#allocation3 + $0x8] sm:$0xff]
        %v3102 = vld [vmem:[#allocation3 + $0x10] sm:$0xff]
        %v3103 = vld [vmem:[#allocation3 + $0x18] sm:$0xff]
        %v3104 = vld [vmem:[#allocation3 + $0x20] sm:$0xff]
        %v3105 = vld [vmem:[#allocation3 + $0x28] sm:$0xff]
        %v3106 = vld [vmem:[#allocation3 + $0x30] sm:$0xff]
        %v3107 = vld [vmem:[#allocation3 + $0x38] sm:$0xff]
        %v3108 = vld [vmem:[#allocation3 + $0x40] sm:$0xff]
        %v3109 = vld [vmem:[#allocation3 + $0x48] sm:$0xff]
        %v3110 = vld [vmem:[#allocation3 + $0x50] sm:$0xff]
        %v3111 = vld [vmem:[#allocation3 + $0x58] sm:$0xff]
        %v3112 = vld [vmem:[#allocation3 + $0x60] sm:$0xff]
        %v3113 = vld [vmem:[#allocation3 + $0x68] sm:$0xff]
        %v3114 = vld [vmem:[#allocation3 + $0x70] sm:$0xff]
        %v3115 = vld [vmem:[#allocation3 + $0x78] sm:$0xff]
        %v3116 = vld [vmem:[#allocation3 + $0x80] sm:$0xff]
        %v3117 = vld [vmem:[#allocation3 + $0x88] sm:$0xff]
        %v3118 = vld [vmem:[#allocation3 + $0x90] sm:$0xff]
        %v3119 = vld [vmem:[#allocation3 + $0x98] sm:$0xff]
        %v3120 = vld [vmem:[#allocation3 + $0xa0] sm:$0xff]
        %v3121 = vld [vmem:[#allocation3 + $0xa8] sm:$0xff]
        %v3122 = vld [vmem:[#allocation3 + $0xb0] sm:$0xff]
        %v3123 = vld [vmem:[#allocation3 + $0xb8] sm:$0xff]
        %v3124 = vld [vmem:[#allocation3 + $0xc0] sm:$0xff]
        %v3125 = vld [vmem:[#allocation3 + $0xc8] sm:$0xff]
        %v3126 = vld [vmem:[#allocation3 + $0xd0] sm:$0xff]
        %v3127 = vld [vmem:[#allocation3 + $0xd8] sm:$0xff]
        %v3128 = vld [vmem:[#allocation3 + $0xe0] sm:$0xff]
        %v3129 = vld [vmem:[#allocation3 + $0xe8] sm:$0xff]
        %v3130 = vld [vmem:[#allocation3 + $0xf0] sm:$0xff]
        %v3131 = vld [vmem:[#allocation3 + $0xf8] sm:$0xff]
        %v3132 = vld [vmem:[#allocation3 + $0x100] sm:$0xff]
        %v3133 = vld [vmem:[#allocation3 + $0x108] sm:$0xff]
        %v3134 = vld [vmem:[#allocation3 + $0x110] sm:$0xff]
        %v3135 = vld [vmem:[#allocation3 + $0x118] sm:$0xff]
        %v3136 = vld [vmem:[#allocation3 + $0x120] sm:$0xff]
        %v3137 = vld [vmem:[#allocation3 + $0x128] sm:$0xff]
        %v3138 = vld [vmem:[#allocation3 + $0x130] sm:$0xff]
        %v3139 = vld [vmem:[#allocation3 + $0x138] sm:$0xff]
        %v3140 = vld [vmem:[#allocation3 + $0x140] sm:$0xff]
        %v3141 = vld [vmem:[#allocation3 + $0x148] sm:$0xff]
        %v3142 = vld [vmem:[#allocation3 + $0x150] sm:$0xff]
        %v3143 = vld [vmem:[#allocation3 + $0x158] sm:$0xff]
        %v3144 = vld [vmem:[#allocation3 + $0x160] sm:$0xff]
        %v3145 = vld [vmem:[#allocation3 + $0x168] sm:$0xff]
        %v3146 = vld [vmem:[#allocation3 + $0x170] sm:$0xff]
        %v3147 = vld [vmem:[#allocation3 + $0x178] sm:$0xff]
        %v3148 = vld [vmem:[#allocation3 + $0x180] sm:$0xff]
        %v3149 = vld [vmem:[#allocation3 + $0x188] sm:$0xff]
        %v3150 = vld [vmem:[#allocation3 + $0x190] sm:$0xff]
        %v3151 = vld [vmem:[#allocation3 + $0x198] sm:$0xff]
        %v3152 = vld [vmem:[#allocation3 + $0x1a0] sm:$0xff]
        %v3153 = vld [vmem:[#allocation3 + $0x1a8] sm:$0xff]
        %v3154 = vld [vmem:[#allocation3 + $0x1b0] sm:$0xff]
        %v3155 = vld [vmem:[#allocation3 + $0x1b8] sm:$0xff]
        %v3156 = vld [vmem:[#allocation3 + $0x1c0] sm:$0xff]
        %v3157 = vld [vmem:[#allocation3 + $0x1c8] sm:$0xff]
        %v3158 = vld [vmem:[#allocation3 + $0x1d0] sm:$0xff]
        %v3159 = vld [vmem:[#allocation3 + $0x1d8] sm:$0xff]
        %v3160 = vld [vmem:[#allocation3 + $0x1e0] sm:$0xff]
        %v3161 = vld [vmem:[#allocation3 + $0x1e8] sm:$0xff]
        %v3162 = vld [vmem:[#allocation3 + $0x1f0] sm:$0xff]
        %v3163 = vld [vmem:[#allocation3 + $0x1f8] sm:$0xff]
        %v3164 = vadd.f32 %v3100, %v2942
        %v3165 = vadd.f32 %v3101, %v2944
        %v3166 = vadd.f32 %v3102, %v2946
        %v3167 = vadd.f32 %v3103, %v2948
        %v3168 = vadd.f32 %v3104, %v2952
        %v3169 = vadd.f32 %v3105, %v2954
        %v3170 = vadd.f32 %v3106, %v2956
        %v3171 = vadd.f32 %v3107, %v2958
        %v3172 = vadd.f32 %v3108, %v2962
        %v3173 = vadd.f32 %v3109, %v2964
        %v3174 = vadd.f32 %v3110, %v2966
        %v3175 = vadd.f32 %v3111, %v2968
        %v3176 = vadd.f32 %v3112, %v2972
        %v3177 = vadd.f32 %v3113, %v2974
        %v3178 = vadd.f32 %v3114, %v2976
        %v3179 = vadd.f32 %v3115, %v2978
        %v3180 = vadd.f32 %v3116, %v2982
        %v3181 = vadd.f32 %v3117, %v2984
        %v3182 = vadd.f32 %v3118, %v2986
        %v3183 = vadd.f32 %v3119, %v2988
        %v3184 = vadd.f32 %v3120, %v2992
        %v3185 = vadd.f32 %v3121, %v2994
        %v3186 = vadd.f32 %v3122, %v2996
        %v3187 = vadd.f32 %v3123, %v2998
        %v3188 = vadd.f32 %v3124, %v3002
        %v3189 = vadd.f32 %v3125, %v3004
        %v3190 = vadd.f32 %v3126, %v3006
        %v3191 = vadd.f32 %v3127, %v3008
        %v3192 = vadd.f32 %v3128, %v3012
        %v3193 = vadd.f32 %v3129, %v3014
        %v3194 = vadd.f32 %v3130, %v3016
        %v3195 = vadd.f32 %v3131, %v3018
        %v3196 = vadd.f32 %v3132, %v3022
        %v3197 = vadd.f32 %v3133, %v3024
        %v3198 = vadd.f32 %v3134, %v3026
        %v3199 = vadd.f32 %v3135, %v3028
        %v3200 = vadd.f32 %v3136, %v3032
        %v3201 = vadd.f32 %v3137, %v3034
        %v3202 = vadd.f32 %v3138, %v3036
        %v3203 = vadd.f32 %v3139, %v3038
        %v3204 = vadd.f32 %v3140, %v3042
        %v3205 = vadd.f32 %v3141, %v3044
        %v3206 = vadd.f32 %v3142, %v3046
        %v3207 = vadd.f32 %v3143, %v3048
        %v3208 = vadd.f32 %v3144, %v3052
        %v3209 = vadd.f32 %v3145, %v3054
        %v3210 = vadd.f32 %v3146, %v3056
        %v3211 = vadd.f32 %v3147, %v3058
        %v3212 = vadd.f32 %v3148, %v3062
        %v3213 = vadd.f32 %v3149, %v3064
        %v3214 = vadd.f32 %v3150, %v3066
        %v3215 = vadd.f32 %v3151, %v3068
        %v3216 = vadd.f32 %v3152, %v3072
        %v3217 = vadd.f32 %v3153, %v3074
        %v3218 = vadd.f32 %v3154, %v3076
        %v3219 = vadd.f32 %v3155, %v3078
        %v3220 = vadd.f32 %v3156, %v3082
        %v3221 = vadd.f32 %v3157, %v3084
        %v3222 = vadd.f32 %v3158, %v3086
        %v3223 = vadd.f32 %v3159, %v3088
        %v3224 = vadd.f32 %v3160, %v3092
        %v3225 = vadd.f32 %v3161, %v3094
        %v3226 = vadd.f32 %v3162, %v3096
        %v3227 = vadd.f32 %v3163, %v3098
        %3228 = vst [vmem:[#allocation3] sm:$0xff] %v3164
        %3229 = vst [vmem:[#allocation3 + $0x8] sm:$0xff] %v3165
        %3230 = vst [vmem:[#allocation3 + $0x10] sm:$0xff] %v3166
        %3231 = vst [vmem:[#allocation3 + $0x18] sm:$0xff] %v3167
        %3232 = vst [vmem:[#allocation3 + $0x20] sm:$0xff] %v3168
        %3233 = vst [vmem:[#allocation3 + $0x28] sm:$0xff] %v3169
        %3234 = vst [vmem:[#allocation3 + $0x30] sm:$0xff] %v3170
        %3235 = vst [vmem:[#allocation3 + $0x38] sm:$0xff] %v3171
        %3236 = vst [vmem:[#allocation3 + $0x40] sm:$0xff] %v3172
        %3237 = vst [vmem:[#allocation3 + $0x48] sm:$0xff] %v3173
        %3238 = vst [vmem:[#allocation3 + $0x50] sm:$0xff] %v3174
        %3239 = vst [vmem:[#allocation3 + $0x58] sm:$0xff] %v3175
        %3240 = vst [vmem:[#allocation3 + $0x60] sm:$0xff] %v3176
        %3241 = vst [vmem:[#allocation3 + $0x68] sm:$0xff] %v3177
        %3242 = vst [vmem:[#allocation3 + $0x70] sm:$0xff] %v3178
        %3243 = vst [vmem:[#allocation3 + $0x78] sm:$0xff] %v3179
        %3244 = vst [vmem:[#allocation3 + $0x80] sm:$0xff] %v3180
        %3245 = vst [vmem:[#allocation3 + $0x88] sm:$0xff] %v3181
        %3246 = vst [vmem:[#allocation3 + $0x90] sm:$0xff] %v3182
        %3247 = vst [vmem:[#allocation3 + $0x98] sm:$0xff] %v3183
        %3248 = vst [vmem:[#allocation3 + $0xa0] sm:$0xff] %v3184
        %3249 = vst [vmem:[#allocation3 + $0xa8] sm:$0xff] %v3185
        %3250 = vst [vmem:[#allocation3 + $0xb0] sm:$0xff] %v3186
        %3251 = vst [vmem:[#allocation3 + $0xb8] sm:$0xff] %v3187
        %3252 = vst [vmem:[#allocation3 + $0xc0] sm:$0xff] %v3188
        %3253 = vst [vmem:[#allocation3 + $0xc8] sm:$0xff] %v3189
        %3254 = vst [vmem:[#allocation3 + $0xd0] sm:$0xff] %v3190
        %3255 = vst [vmem:[#allocation3 + $0xd8] sm:$0xff] %v3191
        %3256 = vst [vmem:[#allocation3 + $0xe0] sm:$0xff] %v3192
        %3257 = vst [vmem:[#allocation3 + $0xe8] sm:$0xff] %v3193
        %3258 = vst [vmem:[#allocation3 + $0xf0] sm:$0xff] %v3194
        %3259 = vst [vmem:[#allocation3 + $0xf8] sm:$0xff] %v3195
        %3260 = vst [vmem:[#allocation3 + $0x100] sm:$0xff] %v3196
        %3261 = vst [vmem:[#allocation3 + $0x108] sm:$0xff] %v3197
        %3262 = vst [vmem:[#allocation3 + $0x110] sm:$0xff] %v3198
        %3263 = vst [vmem:[#allocation3 + $0x118] sm:$0xff] %v3199
        %3264 = vst [vmem:[#allocation3 + $0x120] sm:$0xff] %v3200
        %3265 = vst [vmem:[#allocation3 + $0x128] sm:$0xff] %v3201
        %3266 = vst [vmem:[#allocation3 + $0x130] sm:$0xff] %v3202
        %3267 = vst [vmem:[#allocation3 + $0x138] sm:$0xff] %v3203
        %3268 = vst [vmem:[#allocation3 + $0x140] sm:$0xff] %v3204
        %3269 = vst [vmem:[#allocation3 + $0x148] sm:$0xff] %v3205
        %3270 = vst [vmem:[#allocation3 + $0x150] sm:$0xff] %v3206
        %3271 = vst [vmem:[#allocation3 + $0x158] sm:$0xff] %v3207
        %3272 = vst [vmem:[#allocation3 + $0x160] sm:$0xff] %v3208
        %3273 = vst [vmem:[#allocation3 + $0x168] sm:$0xff] %v3209
        %3274 = vst [vmem:[#allocation3 + $0x170] sm:$0xff] %v3210
        %3275 = vst [vmem:[#allocation3 + $0x178] sm:$0xff] %v3211
        %3276 = vst [vmem:[#allocation3 + $0x180] sm:$0xff] %v3212
        %3277 = vst [vmem:[#allocation3 + $0x188] sm:$0xff] %v3213
        %3278 = vst [vmem:[#allocation3 + $0x190] sm:$0xff] %v3214
        %3279 = vst [vmem:[#allocation3 + $0x198] sm:$0xff] %v3215
        %3280 = vst [vmem:[#allocation3 + $0x1a0] sm:$0xff] %v3216
        %3281 = vst [vmem:[#allocation3 + $0x1a8] sm:$0xff] %v3217
        %3282 = vst [vmem:[#allocation3 + $0x1b0] sm:$0xff] %v3218
        %3283 = vst [vmem:[#allocation3 + $0x1b8] sm:$0xff] %v3219
        %3284 = vst [vmem:[#allocation3 + $0x1c0] sm:$0xff] %v3220
        %3285 = vst [vmem:[#allocation3 + $0x1c8] sm:$0xff] %v3221
        %3286 = vst [vmem:[#allocation3 + $0x1d0] sm:$0xff] %v3222
        %3287 = vst [vmem:[#allocation3 + $0x1d8] sm:$0xff] %v3223
        %3288 = vst [vmem:[#allocation3 + $0x1e0] sm:$0xff] %v3224
        %3289 = vst [vmem:[#allocation3 + $0x1e8] sm:$0xff] %v3225
        %3290 = vst [vmem:[#allocation3 + $0x1f0] sm:$0xff] %v3226
        %3291 = vst [vmem:[#allocation3 + $0x1f8] sm:$0xff] %v3227
        %s3292 = scalar_lea.vmem [#allocation2], 48
        %v3293 = vld [vmem:[%s3292] sm:$0xff]
        %v3294 = vld [vmem:[%s3292 + $0x8] sm:$0xf]
        %v3295 = vld [vmem:[%s3292 + $0xc] sm:$0xff]
        %v3296 = vld [vmem:[%s3292 + $0x14] sm:$0xf]
        %v3297 = vld [vmem:[%s3292 + $0x18] sm:$0xff]
        %v3298 = vld [vmem:[%s3292 + $0x20] sm:$0xf]
        %v3299 = vld [vmem:[%s3292 + $0x24] sm:$0xff]
        %v3300 = vld [vmem:[%s3292 + $0x2c] sm:$0xf]
        %v3301 = vld [vmem:[%s3292 + $0x30] sm:$0xff]
        %v3302 = vld [vmem:[%s3292 + $0x38] sm:$0xf]
        %v3303 = vld [vmem:[%s3292 + $0x3c] sm:$0xff]
        %v3304 = vld [vmem:[%s3292 + $0x44] sm:$0xf]
        %v3305 = vld [vmem:[%s3292 + $0x48] sm:$0xff]
        %v3306 = vld [vmem:[%s3292 + $0x50] sm:$0xf]
        %v3307 = vld [vmem:[%s3292 + $0x54] sm:$0xff]
        %v3308 = vld [vmem:[%s3292 + $0x5c] sm:$0xf]
        %v3309 = vld [vmem:[%s3292 + $0x60] sm:$0xff]
        %v3310 = vld [vmem:[%s3292 + $0x68] sm:$0xf]
        %v3311 = vld [vmem:[%s3292 + $0x6c] sm:$0xff]
        %v3312 = vld [vmem:[%s3292 + $0x74] sm:$0xf]
        %v3313 = vld [vmem:[%s3292 + $0x78] sm:$0xff]
        %v3314 = vld [vmem:[%s3292 + $0x80] sm:$0xf]
        %v3315 = vld [vmem:[%s3292 + $0x84] sm:$0xff]
        %v3316 = vld [vmem:[%s3292 + $0x8c] sm:$0xf]
        %v3317 = vld [vmem:[%s3292 + $0x90] sm:$0xff]
        %v3318 = vld [vmem:[%s3292 + $0x98] sm:$0xf]
        %v3319 = vld [vmem:[%s3292 + $0x9c] sm:$0xff]
        %v3320 = vld [vmem:[%s3292 + $0xa4] sm:$0xf]
        %v3321 = vld [vmem:[%s3292 + $0xa8] sm:$0xff]
        %v3322 = vld [vmem:[%s3292 + $0xb0] sm:$0xf]
        %v3323 = vld [vmem:[%s3292 + $0xb4] sm:$0xff]
        %v3324 = vld [vmem:[%s3292 + $0xbc] sm:$0xf]
        %v3325 = vld [vmem:[%s3292 + $0xc0] sm:$0xff]
        %v3326 = vld [vmem:[%s3292 + $0xc8] sm:$0xf]
        %v3327 = vld [vmem:[%s3292 + $0xcc] sm:$0xff]
        %v3328 = vld [vmem:[%s3292 + $0xd4] sm:$0xf]
        %v3329 = vld [vmem:[%s3292 + $0xd8] sm:$0xff]
        %v3330 = vld [vmem:[%s3292 + $0xe0] sm:$0xf]
        %v3331 = vld [vmem:[%s3292 + $0xe4] sm:$0xff]
        %v3332 = vld [vmem:[%s3292 + $0xec] sm:$0xf]
        %v3333 = vld [vmem:[%s3292 + $0xf0] sm:$0xff]
        %v3334 = vld [vmem:[%s3292 + $0xf8] sm:$0xf]
        %v3335 = vld [vmem:[%s3292 + $0xfc] sm:$0xff]
        %v3336 = vld [vmem:[%s3292 + $0x104] sm:$0xf]
        %v3337 = vld [vmem:[%s3292 + $0x108] sm:$0xff]
        %v3338 = vld [vmem:[%s3292 + $0x110] sm:$0xf]
        %v3339 = vld [vmem:[%s3292 + $0x114] sm:$0xff]
        %v3340 = vld [vmem:[%s3292 + $0x11c] sm:$0xf]
        %v3341 = vld [vmem:[%s3292 + $0x120] sm:$0xff]
        %v3342 = vld [vmem:[%s3292 + $0x128] sm:$0xf]
        %v3343 = vld [vmem:[%s3292 + $0x12c] sm:$0xff]
        %v3344 = vld [vmem:[%s3292 + $0x134] sm:$0xf]
        %v3345 = vld [vmem:[%s3292 + $0x138] sm:$0xff]
        %v3346 = vld [vmem:[%s3292 + $0x140] sm:$0xf]
        %v3347 = vld [vmem:[%s3292 + $0x144] sm:$0xff]
        %v3348 = vld [vmem:[%s3292 + $0x14c] sm:$0xf]
        %v3349 = vld [vmem:[%s3292 + $0x150] sm:$0xff]
        %v3350 = vld [vmem:[%s3292 + $0x158] sm:$0xf]
        %v3351 = vld [vmem:[%s3292 + $0x15c] sm:$0xff]
        %v3352 = vld [vmem:[%s3292 + $0x164] sm:$0xf]
        %v3353 = vld [vmem:[%s3292 + $0x168] sm:$0xff]
        %v3354 = vld [vmem:[%s3292 + $0x170] sm:$0xf]
        %v3355 = vld [vmem:[%s3292 + $0x174] sm:$0xff]
        %v3356 = vld [vmem:[%s3292 + $0x17c] sm:$0xf]
        %s3357 = scalar_lea.vmem [#allocation7], 768
        %v3358 = vld [vmem:[%s3357] sm:$0xff]
        %v3359 = vld [vmem:[%s3357 + $0x8] sm:$0xff]
        %v3360 = vld [vmem:[%s3357 + $0x10] sm:$0xff]
        %v3361 = vld [vmem:[%s3357 + $0x18] sm:$0xff]
        %v3362 = vld [vmem:[%s3357 + $0x20] sm:$0xff]
        %v3363 = vld [vmem:[%s3357 + $0x28] sm:$0xff]
        %v3364 = vld [vmem:[%s3357 + $0x30] sm:$0xff]
        %v3365 = vld [vmem:[%s3357 + $0x38] sm:$0xff]
        %v3366 = vld [vmem:[%s3357 + $0x40] sm:$0xff]
        %v3367 = vld [vmem:[%s3357 + $0x48] sm:$0xff]
        %v3368 = vld [vmem:[%s3357 + $0x50] sm:$0xff]
        %v3369 = vld [vmem:[%s3357 + $0x58] sm:$0xff]
        %v3370 = vld [vmem:[%s3357 + $0x60] sm:$0xff]
        %v3371 = vld [vmem:[%s3357 + $0x68] sm:$0xff]
        %v3372 = vld [vmem:[%s3357 + $0x70] sm:$0xff]
        %v3373 = vld [vmem:[%s3357 + $0x78] sm:$0xff]
        %v3374 = vld [vmem:[%s3357 + $0x80] sm:$0xff]
        %v3375 = vld [vmem:[%s3357 + $0x88] sm:$0xff]
        %v3376 = vld [vmem:[%s3357 + $0x90] sm:$0xff]
        %v3377 = vld [vmem:[%s3357 + $0x98] sm:$0xff]
        %v3378 = vld [vmem:[%s3357 + $0xa0] sm:$0xff]
        %v3379 = vld [vmem:[%s3357 + $0xa8] sm:$0xff]
        %v3380 = vld [vmem:[%s3357 + $0xb0] sm:$0xff]
        %v3381 = vld [vmem:[%s3357 + $0xb8] sm:$0xff]
        %v3382 = vld [vmem:[%s3357 + $0xc0] sm:$0xff]
        %v3383 = vld [vmem:[%s3357 + $0xc8] sm:$0xff]
        %v3384 = vld [vmem:[%s3357 + $0xd0] sm:$0xff]
        %v3385 = vld [vmem:[%s3357 + $0xd8] sm:$0xff]
        %v3386 = vld [vmem:[%s3357 + $0xe0] sm:$0xff]
        %v3387 = vld [vmem:[%s3357 + $0xe8] sm:$0xff]
        %v3388 = vld [vmem:[%s3357 + $0xf0] sm:$0xff]
        %v3389 = vld [vmem:[%s3357 + $0xf8] sm:$0xff]
        %v3390 = vld [vmem:[%s3357 + $0x100] sm:$0xff]
        %v3391 = vld [vmem:[%s3357 + $0x108] sm:$0xff]
        %v3392 = vld [vmem:[%s3357 + $0x110] sm:$0xff]
        %v3393 = vld [vmem:[%s3357 + $0x118] sm:$0xff]
        %v3394 = vld [vmem:[%s3357 + $0x120] sm:$0xff]
        %v3395 = vld [vmem:[%s3357 + $0x128] sm:$0xff]
        %v3396 = vld [vmem:[%s3357 + $0x130] sm:$0xff]
        %v3397 = vld [vmem:[%s3357 + $0x138] sm:$0xff]
        %v3398 = vld [vmem:[%s3357 + $0x140] sm:$0xff]
        %v3399 = vld [vmem:[%s3357 + $0x148] sm:$0xff]
        %v3400 = vld [vmem:[%s3357 + $0x150] sm:$0xff]
        %v3401 = vld [vmem:[%s3357 + $0x158] sm:$0xff]
        %v3402 = vld [vmem:[%s3357 + $0x160] sm:$0xff]
        %v3403 = vld [vmem:[%s3357 + $0x168] sm:$0xff]
        %v3404 = vld [vmem:[%s3357 + $0x170] sm:$0xff]
        %v3405 = vld [vmem:[%s3357 + $0x178] sm:$0xff]
        %v3470 = vunpack.c.l.b16 %v3293
        %v3471 = vunpack.c.h.b16 %v3293
        %v3472 = vunpack.c.l.b16 %v3294
        %v3473 = vunpack.c.l.b16 %v3295
        %v3474 = vunpack.c.h.b16 %v3295
        %v3475 = vunpack.c.l.b16 %v3296
        %v3476 = vunpack.c.l.b16 %v3297
        %v3477 = vunpack.c.h.b16 %v3297
        %v3478 = vunpack.c.l.b16 %v3298
        %v3479 = vunpack.c.l.b16 %v3299
        %v3480 = vunpack.c.h.b16 %v3299
        %v3481 = vunpack.c.l.b16 %v3300
        %v3482 = vunpack.c.l.b16 %v3301
        %v3483 = vunpack.c.h.b16 %v3301
        %v3484 = vunpack.c.l.b16 %v3302
        %v3485 = vunpack.c.l.b16 %v3303
        %v3486 = vunpack.c.h.b16 %v3303
        %v3487 = vunpack.c.l.b16 %v3304
        %v3488 = vunpack.c.l.b16 %v3305
        %v3489 = vunpack.c.h.b16 %v3305
        %v3490 = vunpack.c.l.b16 %v3306
        %v3491 = vunpack.c.l.b16 %v3307
        %v3492 = vunpack.c.h.b16 %v3307
        %v3493 = vunpack.c.l.b16 %v3308
        %v3494 = vunpack.c.l.b16 %v3309
        %v3495 = vunpack.c.h.b16 %v3309
        %v3496 = vunpack.c.l.b16 %v3310
        %v3497 = vunpack.c.l.b16 %v3311
        %v3498 = vunpack.c.h.b16 %v3311
        %v3499 = vunpack.c.l.b16 %v3312
        %v3500 = vunpack.c.l.b16 %v3313
        %v3501 = vunpack.c.h.b16 %v3313
        %v3502 = vunpack.c.l.b16 %v3314
        %v3503 = vunpack.c.l.b16 %v3315
        %v3504 = vunpack.c.h.b16 %v3315
        %v3505 = vunpack.c.l.b16 %v3316
        %v3506 = vunpack.c.l.b16 %v3317
        %v3507 = vunpack.c.h.b16 %v3317
        %v3508 = vunpack.c.l.b16 %v3318
        %v3509 = vunpack.c.l.b16 %v3319
        %v3510 = vunpack.c.h.b16 %v3319
        %v3511 = vunpack.c.l.b16 %v3320
        %v3512 = vunpack.c.l.b16 %v3321
        %v3513 = vunpack.c.h.b16 %v3321
        %v3514 = vunpack.c.l.b16 %v3322
        %v3515 = vunpack.c.l.b16 %v3323
        %v3516 = vunpack.c.h.b16 %v3323
        %v3517 = vunpack.c.l.b16 %v3324
        %v3518 = vunpack.c.l.b16 %v3325
        %v3519 = vunpack.c.h.b16 %v3325
        %v3520 = vunpack.c.l.b16 %v3326
        %v3521 = vunpack.c.l.b16 %v3327
        %v3522 = vunpack.c.h.b16 %v3327
        %v3523 = vunpack.c.l.b16 %v3328
        %v3524 = vunpack.c.l.b16 %v3329
        %v3525 = vunpack.c.h.b16 %v3329
        %v3526 = vunpack.c.l.b16 %v3330
        %v3527 = vunpack.c.l.b16 %v3331
        %v3528 = vunpack.c.h.b16 %v3331
        %v3529 = vunpack.c.l.b16 %v3332
        %v3530 = vunpack.c.l.b16 %v3333
        %v3531 = vunpack.c.h.b16 %v3333
        %v3532 = vunpack.c.l.b16 %v3334
        %v3533 = vunpack.c.l.b16 %v3335
        %v3534 = vunpack.c.h.b16 %v3335
        %v3535 = vunpack.c.l.b16 %v3336
        %v3536 = vunpack.c.l.b16 %v3337
        %v3537 = vunpack.c.h.b16 %v3337
        %v3538 = vunpack.c.l.b16 %v3338
        %v3539 = vunpack.c.l.b16 %v3339
        %v3540 = vunpack.c.h.b16 %v3339
        %v3541 = vunpack.c.l.b16 %v3340
        %v3542 = vunpack.c.l.b16 %v3341
        %v3543 = vunpack.c.h.b16 %v3341
        %v3544 = vunpack.c.l.b16 %v3342
        %v3545 = vunpack.c.l.b16 %v3343
        %v3546 = vunpack.c.h.b16 %v3343
        %v3547 = vunpack.c.l.b16 %v3344
        %v3548 = vunpack.c.l.b16 %v3345
        %v3549 = vunpack.c.h.b16 %v3345
        %v3550 = vunpack.c.l.b16 %v3346
        %v3551 = vunpack.c.l.b16 %v3347
        %v3552 = vunpack.c.h.b16 %v3347
        %v3553 = vunpack.c.l.b16 %v3348
        %v3554 = vunpack.c.l.b16 %v3349
        %v3555 = vunpack.c.h.b16 %v3349
        %v3556 = vunpack.c.l.b16 %v3350
        %v3557 = vunpack.c.l.b16 %v3351
        %v3558 = vunpack.c.h.b16 %v3351
        %v3559 = vunpack.c.l.b16 %v3352
        %v3560 = vunpack.c.l.b16 %v3353
        %v3561 = vunpack.c.h.b16 %v3353
        %v3562 = vunpack.c.l.b16 %v3354
        %v3563 = vunpack.c.l.b16 %v3355
        %v3564 = vunpack.c.h.b16 %v3355
        %v3565 = vunpack.c.l.b16 %v3356
        %v3566 = vpack.c.b16 %v3473, %v3470
        %v3567 = vpack.c.b16 %v3474, %v3471
        %v3568 = vpack.c.b16 %v3475, %v3472
        %v3569 = vpack.c.b16 %v3479, %v3476
        %v3570 = vpack.c.b16 %v3480, %v3477
        %v3571 = vpack.c.b16 %v3481, %v3478
        %v3572 = vpack.c.b16 %v3485, %v3482
        %v3573 = vpack.c.b16 %v3486, %v3483
        %v3574 = vpack.c.b16 %v3487, %v3484
        %v3575 = vpack.c.b16 %v3491, %v3488
        %v3576 = vpack.c.b16 %v3492, %v3489
        %v3577 = vpack.c.b16 %v3493, %v3490
        %v3578 = vpack.c.b16 %v3497, %v3494
        %v3579 = vpack.c.b16 %v3498, %v3495
        %v3580 = vpack.c.b16 %v3499, %v3496
        %v3581 = vpack.c.b16 %v3503, %v3500
        %v3582 = vpack.c.b16 %v3504, %v3501
        %v3583 = vpack.c.b16 %v3505, %v3502
        %v3584 = vpack.c.b16 %v3509, %v3506
        %v3585 = vpack.c.b16 %v3510, %v3507
        %v3586 = vpack.c.b16 %v3511, %v3508
        %v3587 = vpack.c.b16 %v3515, %v3512
        %v3588 = vpack.c.b16 %v3516, %v3513
        %v3589 = vpack.c.b16 %v3517, %v3514
        %v3590 = vpack.c.b16 %v3521, %v3518
        %v3591 = vpack.c.b16 %v3522, %v3519
        %v3592 = vpack.c.b16 %v3523, %v3520
        %v3593 = vpack.c.b16 %v3527, %v3524
        %v3594 = vpack.c.b16 %v3528, %v3525
        %v3595 = vpack.c.b16 %v3529, %v3526
        %v3596 = vpack.c.b16 %v3533, %v3530
        %v3597 = vpack.c.b16 %v3534, %v3531
        %v3598 = vpack.c.b16 %v3535, %v3532
        %v3599 = vpack.c.b16 %v3539, %v3536
        %v3600 = vpack.c.b16 %v3540, %v3537
        %v3601 = vpack.c.b16 %v3541, %v3538
        %v3602 = vpack.c.b16 %v3545, %v3542
        %v3603 = vpack.c.b16 %v3546, %v3543
        %v3604 = vpack.c.b16 %v3547, %v3544
        %v3605 = vpack.c.b16 %v3551, %v3548
        %v3606 = vpack.c.b16 %v3552, %v3549
        %v3607 = vpack.c.b16 %v3553, %v3550
        %v3608 = vpack.c.b16 %v3557, %v3554
        %v3609 = vpack.c.b16 %v3558, %v3555
        %v3610 = vpack.c.b16 %v3559, %v3556
        %v3611 = vpack.c.b16 %v3563, %v3560
        %v3612 = vpack.c.b16 %v3564, %v3561
        %v3613 = vpack.c.b16 %v3565, %v3562
        %v3710 = vunpack.c.l.b16 %v3358
        %v3711 = vunpack.c.h.b16 %v3358
        %v3712 = vunpack.c.l.b16 %v3359
        %v3713 = vunpack.c.h.b16 %v3359
        %v3714 = vunpack.c.l.b16 %v3360
        %v3715 = vunpack.c.h.b16 %v3360
        %v3716 = vunpack.c.l.b16 %v3361
        %v3717 = vunpack.c.h.b16 %v3361
        %v3718 = vunpack.c.l.b16 %v3362
        %v3719 = vunpack.c.h.b16 %v3362
        %v3720 = vunpack.c.l.b16 %v3363
        %v3721 = vunpack.c.h.b16 %v3363
        %v3722 = vunpack.c.l.b16 %v3364
        %v3723 = vunpack.c.h.b16 %v3364
        %v3724 = vunpack.c.l.b16 %v3365
        %v3725 = vunpack.c.h.b16 %v3365
        %v3726 = vunpack.c.l.b16 %v3366
        %v3727 = vunpack.c.h.b16 %v3366
        %v3728 = vunpack.c.l.b16 %v3367
        %v3729 = vunpack.c.h.b16 %v3367
        %v3730 = vunpack.c.l.b16 %v3368
        %v3731 = vunpack.c.h.b16 %v3368
        %v3732 = vunpack.c.l.b16 %v3369
        %v3733 = vunpack.c.h.b16 %v3369
        %v3734 = vunpack.c.l.b16 %v3370
        %v3735 = vunpack.c.h.b16 %v3370
        %v3736 = vunpack.c.l.b16 %v3371
        %v3737 = vunpack.c.h.b16 %v3371
        %v3738 = vunpack.c.l.b16 %v3372
        %v3739 = vunpack.c.h.b16 %v3372
        %v3740 = vunpack.c.l.b16 %v3373
        %v3741 = vunpack.c.h.b16 %v3373
        %v3742 = vunpack.c.l.b16 %v3374
        %v3743 = vunpack.c.h.b16 %v3374
        %v3744 = vunpack.c.l.b16 %v3375
        %v3745 = vunpack.c.h.b16 %v3375
        %v3746 = vunpack.c.l.b16 %v3376
        %v3747 = vunpack.c.h.b16 %v3376
        %v3748 = vunpack.c.l.b16 %v3377
        %v3749 = vunpack.c.h.b16 %v3377
        %v3750 = vunpack.c.l.b16 %v3378
        %v3751 = vunpack.c.h.b16 %v3378
        %v3752 = vunpack.c.l.b16 %v3379
        %v3753 = vunpack.c.h.b16 %v3379
        %v3754 = vunpack.c.l.b16 %v3380
        %v3755 = vunpack.c.h.b16 %v3380
        %v3756 = vunpack.c.l.b16 %v3381
        %v3757 = vunpack.c.h.b16 %v3381
        %v3758 = vunpack.c.l.b16 %v3382
        %v3759 = vunpack.c.h.b16 %v3382
        %v3760 = vunpack.c.l.b16 %v3383
        %v3761 = vunpack.c.h.b16 %v3383
        %v3762 = vunpack.c.l.b16 %v3384
        %v3763 = vunpack.c.h.b16 %v3384
        %v3764 = vunpack.c.l.b16 %v3385
        %v3765 = vunpack.c.h.b16 %v3385
        %v3766 = vunpack.c.l.b16 %v3386
        %v3767 = vunpack.c.h.b16 %v3386
        %v3768 = vunpack.c.l.b16 %v3387
        %v3769 = vunpack.c.h.b16 %v3387
        %v3770 = vunpack.c.l.b16 %v3388
        %v3771 = vunpack.c.h.b16 %v3388
        %v3772 = vunpack.c.l.b16 %v3389
        %v3773 = vunpack.c.h.b16 %v3389
        %v3774 = vunpack.c.l.b16 %v3390
        %v3775 = vunpack.c.h.b16 %v3390
        %v3776 = vunpack.c.l.b16 %v3391
        %v3777 = vunpack.c.h.b16 %v3391
        %v3778 = vunpack.c.l.b16 %v3392
        %v3779 = vunpack.c.h.b16 %v3392
        %v3780 = vunpack.c.l.b16 %v3393
        %v3781 = vunpack.c.h.b16 %v3393
        %v3782 = vunpack.c.l.b16 %v3394
        %v3783 = vunpack.c.h.b16 %v3394
        %v3784 = vunpack.c.l.b16 %v3395
        %v3785 = vunpack.c.h.b16 %v3395
        %v3786 = vunpack.c.l.b16 %v3396
        %v3787 = vunpack.c.h.b16 %v3396
        %v3788 = vunpack.c.l.b16 %v3397
        %v3789 = vunpack.c.h.b16 %v3397
        %v3790 = vunpack.c.l.b16 %v3398
        %v3791 = vunpack.c.h.b16 %v3398
        %v3792 = vunpack.c.l.b16 %v3399
        %v3793 = vunpack.c.h.b16 %v3399
        %v3794 = vunpack.c.l.b16 %v3400
        %v3795 = vunpack.c.h.b16 %v3400
        %v3796 = vunpack.c.l.b16 %v3401
        %v3797 = vunpack.c.h.b16 %v3401
        %v3798 = vunpack.c.l.b16 %v3402
        %v3799 = vunpack.c.h.b16 %v3402
        %v3800 = vunpack.c.l.b16 %v3403
        %v3801 = vunpack.c.h.b16 %v3403
        %v3802 = vunpack.c.l.b16 %v3404
        %v3803 = vunpack.c.h.b16 %v3404
        %v3804 = vunpack.c.l.b16 %v3405
        %v3805 = vunpack.c.h.b16 %v3405
        %v3806 = vpack.c.b16 %v3712, %v3710
        %v3807 = vpack.c.b16 %v3713, %v3711
        %v3808 = vpack.c.b16 %v3716, %v3714
        %v3809 = vpack.c.b16 %v3717, %v3715
        %v3810 = vpack.c.b16 %v3720, %v3718
        %v3811 = vpack.c.b16 %v3721, %v3719
        %v3812 = vpack.c.b16 %v3724, %v3722
        %v3813 = vpack.c.b16 %v3725, %v3723
        %v3814 = vpack.c.b16 %v3728, %v3726
        %v3815 = vpack.c.b16 %v3729, %v3727
        %v3816 = vpack.c.b16 %v3732, %v3730
        %v3817 = vpack.c.b16 %v3733, %v3731
        %v3818 = vpack.c.b16 %v3736, %v3734
        %v3819 = vpack.c.b16 %v3737, %v3735
        %v3820 = vpack.c.b16 %v3740, %v3738
        %v3821 = vpack.c.b16 %v3741, %v3739
        %v3822 = vpack.c.b16 %v3744, %v3742
        %v3823 = vpack.c.b16 %v3745, %v3743
        %v3824 = vpack.c.b16 %v3748, %v3746
        %v3825 = vpack.c.b16 %v3749, %v3747
        %v3826 = vpack.c.b16 %v3752, %v3750
        %v3827 = vpack.c.b16 %v3753, %v3751
        %v3828 = vpack.c.b16 %v3756, %v3754
        %v3829 = vpack.c.b16 %v3757, %v3755
        %v3830 = vpack.c.b16 %v3760, %v3758
        %v3831 = vpack.c.b16 %v3761, %v3759
        %v3832 = vpack.c.b16 %v3764, %v3762
        %v3833 = vpack.c.b16 %v3765, %v3763
        %v3834 = vpack.c.b16 %v3768, %v3766
        %v3835 = vpack.c.b16 %v3769, %v3767
        %v3836 = vpack.c.b16 %v3772, %v3770
        %v3837 = vpack.c.b16 %v3773, %v3771
        %v3838 = vpack.c.b16 %v3776, %v3774
        %v3839 = vpack.c.b16 %v3777, %v3775
        %v3840 = vpack.c.b16 %v3780, %v3778
        %v3841 = vpack.c.b16 %v3781, %v3779
        %v3842 = vpack.c.b16 %v3784, %v3782
        %v3843 = vpack.c.b16 %v3785, %v3783
        %v3844 = vpack.c.b16 %v3788, %v3786
        %v3845 = vpack.c.b16 %v3789, %v3787
        %v3846 = vpack.c.b16 %v3792, %v3790
        %v3847 = vpack.c.b16 %v3793, %v3791
        %v3848 = vpack.c.b16 %v3796, %v3794
        %v3849 = vpack.c.b16 %v3797, %v3795
        %v3850 = vpack.c.b16 %v3800, %v3798
        %v3851 = vpack.c.b16 %v3801, %v3799
        %v3852 = vpack.c.b16 %v3804, %v3802
        %v3853 = vpack.c.b16 %v3805, %v3803
        %3902 = vmatprep.subr.bf16.mxu0 %v3821
        %3903 = vmatpush1.bf16.msra.mxu0 %v3820
        %3904 = vmatprep.subr.bf16.mxu0 %v3819
        %3905 = vmatpush1.bf16.msra.mxu0 %v3818
        %3906 = vmatprep.subr.bf16.mxu0 %v3817
        %3907 = vmatpush1.bf16.msra.mxu0 %v3816
        %3908 = vmatprep.subr.bf16.mxu0 %v3815
        %3909 = vmatpush1.bf16.msra.mxu0 %v3814
        %3910 = vmatprep.subr.bf16.mxu0 %v3813
        %3911 = vmatpush1.bf16.msra.mxu0 %v3812
        %3912 = vmatprep.subr.bf16.mxu0 %v3811
        %3913 = vmatpush1.bf16.msra.mxu0 %v3810
        %3914 = vmatprep.subr.bf16.mxu0 %v3809
        %3915 = vmatpush1.bf16.msra.mxu0 %v3808
        %3916 = vmatprep.subr.bf16.mxu0 %v3807
        %3917 = vmatpush1.bf16.msra.mxu0 %v3806
        %3918 = vmatprep.subr.bf16.mxu0 %v3837
        %3919 = vmatpush2.bf16.msra.mxu0 %v3836
        %3920 = vmatprep.subr.bf16.mxu0 %v3835
        %3921 = vmatpush2.bf16.msra.mxu0 %v3834
        %3922 = vmatprep.subr.bf16.mxu0 %v3833
        %3923 = vmatpush2.bf16.msra.mxu0 %v3832
        %3924 = vmatprep.subr.bf16.mxu0 %v3831
        %3925 = vmatpush2.bf16.msra.mxu0 %v3830
        %3926 = vmatprep.subr.bf16.mxu0 %v3829
        %3927 = vmatpush2.bf16.msra.mxu0 %v3828
        %3928 = vmatprep.subr.bf16.mxu0 %v3827
        %3929 = vmatpush2.bf16.msra.mxu0 %v3826
        %3930 = vmatprep.subr.bf16.mxu0 %v3825
        %3931 = vmatpush2.bf16.msra.mxu0 %v3824
        %3932 = vmatprep.subr.bf16.mxu0 %v3823
        %3933 = vmatpush2.bf16.msra.mxu0 %v3822
        %3934 = vmatprep.mubr.bf16.mxu0 %v3567
        %3935 = vmatmul.mubr.bf16.gmra.mxu0 %v3566
        %v3936 = vpop.f32.mrf.mxu0
        %v3937 = vadd.f32 0.0, %v3936
        %v3938 = vpop.f32.mrf.mxu0
        %v3939 = vadd.f32 0.0, %v3938
        %v3940 = vpop.f32.mrf.mxu0
        %v3941 = vadd.f32 0.0, %v3940
        %v3942 = vpop.f32.mrf.mxu0
        %v3943 = vadd.f32 0.0, %v3942
        %3944 = vmatprep.mubr.bf16.mxu0 %v3570
        %3945 = vmatmul.mubr.bf16.gmra.mxu0 %v3569
        %v3946 = vpop.f32.mrf.mxu0
        %v3947 = vadd.f32 0.0, %v3946
        %v3948 = vpop.f32.mrf.mxu0
        %v3949 = vadd.f32 0.0, %v3948
        %v3950 = vpop.f32.mrf.mxu0
        %v3951 = vadd.f32 0.0, %v3950
        %v3952 = vpop.f32.mrf.mxu0
        %v3953 = vadd.f32 0.0, %v3952
        %3954 = vmatprep.mubr.bf16.mxu0 %v3573
        %3955 = vmatmul.mubr.bf16.gmra.mxu0 %v3572
        %v3956 = vpop.f32.mrf.mxu0
        %v3957 = vadd.f32 0.0, %v3956
        %v3958 = vpop.f32.mrf.mxu0
        %v3959 = vadd.f32 0.0, %v3958
        %v3960 = vpop.f32.mrf.mxu0
        %v3961 = vadd.f32 0.0, %v3960
        %v3962 = vpop.f32.mrf.mxu0
        %v3963 = vadd.f32 0.0, %v3962
        %3964 = vmatprep.mubr.bf16.mxu0 %v3576
        %3965 = vmatmul.mubr.bf16.gmra.mxu0 %v3575
        %v3966 = vpop.f32.mrf.mxu0
        %v3967 = vadd.f32 0.0, %v3966
        %v3968 = vpop.f32.mrf.mxu0
        %v3969 = vadd.f32 0.0, %v3968
        %v3970 = vpop.f32.mrf.mxu0
        %v3971 = vadd.f32 0.0, %v3970
        %v3972 = vpop.f32.mrf.mxu0
        %v3973 = vadd.f32 0.0, %v3972
        %3974 = vmatprep.mubr.bf16.mxu0 %v3579
        %3975 = vmatmul.mubr.bf16.gmra.mxu0 %v3578
        %v3976 = vpop.f32.mrf.mxu0
        %v3977 = vadd.f32 0.0, %v3976
        %v3978 = vpop.f32.mrf.mxu0
        %v3979 = vadd.f32 0.0, %v3978
        %v3980 = vpop.f32.mrf.mxu0
        %v3981 = vadd.f32 0.0, %v3980
        %v3982 = vpop.f32.mrf.mxu0
        %v3983 = vadd.f32 0.0, %v3982
        %3984 = vmatprep.mubr.bf16.mxu0 %v3582
        %3985 = vmatmul.mubr.bf16.gmra.mxu0 %v3581
        %v3986 = vpop.f32.mrf.mxu0
        %v3987 = vadd.f32 0.0, %v3986
        %v3988 = vpop.f32.mrf.mxu0
        %v3989 = vadd.f32 0.0, %v3988
        %v3990 = vpop.f32.mrf.mxu0
        %v3991 = vadd.f32 0.0, %v3990
        %v3992 = vpop.f32.mrf.mxu0
        %v3993 = vadd.f32 0.0, %v3992
        %3994 = vmatprep.mubr.bf16.mxu0 %v3585
        %3995 = vmatmul.mubr.bf16.gmra.mxu0 %v3584
        %v3996 = vpop.f32.mrf.mxu0
        %v3997 = vadd.f32 0.0, %v3996
        %v3998 = vpop.f32.mrf.mxu0
        %v3999 = vadd.f32 0.0, %v3998
        %v4000 = vpop.f32.mrf.mxu0
        %v4001 = vadd.f32 0.0, %v4000
        %v4002 = vpop.f32.mrf.mxu0
        %v4003 = vadd.f32 0.0, %v4002
        %4004 = vmatprep.mubr.bf16.mxu0 %v3588
        %4005 = vmatmul.mubr.bf16.gmra.mxu0 %v3587
        %v4006 = vpop.f32.mrf.mxu0
        %v4007 = vadd.f32 0.0, %v4006
        %v4008 = vpop.f32.mrf.mxu0
        %v4009 = vadd.f32 0.0, %v4008
        %v4010 = vpop.f32.mrf.mxu0
        %v4011 = vadd.f32 0.0, %v4010
        %v4012 = vpop.f32.mrf.mxu0
        %v4013 = vadd.f32 0.0, %v4012
        %4014 = vmatprep.mubr.bf16.mxu0 %v3591
        %4015 = vmatmul.mubr.bf16.gmra.mxu0 %v3590
        %v4016 = vpop.f32.mrf.mxu0
        %v4017 = vadd.f32 0.0, %v4016
        %v4018 = vpop.f32.mrf.mxu0
        %v4019 = vadd.f32 0.0, %v4018
        %v4020 = vpop.f32.mrf.mxu0
        %v4021 = vadd.f32 0.0, %v4020
        %v4022 = vpop.f32.mrf.mxu0
        %v4023 = vadd.f32 0.0, %v4022
        %4024 = vmatprep.mubr.bf16.mxu0 %v3594
        %4025 = vmatmul.mubr.bf16.gmra.mxu0 %v3593
        %v4026 = vpop.f32.mrf.mxu0
        %v4027 = vadd.f32 0.0, %v4026
        %v4028 = vpop.f32.mrf.mxu0
        %v4029 = vadd.f32 0.0, %v4028
        %v4030 = vpop.f32.mrf.mxu0
        %v4031 = vadd.f32 0.0, %v4030
        %v4032 = vpop.f32.mrf.mxu0
        %v4033 = vadd.f32 0.0, %v4032
        %4034 = vmatprep.mubr.bf16.mxu0 %v3597
        %4035 = vmatmul.mubr.bf16.gmra.mxu0 %v3596
        %v4036 = vpop.f32.mrf.mxu0
        %v4037 = vadd.f32 0.0, %v4036
        %v4038 = vpop.f32.mrf.mxu0
        %v4039 = vadd.f32 0.0, %v4038
        %v4040 = vpop.f32.mrf.mxu0
        %v4041 = vadd.f32 0.0, %v4040
        %v4042 = vpop.f32.mrf.mxu0
        %v4043 = vadd.f32 0.0, %v4042
        %4044 = vmatprep.mubr.bf16.mxu0 %v3600
        %4045 = vmatmul.mubr.bf16.gmra.mxu0 %v3599
        %v4046 = vpop.f32.mrf.mxu0
        %v4047 = vadd.f32 0.0, %v4046
        %v4048 = vpop.f32.mrf.mxu0
        %v4049 = vadd.f32 0.0, %v4048
        %v4050 = vpop.f32.mrf.mxu0
        %v4051 = vadd.f32 0.0, %v4050
        %v4052 = vpop.f32.mrf.mxu0
        %v4053 = vadd.f32 0.0, %v4052
        %4054 = vmatprep.mubr.bf16.mxu0 %v3603
        %4055 = vmatmul.mubr.bf16.gmra.mxu0 %v3602
        %v4056 = vpop.f32.mrf.mxu0
        %v4057 = vadd.f32 0.0, %v4056
        %v4058 = vpop.f32.mrf.mxu0
        %v4059 = vadd.f32 0.0, %v4058
        %v4060 = vpop.f32.mrf.mxu0
        %v4061 = vadd.f32 0.0, %v4060
        %v4062 = vpop.f32.mrf.mxu0
        %v4063 = vadd.f32 0.0, %v4062
        %4064 = vmatprep.mubr.bf16.mxu0 %v3606
        %4065 = vmatmul.mubr.bf16.gmra.mxu0 %v3605
        %v4066 = vpop.f32.mrf.mxu0
        %v4067 = vadd.f32 0.0, %v4066
        %v4068 = vpop.f32.mrf.mxu0
        %v4069 = vadd.f32 0.0, %v4068
        %v4070 = vpop.f32.mrf.mxu0
        %v4071 = vadd.f32 0.0, %v4070
        %v4072 = vpop.f32.mrf.mxu0
        %v4073 = vadd.f32 0.0, %v4072
        %4074 = vmatprep.mubr.bf16.mxu0 %v3609
        %4075 = vmatmul.mubr.bf16.gmra.mxu0 %v3608
        %v4076 = vpop.f32.mrf.mxu0
        %v4077 = vadd.f32 0.0, %v4076
        %v4078 = vpop.f32.mrf.mxu0
        %v4079 = vadd.f32 0.0, %v4078
        %v4080 = vpop.f32.mrf.mxu0
        %v4081 = vadd.f32 0.0, %v4080
        %v4082 = vpop.f32.mrf.mxu0
        %v4083 = vadd.f32 0.0, %v4082
        %4084 = vmatprep.mubr.bf16.mxu0 %v3612
        %4085 = vmatmul.mubr.bf16.gmra.mxu0 %v3611
        %v4086 = vpop.f32.mrf.mxu0
        %v4087 = vadd.f32 0.0, %v4086
        %v4088 = vpop.f32.mrf.mxu0
        %v4089 = vadd.f32 0.0, %v4088
        %v4090 = vpop.f32.mrf.mxu0
        %v4091 = vadd.f32 0.0, %v4090
        %v4092 = vpop.f32.mrf.mxu0
        %v4093 = vadd.f32 0.0, %v4092
        %4094 = vdwg.mxu0
        %4095 = vmatprep.subr.bf16.mxu0 %v3853
        %4096 = vmatpush1.bf16.msra.mxu0 %v3852
        %4097 = vmatprep.subr.bf16.mxu0 %v3851
        %4098 = vmatpush1.bf16.msra.mxu0 %v3850
        %4099 = vmatprep.subr.bf16.mxu0 %v3849
        %4100 = vmatpush1.bf16.msra.mxu0 %v3848
        %4101 = vmatprep.subr.bf16.mxu0 %v3847
        %4102 = vmatpush1.bf16.msra.mxu0 %v3846
        %4103 = vmatprep.subr.bf16.mxu0 %v3845
        %4104 = vmatpush1.bf16.msra.mxu0 %v3844
        %4105 = vmatprep.subr.bf16.mxu0 %v3843
        %4106 = vmatpush1.bf16.msra.mxu0 %v3842
        %4107 = vmatprep.subr.bf16.mxu0 %v3841
        %4108 = vmatpush1.bf16.msra.mxu0 %v3840
        %4109 = vmatprep.subr.bf16.mxu0 %v3839
        %4110 = vmatpush1.bf16.msra.mxu0 %v3838
        %4111 = vmatprep.subr.bf16.mxu0 0
        %4112 = vmatpush2.bf16.msra.mxu0 0
        %4113 = vmatprep.subr.bf16.mxu0 0
        %4114 = vmatpush2.bf16.msra.mxu0 0
        %4115 = vmatprep.subr.bf16.mxu0 0
        %4116 = vmatpush2.bf16.msra.mxu0 0
        %4117 = vmatprep.subr.bf16.mxu0 0
        %4118 = vmatpush2.bf16.msra.mxu0 0
        %4119 = vmatprep.subr.bf16.mxu0 0
        %4120 = vmatpush2.bf16.msra.mxu0 0
        %4121 = vmatprep.subr.bf16.mxu0 0
        %4122 = vmatpush2.bf16.msra.mxu0 0
        %4123 = vmatprep.subr.bf16.mxu0 0
        %4124 = vmatpush2.bf16.msra.mxu0 0
        %4125 = vmatprep.subr.bf16.mxu0 0
        %4126 = vmatpush2.bf16.msra.mxu0 0
        %4127 = vmatprep.mubr.bf16.mxu0 0
        %4128 = vmatmul.mubr.bf16.gmra.mxu0 %v3568
        %v4129 = vpop.f32.mrf.mxu0
        %v4130 = vadd.f32 %v3937, %v4129
        %v4131 = vpop.f32.mrf.mxu0
        %v4132 = vadd.f32 %v3939, %v4131
        %v4133 = vpop.f32.mrf.mxu0
        %v4134 = vadd.f32 %v3941, %v4133
        %v4135 = vpop.f32.mrf.mxu0
        %v4136 = vadd.f32 %v3943, %v4135
        %4137 = vmatprep.mubr.bf16.mxu0 0
        %4138 = vmatmul.mubr.bf16.gmra.mxu0 %v3571
        %v4139 = vpop.f32.mrf.mxu0
        %v4140 = vadd.f32 %v3947, %v4139
        %v4141 = vpop.f32.mrf.mxu0
        %v4142 = vadd.f32 %v3949, %v4141
        %v4143 = vpop.f32.mrf.mxu0
        %v4144 = vadd.f32 %v3951, %v4143
        %v4145 = vpop.f32.mrf.mxu0
        %v4146 = vadd.f32 %v3953, %v4145
        %4147 = vmatprep.mubr.bf16.mxu0 0
        %4148 = vmatmul.mubr.bf16.gmra.mxu0 %v3574
        %v4149 = vpop.f32.mrf.mxu0
        %v4150 = vadd.f32 %v3957, %v4149
        %v4151 = vpop.f32.mrf.mxu0
        %v4152 = vadd.f32 %v3959, %v4151
        %v4153 = vpop.f32.mrf.mxu0
        %v4154 = vadd.f32 %v3961, %v4153
        %v4155 = vpop.f32.mrf.mxu0
        %v4156 = vadd.f32 %v3963, %v4155
        %4157 = vmatprep.mubr.bf16.mxu0 0
        %4158 = vmatmul.mubr.bf16.gmra.mxu0 %v3577
        %v4159 = vpop.f32.mrf.mxu0
        %v4160 = vadd.f32 %v3967, %v4159
        %v4161 = vpop.f32.mrf.mxu0
        %v4162 = vadd.f32 %v3969, %v4161
        %v4163 = vpop.f32.mrf.mxu0
        %v4164 = vadd.f32 %v3971, %v4163
        %v4165 = vpop.f32.mrf.mxu0
        %v4166 = vadd.f32 %v3973, %v4165
        %4167 = vmatprep.mubr.bf16.mxu0 0
        %4168 = vmatmul.mubr.bf16.gmra.mxu0 %v3580
        %v4169 = vpop.f32.mrf.mxu0
        %v4170 = vadd.f32 %v3977, %v4169
        %v4171 = vpop.f32.mrf.mxu0
        %v4172 = vadd.f32 %v3979, %v4171
        %v4173 = vpop.f32.mrf.mxu0
        %v4174 = vadd.f32 %v3981, %v4173
        %v4175 = vpop.f32.mrf.mxu0
        %v4176 = vadd.f32 %v3983, %v4175
        %4177 = vmatprep.mubr.bf16.mxu0 0
        %4178 = vmatmul.mubr.bf16.gmra.mxu0 %v3583
        %v4179 = vpop.f32.mrf.mxu0
        %v4180 = vadd.f32 %v3987, %v4179
        %v4181 = vpop.f32.mrf.mxu0
        %v4182 = vadd.f32 %v3989, %v4181
        %v4183 = vpop.f32.mrf.mxu0
        %v4184 = vadd.f32 %v3991, %v4183
        %v4185 = vpop.f32.mrf.mxu0
        %v4186 = vadd.f32 %v3993, %v4185
        %4187 = vmatprep.mubr.bf16.mxu0 0
        %4188 = vmatmul.mubr.bf16.gmra.mxu0 %v3586
        %v4189 = vpop.f32.mrf.mxu0
        %v4190 = vadd.f32 %v3997, %v4189
        %v4191 = vpop.f32.mrf.mxu0
        %v4192 = vadd.f32 %v3999, %v4191
        %v4193 = vpop.f32.mrf.mxu0
        %v4194 = vadd.f32 %v4001, %v4193
        %v4195 = vpop.f32.mrf.mxu0
        %v4196 = vadd.f32 %v4003, %v4195
        %4197 = vmatprep.mubr.bf16.mxu0 0
        %4198 = vmatmul.mubr.bf16.gmra.mxu0 %v3589
        %v4199 = vpop.f32.mrf.mxu0
        %v4200 = vadd.f32 %v4007, %v4199
        %v4201 = vpop.f32.mrf.mxu0
        %v4202 = vadd.f32 %v4009, %v4201
        %v4203 = vpop.f32.mrf.mxu0
        %v4204 = vadd.f32 %v4011, %v4203
        %v4205 = vpop.f32.mrf.mxu0
        %v4206 = vadd.f32 %v4013, %v4205
        %4207 = vmatprep.mubr.bf16.mxu0 0
        %4208 = vmatmul.mubr.bf16.gmra.mxu0 %v3592
        %v4209 = vpop.f32.mrf.mxu0
        %v4210 = vadd.f32 %v4017, %v4209
        %v4211 = vpop.f32.mrf.mxu0
        %v4212 = vadd.f32 %v4019, %v4211
        %v4213 = vpop.f32.mrf.mxu0
        %v4214 = vadd.f32 %v4021, %v4213
        %v4215 = vpop.f32.mrf.mxu0
        %v4216 = vadd.f32 %v4023, %v4215
        %4217 = vmatprep.mubr.bf16.mxu0 0
        %4218 = vmatmul.mubr.bf16.gmra.mxu0 %v3595
        %v4219 = vpop.f32.mrf.mxu0
        %v4220 = vadd.f32 %v4027, %v4219
        %v4221 = vpop.f32.mrf.mxu0
        %v4222 = vadd.f32 %v4029, %v4221
        %v4223 = vpop.f32.mrf.mxu0
        %v4224 = vadd.f32 %v4031, %v4223
        %v4225 = vpop.f32.mrf.mxu0
        %v4226 = vadd.f32 %v4033, %v4225
        %4227 = vmatprep.mubr.bf16.mxu0 0
        %4228 = vmatmul.mubr.bf16.gmra.mxu0 %v3598
        %v4229 = vpop.f32.mrf.mxu0
        %v4230 = vadd.f32 %v4037, %v4229
        %v4231 = vpop.f32.mrf.mxu0
        %v4232 = vadd.f32 %v4039, %v4231
        %v4233 = vpop.f32.mrf.mxu0
        %v4234 = vadd.f32 %v4041, %v4233
        %v4235 = vpop.f32.mrf.mxu0
        %v4236 = vadd.f32 %v4043, %v4235
        %4237 = vmatprep.mubr.bf16.mxu0 0
        %4238 = vmatmul.mubr.bf16.gmra.mxu0 %v3601
        %v4239 = vpop.f32.mrf.mxu0
        %v4240 = vadd.f32 %v4047, %v4239
        %v4241 = vpop.f32.mrf.mxu0
        %v4242 = vadd.f32 %v4049, %v4241
        %v4243 = vpop.f32.mrf.mxu0
        %v4244 = vadd.f32 %v4051, %v4243
        %v4245 = vpop.f32.mrf.mxu0
        %v4246 = vadd.f32 %v4053, %v4245
        %4247 = vmatprep.mubr.bf16.mxu0 0
        %4248 = vmatmul.mubr.bf16.gmra.mxu0 %v3604
        %v4249 = vpop.f32.mrf.mxu0
        %v4250 = vadd.f32 %v4057, %v4249
        %v4251 = vpop.f32.mrf.mxu0
        %v4252 = vadd.f32 %v4059, %v4251
        %v4253 = vpop.f32.mrf.mxu0
        %v4254 = vadd.f32 %v4061, %v4253
        %v4255 = vpop.f32.mrf.mxu0
        %v4256 = vadd.f32 %v4063, %v4255
        %4257 = vmatprep.mubr.bf16.mxu0 0
        %4258 = vmatmul.mubr.bf16.gmra.mxu0 %v3607
        %v4259 = vpop.f32.mrf.mxu0
        %v4260 = vadd.f32 %v4067, %v4259
        %v4261 = vpop.f32.mrf.mxu0
        %v4262 = vadd.f32 %v4069, %v4261
        %v4263 = vpop.f32.mrf.mxu0
        %v4264 = vadd.f32 %v4071, %v4263
        %v4265 = vpop.f32.mrf.mxu0
        %v4266 = vadd.f32 %v4073, %v4265
        %4267 = vmatprep.mubr.bf16.mxu0 0
        %4268 = vmatmul.mubr.bf16.gmra.mxu0 %v3610
        %v4269 = vpop.f32.mrf.mxu0
        %v4270 = vadd.f32 %v4077, %v4269
        %v4271 = vpop.f32.mrf.mxu0
        %v4272 = vadd.f32 %v4079, %v4271
        %v4273 = vpop.f32.mrf.mxu0
        %v4274 = vadd.f32 %v4081, %v4273
        %v4275 = vpop.f32.mrf.mxu0
        %v4276 = vadd.f32 %v4083, %v4275
        %4277 = vmatprep.mubr.bf16.mxu0 0
        %4278 = vmatmul.mubr.bf16.gmra.mxu0 %v3613
        %v4279 = vpop.f32.mrf.mxu0
        %v4280 = vadd.f32 %v4087, %v4279
        %v4281 = vpop.f32.mrf.mxu0
        %v4282 = vadd.f32 %v4089, %v4281
        %v4283 = vpop.f32.mrf.mxu0
        %v4284 = vadd.f32 %v4091, %v4283
        %v4285 = vpop.f32.mrf.mxu0
        %v4286 = vadd.f32 %v4093, %v4285
        %4287 = vdwg.mxu0
        %v4288 = vld [vmem:[#allocation3] sm:$0xff]
        %v4289 = vld [vmem:[#allocation3 + $0x8] sm:$0xff]
        %v4290 = vld [vmem:[#allocation3 + $0x10] sm:$0xff]
        %v4291 = vld [vmem:[#allocation3 + $0x18] sm:$0xff]
        %v4292 = vld [vmem:[#allocation3 + $0x20] sm:$0xff]
        %v4293 = vld [vmem:[#allocation3 + $0x28] sm:$0xff]
        %v4294 = vld [vmem:[#allocation3 + $0x30] sm:$0xff]
        %v4295 = vld [vmem:[#allocation3 + $0x38] sm:$0xff]
        %v4296 = vld [vmem:[#allocation3 + $0x40] sm:$0xff]
        %v4297 = vld [vmem:[#allocation3 + $0x48] sm:$0xff]
        %v4298 = vld [vmem:[#allocation3 + $0x50] sm:$0xff]
        %v4299 = vld [vmem:[#allocation3 + $0x58] sm:$0xff]
        %v4300 = vld [vmem:[#allocation3 + $0x60] sm:$0xff]
        %v4301 = vld [vmem:[#allocation3 + $0x68] sm:$0xff]
        %v4302 = vld [vmem:[#allocation3 + $0x70] sm:$0xff]
        %v4303 = vld [vmem:[#allocation3 + $0x78] sm:$0xff]
        %v4304 = vld [vmem:[#allocation3 + $0x80] sm:$0xff]
        %v4305 = vld [vmem:[#allocation3 + $0x88] sm:$0xff]
        %v4306 = vld [vmem:[#allocation3 + $0x90] sm:$0xff]
        %v4307 = vld [vmem:[#allocation3 + $0x98] sm:$0xff]
        %v4308 = vld [vmem:[#allocation3 + $0xa0] sm:$0xff]
        %v4309 = vld [vmem:[#allocation3 + $0xa8] sm:$0xff]
        %v4310 = vld [vmem:[#allocation3 + $0xb0] sm:$0xff]
        %v4311 = vld [vmem:[#allocation3 + $0xb8] sm:$0xff]
        %v4312 = vld [vmem:[#allocation3 + $0xc0] sm:$0xff]
        %v4313 = vld [vmem:[#allocation3 + $0xc8] sm:$0xff]
        %v4314 = vld [vmem:[#allocation3 + $0xd0] sm:$0xff]
        %v4315 = vld [vmem:[#allocation3 + $0xd8] sm:$0xff]
        %v4316 = vld [vmem:[#allocation3 + $0xe0] sm:$0xff]
        %v4317 = vld [vmem:[#allocation3 + $0xe8] sm:$0xff]
        %v4318 = vld [vmem:[#allocation3 + $0xf0] sm:$0xff]
        %v4319 = vld [vmem:[#allocation3 + $0xf8] sm:$0xff]
        %v4320 = vld [vmem:[#allocation3 + $0x100] sm:$0xff]
        %v4321 = vld [vmem:[#allocation3 + $0x108] sm:$0xff]
        %v4322 = vld [vmem:[#allocation3 + $0x110] sm:$0xff]
        %v4323 = vld [vmem:[#allocation3 + $0x118] sm:$0xff]
        %v4324 = vld [vmem:[#allocation3 + $0x120] sm:$0xff]
        %v4325 = vld [vmem:[#allocation3 + $0x128] sm:$0xff]
        %v4326 = vld [vmem:[#allocation3 + $0x130] sm:$0xff]
        %v4327 = vld [vmem:[#allocation3 + $0x138] sm:$0xff]
        %v4328 = vld [vmem:[#allocation3 + $0x140] sm:$0xff]
        %v4329 = vld [vmem:[#allocation3 + $0x148] sm:$0xff]
        %v4330 = vld [vmem:[#allocation3 + $0x150] sm:$0xff]
        %v4331 = vld [vmem:[#allocation3 + $0x158] sm:$0xff]
        %v4332 = vld [vmem:[#allocation3 + $0x160] sm:$0xff]
        %v4333 = vld [vmem:[#allocation3 + $0x168] sm:$0xff]
        %v4334 = vld [vmem:[#allocation3 + $0x170] sm:$0xff]
        %v4335 = vld [vmem:[#allocation3 + $0x178] sm:$0xff]
        %v4336 = vld [vmem:[#allocation3 + $0x180] sm:$0xff]
        %v4337 = vld [vmem:[#allocation3 + $0x188] sm:$0xff]
        %v4338 = vld [vmem:[#allocation3 + $0x190] sm:$0xff]
        %v4339 = vld [vmem:[#allocation3 + $0x198] sm:$0xff]
        %v4340 = vld [vmem:[#allocation3 + $0x1a0] sm:$0xff]
        %v4341 = vld [vmem:[#allocation3 + $0x1a8] sm:$0xff]
        %v4342 = vld [vmem:[#allocation3 + $0x1b0] sm:$0xff]
        %v4343 = vld [vmem:[#allocation3 + $0x1b8] sm:$0xff]
        %v4344 = vld [vmem:[#allocation3 + $0x1c0] sm:$0xff]
        %v4345 = vld [vmem:[#allocation3 + $0x1c8] sm:$0xff]
        %v4346 = vld [vmem:[#allocation3 + $0x1d0] sm:$0xff]
        %v4347 = vld [vmem:[#allocation3 + $0x1d8] sm:$0xff]
        %v4348 = vld [vmem:[#allocation3 + $0x1e0] sm:$0xff]
        %v4349 = vld [vmem:[#allocation3 + $0x1e8] sm:$0xff]
        %v4350 = vld [vmem:[#allocation3 + $0x1f0] sm:$0xff]
        %v4351 = vld [vmem:[#allocation3 + $0x1f8] sm:$0xff]
        %v4352 = vadd.f32 %v4288, %v4130
        %v4353 = vadd.f32 %v4289, %v4132
        %v4354 = vadd.f32 %v4290, %v4134
        %v4355 = vadd.f32 %v4291, %v4136
        %v4356 = vadd.f32 %v4292, %v4140
        %v4357 = vadd.f32 %v4293, %v4142
        %v4358 = vadd.f32 %v4294, %v4144
        %v4359 = vadd.f32 %v4295, %v4146
        %v4360 = vadd.f32 %v4296, %v4150
        %v4361 = vadd.f32 %v4297, %v4152
        %v4362 = vadd.f32 %v4298, %v4154
        %v4363 = vadd.f32 %v4299, %v4156
        %v4364 = vadd.f32 %v4300, %v4160
        %v4365 = vadd.f32 %v4301, %v4162
        %v4366 = vadd.f32 %v4302, %v4164
        %v4367 = vadd.f32 %v4303, %v4166
        %v4368 = vadd.f32 %v4304, %v4170
        %v4369 = vadd.f32 %v4305, %v4172
        %v4370 = vadd.f32 %v4306, %v4174
        %v4371 = vadd.f32 %v4307, %v4176
        %v4372 = vadd.f32 %v4308, %v4180
        %v4373 = vadd.f32 %v4309, %v4182
        %v4374 = vadd.f32 %v4310, %v4184
        %v4375 = vadd.f32 %v4311, %v4186
        %v4376 = vadd.f32 %v4312, %v4190
        %v4377 = vadd.f32 %v4313, %v4192
        %v4378 = vadd.f32 %v4314, %v4194
        %v4379 = vadd.f32 %v4315, %v4196
        %v4380 = vadd.f32 %v4316, %v4200
        %v4381 = vadd.f32 %v4317, %v4202
        %v4382 = vadd.f32 %v4318, %v4204
        %v4383 = vadd.f32 %v4319, %v4206
        %v4384 = vadd.f32 %v4320, %v4210
        %v4385 = vadd.f32 %v4321, %v4212
        %v4386 = vadd.f32 %v4322, %v4214
        %v4387 = vadd.f32 %v4323, %v4216
        %v4388 = vadd.f32 %v4324, %v4220
        %v4389 = vadd.f32 %v4325, %v4222
        %v4390 = vadd.f32 %v4326, %v4224
        %v4391 = vadd.f32 %v4327, %v4226
        %v4392 = vadd.f32 %v4328, %v4230
        %v4393 = vadd.f32 %v4329, %v4232
        %v4394 = vadd.f32 %v4330, %v4234
        %v4395 = vadd.f32 %v4331, %v4236
        %v4396 = vadd.f32 %v4332, %v4240
        %v4397 = vadd.f32 %v4333, %v4242
        %v4398 = vadd.f32 %v4334, %v4244
        %v4399 = vadd.f32 %v4335, %v4246
        %v4400 = vadd.f32 %v4336, %v4250
        %v4401 = vadd.f32 %v4337, %v4252
        %v4402 = vadd.f32 %v4338, %v4254
        %v4403 = vadd.f32 %v4339, %v4256
        %v4404 = vadd.f32 %v4340, %v4260
        %v4405 = vadd.f32 %v4341, %v4262
        %v4406 = vadd.f32 %v4342, %v4264
        %v4407 = vadd.f32 %v4343, %v4266
        %v4408 = vadd.f32 %v4344, %v4270
        %v4409 = vadd.f32 %v4345, %v4272
        %v4410 = vadd.f32 %v4346, %v4274
        %v4411 = vadd.f32 %v4347, %v4276
        %v4412 = vadd.f32 %v4348, %v4280
        %v4413 = vadd.f32 %v4349, %v4282
        %v4414 = vadd.f32 %v4350, %v4284
        %v4415 = vadd.f32 %v4351, %v4286
        %4416 = vst [vmem:[#allocation3] sm:$0xff] %v4352
        %4417 = vst [vmem:[#allocation3 + $0x8] sm:$0xff] %v4353
        %4418 = vst [vmem:[#allocation3 + $0x10] sm:$0xff] %v4354
        %4419 = vst [vmem:[#allocation3 + $0x18] sm:$0xff] %v4355
        %4420 = vst [vmem:[#allocation3 + $0x20] sm:$0xff] %v4356
        %4421 = vst [vmem:[#allocation3 + $0x28] sm:$0xff] %v4357
        %4422 = vst [vmem:[#allocation3 + $0x30] sm:$0xff] %v4358
        %4423 = vst [vmem:[#allocation3 + $0x38] sm:$0xff] %v4359
        %4424 = vst [vmem:[#allocation3 + $0x40] sm:$0xff] %v4360
        %4425 = vst [vmem:[#allocation3 + $0x48] sm:$0xff] %v4361
        %4426 = vst [vmem:[#allocation3 + $0x50] sm:$0xff] %v4362
        %4427 = vst [vmem:[#allocation3 + $0x58] sm:$0xff] %v4363
        %4428 = vst [vmem:[#allocation3 + $0x60] sm:$0xff] %v4364
        %4429 = vst [vmem:[#allocation3 + $0x68] sm:$0xff] %v4365
        %4430 = vst [vmem:[#allocation3 + $0x70] sm:$0xff] %v4366
        %4431 = vst [vmem:[#allocation3 + $0x78] sm:$0xff] %v4367
        %4432 = vst [vmem:[#allocation3 + $0x80] sm:$0xff] %v4368
        %4433 = vst [vmem:[#allocation3 + $0x88] sm:$0xff] %v4369
        %4434 = vst [vmem:[#allocation3 + $0x90] sm:$0xff] %v4370
        %4435 = vst [vmem:[#allocation3 + $0x98] sm:$0xff] %v4371
        %4436 = vst [vmem:[#allocation3 + $0xa0] sm:$0xff] %v4372
        %4437 = vst [vmem:[#allocation3 + $0xa8] sm:$0xff] %v4373
        %4438 = vst [vmem:[#allocation3 + $0xb0] sm:$0xff] %v4374
        %4439 = vst [vmem:[#allocation3 + $0xb8] sm:$0xff] %v4375
        %4440 = vst [vmem:[#allocation3 + $0xc0] sm:$0xff] %v4376
        %4441 = vst [vmem:[#allocation3 + $0xc8] sm:$0xff] %v4377
        %4442 = vst [vmem:[#allocation3 + $0xd0] sm:$0xff] %v4378
        %4443 = vst [vmem:[#allocation3 + $0xd8] sm:$0xff] %v4379
        %4444 = vst [vmem:[#allocation3 + $0xe0] sm:$0xff] %v4380
        %4445 = vst [vmem:[#allocation3 + $0xe8] sm:$0xff] %v4381
        %4446 = vst [vmem:[#allocation3 + $0xf0] sm:$0xff] %v4382
        %4447 = vst [vmem:[#allocation3 + $0xf8] sm:$0xff] %v4383
        %4448 = vst [vmem:[#allocation3 + $0x100] sm:$0xff] %v4384
        %4449 = vst [vmem:[#allocation3 + $0x108] sm:$0xff] %v4385
        %4450 = vst [vmem:[#allocation3 + $0x110] sm:$0xff] %v4386
        %4451 = vst [vmem:[#allocation3 + $0x118] sm:$0xff] %v4387
        %4452 = vst [vmem:[#allocation3 + $0x120] sm:$0xff] %v4388
        %4453 = vst [vmem:[#allocation3 + $0x128] sm:$0xff] %v4389
        %4454 = vst [vmem:[#allocation3 + $0x130] sm:$0xff] %v4390
        %4455 = vst [vmem:[#allocation3 + $0x138] sm:$0xff] %v4391
        %4456 = vst [vmem:[#allocation3 + $0x140] sm:$0xff] %v4392
        %4457 = vst [vmem:[#allocation3 + $0x148] sm:$0xff] %v4393
        %4458 = vst [vmem:[#allocation3 + $0x150] sm:$0xff] %v4394
        %4459 = vst [vmem:[#allocation3 + $0x158] sm:$0xff] %v4395
        %4460 = vst [vmem:[#allocation3 + $0x160] sm:$0xff] %v4396
        %4461 = vst [vmem:[#allocation3 + $0x168] sm:$0xff] %v4397
        %4462 = vst [vmem:[#allocation3 + $0x170] sm:$0xff] %v4398
        %4463 = vst [vmem:[#allocation3 + $0x178] sm:$0xff] %v4399
        %4464 = vst [vmem:[#allocation3 + $0x180] sm:$0xff] %v4400
        %4465 = vst [vmem:[#allocation3 + $0x188] sm:$0xff] %v4401
        %4466 = vst [vmem:[#allocation3 + $0x190] sm:$0xff] %v4402
        %4467 = vst [vmem:[#allocation3 + $0x198] sm:$0xff] %v4403
        %4468 = vst [vmem:[#allocation3 + $0x1a0] sm:$0xff] %v4404
        %4469 = vst [vmem:[#allocation3 + $0x1a8] sm:$0xff] %v4405
        %4470 = vst [vmem:[#allocation3 + $0x1b0] sm:$0xff] %v4406
        %4471 = vst [vmem:[#allocation3 + $0x1b8] sm:$0xff] %v4407
        %4472 = vst [vmem:[#allocation3 + $0x1c0] sm:$0xff] %v4408
        %4473 = vst [vmem:[#allocation3 + $0x1c8] sm:$0xff] %v4409
        %4474 = vst [vmem:[#allocation3 + $0x1d0] sm:$0xff] %v4410
        %4475 = vst [vmem:[#allocation3 + $0x1d8] sm:$0xff] %v4411
        %4476 = vst [vmem:[#allocation3 + $0x1e0] sm:$0xff] %v4412
        %4477 = vst [vmem:[#allocation3 + $0x1e8] sm:$0xff] %v4413
        %4478 = vst [vmem:[#allocation3 + $0x1f0] sm:$0xff] %v4414
        %4479 = vst [vmem:[#allocation3 + $0x1f8] sm:$0xff] %v4415
        %v4480 = vld [vmem:[#allocation3] sm:$0xff]
        %v4481 = vld [vmem:[#allocation3 + $0x8] sm:$0xff]
        %v4482 = vld [vmem:[#allocation3 + $0x10] sm:$0xff]
        %v4483 = vld [vmem:[#allocation3 + $0x18] sm:$0xff]
        %v4484 = vld [vmem:[#allocation3 + $0x20] sm:$0xff]
        %v4485 = vld [vmem:[#allocation3 + $0x28] sm:$0xff]
        %v4486 = vld [vmem:[#allocation3 + $0x30] sm:$0xff]
        %v4487 = vld [vmem:[#allocation3 + $0x38] sm:$0xff]
        %v4488 = vld [vmem:[#allocation3 + $0x40] sm:$0xff]
        %v4489 = vld [vmem:[#allocation3 + $0x48] sm:$0xff]
        %v4490 = vld [vmem:[#allocation3 + $0x50] sm:$0xff]
        %v4491 = vld [vmem:[#allocation3 + $0x58] sm:$0xff]
        %v4492 = vld [vmem:[#allocation3 + $0x60] sm:$0xff]
        %v4493 = vld [vmem:[#allocation3 + $0x68] sm:$0xff]
        %v4494 = vld [vmem:[#allocation3 + $0x70] sm:$0xff]
        %v4495 = vld [vmem:[#allocation3 + $0x78] sm:$0xff]
        %v4496 = vld [vmem:[#allocation3 + $0x80] sm:$0xff]
        %v4497 = vld [vmem:[#allocation3 + $0x88] sm:$0xff]
        %v4498 = vld [vmem:[#allocation3 + $0x90] sm:$0xff]
        %v4499 = vld [vmem:[#allocation3 + $0x98] sm:$0xff]
        %v4500 = vld [vmem:[#allocation3 + $0xa0] sm:$0xff]
        %v4501 = vld [vmem:[#allocation3 + $0xa8] sm:$0xff]
        %v4502 = vld [vmem:[#allocation3 + $0xb0] sm:$0xff]
        %v4503 = vld [vmem:[#allocation3 + $0xb8] sm:$0xff]
        %v4504 = vld [vmem:[#allocation3 + $0xc0] sm:$0xff]
        %v4505 = vld [vmem:[#allocation3 + $0xc8] sm:$0xff]
        %v4506 = vld [vmem:[#allocation3 + $0xd0] sm:$0xff]
        %v4507 = vld [vmem:[#allocation3 + $0xd8] sm:$0xff]
        %v4508 = vld [vmem:[#allocation3 + $0xe0] sm:$0xff]
        %v4509 = vld [vmem:[#allocation3 + $0xe8] sm:$0xff]
        %v4510 = vld [vmem:[#allocation3 + $0xf0] sm:$0xff]
        %v4511 = vld [vmem:[#allocation3 + $0xf8] sm:$0xff]
        %v4512 = vld [vmem:[#allocation3 + $0x100] sm:$0xff]
        %v4513 = vld [vmem:[#allocation3 + $0x108] sm:$0xff]
        %v4514 = vld [vmem:[#allocation3 + $0x110] sm:$0xff]
        %v4515 = vld [vmem:[#allocation3 + $0x118] sm:$0xff]
        %v4516 = vld [vmem:[#allocation3 + $0x120] sm:$0xff]
        %v4517 = vld [vmem:[#allocation3 + $0x128] sm:$0xff]
        %v4518 = vld [vmem:[#allocation3 + $0x130] sm:$0xff]
        %v4519 = vld [vmem:[#allocation3 + $0x138] sm:$0xff]
        %v4520 = vld [vmem:[#allocation3 + $0x140] sm:$0xff]
        %v4521 = vld [vmem:[#allocation3 + $0x148] sm:$0xff]
        %v4522 = vld [vmem:[#allocation3 + $0x150] sm:$0xff]
        %v4523 = vld [vmem:[#allocation3 + $0x158] sm:$0xff]
        %v4524 = vld [vmem:[#allocation3 + $0x160] sm:$0xff]
        %v4525 = vld [vmem:[#allocation3 + $0x168] sm:$0xff]
        %v4526 = vld [vmem:[#allocation3 + $0x170] sm:$0xff]
        %v4527 = vld [vmem:[#allocation3 + $0x178] sm:$0xff]
        %v4528 = vld [vmem:[#allocation3 + $0x180] sm:$0xff]
        %v4529 = vld [vmem:[#allocation3 + $0x188] sm:$0xff]
        %v4530 = vld [vmem:[#allocation3 + $0x190] sm:$0xff]
        %v4531 = vld [vmem:[#allocation3 + $0x198] sm:$0xff]
        %v4532 = vld [vmem:[#allocation3 + $0x1a0] sm:$0xff]
        %v4533 = vld [vmem:[#allocation3 + $0x1a8] sm:$0xff]
        %v4534 = vld [vmem:[#allocation3 + $0x1b0] sm:$0xff]
        %v4535 = vld [vmem:[#allocation3 + $0x1b8] sm:$0xff]
        %v4536 = vld [vmem:[#allocation3 + $0x1c0] sm:$0xff]
        %v4537 = vld [vmem:[#allocation3 + $0x1c8] sm:$0xff]
        %v4538 = vld [vmem:[#allocation3 + $0x1d0] sm:$0xff]
        %v4539 = vld [vmem:[#allocation3 + $0x1d8] sm:$0xff]
        %v4540 = vld [vmem:[#allocation3 + $0x1e0] sm:$0xff]
        %v4541 = vld [vmem:[#allocation3 + $0x1e8] sm:$0xff]
        %v4542 = vld [vmem:[#allocation3 + $0x1f0] sm:$0xff]
        %v4543 = vld [vmem:[#allocation3 + $0x1f8] sm:$0xff]
        %v4544 = vadd.f32 %v4480, %v4482
        %v4545 = vadd.f32 %v4544, %v4484
        %v4546 = vadd.f32 %v4545, %v4486
        %v4547 = vadd.f32 %v4546, %v4488
        %v4548 = vadd.f32 %v4547, %v4490
        %v4549 = vadd.f32 %v4548, %v4492
        %v4550 = vadd.f32 %v4549, %v4494
        %v4551 = vadd.f32 %v4550, %v4496
        %v4552 = vadd.f32 %v4551, %v4498
        %v4553 = vadd.f32 %v4552, %v4500
        %v4554 = vadd.f32 %v4553, %v4502
        %v4555 = vadd.f32 %v4554, %v4504
        %v4556 = vadd.f32 %v4555, %v4506
        %v4557 = vadd.f32 %v4556, %v4508
        %v4558 = vadd.f32 %v4557, %v4510
        %v4559 = vadd.f32 %v4558, %v4512
        %v4560 = vadd.f32 %v4559, %v4514
        %v4561 = vadd.f32 %v4560, %v4516
        %v4562 = vadd.f32 %v4561, %v4518
        %v4563 = vadd.f32 %v4562, %v4520
        %v4564 = vadd.f32 %v4563, %v4522
        %v4565 = vadd.f32 %v4564, %v4524
        %v4566 = vadd.f32 %v4565, %v4526
        %v4567 = vadd.f32 %v4566, %v4528
        %v4568 = vadd.f32 %v4567, %v4530
        %v4569 = vadd.f32 %v4568, %v4532
        %v4570 = vadd.f32 %v4569, %v4534
        %v4571 = vadd.f32 %v4570, %v4536
        %v4572 = vadd.f32 %v4571, %v4538
        %v4573 = vadd.f32 %v4572, %v4540
        %v4574 = vadd.f32 %v4573, %v4542
        %v4575 = vrot.slane %v4574, 4
        %v4576 = vadd.f32 %v4574, %v4575
        %v4577 = vrot.slane %v4576, 2
        %v4578 = vadd.f32 %v4576, %v4577
        %v4579 = vrot.slane %v4578, 1
        %v4580 = vadd.f32 %v4578, %v4579
        %v4581 = vadd.f32 %v4481, %v4483
        %v4582 = vadd.f32 %v4581, %v4485
        %v4583 = vadd.f32 %v4582, %v4487
        %v4584 = vadd.f32 %v4583, %v4489
        %v4585 = vadd.f32 %v4584, %v4491
        %v4586 = vadd.f32 %v4585, %v4493
        %v4587 = vadd.f32 %v4586, %v4495
        %v4588 = vadd.f32 %v4587, %v4497
        %v4589 = vadd.f32 %v4588, %v4499
        %v4590 = vadd.f32 %v4589, %v4501
        %v4591 = vadd.f32 %v4590, %v4503
        %v4592 = vadd.f32 %v4591, %v4505
        %v4593 = vadd.f32 %v4592, %v4507
        %v4594 = vadd.f32 %v4593, %v4509
        %v4595 = vadd.f32 %v4594, %v4511
        %v4596 = vadd.f32 %v4595, %v4513
        %v4597 = vadd.f32 %v4596, %v4515
        %v4598 = vadd.f32 %v4597, %v4517
        %v4599 = vadd.f32 %v4598, %v4519
        %v4600 = vadd.f32 %v4599, %v4521
        %v4601 = vadd.f32 %v4600, %v4523
        %v4602 = vadd.f32 %v4601, %v4525
        %v4603 = vadd.f32 %v4602, %v4527
        %v4604 = vadd.f32 %v4603, %v4529
        %v4605 = vadd.f32 %v4604, %v4531
        %v4606 = vadd.f32 %v4605, %v4533
        %v4607 = vadd.f32 %v4606, %v4535
        %v4608 = vadd.f32 %v4607, %v4537
        %v4609 = vadd.f32 %v4608, %v4539
        %v4610 = vadd.f32 %v4609, %v4541
        %v4611 = vadd.f32 %v4610, %v4543
        %v4612 = vrot.slane %v4611, 4
        %v4613 = vadd.f32 %v4611, %v4612
        %v4614 = vrot.slane %v4613, 2
        %v4615 = vadd.f32 %v4613, %v4614
        %v4616 = vrot.slane %v4615, 1
        %v4617 = vadd.f32 %v4615, %v4616
        %v4618 = vld [vmem:[%s4] sm:$0xff]
        %v4619 = vld [vmem:[%s4 + $0x8] sm:$0xff]
        %v4620 = vld [vmem:[%s4 + $0x10] sm:$0xff]
        %v4621 = vld [vmem:[%s4 + $0x18] sm:$0xff]
        %v4622 = vld [vmem:[%s4 + $0x20] sm:$0xff]
        %v4623 = vld [vmem:[%s4 + $0x28] sm:$0xff]
        %v4624 = vld [vmem:[%s4 + $0x30] sm:$0xff]
        %v4625 = vld [vmem:[%s4 + $0x38] sm:$0xff]
        %v4626 = vld [vmem:[%s4 + $0x40] sm:$0xff]
        %v4627 = vld [vmem:[%s4 + $0x48] sm:$0xff]
        %v4628 = vld [vmem:[%s4 + $0x50] sm:$0xff]
        %v4629 = vld [vmem:[%s4 + $0x58] sm:$0xff]
        %v4630 = vld [vmem:[%s4 + $0x60] sm:$0xff]
        %v4631 = vld [vmem:[%s4 + $0x68] sm:$0xff]
        %v4632 = vld [vmem:[%s4 + $0x70] sm:$0xff]
        %v4633 = vld [vmem:[%s4 + $0x78] sm:$0xff]
        %v4634 = vld [vmem:[%s4 + $0x80] sm:$0xff]
        %v4635 = vld [vmem:[%s4 + $0x88] sm:$0xff]
        %v4636 = vld [vmem:[%s4 + $0x90] sm:$0xff]
        %v4637 = vld [vmem:[%s4 + $0x98] sm:$0xff]
        %v4638 = vld [vmem:[%s4 + $0xa0] sm:$0xff]
        %v4639 = vld [vmem:[%s4 + $0xa8] sm:$0xff]
        %v4640 = vld [vmem:[%s4 + $0xb0] sm:$0xff]
        %v4641 = vld [vmem:[%s4 + $0xb8] sm:$0xff]
        %v4642 = vld [vmem:[%s4 + $0xc0] sm:$0xff]
        %v4643 = vld [vmem:[%s4 + $0xc8] sm:$0xff]
        %v4644 = vld [vmem:[%s4 + $0xd0] sm:$0xff]
        %v4645 = vld [vmem:[%s4 + $0xd8] sm:$0xff]
        %v4646 = vld [vmem:[%s4 + $0xe0] sm:$0xff]
        %v4647 = vld [vmem:[%s4 + $0xe8] sm:$0xff]
        %v4648 = vld [vmem:[%s4 + $0xf0] sm:$0xff]
        %v4649 = vld [vmem:[%s4 + $0xf8] sm:$0xff]
        %4650 = vmatprep.subr.mxu0 0.0
        %4651 = vmatpush1.msra.mxu0 %v4633
        %4652 = vmatprep.subr.mxu0 0.0
        %4653 = vmatpush1.msra.mxu0 %v4632
        %4654 = vmatprep.subr.mxu0 0.0
        %4655 = vmatpush1.msra.mxu0 %v4631
        %4656 = vmatprep.subr.mxu0 0.0
        %4657 = vmatpush1.msra.mxu0 %v4630
        %4658 = vmatprep.subr.mxu0 0.0
        %4659 = vmatpush1.msra.mxu0 %v4629
        %4660 = vmatprep.subr.mxu0 0.0
        %4661 = vmatpush1.msra.mxu0 %v4628
        %4662 = vmatprep.subr.mxu0 0.0
        %4663 = vmatpush1.msra.mxu0 %v4627
        %4664 = vmatprep.subr.mxu0 0.0
        %4665 = vmatpush1.msra.mxu0 %v4626
        %4666 = vmatprep.subr.mxu0 0.0
        %4667 = vmatpush1.msra.mxu0 %v4625
        %4668 = vmatprep.subr.mxu0 0.0
        %4669 = vmatpush1.msra.mxu0 %v4624
        %4670 = vmatprep.subr.mxu0 0.0
        %4671 = vmatpush1.msra.mxu0 %v4623
        %4672 = vmatprep.subr.mxu0 0.0
        %4673 = vmatpush1.msra.mxu0 %v4622
        %4674 = vmatprep.subr.mxu0 0.0
        %4675 = vmatpush1.msra.mxu0 %v4621
        %4676 = vmatprep.subr.mxu0 0.0
        %4677 = vmatpush1.msra.mxu0 %v4620
        %4678 = vmatprep.subr.mxu0 0.0
        %4679 = vmatpush1.msra.mxu0 %v4619
        %4680 = vmatprep.subr.mxu0 0.0
        %4681 = vmatpush1.msra.mxu0 %v4618
        %4682 = vmatprep.subr.mxu0 0.0
        %4683 = vmatpush2.msra.mxu0 %v4649
        %4684 = vmatprep.subr.mxu0 0.0
        %4685 = vmatpush2.msra.mxu0 %v4648
        %4686 = vmatprep.subr.mxu0 0.0
        %4687 = vmatpush2.msra.mxu0 %v4647
        %4688 = vmatprep.subr.mxu0 0.0
        %4689 = vmatpush2.msra.mxu0 %v4646
        %4690 = vmatprep.subr.mxu0 0.0
        %4691 = vmatpush2.msra.mxu0 %v4645
        %4692 = vmatprep.subr.mxu0 0.0
        %4693 = vmatpush2.msra.mxu0 %v4644
        %4694 = vmatprep.subr.mxu0 0.0
        %4695 = vmatpush2.msra.mxu0 %v4643
        %4696 = vmatprep.subr.mxu0 0.0
        %4697 = vmatpush2.msra.mxu0 %v4642
        %4698 = vmatprep.subr.mxu0 0.0
        %4699 = vmatpush2.msra.mxu0 %v4641
        %4700 = vmatprep.subr.mxu0 0.0
        %4701 = vmatpush2.msra.mxu0 %v4640
        %4702 = vmatprep.subr.mxu0 0.0
        %4703 = vmatpush2.msra.mxu0 %v4639
        %4704 = vmatprep.subr.mxu0 0.0
        %4705 = vmatpush2.msra.mxu0 %v4638
        %4706 = vmatprep.subr.mxu0 0.0
        %4707 = vmatpush2.msra.mxu0 %v4637
        %4708 = vmatprep.subr.mxu0 0.0
        %4709 = vmatpush2.msra.mxu0 %v4636
        %4710 = vmatprep.subr.mxu0 0.0
        %4711 = vmatpush2.msra.mxu0 %v4635
        %4712 = vmatprep.subr.mxu0 0.0
        %4713 = vmatpush2.msra.mxu0 %v4634
        %4714 = vmatprep.mubr.f32.mxu0 %v4617
        %4715 = vmatmul.mubr.f32.gmra.mxu0 %v4580
        %v4716 = vpop.f32.mrf.mxu0
        %v4717 = vadd.f32 0.0, %v4716
        %v4718 = vpop.f32.mrf.mxu0
        %4719 = vdwg.mxu0
        %v4720 = vmul.f32 %v4717, 0.0009765625
        %v4721 = vld [vmem:[%s5] sm:$0xff]
        %v4722 = vld [vmem:[%s5 + $0x8] sm:$0xff]
        %v4723 = vld [vmem:[%s5 + $0x10] sm:$0xff]
        %v4724 = vld [vmem:[%s5 + $0x18] sm:$0xff]
        %v4725 = vld [vmem:[%s5 + $0x20] sm:$0xff]
        %v4726 = vld [vmem:[%s5 + $0x28] sm:$0xff]
        %v4727 = vld [vmem:[%s5 + $0x30] sm:$0xff]
        %v4728 = vld [vmem:[%s5 + $0x38] sm:$0xff]
        %v4729 = vld [vmem:[%s5 + $0x40] sm:$0xff]
        %v4730 = vld [vmem:[%s5 + $0x48] sm:$0xff]
        %v4731 = vld [vmem:[%s5 + $0x50] sm:$0xff]
        %v4732 = vld [vmem:[%s5 + $0x58] sm:$0xff]
        %v4733 = vld [vmem:[%s5 + $0x60] sm:$0xff]
        %v4734 = vld [vmem:[%s5 + $0x68] sm:$0xff]
        %v4735 = vld [vmem:[%s5 + $0x70] sm:$0xff]
        %v4736 = vld [vmem:[%s5 + $0x78] sm:$0xff]
        %vm4737 = vcmask 523264
        %v4739 = vsel %vm4737, %v4720, 0
        %4741 = vmatprep.subr.mxu0 0.0
        %4742 = vmatpush1.msra.mxu0 0.0
        %4743 = vmatprep.subr.mxu0 0.0
        %4744 = vmatpush1.msra.mxu0 0.0
        %4745 = vmatprep.subr.mxu0 0.0
        %4746 = vmatpush1.msra.mxu0 0.0
        %4747 = vmatprep.subr.mxu0 0.0
        %4748 = vmatpush1.msra.mxu0 0.0
        %4749 = vmatprep.subr.mxu0 0.0
        %4750 = vmatpush1.msra.mxu0 0.0
        %4751 = vmatprep.subr.mxu0 0.0
        %4752 = vmatpush1.msra.mxu0 0.0
        %4753 = vmatprep.subr.mxu0 0.0
        %4754 = vmatpush1.msra.mxu0 0.0
        %4755 = vmatprep.subr.mxu0 0.0
        %4756 = vmatpush1.msra.mxu0 0.0
        %4757 = vmatprep.subr.mxu0 %v4736
        %4758 = vmatpush1.msra.mxu0 %v4735
        %4759 = vmatprep.subr.mxu0 %v4734
        %4760 = vmatpush1.msra.mxu0 %v4733
        %4761 = vmatprep.subr.mxu0 %v4732
        %4762 = vmatpush1.msra.mxu0 %v4731
        %4763 = vmatprep.subr.mxu0 %v4730
        %4764 = vmatpush1.msra.mxu0 %v4729
        %4765 = vmatprep.subr.mxu0 %v4728
        %4766 = vmatpush1.msra.mxu0 %v4727
        %4767 = vmatprep.subr.mxu0 %v4726
        %4768 = vmatpush1.msra.mxu0 %v4725
        %4769 = vmatprep.subr.mxu0 %v4724
        %4770 = vmatpush1.msra.mxu0 %v4723
        %4771 = vmatprep.subr.mxu0 %v4722
        %4772 = vmatpush1.msra.mxu0 %v4721
        %4773 = vmatprep.subr.mxu0 0.0
        %4774 = vmatpush2.msra.mxu0 0.0
        %4775 = vmatprep.subr.mxu0 0.0
        %4776 = vmatpush2.msra.mxu0 0.0
        %4777 = vmatprep.subr.mxu0 0.0
        %4778 = vmatpush2.msra.mxu0 0.0
        %4779 = vmatprep.subr.mxu0 0.0
        %4780 = vmatpush2.msra.mxu0 0.0
        %4781 = vmatprep.subr.mxu0 0.0
        %4782 = vmatpush2.msra.mxu0 0.0
        %4783 = vmatprep.subr.mxu0 0.0
        %4784 = vmatpush2.msra.mxu0 0.0
        %4785 = vmatprep.subr.mxu0 0.0
        %4786 = vmatpush2.msra.mxu0 0.0
        %4787 = vmatprep.subr.mxu0 0.0
        %4788 = vmatpush2.msra.mxu0 0.0
        %4789 = vmatprep.subr.mxu0 0.0
        %4790 = vmatpush2.msra.mxu0 0.0
        %4791 = vmatprep.subr.mxu0 0.0
        %4792 = vmatpush2.msra.mxu0 0.0
        %4793 = vmatprep.subr.mxu0 0.0
        %4794 = vmatpush2.msra.mxu0 0.0
        %4795 = vmatprep.subr.mxu0 0.0
        %4796 = vmatpush2.msra.mxu0 0.0
        %4797 = vmatprep.subr.mxu0 0.0
        %4798 = vmatpush2.msra.mxu0 0.0
        %4799 = vmatprep.subr.mxu0 0.0
        %4800 = vmatpush2.msra.mxu0 0.0
        %4801 = vmatprep.subr.mxu0 0.0
        %4802 = vmatpush2.msra.mxu0 0.0
        %4803 = vmatprep.subr.mxu0 0.0
        %4804 = vmatpush2.msra.mxu0 0.0
        %4805 = vmatprep.mubr.f32.mxu0 0.0
        %4806 = vmatmul.mubr.f32.gmra.mxu0 %v4739
        %v4807 = vpop.f32.mrf.mxu0
        %v4808 = vadd.f32 0.0, %v4807
        %v4809 = vpop.f32.mrf.mxu0
        %v4810 = vadd.f32 0.0, %v4809
        %4811 = vdwg.mxu0
        %v4812 = vlaneseq
        %v4813 = vshrl.u32 %v4812, 7
        %v4814 = vsub.s32 0, %v4813
        %v4815 = vrot.slane %v4808, %v4814
        %v4816 = vlaneseq
        %v4817 = vshrl.u32 %v4816, 7
        %v4818 = vsub.s32 0, %v4817
        %v4819 = vrot.slane %v4810, %v4818
        %v4820 = vsub.f32 %v4480, %v4815
        %v4821 = vsub.f32 %v4481, %v4819
        %v4822 = vsub.f32 %v4482, %v4815
        %v4823 = vsub.f32 %v4483, %v4819
        %v4824 = vsub.f32 %v4484, %v4815
        %v4825 = vsub.f32 %v4485, %v4819
        %v4826 = vsub.f32 %v4486, %v4815
        %v4827 = vsub.f32 %v4487, %v4819
        %v4828 = vsub.f32 %v4488, %v4815
        %v4829 = vsub.f32 %v4489, %v4819
        %v4830 = vsub.f32 %v4490, %v4815
        %v4831 = vsub.f32 %v4491, %v4819
        %v4832 = vsub.f32 %v4492, %v4815
        %v4833 = vsub.f32 %v4493, %v4819
        %v4834 = vsub.f32 %v4494, %v4815
        %v4835 = vsub.f32 %v4495, %v4819
        %v4836 = vsub.f32 %v4496, %v4815
        %v4837 = vsub.f32 %v4497, %v4819
        %v4838 = vsub.f32 %v4498, %v4815
        %v4839 = vsub.f32 %v4499, %v4819
        %v4840 = vsub.f32 %v4500, %v4815
        %v4841 = vsub.f32 %v4501, %v4819
        %v4842 = vsub.f32 %v4502, %v4815
        %v4843 = vsub.f32 %v4503, %v4819
        %v4844 = vsub.f32 %v4504, %v4815
        %v4845 = vsub.f32 %v4505, %v4819
        %v4846 = vsub.f32 %v4506, %v4815
        %v4847 = vsub.f32 %v4507, %v4819
        %v4848 = vsub.f32 %v4508, %v4815
        %v4849 = vsub.f32 %v4509, %v4819
        %v4850 = vsub.f32 %v4510, %v4815
        %v4851 = vsub.f32 %v4511, %v4819
        %v4852 = vsub.f32 %v4512, %v4815
        %v4853 = vsub.f32 %v4513, %v4819
        %v4854 = vsub.f32 %v4514, %v4815
        %v4855 = vsub.f32 %v4515, %v4819
        %v4856 = vsub.f32 %v4516, %v4815
        %v4857 = vsub.f32 %v4517, %v4819
        %v4858 = vsub.f32 %v4518, %v4815
        %v4859 = vsub.f32 %v4519, %v4819
        %v4860 = vsub.f32 %v4520, %v4815
        %v4861 = vsub.f32 %v4521, %v4819
        %v4862 = vsub.f32 %v4522, %v4815
        %v4863 = vsub.f32 %v4523, %v4819
        %v4864 = vsub.f32 %v4524, %v4815
        %v4865 = vsub.f32 %v4525, %v4819
        %v4866 = vsub.f32 %v4526, %v4815
        %v4867 = vsub.f32 %v4527, %v4819
        %v4868 = vsub.f32 %v4528, %v4815
        %v4869 = vsub.f32 %v4529, %v4819
        %v4870 = vsub.f32 %v4530, %v4815
        %v4871 = vsub.f32 %v4531, %v4819
        %v4872 = vsub.f32 %v4532, %v4815
        %v4873 = vsub.f32 %v4533, %v4819
        %v4874 = vsub.f32 %v4534, %v4815
        %v4875 = vsub.f32 %v4535, %v4819
        %v4876 = vsub.f32 %v4536, %v4815
        %v4877 = vsub.f32 %v4537, %v4819
        %v4878 = vsub.f32 %v4538, %v4815
        %v4879 = vsub.f32 %v4539, %v4819
        %v4880 = vsub.f32 %v4540, %v4815
        %v4881 = vsub.f32 %v4541, %v4819
        %v4882 = vsub.f32 %v4542, %v4815
        %v4883 = vsub.f32 %v4543, %v4819
        %v4884 = vmul.f32 %v4820, %v4820
        %v4885 = vmul.f32 %v4821, %v4821
        %v4886 = vmul.f32 %v4822, %v4822
        %v4887 = vmul.f32 %v4823, %v4823
        %v4888 = vmul.f32 %v4824, %v4824
        %v4889 = vmul.f32 %v4825, %v4825
        %v4890 = vmul.f32 %v4826, %v4826
        %v4891 = vmul.f32 %v4827, %v4827
        %v4892 = vmul.f32 %v4828, %v4828
        %v4893 = vmul.f32 %v4829, %v4829
        %v4894 = vmul.f32 %v4830, %v4830
        %v4895 = vmul.f32 %v4831, %v4831
        %v4896 = vmul.f32 %v4832, %v4832
        %v4897 = vmul.f32 %v4833, %v4833
        %v4898 = vmul.f32 %v4834, %v4834
        %v4899 = vmul.f32 %v4835, %v4835
        %v4900 = vmul.f32 %v4836, %v4836
        %v4901 = vmul.f32 %v4837, %v4837
        %v4902 = vmul.f32 %v4838, %v4838
        %v4903 = vmul.f32 %v4839, %v4839
        %v4904 = vmul.f32 %v4840, %v4840
        %v4905 = vmul.f32 %v4841, %v4841
        %v4906 = vmul.f32 %v4842, %v4842
        %v4907 = vmul.f32 %v4843, %v4843
        %v4908 = vmul.f32 %v4844, %v4844
        %v4909 = vmul.f32 %v4845, %v4845
        %v4910 = vmul.f32 %v4846, %v4846
        %v4911 = vmul.f32 %v4847, %v4847
        %v4912 = vmul.f32 %v4848, %v4848
        %v4913 = vmul.f32 %v4849, %v4849
        %v4914 = vmul.f32 %v4850, %v4850
        %v4915 = vmul.f32 %v4851, %v4851
        %v4916 = vmul.f32 %v4852, %v4852
        %v4917 = vmul.f32 %v4853, %v4853
        %v4918 = vmul.f32 %v4854, %v4854
        %v4919 = vmul.f32 %v4855, %v4855
        %v4920 = vmul.f32 %v4856, %v4856
        %v4921 = vmul.f32 %v4857, %v4857
        %v4922 = vmul.f32 %v4858, %v4858
        %v4923 = vmul.f32 %v4859, %v4859
        %v4924 = vmul.f32 %v4860, %v4860
        %v4925 = vmul.f32 %v4861, %v4861
        %v4926 = vmul.f32 %v4862, %v4862
        %v4927 = vmul.f32 %v4863, %v4863
        %v4928 = vmul.f32 %v4864, %v4864
        %v4929 = vmul.f32 %v4865, %v4865
        %v4930 = vmul.f32 %v4866, %v4866
        %v4931 = vmul.f32 %v4867, %v4867
        %v4932 = vmul.f32 %v4868, %v4868
        %v4933 = vmul.f32 %v4869, %v4869
        %v4934 = vmul.f32 %v4870, %v4870
        %v4935 = vmul.f32 %v4871, %v4871
        %v4936 = vmul.f32 %v4872, %v4872
        %v4937 = vmul.f32 %v4873, %v4873
        %v4938 = vmul.f32 %v4874, %v4874
        %v4939 = vmul.f32 %v4875, %v4875
        %v4940 = vmul.f32 %v4876, %v4876
        %v4941 = vmul.f32 %v4877, %v4877
        %v4942 = vmul.f32 %v4878, %v4878
        %v4943 = vmul.f32 %v4879, %v4879
        %v4944 = vmul.f32 %v4880, %v4880
        %v4945 = vmul.f32 %v4881, %v4881
        %v4946 = vmul.f32 %v4882, %v4882
        %v4947 = vmul.f32 %v4883, %v4883
        %v4948 = vadd.f32 %v4884, %v4886
        %v4949 = vadd.f32 %v4948, %v4888
        %v4950 = vadd.f32 %v4949, %v4890
        %v4951 = vadd.f32 %v4950, %v4892
        %v4952 = vadd.f32 %v4951, %v4894
        %v4953 = vadd.f32 %v4952, %v4896
        %v4954 = vadd.f32 %v4953, %v4898
        %v4955 = vadd.f32 %v4954, %v4900
        %v4956 = vadd.f32 %v4955, %v4902
        %v4957 = vadd.f32 %v4956, %v4904
        %v4958 = vadd.f32 %v4957, %v4906
        %v4959 = vadd.f32 %v4958, %v4908
        %v4960 = vadd.f32 %v4959, %v4910
        %v4961 = vadd.f32 %v4960, %v4912
        %v4962 = vadd.f32 %v4961, %v4914
        %v4963 = vadd.f32 %v4962, %v4916
        %v4964 = vadd.f32 %v4963, %v4918
        %v4965 = vadd.f32 %v4964, %v4920
        %v4966 = vadd.f32 %v4965, %v4922
        %v4967 = vadd.f32 %v4966, %v4924
        %v4968 = vadd.f32 %v4967, %v4926
        %v4969 = vadd.f32 %v4968, %v4928
        %v4970 = vadd.f32 %v4969, %v4930
        %v4971 = vadd.f32 %v4970, %v4932
        %v4972 = vadd.f32 %v4971, %v4934
        %v4973 = vadd.f32 %v4972, %v4936
        %v4974 = vadd.f32 %v4973, %v4938
        %v4975 = vadd.f32 %v4974, %v4940
        %v4976 = vadd.f32 %v4975, %v4942
        %v4977 = vadd.f32 %v4976, %v4944
        %v4978 = vadd.f32 %v4977, %v4946
        %v4979 = vrot.slane %v4978, 4
        %v4980 = vadd.f32 %v4978, %v4979
        %v4981 = vrot.slane %v4980, 2
        %v4982 = vadd.f32 %v4980, %v4981
        %v4983 = vrot.slane %v4982, 1
        %v4984 = vadd.f32 %v4982, %v4983
        %v4985 = vadd.f32 %v4885, %v4887
        %v4986 = vadd.f32 %v4985, %v4889
        %v4987 = vadd.f32 %v4986, %v4891
        %v4988 = vadd.f32 %v4987, %v4893
        %v4989 = vadd.f32 %v4988, %v4895
        %v4990 = vadd.f32 %v4989, %v4897
        %v4991 = vadd.f32 %v4990, %v4899
        %v4992 = vadd.f32 %v4991, %v4901
        %v4993 = vadd.f32 %v4992, %v4903
        %v4994 = vadd.f32 %v4993, %v4905
        %v4995 = vadd.f32 %v4994, %v4907
        %v4996 = vadd.f32 %v4995, %v4909
        %v4997 = vadd.f32 %v4996, %v4911
        %v4998 = vadd.f32 %v4997, %v4913
        %v4999 = vadd.f32 %v4998, %v4915
        %v5000 = vadd.f32 %v4999, %v4917
        %v5001 = vadd.f32 %v5000, %v4919
        %v5002 = vadd.f32 %v5001, %v4921
        %v5003 = vadd.f32 %v5002, %v4923
        %v5004 = vadd.f32 %v5003, %v4925
        %v5005 = vadd.f32 %v5004, %v4927
        %v5006 = vadd.f32 %v5005, %v4929
        %v5007 = vadd.f32 %v5006, %v4931
        %v5008 = vadd.f32 %v5007, %v4933
        %v5009 = vadd.f32 %v5008, %v4935
        %v5010 = vadd.f32 %v5009, %v4937
        %v5011 = vadd.f32 %v5010, %v4939
        %v5012 = vadd.f32 %v5011, %v4941
        %v5013 = vadd.f32 %v5012, %v4943
        %v5014 = vadd.f32 %v5013, %v4945
        %v5015 = vadd.f32 %v5014, %v4947
        %v5016 = vrot.slane %v5015, 4
        %v5017 = vadd.f32 %v5015, %v5016
        %v5018 = vrot.slane %v5017, 2
        %v5019 = vadd.f32 %v5017, %v5018
        %v5020 = vrot.slane %v5019, 1
        %v5021 = vadd.f32 %v5019, %v5020
        %5022 = vmatprep.subr.mxu0 0.0
        %5023 = vmatpush1.msra.mxu0 %v4633
        %5024 = vmatprep.subr.mxu0 0.0
        %5025 = vmatpush1.msra.mxu0 %v4632
        %5026 = vmatprep.subr.mxu0 0.0
        %5027 = vmatpush1.msra.mxu0 %v4631
        %5028 = vmatprep.subr.mxu0 0.0
        %5029 = vmatpush1.msra.mxu0 %v4630
        %5030 = vmatprep.subr.mxu0 0.0
        %5031 = vmatpush1.msra.mxu0 %v4629
        %5032 = vmatprep.subr.mxu0 0.0
        %5033 = vmatpush1.msra.mxu0 %v4628
        %5034 = vmatprep.subr.mxu0 0.0
        %5035 = vmatpush1.msra.mxu0 %v4627
        %5036 = vmatprep.subr.mxu0 0.0
        %5037 = vmatpush1.msra.mxu0 %v4626
        %5038 = vmatprep.subr.mxu0 0.0
        %5039 = vmatpush1.msra.mxu0 %v4625
        %5040 = vmatprep.subr.mxu0 0.0
        %5041 = vmatpush1.msra.mxu0 %v4624
        %5042 = vmatprep.subr.mxu0 0.0
        %5043 = vmatpush1.msra.mxu0 %v4623
        %5044 = vmatprep.subr.mxu0 0.0
        %5045 = vmatpush1.msra.mxu0 %v4622
        %5046 = vmatprep.subr.mxu0 0.0
        %5047 = vmatpush1.msra.mxu0 %v4621
        %5048 = vmatprep.subr.mxu0 0.0
        %5049 = vmatpush1.msra.mxu0 %v4620
        %5050 = vmatprep.subr.mxu0 0.0
        %5051 = vmatpush1.msra.mxu0 %v4619
        %5052 = vmatprep.subr.mxu0 0.0
        %5053 = vmatpush1.msra.mxu0 %v4618
        %5054 = vmatprep.subr.mxu0 0.0
        %5055 = vmatpush2.msra.mxu0 %v4649
        %5056 = vmatprep.subr.mxu0 0.0
        %5057 = vmatpush2.msra.mxu0 %v4648
        %5058 = vmatprep.subr.mxu0 0.0
        %5059 = vmatpush2.msra.mxu0 %v4647
        %5060 = vmatprep.subr.mxu0 0.0
        %5061 = vmatpush2.msra.mxu0 %v4646
        %5062 = vmatprep.subr.mxu0 0.0
        %5063 = vmatpush2.msra.mxu0 %v4645
        %5064 = vmatprep.subr.mxu0 0.0
        %5065 = vmatpush2.msra.mxu0 %v4644
        %5066 = vmatprep.subr.mxu0 0.0
        %5067 = vmatpush2.msra.mxu0 %v4643
        %5068 = vmatprep.subr.mxu0 0.0
        %5069 = vmatpush2.msra.mxu0 %v4642
        %5070 = vmatprep.subr.mxu0 0.0
        %5071 = vmatpush2.msra.mxu0 %v4641
        %5072 = vmatprep.subr.mxu0 0.0
        %5073 = vmatpush2.msra.mxu0 %v4640
        %5074 = vmatprep.subr.mxu0 0.0
        %5075 = vmatpush2.msra.mxu0 %v4639
        %5076 = vmatprep.subr.mxu0 0.0
        %5077 = vmatpush2.msra.mxu0 %v4638
        %5078 = vmatprep.subr.mxu0 0.0
        %5079 = vmatpush2.msra.mxu0 %v4637
        %5080 = vmatprep.subr.mxu0 0.0
        %5081 = vmatpush2.msra.mxu0 %v4636
        %5082 = vmatprep.subr.mxu0 0.0
        %5083 = vmatpush2.msra.mxu0 %v4635
        %5084 = vmatprep.subr.mxu0 0.0
        %5085 = vmatpush2.msra.mxu0 %v4634
        %5086 = vmatprep.mubr.f32.mxu0 %v5021
        %5087 = vmatmul.mubr.f32.gmra.mxu0 %v4984
        %v5088 = vpop.f32.mrf.mxu0
        %v5089 = vadd.f32 0.0, %v5088
        %v5090 = vpop.f32.mrf.mxu0
        %5091 = vdwg.mxu0
        %v5092 = vmul.f32 %v5089, 0.0009765625
        %v5093 = vadd.f32 %v5092, 1e-05
        %v5094 = vrsqrt.pop %v5093
        %v5096 = vsel %vm4737, %v5094, 0
        %5098 = vmatprep.subr.mxu0 0.0
        %5099 = vmatpush1.msra.mxu0 0.0
        %5100 = vmatprep.subr.mxu0 0.0
        %5101 = vmatpush1.msra.mxu0 0.0
        %5102 = vmatprep.subr.mxu0 0.0
        %5103 = vmatpush1.msra.mxu0 0.0
        %5104 = vmatprep.subr.mxu0 0.0
        %5105 = vmatpush1.msra.mxu0 0.0
        %5106 = vmatprep.subr.mxu0 0.0
        %5107 = vmatpush1.msra.mxu0 0.0
        %5108 = vmatprep.subr.mxu0 0.0
        %5109 = vmatpush1.msra.mxu0 0.0
        %5110 = vmatprep.subr.mxu0 0.0
        %5111 = vmatpush1.msra.mxu0 0.0
        %5112 = vmatprep.subr.mxu0 0.0
        %5113 = vmatpush1.msra.mxu0 0.0
        %5114 = vmatprep.subr.mxu0 %v4736
        %5115 = vmatpush1.msra.mxu0 %v4735
        %5116 = vmatprep.subr.mxu0 %v4734
        %5117 = vmatpush1.msra.mxu0 %v4733
        %5118 = vmatprep.subr.mxu0 %v4732
        %5119 = vmatpush1.msra.mxu0 %v4731
        %5120 = vmatprep.subr.mxu0 %v4730
        %5121 = vmatpush1.msra.mxu0 %v4729
        %5122 = vmatprep.subr.mxu0 %v4728
        %5123 = vmatpush1.msra.mxu0 %v4727
        %5124 = vmatprep.subr.mxu0 %v4726
        %5125 = vmatpush1.msra.mxu0 %v4725
        %5126 = vmatprep.subr.mxu0 %v4724
        %5127 = vmatpush1.msra.mxu0 %v4723
        %5128 = vmatprep.subr.mxu0 %v4722
        %5129 = vmatpush1.msra.mxu0 %v4721
        %5130 = vmatprep.subr.mxu0 0.0
        %5131 = vmatpush2.msra.mxu0 0.0
        %5132 = vmatprep.subr.mxu0 0.0
        %5133 = vmatpush2.msra.mxu0 0.0
        %5134 = vmatprep.subr.mxu0 0.0
        %5135 = vmatpush2.msra.mxu0 0.0
        %5136 = vmatprep.subr.mxu0 0.0
        %5137 = vmatpush2.msra.mxu0 0.0
        %5138 = vmatprep.subr.mxu0 0.0
        %5139 = vmatpush2.msra.mxu0 0.0
        %5140 = vmatprep.subr.mxu0 0.0
        %5141 = vmatpush2.msra.mxu0 0.0
        %5142 = vmatprep.subr.mxu0 0.0
        %5143 = vmatpush2.msra.mxu0 0.0
        %5144 = vmatprep.subr.mxu0 0.0
        %5145 = vmatpush2.msra.mxu0 0.0
        %5146 = vmatprep.subr.mxu0 0.0
        %5147 = vmatpush2.msra.mxu0 0.0
        %5148 = vmatprep.subr.mxu0 0.0
        %5149 = vmatpush2.msra.mxu0 0.0
        %5150 = vmatprep.subr.mxu0 0.0
        %5151 = vmatpush2.msra.mxu0 0.0
        %5152 = vmatprep.subr.mxu0 0.0
        %5153 = vmatpush2.msra.mxu0 0.0
        %5154 = vmatprep.subr.mxu0 0.0
        %5155 = vmatpush2.msra.mxu0 0.0
        %5156 = vmatprep.subr.mxu0 0.0
        %5157 = vmatpush2.msra.mxu0 0.0
        %5158 = vmatprep.subr.mxu0 0.0
        %5159 = vmatpush2.msra.mxu0 0.0
        %5160 = vmatprep.subr.mxu0 0.0
        %5161 = vmatpush2.msra.mxu0 0.0
        %5162 = vmatprep.mubr.f32.mxu0 0.0
        %5163 = vmatmul.mubr.f32.gmra.mxu0 %v5096
        %v5164 = vpop.f32.mrf.mxu0
        %v5165 = vadd.f32 0.0, %v5164
        %v5166 = vpop.f32.mrf.mxu0
        %v5167 = vadd.f32 0.0, %v5166
        %5168 = vdwg.mxu0
        %v5169 = vld [vmem:[%s2] sm:$0x3]
        %v5172 = vcombine.low %v5165, %v5167
        %v5174 = vunpack.c.l.s4 1966171168
        %v5175 = vunpack.c.0.s8 %v5174
        %v5176 = vlaneseq
        %v5177 = vshrl.u32 %v5176, 7
        %v5178 = vsub.s32 %v5175, %v5177
        %v5179 = vrot.slane %v5172, %v5178
        %v5181 = vunpack.c.l.s4 1966171168
        %v5182 = vunpack.c.0.s8 %v5181
        %v5183 = vlaneseq
        %v5184 = vshrl.u32 %v5183, 7
        %v5185 = vsub.s32 %v5182, %v5184
        %v5186 = vrot.slane %v5179, %v5185
        %v5188 = vmul.f32 %v5169, %v5186
        %v5190 = vlaneseq
        %v5191 = vshrl.u32 %v5190, 7
        %v5192 = vsub.s32 0, %v5191
        %v5193 = vrot.slane %v5188, %v5192
        %v5194 = vlaneseq
        %v5195 = vshrl.u32 %v5194, 7
        %v5196 = vsub.s32 1, %v5195
        %v5197 = vrot.slane %v5188, %v5196
        %v5200 = vmul.f32 %v4820, %v5193
        %v5201 = vmul.f32 %v4821, %v5197
        %v5202 = vmul.f32 %v4822, %v5193
        %v5203 = vmul.f32 %v4823, %v5197
        %v5204 = vmul.f32 %v4824, %v5193
        %v5205 = vmul.f32 %v4825, %v5197
        %v5206 = vmul.f32 %v4826, %v5193
        %v5207 = vmul.f32 %v4827, %v5197
        %v5208 = vmul.f32 %v4828, %v5193
        %v5209 = vmul.f32 %v4829, %v5197
        %v5210 = vmul.f32 %v4830, %v5193
        %v5211 = vmul.f32 %v4831, %v5197
        %v5212 = vmul.f32 %v4832, %v5193
        %v5213 = vmul.f32 %v4833, %v5197
        %v5214 = vmul.f32 %v4834, %v5193
        %v5215 = vmul.f32 %v4835, %v5197
        %v5216 = vmul.f32 %v4836, %v5193
        %v5217 = vmul.f32 %v4837, %v5197
        %v5218 = vmul.f32 %v4838, %v5193
        %v5219 = vmul.f32 %v4839, %v5197
        %v5220 = vmul.f32 %v4840, %v5193
        %v5221 = vmul.f32 %v4841, %v5197
        %v5222 = vmul.f32 %v4842, %v5193
        %v5223 = vmul.f32 %v4843, %v5197
        %v5224 = vmul.f32 %v4844, %v5193
        %v5225 = vmul.f32 %v4845, %v5197
        %v5226 = vmul.f32 %v4846, %v5193
        %v5227 = vmul.f32 %v4847, %v5197
        %v5228 = vmul.f32 %v4848, %v5193
        %v5229 = vmul.f32 %v4849, %v5197
        %v5230 = vmul.f32 %v4850, %v5193
        %v5231 = vmul.f32 %v4851, %v5197
        %v5232 = vmul.f32 %v4852, %v5193
        %v5233 = vmul.f32 %v4853, %v5197
        %v5234 = vmul.f32 %v4854, %v5193
        %v5235 = vmul.f32 %v4855, %v5197
        %v5236 = vmul.f32 %v4856, %v5193
        %v5237 = vmul.f32 %v4857, %v5197
        %v5238 = vmul.f32 %v4858, %v5193
        %v5239 = vmul.f32 %v4859, %v5197
        %v5240 = vmul.f32 %v4860, %v5193
        %v5241 = vmul.f32 %v4861, %v5197
        %v5242 = vmul.f32 %v4862, %v5193
        %v5243 = vmul.f32 %v4863, %v5197
        %v5244 = vmul.f32 %v4864, %v5193
        %v5245 = vmul.f32 %v4865, %v5197
        %v5246 = vmul.f32 %v4866, %v5193
        %v5247 = vmul.f32 %v4867, %v5197
        %v5248 = vmul.f32 %v4868, %v5193
        %v5249 = vmul.f32 %v4869, %v5197
        %v5250 = vmul.f32 %v4870, %v5193
        %v5251 = vmul.f32 %v4871, %v5197
        %v5252 = vmul.f32 %v4872, %v5193
        %v5253 = vmul.f32 %v4873, %v5197
        %v5254 = vmul.f32 %v4874, %v5193
        %v5255 = vmul.f32 %v4875, %v5197
        %v5256 = vmul.f32 %v4876, %v5193
        %v5257 = vmul.f32 %v4877, %v5197
        %v5258 = vmul.f32 %v4878, %v5193
        %v5259 = vmul.f32 %v4879, %v5197
        %v5260 = vmul.f32 %v4880, %v5193
        %v5261 = vmul.f32 %v4881, %v5197
        %v5262 = vmul.f32 %v4882, %v5193
        %v5263 = vmul.f32 %v4883, %v5197
        %v5264 = vld [vmem:[%s3] sm:$0x3]
        %v5266 = vlaneseq
        %v5267 = vshrl.u32 %v5266, 7
        %v5268 = vsub.s32 0, %v5267
        %v5269 = vrot.slane %v5264, %v5268
        %v5270 = vlaneseq
        %v5271 = vshrl.u32 %v5270, 7
        %v5272 = vsub.s32 1, %v5271
        %v5273 = vrot.slane %v5264, %v5272
        %v5276 = vadd.f32 %v5200, %v5269
        %v5277 = vadd.f32 %v5201, %v5273
        %v5278 = vadd.f32 %v5202, %v5269
        %v5279 = vadd.f32 %v5203, %v5273
        %v5280 = vadd.f32 %v5204, %v5269
        %v5281 = vadd.f32 %v5205, %v5273
        %v5282 = vadd.f32 %v5206, %v5269
        %v5283 = vadd.f32 %v5207, %v5273
        %v5284 = vadd.f32 %v5208, %v5269
        %v5285 = vadd.f32 %v5209, %v5273
        %v5286 = vadd.f32 %v5210, %v5269
        %v5287 = vadd.f32 %v5211, %v5273
        %v5288 = vadd.f32 %v5212, %v5269
        %v5289 = vadd.f32 %v5213, %v5273
        %v5290 = vadd.f32 %v5214, %v5269
        %v5291 = vadd.f32 %v5215, %v5273
        %v5292 = vadd.f32 %v5216, %v5269
        %v5293 = vadd.f32 %v5217, %v5273
        %v5294 = vadd.f32 %v5218, %v5269
        %v5295 = vadd.f32 %v5219, %v5273
        %v5296 = vadd.f32 %v5220, %v5269
        %v5297 = vadd.f32 %v5221, %v5273
        %v5298 = vadd.f32 %v5222, %v5269
        %v5299 = vadd.f32 %v5223, %v5273
        %v5300 = vadd.f32 %v5224, %v5269
        %v5301 = vadd.f32 %v5225, %v5273
        %v5302 = vadd.f32 %v5226, %v5269
        %v5303 = vadd.f32 %v5227, %v5273
        %v5304 = vadd.f32 %v5228, %v5269
        %v5305 = vadd.f32 %v5229, %v5273
        %v5306 = vadd.f32 %v5230, %v5269
        %v5307 = vadd.f32 %v5231, %v5273
        %v5308 = vadd.f32 %v5232, %v5269
        %v5309 = vadd.f32 %v5233, %v5273
        %v5310 = vadd.f32 %v5234, %v5269
        %v5311 = vadd.f32 %v5235, %v5273
        %v5312 = vadd.f32 %v5236, %v5269
        %v5313 = vadd.f32 %v5237, %v5273
        %v5314 = vadd.f32 %v5238, %v5269
        %v5315 = vadd.f32 %v5239, %v5273
        %v5316 = vadd.f32 %v5240, %v5269
        %v5317 = vadd.f32 %v5241, %v5273
        %v5318 = vadd.f32 %v5242, %v5269
        %v5319 = vadd.f32 %v5243, %v5273
        %v5320 = vadd.f32 %v5244, %v5269
        %v5321 = vadd.f32 %v5245, %v5273
        %v5322 = vadd.f32 %v5246, %v5269
        %v5323 = vadd.f32 %v5247, %v5273
        %v5324 = vadd.f32 %v5248, %v5269
        %v5325 = vadd.f32 %v5249, %v5273
        %v5326 = vadd.f32 %v5250, %v5269
        %v5327 = vadd.f32 %v5251, %v5273
        %v5328 = vadd.f32 %v5252, %v5269
        %v5329 = vadd.f32 %v5253, %v5273
        %v5330 = vadd.f32 %v5254, %v5269
        %v5331 = vadd.f32 %v5255, %v5273
        %v5332 = vadd.f32 %v5256, %v5269
        %v5333 = vadd.f32 %v5257, %v5273
        %v5334 = vadd.f32 %v5258, %v5269
        %v5335 = vadd.f32 %v5259, %v5273
        %v5336 = vadd.f32 %v5260, %v5269
        %v5337 = vadd.f32 %v5261, %v5273
        %v5338 = vadd.f32 %v5262, %v5269
        %v5339 = vadd.f32 %v5263, %v5273
        %v5340 = vmax.f32 %v5276, 0.0
        %v5341 = vmax.f32 %v5277, 0.0
        %v5342 = vmax.f32 %v5278, 0.0
        %v5343 = vmax.f32 %v5279, 0.0
        %v5344 = vmax.f32 %v5280, 0.0
        %v5345 = vmax.f32 %v5281, 0.0
        %v5346 = vmax.f32 %v5282, 0.0
        %v5347 = vmax.f32 %v5283, 0.0
        %v5348 = vmax.f32 %v5284, 0.0
        %v5349 = vmax.f32 %v5285, 0.0
        %v5350 = vmax.f32 %v5286, 0.0
        %v5351 = vmax.f32 %v5287, 0.0
        %v5352 = vmax.f32 %v5288, 0.0
        %v5353 = vmax.f32 %v5289, 0.0
        %v5354 = vmax.f32 %v5290, 0.0
        %v5355 = vmax.f32 %v5291, 0.0
        %v5356 = vmax.f32 %v5292, 0.0
        %v5357 = vmax.f32 %v5293, 0.0
        %v5358 = vmax.f32 %v5294, 0.0
        %v5359 = vmax.f32 %v5295, 0.0
        %v5360 = vmax.f32 %v5296, 0.0
        %v5361 = vmax.f32 %v5297, 0.0
        %v5362 = vmax.f32 %v5298, 0.0
        %v5363 = vmax.f32 %v5299, 0.0
        %v5364 = vmax.f32 %v5300, 0.0
        %v5365 = vmax.f32 %v5301, 0.0
        %v5366 = vmax.f32 %v5302, 0.0
        %v5367 = vmax.f32 %v5303, 0.0
        %v5368 = vmax.f32 %v5304, 0.0
        %v5369 = vmax.f32 %v5305, 0.0
        %v5370 = vmax.f32 %v5306, 0.0
        %v5371 = vmax.f32 %v5307, 0.0
        %v5372 = vmax.f32 %v5308, 0.0
        %v5373 = vmax.f32 %v5309, 0.0
        %v5374 = vmax.f32 %v5310, 0.0
        %v5375 = vmax.f32 %v5311, 0.0
        %v5376 = vmax.f32 %v5312, 0.0
        %v5377 = vmax.f32 %v5313, 0.0
        %v5378 = vmax.f32 %v5314, 0.0
        %v5379 = vmax.f32 %v5315, 0.0
        %v5380 = vmax.f32 %v5316, 0.0
        %v5381 = vmax.f32 %v5317, 0.0
        %v5382 = vmax.f32 %v5318, 0.0
        %v5383 = vmax.f32 %v5319, 0.0
        %v5384 = vmax.f32 %v5320, 0.0
        %v5385 = vmax.f32 %v5321, 0.0
        %v5386 = vmax.f32 %v5322, 0.0
        %v5387 = vmax.f32 %v5323, 0.0
        %v5388 = vmax.f32 %v5324, 0.0
        %v5389 = vmax.f32 %v5325, 0.0
        %v5390 = vmax.f32 %v5326, 0.0
        %v5391 = vmax.f32 %v5327, 0.0
        %v5392 = vmax.f32 %v5328, 0.0
        %v5393 = vmax.f32 %v5329, 0.0
        %v5394 = vmax.f32 %v5330, 0.0
        %v5395 = vmax.f32 %v5331, 0.0
        %v5396 = vmax.f32 %v5332, 0.0
        %v5397 = vmax.f32 %v5333, 0.0
        %v5398 = vmax.f32 %v5334, 0.0
        %v5399 = vmax.f32 %v5335, 0.0
        %v5400 = vmax.f32 %v5336, 0.0
        %v5401 = vmax.f32 %v5337, 0.0
        %v5402 = vmax.f32 %v5338, 0.0
        %v5403 = vmax.f32 %v5339, 0.0
        %5404 = vst [vmem:[%s315] sm:$0xff] %v5340
        %5405 = vst [vmem:[%s315 + $0x8] sm:$0xff] %v5342
        %5406 = vst [vmem:[%s315 + $0x10] sm:$0xff] %v5344
        %5407 = vst [vmem:[%s315 + $0x18] sm:$0xff] %v5346
        %5408 = vst [vmem:[%s315 + $0x20] sm:$0xff] %v5348
        %5409 = vst [vmem:[%s315 + $0x28] sm:$0xff] %v5350
        %5410 = vst [vmem:[%s315 + $0x30] sm:$0xff] %v5352
        %5411 = vst [vmem:[%s315 + $0x38] sm:$0xff] %v5354
        %5412 = vst [vmem:[%s315 + $0x40] sm:$0xff] %v5356
        %5413 = vst [vmem:[%s315 + $0x48] sm:$0xff] %v5358
        %5414 = vst [vmem:[%s315 + $0x50] sm:$0xff] %v5360
        %5415 = vst [vmem:[%s315 + $0x58] sm:$0xff] %v5362
        %5416 = vst [vmem:[%s315 + $0x60] sm:$0xff] %v5364
        %5417 = vst [vmem:[%s315 + $0x68] sm:$0xff] %v5366
        %5418 = vst [vmem:[%s315 + $0x70] sm:$0xff] %v5368
        %5419 = vst [vmem:[%s315 + $0x78] sm:$0xff] %v5370
        %5420 = vst [vmem:[%s315 + $0x80] sm:$0xff] %v5372
        %5421 = vst [vmem:[%s315 + $0x88] sm:$0xff] %v5374
        %5422 = vst [vmem:[%s315 + $0x90] sm:$0xff] %v5376
        %5423 = vst [vmem:[%s315 + $0x98] sm:$0xff] %v5378
        %5424 = vst [vmem:[%s315 + $0xa0] sm:$0xff] %v5380
        %5425 = vst [vmem:[%s315 + $0xa8] sm:$0xff] %v5382
        %5426 = vst [vmem:[%s315 + $0xb0] sm:$0xff] %v5384
        %5427 = vst [vmem:[%s315 + $0xb8] sm:$0xff] %v5386
        %5428 = vst [vmem:[%s315 + $0xc0] sm:$0xff] %v5388
        %5429 = vst [vmem:[%s315 + $0xc8] sm:$0xff] %v5390
        %5430 = vst [vmem:[%s315 + $0xd0] sm:$0xff] %v5392
        %5431 = vst [vmem:[%s315 + $0xd8] sm:$0xff] %v5394
        %5432 = vst [vmem:[%s315 + $0xe0] sm:$0xff] %v5396
        %5433 = vst [vmem:[%s315 + $0xe8] sm:$0xff] %v5398
        %5434 = vst [vmem:[%s315 + $0xf0] sm:$0xff] %v5400
        %5435 = vst [vmem:[%s315 + $0xf8] sm:$0xff] %v5402
        %5436 = vst [vmem:[%s322] sm:$0xff] %v5341
        %5437 = vst [vmem:[%s322 + $0x8] sm:$0xff] %v5343
        %5438 = vst [vmem:[%s322 + $0x10] sm:$0xff] %v5345
        %5439 = vst [vmem:[%s322 + $0x18] sm:$0xff] %v5347
        %5440 = vst [vmem:[%s322 + $0x20] sm:$0xff] %v5349
        %5441 = vst [vmem:[%s322 + $0x28] sm:$0xff] %v5351
        %5442 = vst [vmem:[%s322 + $0x30] sm:$0xff] %v5353
        %5443 = vst [vmem:[%s322 + $0x38] sm:$0xff] %v5355
        %5444 = vst [vmem:[%s322 + $0x40] sm:$0xff] %v5357
        %5445 = vst [vmem:[%s322 + $0x48] sm:$0xff] %v5359
        %5446 = vst [vmem:[%s322 + $0x50] sm:$0xff] %v5361
        %5447 = vst [vmem:[%s322 + $0x58] sm:$0xff] %v5363
        %5448 = vst [vmem:[%s322 + $0x60] sm:$0xff] %v5365
        %5449 = vst [vmem:[%s322 + $0x68] sm:$0xff] %v5367
        %5450 = vst [vmem:[%s322 + $0x70] sm:$0xff] %v5369
        %5451 = vst [vmem:[%s322 + $0x78] sm:$0xff] %v5371
        %5452 = vst [vmem:[%s322 + $0x80] sm:$0xff] %v5373
        %5453 = vst [vmem:[%s322 + $0x88] sm:$0xff] %v5375
        %5454 = vst [vmem:[%s322 + $0x90] sm:$0xff] %v5377
        %5455 = vst [vmem:[%s322 + $0x98] sm:$0xff] %v5379
        %5456 = vst [vmem:[%s322 + $0xa0] sm:$0xff] %v5381
        %5457 = vst [vmem:[%s322 + $0xa8] sm:$0xff] %v5383
        %5458 = vst [vmem:[%s322 + $0xb0] sm:$0xff] %v5385
        %5459 = vst [vmem:[%s322 + $0xb8] sm:$0xff] %v5387
        %5460 = vst [vmem:[%s322 + $0xc0] sm:$0xff] %v5389
        %5461 = vst [vmem:[%s322 + $0xc8] sm:$0xff] %v5391
        %5462 = vst [vmem:[%s322 + $0xd0] sm:$0xff] %v5393
        %5463 = vst [vmem:[%s322 + $0xd8] sm:$0xff] %v5395
        %5464 = vst [vmem:[%s322 + $0xe0] sm:$0xff] %v5397
        %5465 = vst [vmem:[%s322 + $0xe8] sm:$0xff] %v5399
        %5466 = vst [vmem:[%s322 + $0xf0] sm:$0xff] %v5401
        %5467 = vst [vmem:[%s322 + $0xf8] sm:$0xff] %v5403
        %s5468 = sand.u32 %s168, 1
        %s5469 = scalar_lea.sflag [#allocation6], %s5468
        %s5470 = sand.u32 %s168, 1
        %s5471 = smul.addr %s5470, 256
        %s5472 = scalar_lea.vmem [#allocation9], %s5471
        %s5473 = sand.u32 %s194, 1
        %s5474 = scalar_lea.sflag [#allocation11], %s5473
        %s5475 = sand.u32 %s194, 1
        %s5476 = smul.addr %s5475, 256
        %s5477 = scalar_lea.vmem [#allocation10], %s5476
        // Predicated region
        $region53: #{tpu_custom_call.1} parent=43 // pred_check
          %p5478 = pneg %p178
        $region54: #{tpu_custom_call.1} parent=43 // pred_check_branch
          %5480 = sbr.rel (%p5478) target = $region56
        $region55: #{tpu_custom_call.1} parent=43 // pred_region
          %s5482 = ssub.s32 4096, 4096
          %5483 = vsyncadd %s5469, %s5482
          %s5484 = smul.addr %s29, 32
          %s5485 = smul.addr %s5484, 128
          %s5486 = scalar_lea.hbm %s6, %s5485
          %s5487 = sshll.u32 %s5472, 4
          %s5488 = int_to_ptr.vmem [resolvable:$true] %s5487
          %5493 = dma.vmem_to_hbm [thread:$0]  %s5488, 4096, %s5486, %s5469, 128, 128, 8
        $region56: #{tpu_custom_call.1} parent=43 // pred_fallthru
          _
        // Predicated region
        $region57: #{tpu_custom_call.1} parent=43 // pred_check
          %p5494 = pneg %p204
        $region58: #{tpu_custom_call.1} parent=43 // pred_check_branch
          %5496 = sbr.rel (%p5494) target = $region60
        $region59: #{tpu_custom_call.1} parent=43 // pred_region
          %s5498 = ssub.s32 4096, 4096
          %5499 = vsyncadd %s5474, %s5498
          %s5500 = smul.addr %s29, 32
          %s5501 = smul.addr %s5500, 128
          %s5502 = scalar_lea.hbm %s7, %s5501
          %s5503 = sshll.u32 %s5477, 4
          %s5504 = int_to_ptr.vmem [resolvable:$true] %s5503
          %5509 = dma.vmem_to_hbm [thread:$0]  %s5504, 4096, %s5502, %s5474, 128, 128, 8
        $region60: #{tpu_custom_call.1} parent=43 // pred_fallthru
          _
      $region44: #{tpu_custom_call.1} parent=5 // pred_fallthru
        _
      %p5510 = scmp.le.s32.totalorder 2, %s24
      // Predicated region
      $region61: #{tpu_custom_call.1} parent=5 // pred_check
        %p5511 = pneg %p5510
      $region62: #{tpu_custom_call.1} parent=5 // pred_check_branch
        %5513 = sbr.rel (%p5511) target = $region64
      $region63: #{tpu_custom_call.1} parent=5 // pred_region
        %s5514 = ssub.s32 %s24, 2
        // Predicated region
        $region65: #{tpu_custom_call.1} parent=63 // pred_check
          %p5515 = pneg %p184
        $region66: #{tpu_custom_call.1} parent=63 // pred_check_branch
          %5517 = sbr.rel (%p5515) target = $region68
        $region67: #{tpu_custom_call.1} parent=63 // pred_region
          %s5518 = sand.u32 %s169, 1
          %s5519 = scalar_lea.sflag [#allocation6], %s5518
          %s5520 = sand.u32 %s169, 1
          %s5521 = smul.addr %s5520, 256
          %s5522 = scalar_lea.vmem [#allocation9], %s5521
          %5523 = dma.done %s5519, 4096
        $region68: #{tpu_custom_call.1} parent=63 // pred_fallthru
          _
        // Predicated region
        $region69: #{tpu_custom_call.1} parent=63 // pred_check
          %p5524 = pneg %p210
        $region70: #{tpu_custom_call.1} parent=63 // pred_check_branch
          %5526 = sbr.rel (%p5524) target = $region72
        $region71: #{tpu_custom_call.1} parent=63 // pred_region
          %s5527 = sand.u32 %s195, 1
          %s5528 = scalar_lea.sflag [#allocation11], %s5527
          %s5529 = sand.u32 %s195, 1
          %s5530 = smul.addr %s5529, 256
          %s5531 = scalar_lea.vmem [#allocation10], %s5530
          %5532 = dma.done %s5528, 4096
        $region72: #{tpu_custom_call.1} parent=63 // pred_fallthru
          _
      $region64: #{tpu_custom_call.1} parent=5 // pred_fallthru
        _
    $region6: #{tpu_custom_call.1} parent=1 // loop_footer
      %s28 = sadd.s32 1, %s24
    $region7: #{tpu_custom_call.1} parent=1 // loop_footer_branch
      %23 = sbr.rel target = $region3
    $region8: #{tpu_custom_call.1} parent=1 // loop_exit
      _
    %5533 = vsyncpa [#allocation5], 1
    %s5534 = scalar_lea.sflag [#allocation5], 1
    %5535 = vsyncpa %s5534, 1
    %5536 = vsyncpa [#allocation8], 1
    %5537 = vsyncpa [#allocation6], 1
    %s5538 = scalar_lea.sflag [#allocation6], 1
    %5539 = vsyncpa %s5538, 1
    %5540 = vsyncpa [#allocation11], 1
    %s5541 = scalar_lea.sflag [#allocation11], 1
    %5542 = vsyncpa %s5541, 1

</llo_original>
